<compile_context>
chip_gen: v5e
topology: v5e:2x2
jax: 0.10.0
libtpu: 0.0.40
codegen_flags: <defaults>
</compile_context>

<pallas_src>
import functools

import jax
import jax.numpy as jnp
import numpy as np
from jax.experimental import pallas as pl
from jax.experimental.pallas import tpu as pltpu


# ----------------------------------------------------------------------------
# Host-side weight re-packing (done ONCE, outside the jitted forward)
# ----------------------------------------------------------------------------
def _conv3x3_weight_to_s2d(w_oihw):
    """PyTorch (Cout, Cin, 3, 3) conv (stride 1, pad 1) -> (3, 3, 4Cin, 4Cout)
    weight of the equivalent 3x3 conv over the space-to-depth(2) tensor.
    s2d channel order: phase-major (p = ph*2 + pw), full-res channel minor."""
    w = np.asarray(w_oihw, np.float32)
    Cout, Cin, _, _ = w.shape
    ws = np.zeros((3, 3, 4 * Cin, 4 * Cout), np.float32)
    for ph in range(2):
        for pw in range(2):
            p = ph * 2 + pw
            for qh in range(2):
                for qw in range(2):
                    q = qh * 2 + qw
                    for Dy in (-1, 0, 1):
                        dy = 2 * Dy + qh - ph + 1
                        if not 0 <= dy <= 2:
                            continue
                        for Dx in (-1, 0, 1):
                            dx = 2 * Dx + qw - pw + 1
                            if not 0 <= dx <= 2:
                                continue
                            ws[Dy + 1, Dx + 1,
                               q * Cin:(q + 1) * Cin,
                               p * Cout:(p + 1) * Cout] = w[:, :, dy, dx].T
    return ws


def _concat_perm(n_out):
    """Map the kernel's per-pixel channel order [deconv s2d | skip s2d] onto
    the canonical s2d order of the concatenated 2*n_out full-res channels."""
    perm = np.empty(8 * n_out, np.int64)
    for q in range(4):
        for c in range(n_out):
            perm[q * n_out + c] = q * 2 * n_out + c                      # deconv
            perm[4 * n_out + q * n_out + c] = q * 2 * n_out + n_out + c  # skip
    return perm


def _band_weight(ws, W, out_halo):
    """Fold the dx taps into a block-banded GEMM weight.
    ws: (3, 3, ci, co) s2d conv weight.  Returns (3, (W+2)*ci, out_width) where
    out_width = (W+2)*co (zero halo columns) if out_halo else W*co."""
    _, _, ci, co = ws.shape
    out_w = (W + 2) * co if out_halo else W * co
    off = co if out_halo else 0
    Wb = np.zeros((3, (W + 2) * ci, out_w), np.float32)
    for dy in range(3):
        for dx in range(3):
            for x in range(W):
                Wb[dy, (x + dx) * ci:(x + dx + 1) * ci,
                   off + x * co: off + (x + 1) * co] = ws[dy, dx]
    return Wb


def pack_decoder_weights(params, W):
    """One-time host-side packing of all weights / per-channel parameters into
    the lane-dense kernel layouts (review: hoist repacking out of the forward)."""
    n_in, n_out = params["deconv_w"].shape[:2]
    C2, C1 = 4 * n_out, 8 * n_out
    Wp = W + 2
    f32 = np.float32

    # Deconv GEMM weight: block-diagonal, emits the conv1-input row layout
    # (per pixel [deconv-s2d (C2) | zero skip slots (C2)], zero halo columns).
    wd_s2d = np.asarray(params["deconv_w"], f32).transpose(0, 2, 3, 1).reshape(n_in, C2)
    wd = np.zeros((W * n_in, Wp * C1), f32)
    for x in range(W):
        wd[x * n_in:(x + 1) * n_in, (x + 1) * C1:(x + 1) * C1 + C2] = wd_s2d

    ws1 = _conv3x3_weight_to_s2d(np.asarray(params["conv1_w"], f32))
    ws1 = ws1[:, :, _concat_perm(n_out), :]
    w1 = _band_weight(ws1, W, out_halo=True)    # (3, Wp*C1, Wp*C2)
    ws2 = _conv3x3_weight_to_s2d(np.asarray(params["conv2_w"], f32))
    w2 = _band_weight(ws2, W, out_halo=False)   # (3, Wp*C2, W*C2)

    # Single parameter slab: rows 0..2 = conv1 bias / bn1 gamma / bn1 beta at
    # width Wp*C2 (zero halo lanes), rows 3..5 = conv2 bias / bn2 gamma / bn2
    # beta at width W*C2.
    def lane_tile(v, width, halo):
        t = np.tile(np.asarray(v, f32), width // n_out)
        if halo:
            t[:C2] = 0.0
            t[-C2:] = 0.0
        return t

    prm = np.zeros((8, Wp * C2), f32)
    prm[0, :] = lane_tile(params["conv1_b"], Wp * C2, True)
    prm[1, :] = lane_tile(params["bn1_g"], Wp * C2, True)
    prm[2, :] = lane_tile(params["bn1_b"], Wp * C2, True)
    prm[3, :W * C2] = lane_tile(params["conv2_b"], W * C2, False)
    prm[4, :W * C2] = lane_tile(params["bn2_g"], W * C2, False)
    prm[5, :W * C2] = lane_tile(params["bn2_b"], W * C2, False)

    # 0/1 class matrices for the BN reduce+broadcast over (pixel, phase) lane
    # groups; halo lanes masked out for the halo-carrying width.
    def class_matrix(width, halo):
        idx = np.arange(width)
        m = (idx[:, None] % n_out) == (idx[None, :] % n_out)
        if halo:
            interior = (idx >= C2) & (idx < width - C2)
            m = m & interior[:, None] & interior[None, :]
        return m.astype(f32)

    a1 = class_matrix(Wp * C2, True)
    a2 = class_matrix(W * C2, False)

    bias_s2d = np.tile(np.asarray(params["deconv_b"], f32), 4)   # (C2,)

    bf16 = jnp.bfloat16
    return {
        "wd": jnp.asarray(wd, bf16),
        "w1": jnp.asarray(w1, bf16),
        "w2": jnp.asarray(w2, bf16),
        "prm": jnp.asarray(prm),
        "a1": jnp.asarray(a1),
        "a2": jnp.asarray(a2),
        "deconv_bias_s2d": jnp.asarray(bias_s2d),
    }


# ----------------------------------------------------------------------------
# The fused Pallas kernel
# ----------------------------------------------------------------------------
def _decoder_kernel(xw_ref, ea_ref, wd_ref, w1_ref, w2_ref, a1_ref, a2_ref,
                    prm_ref, out_ref, pad1_ref, pad2_ref,
                    *, N, H, W, n_out, eps):
    f32, bf16 = jnp.float32, jnp.bfloat16
    C2 = 4 * n_out
    C1 = 8 * n_out
    Wp = W + 2
    R = H + 2                       # padded rows per image
    w_in1 = Wp * C1                 # pad1 row width (conv1 input)
    w_mid = Wp * C2                 # conv1 output / pad2 row width
    w_out = W * C2                  # conv2 output width
    inv_cnt = 1.0 / (4.0 * N * H * W)   # BN reduces over N*(2H)*(2W) pixels

    # ---- ConvTranspose2d(k=2,s=2): one lane-dense GEMM whose columns already
    #      form the conv1-input rows; ea carries skip + deconv bias + zero halo.
    y = jnp.dot(xw_ref[...], wd_ref[...], preferred_element_type=f32) + ea_ref[...]

    # ---- fill pad1: zero only the 1-row halos, full-width interior writes.
    zrow1 = jnp.zeros((1, w_in1), f32)
    for n in range(N):
        pad1_ref[n * R: n * R + 1, :] = zrow1
        pad1_ref[n * R + R - 1: n * R + R, :] = zrow1
        pad1_ref[n * R + 1: n * R + 1 + H, :] = y[n * H:(n + 1) * H, :]

    def conv_rows(pad_ref, w_ref, n, out_w):
        # 3x3 conv = 3 long-K GEMMs (one per kernel row); the dx taps live in
        # the block-banded weight, so every operand is a full-width lane-dense
        # row slab (no strided / masked patch copies).
        r0 = n * R
        acc = jnp.zeros((H, out_w), f32)
        for dy in range(3):
            lhs = pad_ref[r0 + dy: r0 + dy + H, :].astype(bf16)
            acc = acc + jnp.dot(lhs, w_ref[dy], preferred_element_type=f32)
        return acc

    def batchnorm(hs, a_ref, gamma, beta):
        # Training-mode BN (biased variance).  Per-full-res-channel reduce +
        # broadcast across the (pixel, phase) lane groups via one tiny f32
        # matmul with the constant 0/1 class matrix; everything lane-dense.
        s = hs[0].sum(axis=0, keepdims=True)
        for h in hs[1:]:
            s = s + h.sum(axis=0, keepdims=True)
        mean = jnp.dot(s, a_ref[...], preferred_element_type=f32) * inv_cnt
        ds, ss = [], None
        for h in hs:
            d = h - mean
            ds.append(d)
            q = (d * d).sum(axis=0, keepdims=True)
            ss = q if ss is None else ss + q
        var = jnp.dot(ss, a_ref[...], preferred_element_type=f32) * inv_cnt
        scale = gamma * jax.lax.rsqrt(var + eps)
        return [d * scale + beta for d in ds]

    b1 = prm_ref[0:1, :]
    g1 = prm_ref[1:2, :]
    bb1 = prm_ref[2:3, :]
    b2 = prm_ref[3:4, 0:w_out]
    g2 = prm_ref[4:5, 0:w_out]
    bb2 = prm_ref[5:6, 0:w_out]

    # ---- conv1 -> +bias -> ReLU (per image), BN1 across images --------------
    h1 = [jnp.maximum(conv_rows(pad1_ref, w1_ref, n, w_mid) + b1, 0.0)
          for n in range(N)]
    h1 = batchnorm(h1, a1_ref, g1, bb1)

    # ---- fill pad2 (BN1 output already carries zero halo columns) -----------
    zrow2 = jnp.zeros((1, w_mid), f32)
    for n in range(N):
        pad2_ref[n * R: n * R + 1, :] = zrow2
        pad2_ref[n * R + R - 1: n * R + R, :] = zrow2
        pad2_ref[n * R + 1: n * R + 1 + H, :] = h1[n]

    # ---- conv2 -> +bias -> ReLU -> BN2, lane-dense final store --------------
    h2 = [jnp.maximum(conv_rows(pad2_ref, w2_ref, n, w_out) + b2, 0.0)
          for n in range(N)]
    h2 = batchnorm(h2, a2_ref, g2, bb2)

    for n in range(N):
        out_ref[n * H:(n + 1) * H, :] = h2[n]


def _full_spec(shape):
    zeros = (0,) * len(shape)
    return pl.BlockSpec(shape, lambda i, _z=zeros: _z)


# ----------------------------------------------------------------------------
# Decoder forward (single fused pallas_call; jit-able, weights pre-packed)
# ----------------------------------------------------------------------------
def decoder_forward(packed, x_nchw, e_nchw):
    N, n_in, H, W = x_nchw.shape
    n_out = e_nchw.shape[1]
    assert e_nchw.shape == (N, n_out, 2 * H, 2 * W)
    C2, C1 = 4 * n_out, 8 * n_out
    Wp = W + 2
    f32, bf16 = jnp.float32, jnp.bfloat16

    # ---- input layout: lane-dense row slabs (cheap XLA passes, inputs only) --
    xw = jnp.transpose(x_nchw, (0, 2, 3, 1)).reshape(N * H, W * n_in).astype(bf16)
    e_s2d = (e_nchw.astype(f32)
             .reshape(N, n_out, H, 2, W, 2)
             .transpose(0, 2, 4, 3, 5, 1)            # (N, H, W, qh, qw, c)
             .reshape(N, H, W, C2))
    inter = jnp.concatenate(
        [jnp.broadcast_to(packed["deconv_bias_s2d"], (N, H, W, C2)), e_s2d], axis=-1)
    ea = jnp.pad(inter, ((0, 0), (0, 0), (1, 1), (0, 0))).reshape(N * H, Wp * C1)

    kernel = functools.partial(_decoder_kernel, N=N, H=H, W=W, n_out=n_out, eps=1e-5)
    ins = [xw, ea, packed["wd"], packed["w1"], packed["w2"],
           packed["a1"], packed["a2"], packed["prm"]]

    out = pl.pallas_call(
        kernel,
        out_shape=jax.ShapeDtypeStruct((N * H, W * C2), f32),
        grid=(1,),
        in_specs=[_full_spec(a.shape) for a in ins],
        out_specs=_full_spec((N * H, W * C2)),
        scratch_shapes=[
            pltpu.VMEM((N * (H + 2), Wp * C1), f32),   # padded conv1 input rows
            pltpu.VMEM((N * (H + 2), Wp * C2), f32),   # padded conv2 input rows
        ],
        compiler_params=pltpu.CompilerParams(dimension_semantics=("arbitrary",)),
    )(*ins)

    # ---- depth-to-space + NCHW: single XLA transpose on the final output ----
    out = (out.reshape(N, H, W, 2, 2, n_out)
           .transpose(0, 5, 1, 3, 2, 4)               # (N, c, H, kh, W, kw)
           .reshape(N, n_out, 2 * H, 2 * W))
    return out


# ----------------------------------------------------------------------------
# Pure-JAX reference (sanity check, f32 HIGHEST precision)
# ----------------------------------------------------------------------------
def decoder_reference(params, x, e, eps=1e-5):
    w_eq = jnp.flip(params["deconv_w"], axis=(2, 3)).transpose(1, 0, 2, 3)
    y = jax.lax.conv_general_dilated(
        x, w_eq, window_strides=(1, 1), padding=((1, 1), (1, 1)),
        lhs_dilation=(2, 2), dimension_numbers=("NCHW", "OIHW", "NCHW"),
        precision=jax.lax.Precision.HIGHEST)
    y = y + params["deconv_b"][None, :, None, None]
    h = jnp.concatenate([y, e], axis=1)

    def conv3(t, w, b):
        o = jax.lax.conv_general_dilated(
            t, w, (1, 1), ((1, 1), (1, 1)),
            dimension_numbers=("NCHW", "OIHW", "NCHW"),
            precision=jax.lax.Precision.HIGHEST)
        return o + b[None, :, None, None]

    def bn(t, g, b):
        mean = jnp.mean(t, axis=(0, 2, 3), keepdims=True)
        var = jnp.mean(jnp.square(t - mean), axis=(0, 2, 3), keepdims=True)
        return (t - mean) * jax.lax.rsqrt(var + eps) * g[None, :, None, None] \
               + b[None, :, None, None]

    h = bn(jnp.maximum(conv3(h, params["conv1_w"], params["conv1_b"]), 0.0),
           params["bn1_g"], params["bn1_b"])
    h = bn(jnp.maximum(conv3(h, params["conv2_w"], params["conv2_b"]), 0.0),
           params["bn2_g"], params["bn2_b"])
    return h


# ----------------------------------------------------------------------------
# Deterministic parameter init + driver
# ----------------------------------------------------------------------------
def init_params(key, n_in, n_out):
    ks = jax.random.split(key, 6)
    f32 = jnp.float32
    return {
        "deconv_w": 0.1 * jax.random.normal(ks[0], (n_in, n_out, 2, 2), f32),
        "deconv_b": 0.1 * jax.random.normal(ks[1], (n_out,), f32),
        "conv1_w": 0.1 * jax.random.normal(ks[2], (n_out, 2 * n_out, 3, 3), f32),
        "conv1_b": 0.1 * jax.random.normal(ks[3], (n_out,), f32),
        "bn1_g": jnp.ones((n_out,), f32),
        "bn1_b": jnp.zeros((n_out,), f32),
        "conv2_w": 0.1 * jax.random.normal(ks[4], (n_out, n_out, 3, 3), f32),
        "conv2_b": 0.1 * jax.random.normal(ks[5], (n_out,), f32),
        "bn2_g": jnp.ones((n_out,), f32),
        "bn2_b": jnp.zeros((n_out,), f32),
    }


if __name__ == "__main__":
    n_in, n_out = 8, 4
    N, H, W = 2, 16, 16

    key = jax.random.PRNGKey(0)
    kx, ke, kp = jax.random.split(key, 3)
    x = jax.random.normal(kx, (N, n_in, H, W), jnp.float32)            # NCHW
    e = jax.random.normal(ke, (N, n_out, 2 * H, 2 * W), jnp.float32)   # NCHW skip
    params = init_params(kp, n_in, n_out)

    packed = pack_decoder_weights(params, W)          # host repack: ONCE
    fwd = jax.jit(decoder_forward)

    out = jax.block_until_ready(fwd(packed, x, e))
    assert out.shape == (N, n_out, 2 * H, 2 * W)

    ref = jax.block_until_ready(decoder_reference(params, x, e))
    # Kernel feeds the MXU bf16 operands (f32 accumulation / BN stats); the
    # reference runs f32 at HIGHEST precision, so tolerance is sized for bf16
    # operand rounding through two conv layers + BN.
    np.testing.assert_allclose(np.asarray(out), np.asarray(ref),
                               rtol=2e-2, atol=5e-2)

    print("KERNEL_OK")
</pallas_src>

<mosaic_0001>
module attributes {stable_mosaic.version = 11 : i64} {
  func.func @_decoder_kernel(%arg0: i32, %arg1: memref<32x128xbf16, #tpu.memory_space<vmem>>, %arg2: memref<32x576xf32, #tpu.memory_space<vmem>>, %arg3: memref<128x576xbf16, #tpu.memory_space<vmem>>, %arg4: memref<3x576x288xbf16, #tpu.memory_space<vmem>>, %arg5: memref<3x288x256xbf16, #tpu.memory_space<vmem>>, %arg6: memref<288x288xf32, #tpu.memory_space<vmem>>, %arg7: memref<256x256xf32, #tpu.memory_space<vmem>>, %arg8: memref<8x288xf32, #tpu.memory_space<vmem>>, %arg9: memref<32x256xf32, #tpu.memory_space<vmem>>, %arg10: memref<36x576xf32, #tpu.memory_space<vmem>>, %arg11: memref<36x288xf32, #tpu.memory_space<vmem>>) attributes {dimension_semantics = [#tpu.dimension_semantics<arbitrary>], iteration_bounds = array<i64: 1>, scalar_prefetch = 0 : i64, scratch_operands = 2 : i64, tpu.core_type = #tpu.core_type<tc>, window_params = [{pipeline_mode = #tpu.pipeline_mode<synchronous>, transform_indices = @transform_0, window_bounds = array<i64: 32, 128>}, {pipeline_mode = #tpu.pipeline_mode<synchronous>, transform_indices = @transform_1, window_bounds = array<i64: 32, 576>}, {pipeline_mode = #tpu.pipeline_mode<synchronous>, transform_indices = @transform_2, window_bounds = array<i64: 128, 576>}, {pipeline_mode = #tpu.pipeline_mode<synchronous>, transform_indices = @transform_3, window_bounds = array<i64: 3, 576, 288>}, {pipeline_mode = #tpu.pipeline_mode<synchronous>, transform_indices = @transform_4, window_bounds = array<i64: 3, 288, 256>}, {pipeline_mode = #tpu.pipeline_mode<synchronous>, transform_indices = @transform_5, window_bounds = array<i64: 288, 288>}, {pipeline_mode = #tpu.pipeline_mode<synchronous>, transform_indices = @transform_6, window_bounds = array<i64: 256, 256>}, {pipeline_mode = #tpu.pipeline_mode<synchronous>, transform_indices = @transform_7, window_bounds = array<i64: 8, 288>}, {pipeline_mode = #tpu.pipeline_mode<synchronous>, transform_indices = @transform_8, window_bounds = array<i64: 32, 256>}]} {
    %c0 = arith.constant 0 : index
    %c0_0 = arith.constant 0 : index
    %0 = vector.load %arg1[%c0, %c0_0] : memref<32x128xbf16, #tpu.memory_space<vmem>>, vector<32x128xbf16>
    %c0_1 = arith.constant 0 : index
    %c0_2 = arith.constant 0 : index
    %1 = vector.load %arg3[%c0_1, %c0_2] : memref<128x576xbf16, #tpu.memory_space<vmem>>, vector<128x576xbf16>
    %cst = arith.constant dense<0.000000e+00> : vector<32x576xf32>
    %2 = tpu.matmul %0, %1, %cst {dimension_numbers = #tpu.dot_dimension_numbers<[1], [0], [0], [1], [0, 0, 1, 1], [], []>} : vector<32x128xbf16>, vector<128x576xbf16>, vector<32x576xf32> -> vector<32x576xf32>
    %c0_3 = arith.constant 0 : index
    %c0_4 = arith.constant 0 : index
    %3 = vector.load %arg2[%c0_3, %c0_4] : memref<32x576xf32, #tpu.memory_space<vmem>>, vector<32x576xf32>
    %4 = arith.addf %2, %3 : vector<32x576xf32>
    %cst_5 = arith.constant 0.000000e+00 : f32
    %5 = vector.broadcast %cst_5 : f32 to vector<1x576xf32>
    %c0_6 = arith.constant 0 : index
    %c0_7 = arith.constant 0 : index
    %6 = vector.load %arg10[%c0_6, %c0_7] : memref<36x576xf32, #tpu.memory_space<vmem>>, vector<1x576xf32>
    tpu.vector_store %arg10[%c0_6, %c0_7], %5 {strides = array<i32>} : memref<36x576xf32, #tpu.memory_space<vmem>>, vector<1x576xf32>,
    %c17 = arith.constant 17 : index
    %c0_8 = arith.constant 0 : index
    %7 = vector.load %arg10[%c17, %c0_8] : memref<36x576xf32, #tpu.memory_space<vmem>>, vector<1x576xf32>
    tpu.vector_store %arg10[%c17, %c0_8], %5 {strides = array<i32>} : memref<36x576xf32, #tpu.memory_space<vmem>>, vector<1x576xf32>,
    %8 = vector.extract_strided_slice %4 {offsets = [0, 0], sizes = [16, 576], strides = [1, 1]} : vector<32x576xf32> to vector<16x576xf32>
    %c1 = arith.constant 1 : index
    %c0_9 = arith.constant 0 : index
    %9 = vector.load %arg10[%c1, %c0_9] : memref<36x576xf32, #tpu.memory_space<vmem>>, vector<16x576xf32>
    tpu.vector_store %arg10[%c1, %c0_9], %8 {strides = array<i32>} : memref<36x576xf32, #tpu.memory_space<vmem>>, vector<16x576xf32>,
    %c18 = arith.constant 18 : index
    %c0_10 = arith.constant 0 : index
    %10 = vector.load %arg10[%c18, %c0_10] : memref<36x576xf32, #tpu.memory_space<vmem>>, vector<1x576xf32>
    tpu.vector_store %arg10[%c18, %c0_10], %5 {strides = array<i32>} : memref<36x576xf32, #tpu.memory_space<vmem>>, vector<1x576xf32>,
    %c35 = arith.constant 35 : index
    %c0_11 = arith.constant 0 : index
    %11 = vector.load %arg10[%c35, %c0_11] : memref<36x576xf32, #tpu.memory_space<vmem>>, vector<1x576xf32>
    tpu.vector_store %arg10[%c35, %c0_11], %5 {strides = array<i32>} : memref<36x576xf32, #tpu.memory_space<vmem>>, vector<1x576xf32>,
    %12 = vector.extract_strided_slice %4 {offsets = [16, 0], sizes = [16, 576], strides = [1, 1]} : vector<32x576xf32> to vector<16x576xf32>
    %c19 = arith.constant 19 : index
    %c0_12 = arith.constant 0 : index
    %13 = vector.load %arg10[%c19, %c0_12] : memref<36x576xf32, #tpu.memory_space<vmem>>, vector<16x576xf32>
    tpu.vector_store %arg10[%c19, %c0_12], %12 {strides = array<i32>} : memref<36x576xf32, #tpu.memory_space<vmem>>, vector<16x576xf32>,
    %c0_13 = arith.constant 0 : index
    %c0_14 = arith.constant 0 : index
    %14 = vector.load %arg8[%c0_13, %c0_14] : memref<8x288xf32, #tpu.memory_space<vmem>>, vector<1x288xf32>
    %c1_15 = arith.constant 1 : index
    %c0_16 = arith.constant 0 : index
    %15 = vector.load %arg8[%c1_15, %c0_16] : memref<8x288xf32, #tpu.memory_space<vmem>>, vector<1x288xf32>
    %c2 = arith.constant 2 : index
    %c0_17 = arith.constant 0 : index
    %16 = vector.load %arg8[%c2, %c0_17] : memref<8x288xf32, #tpu.memory_space<vmem>>, vector<1x288xf32>
    %c3 = arith.constant 3 : index
    %c0_18 = arith.constant 0 : index
    %17 = vector.load %arg8[%c3, %c0_18] : memref<8x288xf32, #tpu.memory_space<vmem>>, vector<1x256xf32>
    %c4 = arith.constant 4 : index
    %c0_19 = arith.constant 0 : index
    %18 = vector.load %arg8[%c4, %c0_19] : memref<8x288xf32, #tpu.memory_space<vmem>>, vector<1x256xf32>
    %c5 = arith.constant 5 : index
    %c0_20 = arith.constant 0 : index
    %19 = vector.load %arg8[%c5, %c0_20] : memref<8x288xf32, #tpu.memory_space<vmem>>, vector<1x256xf32>
    %cst_21 = arith.constant 0.000000e+00 : f32
    %20 = vector.broadcast %cst_21 : f32 to vector<16x288xf32>
    %c0_22 = arith.constant 0 : index
    %c0_23 = arith.constant 0 : index
    %21 = vector.load %arg10[%c0_22, %c0_23] : memref<36x576xf32, #tpu.memory_space<vmem>>, vector<16x576xf32>
    %22 = arith.truncf %21 : vector<16x576xf32> to vector<16x576xbf16>
    %c0_24 = arith.constant 0 : index
    %c0_25 = arith.constant 0 : index
    %c0_26 = arith.constant 0 : index
    %23 = vector.load %arg4[%c0_24, %c0_25, %c0_26] : memref<3x576x288xbf16, #tpu.memory_space<vmem>>, vector<1x576x288xbf16>
    %24 = vector.shape_cast %23 : vector<1x576x288xbf16> to vector<576x288xbf16>
    %cst_27 = arith.constant dense<0.000000e+00> : vector<16x288xf32>
    %25 = tpu.matmul %22, %24, %cst_27 {dimension_numbers = #tpu.dot_dimension_numbers<[1], [0], [0], [1], [0, 0, 1, 1], [], []>} : vector<16x576xbf16>, vector<576x288xbf16>, vector<16x288xf32> -> vector<16x288xf32>
    %26 = arith.addf %20, %25 : vector<16x288xf32>
    %c1_28 = arith.constant 1 : index
    %c0_29 = arith.constant 0 : index
    %27 = vector.load %arg10[%c1_28, %c0_29] : memref<36x576xf32, #tpu.memory_space<vmem>>, vector<16x576xf32>
    %28 = arith.truncf %27 : vector<16x576xf32> to vector<16x576xbf16>
    %c1_30 = arith.constant 1 : index
    %c0_31 = arith.constant 0 : index
    %c0_32 = arith.constant 0 : index
    %29 = vector.load %arg4[%c1_30, %c0_31, %c0_32] : memref<3x576x288xbf16, #tpu.memory_space<vmem>>, vector<1x576x288xbf16>
    %30 = vector.shape_cast %29 : vector<1x576x288xbf16> to vector<576x288xbf16>
    %cst_33 = arith.constant dense<0.000000e+00> : vector<16x288xf32>
    %31 = tpu.matmul %28, %30, %cst_33 {dimension_numbers = #tpu.dot_dimension_numbers<[1], [0], [0], [1], [0, 0, 1, 1], [], []>} : vector<16x576xbf16>, vector<576x288xbf16>, vector<16x288xf32> -> vector<16x288xf32>
    %32 = arith.addf %26, %31 : vector<16x288xf32>
    %c2_34 = arith.constant 2 : index
    %c0_35 = arith.constant 0 : index
    %33 = vector.load %arg10[%c2_34, %c0_35] : memref<36x576xf32, #tpu.memory_space<vmem>>, vector<16x576xf32>
    %34 = arith.truncf %33 : vector<16x576xf32> to vector<16x576xbf16>
    %c2_36 = arith.constant 2 : index
    %c0_37 = arith.constant 0 : index
    %c0_38 = arith.constant 0 : index
    %35 = vector.load %arg4[%c2_36, %c0_37, %c0_38] : memref<3x576x288xbf16, #tpu.memory_space<vmem>>, vector<1x576x288xbf16>
    %36 = vector.shape_cast %35 : vector<1x576x288xbf16> to vector<576x288xbf16>
    %cst_39 = arith.constant dense<0.000000e+00> : vector<16x288xf32>
    %37 = tpu.matmul %34, %36, %cst_39 {dimension_numbers = #tpu.dot_dimension_numbers<[1], [0], [0], [1], [0, 0, 1, 1], [], []>} : vector<16x576xbf16>, vector<576x288xbf16>, vector<16x288xf32> -> vector<16x288xf32>
    %38 = arith.addf %32, %37 : vector<16x288xf32>
    %39 = vector.broadcast %14 : vector<1x288xf32> to vector<16x288xf32>
    %40 = arith.addf %38, %39 : vector<16x288xf32>
    %cst_40 = arith.constant 0.000000e+00 : f32
    %41 = vector.broadcast %cst_40 : f32 to vector<16x288xf32>
    %42 = arith.maximumf %40, %41 : vector<16x288xf32>
    %cst_41 = arith.constant 0.000000e+00 : f32
    %43 = vector.broadcast %cst_41 : f32 to vector<16x288xf32>
    %c18_42 = arith.constant 18 : index
    %c0_43 = arith.constant 0 : index
    %44 = vector.load %arg10[%c18_42, %c0_43] : memref<36x576xf32, #tpu.memory_space<vmem>>, vector<16x576xf32>
    %45 = arith.truncf %44 : vector<16x576xf32> to vector<16x576xbf16>
    %c0_44 = arith.constant 0 : index
    %c0_45 = arith.constant 0 : index
    %c0_46 = arith.constant 0 : index
    %46 = vector.load %arg4[%c0_44, %c0_45, %c0_46] : memref<3x576x288xbf16, #tpu.memory_space<vmem>>, vector<1x576x288xbf16>
    %47 = vector.shape_cast %46 : vector<1x576x288xbf16> to vector<576x288xbf16>
    %cst_47 = arith.constant dense<0.000000e+00> : vector<16x288xf32>
    %48 = tpu.matmul %45, %47, %cst_47 {dimension_numbers = #tpu.dot_dimension_numbers<[1], [0], [0], [1], [0, 0, 1, 1], [], []>} : vector<16x576xbf16>, vector<576x288xbf16>, vector<16x288xf32> -> vector<16x288xf32>
    %49 = arith.addf %43, %48 : vector<16x288xf32>
    %c19_48 = arith.constant 19 : index
    %c0_49 = arith.constant 0 : index
    %50 = vector.load %arg10[%c19_48, %c0_49] : memref<36x576xf32, #tpu.memory_space<vmem>>, vector<16x576xf32>
    %51 = arith.truncf %50 : vector<16x576xf32> to vector<16x576xbf16>
    %c1_50 = arith.constant 1 : index
    %c0_51 = arith.constant 0 : index
    %c0_52 = arith.constant 0 : index
    %52 = vector.load %arg4[%c1_50, %c0_51, %c0_52] : memref<3x576x288xbf16, #tpu.memory_space<vmem>>, vector<1x576x288xbf16>
    %53 = vector.shape_cast %52 : vector<1x576x288xbf16> to vector<576x288xbf16>
    %cst_53 = arith.constant dense<0.000000e+00> : vector<16x288xf32>
    %54 = tpu.matmul %51, %53, %cst_53 {dimension_numbers = #tpu.dot_dimension_numbers<[1], [0], [0], [1], [0, 0, 1, 1], [], []>} : vector<16x576xbf16>, vector<576x288xbf16>, vector<16x288xf32> -> vector<16x288xf32>
    %55 = arith.addf %49, %54 : vector<16x288xf32>
    %c20 = arith.constant 20 : index
    %c0_54 = arith.constant 0 : index
    %56 = vector.load %arg10[%c20, %c0_54] : memref<36x576xf32, #tpu.memory_space<vmem>>, vector<16x576xf32>
    %57 = arith.truncf %56 : vector<16x576xf32> to vector<16x576xbf16>
    %c2_55 = arith.constant 2 : index
    %c0_56 = arith.constant 0 : index
    %c0_57 = arith.constant 0 : index
    %58 = vector.load %arg4[%c2_55, %c0_56, %c0_57] : memref<3x576x288xbf16, #tpu.memory_space<vmem>>, vector<1x576x288xbf16>
    %59 = vector.shape_cast %58 : vector<1x576x288xbf16> to vector<576x288xbf16>
    %cst_58 = arith.constant dense<0.000000e+00> : vector<16x288xf32>
    %60 = tpu.matmul %57, %59, %cst_58 {dimension_numbers = #tpu.dot_dimension_numbers<[1], [0], [0], [1], [0, 0, 1, 1], [], []>} : vector<16x576xbf16>, vector<576x288xbf16>, vector<16x288xf32> -> vector<16x288xf32>
    %61 = arith.addf %55, %60 : vector<16x288xf32>
    %62 = vector.broadcast %14 : vector<1x288xf32> to vector<16x288xf32>
    %63 = arith.addf %61, %62 : vector<16x288xf32>
    %cst_59 = arith.constant 0.000000e+00 : f32
    %64 = vector.broadcast %cst_59 : f32 to vector<16x288xf32>
    %65 = arith.maximumf %63, %64 : vector<16x288xf32>
    %cst_60 = arith.constant dense<0.000000e+00> : vector<288xf32>
    %66 = vector.multi_reduction <add>, %42, %cst_60 [0] : vector<16x288xf32> to vector<288xf32>
    %67 = vector.shape_cast %66 : vector<288xf32> to vector<1x288xf32>
    %cst_61 = arith.constant dense<0.000000e+00> : vector<288xf32>
    %68 = vector.multi_reduction <add>, %65, %cst_61 [0] : vector<16x288xf32> to vector<288xf32>
    %69 = vector.shape_cast %68 : vector<288xf32> to vector<1x288xf32>
    %70 = arith.addf %67, %69 : vector<1x288xf32>
    %c0_62 = arith.constant 0 : index
    %c0_63 = arith.constant 0 : index
    %71 = vector.load %arg6[%c0_62, %c0_63] : memref<288x288xf32, #tpu.memory_space<vmem>>, vector<288x288xf32>
    %cst_64 = arith.constant dense<0.000000e+00> : vector<1x288xf32>
    %72 = tpu.matmul %70, %71, %cst_64 {dimension_numbers = #tpu.dot_dimension_numbers<[1], [0], [0], [1], [0, 0, 1, 1], [], []>} : vector<1x288xf32>, vector<288x288xf32>, vector<1x288xf32> -> vector<1x288xf32>
    %cst_65 = arith.constant 4.8828125E-4 : f32
    %73 = vector.broadcast %cst_65 : f32 to vector<1x288xf32>
    %74 = arith.mulf %72, %73 : vector<1x288xf32>
    %75 = vector.broadcast %74 : vector<1x288xf32> to vector<16x288xf32>
    %76 = arith.subf %42, %75 : vector<16x288xf32>
    %77 = arith.mulf %76, %76 : vector<16x288xf32>
    %cst_66 = arith.constant dense<0.000000e+00> : vector<288xf32>
    %78 = vector.multi_reduction <add>, %77, %cst_66 [0] : vector<16x288xf32> to vector<288xf32>
    %79 = vector.shape_cast %78 : vector<288xf32> to vector<1x288xf32>
    %80 = vector.broadcast %74 : vector<1x288xf32> to vector<16x288xf32>
    %81 = arith.subf %65, %80 : vector<16x288xf32>
    %82 = arith.mulf %81, %81 : vector<16x288xf32>
    %cst_67 = arith.constant dense<0.000000e+00> : vector<288xf32>
    %83 = vector.multi_reduction <add>, %82, %cst_67 [0] : vector<16x288xf32> to vector<288xf32>
    %84 = vector.shape_cast %83 : vector<288xf32> to vector<1x288xf32>
    %85 = arith.addf %79, %84 : vector<1x288xf32>
    %c0_68 = arith.constant 0 : index
    %c0_69 = arith.constant 0 : index
    %86 = vector.load %arg6[%c0_68, %c0_69] : memref<288x288xf32, #tpu.memory_space<vmem>>, vector<288x288xf32>
    %cst_70 = arith.constant dense<0.000000e+00> : vector<1x288xf32>
    %87 = tpu.matmul %85, %86, %cst_70 {dimension_numbers = #tpu.dot_dimension_numbers<[1], [0], [0], [1], [0, 0, 1, 1], [], []>} : vector<1x288xf32>, vector<288x288xf32>, vector<1x288xf32> -> vector<1x288xf32>
    %cst_71 = arith.constant 4.8828125E-4 : f32
    %88 = vector.broadcast %cst_71 : f32 to vector<1x288xf32>
    %89 = arith.mulf %87, %88 : vector<1x288xf32>
    %cst_72 = arith.constant 9.99999974E-6 : f32
    %90 = vector.broadcast %cst_72 : f32 to vector<1x288xf32>
    %91 = arith.addf %89, %90 : vector<1x288xf32>
    %92 = math.rsqrt %91 : vector<1x288xf32>
    %93 = arith.mulf %15, %92 : vector<1x288xf32>
    %94 = vector.broadcast %93 : vector<1x288xf32> to vector<16x288xf32>
    %95 = arith.mulf %76, %94 : vector<16x288xf32>
    %96 = vector.broadcast %16 : vector<1x288xf32> to vector<16x288xf32>
    %97 = arith.addf %95, %96 : vector<16x288xf32>
    %98 = vector.broadcast %93 : vector<1x288xf32> to vector<16x288xf32>
    %99 = arith.mulf %81, %98 : vector<16x288xf32>
    %100 = vector.broadcast %16 : vector<1x288xf32> to vector<16x288xf32>
    %101 = arith.addf %99, %100 : vector<16x288xf32>
    %cst_73 = arith.constant 0.000000e+00 : f32
    %102 = vector.broadcast %cst_73 : f32 to vector<1x288xf32>
    %c0_74 = arith.constant 0 : index
    %c0_75 = arith.constant 0 : index
    %103 = vector.load %arg11[%c0_74, %c0_75] : memref<36x288xf32, #tpu.memory_space<vmem>>, vector<1x288xf32>
    tpu.vector_store %arg11[%c0_74, %c0_75], %102 {strides = array<i32>} : memref<36x288xf32, #tpu.memory_space<vmem>>, vector<1x288xf32>,
    %c17_76 = arith.constant 17 : index
    %c0_77 = arith.constant 0 : index
    %104 = vector.load %arg11[%c17_76, %c0_77] : memref<36x288xf32, #tpu.memory_space<vmem>>, vector<1x288xf32>
    tpu.vector_store %arg11[%c17_76, %c0_77], %102 {strides = array<i32>} : memref<36x288xf32, #tpu.memory_space<vmem>>, vector<1x288xf32>,
    %c1_78 = arith.constant 1 : index
    %c0_79 = arith.constant 0 : index
    %105 = vector.load %arg11[%c1_78, %c0_79] : memref<36x288xf32, #tpu.memory_space<vmem>>, vector<16x288xf32>
    tpu.vector_store %arg11[%c1_78, %c0_79], %97 {strides = array<i32>} : memref<36x288xf32, #tpu.memory_space<vmem>>, vector<16x288xf32>,
    %c18_80 = arith.constant 18 : index
    %c0_81 = arith.constant 0 : index
    %106 = vector.load %arg11[%c18_80, %c0_81] : memref<36x288xf32, #tpu.memory_space<vmem>>, vector<1x288xf32>
    tpu.vector_store %arg11[%c18_80, %c0_81], %102 {strides = array<i32>} : memref<36x288xf32, #tpu.memory_space<vmem>>, vector<1x288xf32>,
    %c35_82 = arith.constant 35 : index
    %c0_83 = arith.constant 0 : index
    %107 = vector.load %arg11[%c35_82, %c0_83] : memref<36x288xf32, #tpu.memory_space<vmem>>, vector<1x288xf32>
    tpu.vector_store %arg11[%c35_82, %c0_83], %102 {strides = array<i32>} : memref<36x288xf32, #tpu.memory_space<vmem>>, vector<1x288xf32>,
    %c19_84 = arith.constant 19 : index
    %c0_85 = arith.constant 0 : index
    %108 = vector.load %arg11[%c19_84, %c0_85] : memref<36x288xf32, #tpu.memory_space<vmem>>, vector<16x288xf32>
    tpu.vector_store %arg11[%c19_84, %c0_85], %101 {strides = array<i32>} : memref<36x288xf32, #tpu.memory_space<vmem>>, vector<16x288xf32>,
    %cst_86 = arith.constant 0.000000e+00 : f32
    %109 = vector.broadcast %cst_86 : f32 to vector<16x256xf32>
    %c0_87 = arith.constant 0 : index
    %c0_88 = arith.constant 0 : index
    %110 = vector.load %arg11[%c0_87, %c0_88] : memref<36x288xf32, #tpu.memory_space<vmem>>, vector<16x288xf32>
    %111 = arith.truncf %110 : vector<16x288xf32> to vector<16x288xbf16>
    %c0_89 = arith.constant 0 : index
    %c0_90 = arith.constant 0 : index
    %c0_91 = arith.constant 0 : index
    %112 = vector.load %arg5[%c0_89, %c0_90, %c0_91] : memref<3x288x256xbf16, #tpu.memory_space<vmem>>, vector<1x288x256xbf16>
    %113 = vector.shape_cast %112 : vector<1x288x256xbf16> to vector<288x256xbf16>
    %cst_92 = arith.constant dense<0.000000e+00> : vector<16x256xf32>
    %114 = tpu.matmul %111, %113, %cst_92 {dimension_numbers = #tpu.dot_dimension_numbers<[1], [0], [0], [1], [0, 0, 1, 1], [], []>} : vector<16x288xbf16>, vector<288x256xbf16>, vector<16x256xf32> -> vector<16x256xf32>
    %115 = arith.addf %109, %114 : vector<16x256xf32>
    %c1_93 = arith.constant 1 : index
    %c0_94 = arith.constant 0 : index
    %116 = vector.load %arg11[%c1_93, %c0_94] : memref<36x288xf32, #tpu.memory_space<vmem>>, vector<16x288xf32>
    %117 = arith.truncf %116 : vector<16x288xf32> to vector<16x288xbf16>
    %c1_95 = arith.constant 1 : index
    %c0_96 = arith.constant 0 : index
    %c0_97 = arith.constant 0 : index
    %118 = vector.load %arg5[%c1_95, %c0_96, %c0_97] : memref<3x288x256xbf16, #tpu.memory_space<vmem>>, vector<1x288x256xbf16>
    %119 = vector.shape_cast %118 : vector<1x288x256xbf16> to vector<288x256xbf16>
    %cst_98 = arith.constant dense<0.000000e+00> : vector<16x256xf32>
    %120 = tpu.matmul %117, %119, %cst_98 {dimension_numbers = #tpu.dot_dimension_numbers<[1], [0], [0], [1], [0, 0, 1, 1], [], []>} : vector<16x288xbf16>, vector<288x256xbf16>, vector<16x256xf32> -> vector<16x256xf32>
    %121 = arith.addf %115, %120 : vector<16x256xf32>
    %c2_99 = arith.constant 2 : index
    %c0_100 = arith.constant 0 : index
    %122 = vector.load %arg11[%c2_99, %c0_100] : memref<36x288xf32, #tpu.memory_space<vmem>>, vector<16x288xf32>
    %123 = arith.truncf %122 : vector<16x288xf32> to vector<16x288xbf16>
    %c2_101 = arith.constant 2 : index
    %c0_102 = arith.constant 0 : index
    %c0_103 = arith.constant 0 : index
    %124 = vector.load %arg5[%c2_101, %c0_102, %c0_103] : memref<3x288x256xbf16, #tpu.memory_space<vmem>>, vector<1x288x256xbf16>
    %125 = vector.shape_cast %124 : vector<1x288x256xbf16> to vector<288x256xbf16>
    %cst_104 = arith.constant dense<0.000000e+00> : vector<16x256xf32>
    %126 = tpu.matmul %123, %125, %cst_104 {dimension_numbers = #tpu.dot_dimension_numbers<[1], [0], [0], [1], [0, 0, 1, 1], [], []>} : vector<16x288xbf16>, vector<288x256xbf16>, vector<16x256xf32> -> vector<16x256xf32>
    %127 = arith.addf %121, %126 : vector<16x256xf32>
    %128 = vector.broadcast %17 : vector<1x256xf32> to vector<16x256xf32>
    %129 = arith.addf %127, %128 : vector<16x256xf32>
    %cst_105 = arith.constant 0.000000e+00 : f32
    %130 = vector.broadcast %cst_105 : f32 to vector<16x256xf32>
    %131 = arith.maximumf %129, %130 : vector<16x256xf32>
    %cst_106 = arith.constant 0.000000e+00 : f32
    %132 = vector.broadcast %cst_106 : f32 to vector<16x256xf32>
    %c18_107 = arith.constant 18 : index
    %c0_108 = arith.constant 0 : index
    %133 = vector.load %arg11[%c18_107, %c0_108] : memref<36x288xf32, #tpu.memory_space<vmem>>, vector<16x288xf32>
    %134 = arith.truncf %133 : vector<16x288xf32> to vector<16x288xbf16>
    %c0_109 = arith.constant 0 : index
    %c0_110 = arith.constant 0 : index
    %c0_111 = arith.constant 0 : index
    %135 = vector.load %arg5[%c0_109, %c0_110, %c0_111] : memref<3x288x256xbf16, #tpu.memory_space<vmem>>, vector<1x288x256xbf16>
    %136 = vector.shape_cast %135 : vector<1x288x256xbf16> to vector<288x256xbf16>
    %cst_112 = arith.constant dense<0.000000e+00> : vector<16x256xf32>
    %137 = tpu.matmul %134, %136, %cst_112 {dimension_numbers = #tpu.dot_dimension_numbers<[1], [0], [0], [1], [0, 0, 1, 1], [], []>} : vector<16x288xbf16>, vector<288x256xbf16>, vector<16x256xf32> -> vector<16x256xf32>
    %138 = arith.addf %132, %137 : vector<16x256xf32>
    %c19_113 = arith.constant 19 : index
    %c0_114 = arith.constant 0 : index
    %139 = vector.load %arg11[%c19_113, %c0_114] : memref<36x288xf32, #tpu.memory_space<vmem>>, vector<16x288xf32>
    %140 = arith.truncf %139 : vector<16x288xf32> to vector<16x288xbf16>
    %c1_115 = arith.constant 1 : index
    %c0_116 = arith.constant 0 : index
    %c0_117 = arith.constant 0 : index
    %141 = vector.load %arg5[%c1_115, %c0_116, %c0_117] : memref<3x288x256xbf16, #tpu.memory_space<vmem>>, vector<1x288x256xbf16>
    %142 = vector.shape_cast %141 : vector<1x288x256xbf16> to vector<288x256xbf16>
    %cst_118 = arith.constant dense<0.000000e+00> : vector<16x256xf32>
    %143 = tpu.matmul %140, %142, %cst_118 {dimension_numbers = #tpu.dot_dimension_numbers<[1], [0], [0], [1], [0, 0, 1, 1], [], []>} : vector<16x288xbf16>, vector<288x256xbf16>, vector<16x256xf32> -> vector<16x256xf32>
    %144 = arith.addf %138, %143 : vector<16x256xf32>
    %c20_119 = arith.constant 20 : index
    %c0_120 = arith.constant 0 : index
    %145 = vector.load %arg11[%c20_119, %c0_120] : memref<36x288xf32, #tpu.memory_space<vmem>>, vector<16x288xf32>
    %146 = arith.truncf %145 : vector<16x288xf32> to vector<16x288xbf16>
    %c2_121 = arith.constant 2 : index
    %c0_122 = arith.constant 0 : index
    %c0_123 = arith.constant 0 : index
    %147 = vector.load %arg5[%c2_121, %c0_122, %c0_123] : memref<3x288x256xbf16, #tpu.memory_space<vmem>>, vector<1x288x256xbf16>
    %148 = vector.shape_cast %147 : vector<1x288x256xbf16> to vector<288x256xbf16>
    %cst_124 = arith.constant dense<0.000000e+00> : vector<16x256xf32>
    %149 = tpu.matmul %146, %148, %cst_124 {dimension_numbers = #tpu.dot_dimension_numbers<[1], [0], [0], [1], [0, 0, 1, 1], [], []>} : vector<16x288xbf16>, vector<288x256xbf16>, vector<16x256xf32> -> vector<16x256xf32>
    %150 = arith.addf %144, %149 : vector<16x256xf32>
    %151 = vector.broadcast %17 : vector<1x256xf32> to vector<16x256xf32>
    %152 = arith.addf %150, %151 : vector<16x256xf32>
    %cst_125 = arith.constant 0.000000e+00 : f32
    %153 = vector.broadcast %cst_125 : f32 to vector<16x256xf32>
    %154 = arith.maximumf %152, %153 : vector<16x256xf32>
    %cst_126 = arith.constant dense<0.000000e+00> : vector<256xf32>
    %155 = vector.multi_reduction <add>, %131, %cst_126 [0] : vector<16x256xf32> to vector<256xf32>
    %156 = vector.shape_cast %155 : vector<256xf32> to vector<1x256xf32>
    %cst_127 = arith.constant dense<0.000000e+00> : vector<256xf32>
    %157 = vector.multi_reduction <add>, %154, %cst_127 [0] : vector<16x256xf32> to vector<256xf32>
    %158 = vector.shape_cast %157 : vector<256xf32> to vector<1x256xf32>
    %159 = arith.addf %156, %158 : vector<1x256xf32>
    %c0_128 = arith.constant 0 : index
    %c0_129 = arith.constant 0 : index
    %160 = vector.load %arg7[%c0_128, %c0_129] : memref<256x256xf32, #tpu.memory_space<vmem>>, vector<256x256xf32>
    %cst_130 = arith.constant dense<0.000000e+00> : vector<1x256xf32>
    %161 = tpu.matmul %159, %160, %cst_130 {dimension_numbers = #tpu.dot_dimension_numbers<[1], [0], [0], [1], [0, 0, 1, 1], [], []>} : vector<1x256xf32>, vector<256x256xf32>, vector<1x256xf32> -> vector<1x256xf32>
    %cst_131 = arith.constant 4.8828125E-4 : f32
    %162 = vector.broadcast %cst_131 : f32 to vector<1x256xf32>
    %163 = arith.mulf %161, %162 : vector<1x256xf32>
    %164 = vector.broadcast %163 : vector<1x256xf32> to vector<16x256xf32>
    %165 = arith.subf %131, %164 : vector<16x256xf32>
    %166 = arith.mulf %165, %165 : vector<16x256xf32>
    %cst_132 = arith.constant dense<0.000000e+00> : vector<256xf32>
    %167 = vector.multi_reduction <add>, %166, %cst_132 [0] : vector<16x256xf32> to vector<256xf32>
    %168 = vector.shape_cast %167 : vector<256xf32> to vector<1x256xf32>
    %169 = vector.broadcast %163 : vector<1x256xf32> to vector<16x256xf32>
    %170 = arith.subf %154, %169 : vector<16x256xf32>
    %171 = arith.mulf %170, %170 : vector<16x256xf32>
    %cst_133 = arith.constant dense<0.000000e+00> : vector<256xf32>
    %172 = vector.multi_reduction <add>, %171, %cst_133 [0] : vector<16x256xf32> to vector<256xf32>
    %173 = vector.shape_cast %172 : vector<256xf32> to vector<1x256xf32>
    %174 = arith.addf %168, %173 : vector<1x256xf32>
    %c0_134 = arith.constant 0 : index
    %c0_135 = arith.constant 0 : index
    %175 = vector.load %arg7[%c0_134, %c0_135] : memref<256x256xf32, #tpu.memory_space<vmem>>, vector<256x256xf32>
    %cst_136 = arith.constant dense<0.000000e+00> : vector<1x256xf32>
    %176 = tpu.matmul %174, %175, %cst_136 {dimension_numbers = #tpu.dot_dimension_numbers<[1], [0], [0], [1], [0, 0, 1, 1], [], []>} : vector<1x256xf32>, vector<256x256xf32>, vector<1x256xf32> -> vector<1x256xf32>
    %cst_137 = arith.constant 4.8828125E-4 : f32
    %177 = vector.broadcast %cst_137 : f32 to vector<1x256xf32>
    %178 = arith.mulf %176, %177 : vector<1x256xf32>
    %cst_138 = arith.constant 9.99999974E-6 : f32
    %179 = vector.broadcast %cst_138 : f32 to vector<1x256xf32>
    %180 = arith.addf %178, %179 : vector<1x256xf32>
    %181 = math.rsqrt %180 : vector<1x256xf32>
    %182 = arith.mulf %18, %181 : vector<1x256xf32>
    %183 = vector.broadcast %182 : vector<1x256xf32> to vector<16x256xf32>
    %184 = arith.mulf %165, %183 : vector<16x256xf32>
    %185 = vector.broadcast %19 : vector<1x256xf32> to vector<16x256xf32>
    %186 = arith.addf %184, %185 : vector<16x256xf32>
    %187 = vector.broadcast %182 : vector<1x256xf32> to vector<16x256xf32>
    %188 = arith.mulf %170, %187 : vector<16x256xf32>
    %189 = vector.broadcast %19 : vector<1x256xf32> to vector<16x256xf32>
    %190 = arith.addf %188, %189 : vector<16x256xf32>
    %c0_139 = arith.constant 0 : index
    %c0_140 = arith.constant 0 : index
    %191 = vector.load %arg9[%c0_139, %c0_140] : memref<32x256xf32, #tpu.memory_space<vmem>>, vector<16x256xf32>
    tpu.vector_store %arg9[%c0_139, %c0_140], %186 {strides = array<i32>} : memref<32x256xf32, #tpu.memory_space<vmem>>, vector<16x256xf32>,
    %c16 = arith.constant 16 : index
    %c0_141 = arith.constant 0 : index
    %192 = vector.load %arg9[%c16, %c0_141] : memref<32x256xf32, #tpu.memory_space<vmem>>, vector<16x256xf32>
    tpu.vector_store %arg9[%c16, %c0_141], %190 {strides = array<i32>} : memref<32x256xf32, #tpu.memory_space<vmem>>, vector<16x256xf32>,
    return
  }
  func.func @transform_0(%arg0: i32) -> (i32, i32) {
    %c0_i32 = arith.constant 0 : i32
    %c0_i32_0 = arith.constant 0 : i32
    %c0_i32_1 = arith.constant 0 : i32
    return %c0_i32, %c0_i32_0 : i32, i32
  }
  func.func @transform_1(%arg0: i32) -> (i32, i32) {
    %c0_i32 = arith.constant 0 : i32
    %c0_i32_0 = arith.constant 0 : i32
    %c0_i32_1 = arith.constant 0 : i32
    return %c0_i32, %c0_i32_0 : i32, i32
  }
  func.func @transform_2(%arg0: i32) -> (i32, i32) {
    %c0_i32 = arith.constant 0 : i32
    %c0_i32_0 = arith.constant 0 : i32
    %c0_i32_1 = arith.constant 0 : i32
    return %c0_i32, %c0_i32_0 : i32, i32
  }
  func.func @transform_3(%arg0: i32) -> (i32, i32, i32) {
    %c0_i32 = arith.constant 0 : i32
    %c0_i32_0 = arith.constant 0 : i32
    %c0_i32_1 = arith.constant 0 : i32
    %c0_i32_2 = arith.constant 0 : i32
    return %c0_i32, %c0_i32_0, %c0_i32_1 : i32, i32, i32
  }
  func.func @transform_4(%arg0: i32) -> (i32, i32, i32) {
    %c0_i32 = arith.constant 0 : i32
    %c0_i32_0 = arith.constant 0 : i32
    %c0_i32_1 = arith.constant 0 : i32
    %c0_i32_2 = arith.constant 0 : i32
    return %c0_i32, %c0_i32_0, %c0_i32_1 : i32, i32, i32
  }
  func.func @transform_5(%arg0: i32) -> (i32, i32) {
    %c0_i32 = arith.constant 0 : i32
    %c0_i32_0 = arith.constant 0 : i32
    %c0_i32_1 = arith.constant 0 : i32
    return %c0_i32, %c0_i32_0 : i32, i32
  }
  func.func @transform_6(%arg0: i32) -> (i32, i32) {
    %c0_i32 = arith.constant 0 : i32
    %c0_i32_0 = arith.constant 0 : i32
    %c0_i32_1 = arith.constant 0 : i32
    return %c0_i32, %c0_i32_0 : i32, i32
  }
  func.func @transform_7(%arg0: i32) -> (i32, i32) {
    %c0_i32 = arith.constant 0 : i32
    %c0_i32_0 = arith.constant 0 : i32
    %c0_i32_1 = arith.constant 0 : i32
    return %c0_i32, %c0_i32_0 : i32, i32
  }
  func.func @transform_8(%arg0: i32) -> (i32, i32) {
    %c0_i32 = arith.constant 0 : i32
    %c0_i32_0 = arith.constant 0 : i32
    %c0_i32_1 = arith.constant 0 : i32
    return %c0_i32, %c0_i32_0 : i32, i32
  }
}

</mosaic_0001>

<llo_original>
// kernel: decoder_forward.1
$region0: #{decoder_forward.1}
  #allocation0 [shape = 'u32[]', space=smem, size = 0x4, offset = 0x4, fixed_abs, tag = 'smem constant byte address 0x4 - core index']
  #allocation1 [shape = 'u32[72,128]{1,0:T(1,128)}', space=vmem, size = 0x9000, scoped, tag = 'internal scratch']
  #allocation2 [shape = 'f32[36,576]{1,0:T(8,128)}', space=vmem, size = 0x19000, scoped, tag = 'scratch operand']
  #allocation3 [shape = 'f32[36,288]{1,0:T(8,128)}', space=vmem, size = 0xf000, scoped, tag = 'scratch operand']
  %s0 = inlined_call_operand.vmem [shape: bf16[32,128], index: 0, kind: input, shape index: {}]
  %s1 = inlined_call_operand.vmem [shape: f32[32,576], index: 1, kind: input, shape index: {}]
  %s2 = inlined_call_operand.vmem [shape: bf16[128,576], index: 2, kind: input, shape index: {}]
  %s3 = inlined_call_operand.vmem [shape: bf16[3,576,288], index: 3, kind: input, shape index: {}]
  %s4 = inlined_call_operand.vmem [shape: bf16[3,288,256], index: 4, kind: input, shape index: {}]
  %s5 = inlined_call_operand.vmem [shape: f32[288,288], index: 5, kind: input, shape index: {}]
  %s6 = inlined_call_operand.vmem [shape: f32[256,256], index: 6, kind: input, shape index: {}]
  %s7 = inlined_call_operand.vmem [shape: f32[8,288], index: 7, kind: input, shape index: {}]
  %s8 = inlined_call_operand.vmem [shape: f32[32,256], index: 8, kind: output, shape index: {}]
  %s9 = sld [smem:[#allocation0]]
  $region42: #{decoder_forward.1} parent=0
    _
  %s11 = ssub.s32 1, %s9
  %s12 = scalar_select 0, %s11, %s9
  // Predicated region
  $region2: #{decoder_forward.1} parent=0 // pred_check
    _
  $region3: #{decoder_forward.1} parent=0 // pred_check_branch
    %14 = sbr.rel (0) target = $region5
  $region4: #{decoder_forward.1} parent=0 // pred_region
    _
  $region5: #{decoder_forward.1} parent=0 // pred_fallthru
    _
  // Predicated region
  $region6: #{decoder_forward.1} parent=0 // pred_check
    _
  $region7: #{decoder_forward.1} parent=0 // pred_check_branch
    %16 = sbr.rel (0) target = $region9
  $region8: #{decoder_forward.1} parent=0 // pred_region
    _
  $region9: #{decoder_forward.1} parent=0 // pred_fallthru
    _
  // Predicated region
  $region10: #{decoder_forward.1} parent=0 // pred_check
    _
  $region11: #{decoder_forward.1} parent=0 // pred_check_branch
    %18 = sbr.rel (0) target = $region13
  $region12: #{decoder_forward.1} parent=0 // pred_region
    _
  $region13: #{decoder_forward.1} parent=0 // pred_fallthru
    _
  // Predicated region
  $region14: #{decoder_forward.1} parent=0 // pred_check
    _
  $region15: #{decoder_forward.1} parent=0 // pred_check_branch
    %20 = sbr.rel (0) target = $region17
  $region16: #{decoder_forward.1} parent=0 // pred_region
    _
  $region17: #{decoder_forward.1} parent=0 // pred_fallthru
    _
  // Predicated region
  $region18: #{decoder_forward.1} parent=0 // pred_check
    _
  $region19: #{decoder_forward.1} parent=0 // pred_check_branch
    %22 = sbr.rel (0) target = $region21
  $region20: #{decoder_forward.1} parent=0 // pred_region
    _
  $region21: #{decoder_forward.1} parent=0 // pred_fallthru
    _
  // Predicated region
  $region22: #{decoder_forward.1} parent=0 // pred_check
    _
  $region23: #{decoder_forward.1} parent=0 // pred_check_branch
    %24 = sbr.rel (0) target = $region25
  $region24: #{decoder_forward.1} parent=0 // pred_region
    _
  $region25: #{decoder_forward.1} parent=0 // pred_fallthru
    _
  // Predicated region
  $region26: #{decoder_forward.1} parent=0 // pred_check
    _
  $region27: #{decoder_forward.1} parent=0 // pred_check_branch
    %26 = sbr.rel (0) target = $region29
  $region28: #{decoder_forward.1} parent=0 // pred_region
    _
  $region29: #{decoder_forward.1} parent=0 // pred_fallthru
    _
  // Predicated region
  $region30: #{decoder_forward.1} parent=0 // pred_check
    _
  $region31: #{decoder_forward.1} parent=0 // pred_check_branch
    %28 = sbr.rel (0) target = $region33
  $region32: #{decoder_forward.1} parent=0 // pred_region
    _
  $region33: #{decoder_forward.1} parent=0 // pred_fallthru
    _
  %v30 = vld [vmem:[%s0] sm:$0xf]
  %v31 = vld [vmem:[%s0 + $0x4] sm:$0xf]
  %v32 = vld [vmem:[%s0 + $0x8] sm:$0xf]
  %v33 = vld [vmem:[%s0 + $0xc] sm:$0xf]
  %v34 = vld [vmem:[%s2] sm:$0xff]
  %v35 = vld [vmem:[%s2 + $0x8] sm:$0xff]
  %v36 = vld [vmem:[%s2 + $0x10] sm:$0xf]
  %v37 = vld [vmem:[%s2 + $0x14] sm:$0xff]
  %v38 = vld [vmem:[%s2 + $0x1c] sm:$0xff]
  %v39 = vld [vmem:[%s2 + $0x24] sm:$0xf]
  %v40 = vld [vmem:[%s2 + $0x28] sm:$0xff]
  %v41 = vld [vmem:[%s2 + $0x30] sm:$0xff]
  %v42 = vld [vmem:[%s2 + $0x38] sm:$0xf]
  %v43 = vld [vmem:[%s2 + $0x3c] sm:$0xff]
  %v44 = vld [vmem:[%s2 + $0x44] sm:$0xff]
  %v45 = vld [vmem:[%s2 + $0x4c] sm:$0xf]
  %v46 = vld [vmem:[%s2 + $0x50] sm:$0xff]
  %v47 = vld [vmem:[%s2 + $0x58] sm:$0xff]
  %v48 = vld [vmem:[%s2 + $0x60] sm:$0xf]
  %v49 = vld [vmem:[%s2 + $0x64] sm:$0xff]
  %v50 = vld [vmem:[%s2 + $0x6c] sm:$0xff]
  %v51 = vld [vmem:[%s2 + $0x74] sm:$0xf]
  %v52 = vld [vmem:[%s2 + $0x78] sm:$0xff]
  %v53 = vld [vmem:[%s2 + $0x80] sm:$0xff]
  %v54 = vld [vmem:[%s2 + $0x88] sm:$0xf]
  %v55 = vld [vmem:[%s2 + $0x8c] sm:$0xff]
  %v56 = vld [vmem:[%s2 + $0x94] sm:$0xff]
  %v57 = vld [vmem:[%s2 + $0x9c] sm:$0xf]
  %v58 = vld [vmem:[%s2 + $0xa0] sm:$0xff]
  %v59 = vld [vmem:[%s2 + $0xa8] sm:$0xff]
  %v60 = vld [vmem:[%s2 + $0xb0] sm:$0xf]
  %v61 = vld [vmem:[%s2 + $0xb4] sm:$0xff]
  %v62 = vld [vmem:[%s2 + $0xbc] sm:$0xff]
  %v63 = vld [vmem:[%s2 + $0xc4] sm:$0xf]
  %v64 = vld [vmem:[%s2 + $0xc8] sm:$0xff]
  %v65 = vld [vmem:[%s2 + $0xd0] sm:$0xff]
  %v66 = vld [vmem:[%s2 + $0xd8] sm:$0xf]
  %v67 = vld [vmem:[%s2 + $0xdc] sm:$0xff]
  %v68 = vld [vmem:[%s2 + $0xe4] sm:$0xff]
  %v69 = vld [vmem:[%s2 + $0xec] sm:$0xf]
  %v70 = vld [vmem:[%s2 + $0xf0] sm:$0xff]
  %v71 = vld [vmem:[%s2 + $0xf8] sm:$0xff]
  %v72 = vld [vmem:[%s2 + $0x100] sm:$0xf]
  %v73 = vld [vmem:[%s2 + $0x104] sm:$0xff]
  %v74 = vld [vmem:[%s2 + $0x10c] sm:$0xff]
  %v75 = vld [vmem:[%s2 + $0x114] sm:$0xf]
  %v76 = vld [vmem:[%s2 + $0x118] sm:$0xff]
  %v77 = vld [vmem:[%s2 + $0x120] sm:$0xff]
  %v78 = vld [vmem:[%s2 + $0x128] sm:$0xf]
  %v79 = vld [vmem:[%s2 + $0x12c] sm:$0xff]
  %v80 = vld [vmem:[%s2 + $0x134] sm:$0xff]
  %v81 = vld [vmem:[%s2 + $0x13c] sm:$0xf]
  %v82 = vld [vmem:[%s1] sm:$0xff]
  %v83 = vld [vmem:[%s1 + $0x8] sm:$0xff]
  %v84 = vld [vmem:[%s1 + $0x10] sm:$0xff]
  %v85 = vld [vmem:[%s1 + $0x18] sm:$0xff]
  %v86 = vld [vmem:[%s1 + $0x20] sm:$0xff]
  %v87 = vld [vmem:[%s1 + $0x28] sm:$0xff]
  %v88 = vld [vmem:[%s1 + $0x30] sm:$0xff]
  %v89 = vld [vmem:[%s1 + $0x38] sm:$0xff]
  %v90 = vld [vmem:[%s1 + $0x40] sm:$0xff]
  %v91 = vld [vmem:[%s1 + $0x48] sm:$0xff]
  %v92 = vld [vmem:[%s1 + $0x50] sm:$0xff]
  %v93 = vld [vmem:[%s1 + $0x58] sm:$0xff]
  %v94 = vld [vmem:[%s1 + $0x60] sm:$0xff]
  %v95 = vld [vmem:[%s1 + $0x68] sm:$0xff]
  %v96 = vld [vmem:[%s1 + $0x70] sm:$0xff]
  %v97 = vld [vmem:[%s1 + $0x78] sm:$0xff]
  %v98 = vld [vmem:[%s1 + $0x80] sm:$0xff]
  %v99 = vld [vmem:[%s1 + $0x88] sm:$0xff]
  %v100 = vld [vmem:[%s1 + $0x90] sm:$0xff]
  %v101 = vld [vmem:[%s1 + $0x98] sm:$0xff]
  %v106 = vunpack.c.l.b16 %v30
  %v107 = vunpack.c.l.b16 %v31
  %v108 = vunpack.c.l.b16 %v32
  %v109 = vunpack.c.l.b16 %v33
  %v110 = vpack.c.b16 %v107, %v106
  %v111 = vpack.c.b16 %v109, %v108
  %v162 = vunpack.c.l.b16 %v34
  %v163 = vunpack.c.h.b16 %v34
  %v164 = vunpack.c.l.b16 %v35
  %v165 = vunpack.c.h.b16 %v35
  %v166 = vunpack.c.l.b16 %v36
  %v167 = vunpack.c.l.b16 %v37
  %v168 = vunpack.c.h.b16 %v37
  %v169 = vunpack.c.l.b16 %v38
  %v170 = vunpack.c.h.b16 %v38
  %v171 = vunpack.c.l.b16 %v39
  %v172 = vunpack.c.l.b16 %v40
  %v173 = vunpack.c.h.b16 %v40
  %v174 = vunpack.c.l.b16 %v41
  %v175 = vunpack.c.h.b16 %v41
  %v176 = vunpack.c.l.b16 %v42
  %v177 = vunpack.c.l.b16 %v43
  %v178 = vunpack.c.h.b16 %v43
  %v179 = vunpack.c.l.b16 %v44
  %v180 = vunpack.c.h.b16 %v44
  %v181 = vunpack.c.l.b16 %v45
  %v182 = vunpack.c.l.b16 %v46
  %v183 = vunpack.c.h.b16 %v46
  %v184 = vunpack.c.l.b16 %v47
  %v185 = vunpack.c.h.b16 %v47
  %v186 = vunpack.c.l.b16 %v48
  %v187 = vunpack.c.l.b16 %v49
  %v188 = vunpack.c.h.b16 %v49
  %v189 = vunpack.c.l.b16 %v50
  %v190 = vunpack.c.h.b16 %v50
  %v191 = vunpack.c.l.b16 %v51
  %v192 = vunpack.c.l.b16 %v52
  %v193 = vunpack.c.h.b16 %v52
  %v194 = vunpack.c.l.b16 %v53
  %v195 = vunpack.c.h.b16 %v53
  %v196 = vunpack.c.l.b16 %v54
  %v197 = vunpack.c.l.b16 %v55
  %v198 = vunpack.c.h.b16 %v55
  %v199 = vunpack.c.l.b16 %v56
  %v200 = vunpack.c.h.b16 %v56
  %v201 = vunpack.c.l.b16 %v57
  %v202 = vunpack.c.l.b16 %v58
  %v203 = vunpack.c.h.b16 %v58
  %v204 = vunpack.c.l.b16 %v59
  %v205 = vunpack.c.h.b16 %v59
  %v206 = vunpack.c.l.b16 %v60
  %v207 = vunpack.c.l.b16 %v61
  %v208 = vunpack.c.h.b16 %v61
  %v209 = vunpack.c.l.b16 %v62
  %v210 = vunpack.c.h.b16 %v62
  %v211 = vunpack.c.l.b16 %v63
  %v212 = vunpack.c.l.b16 %v64
  %v213 = vunpack.c.h.b16 %v64
  %v214 = vunpack.c.l.b16 %v65
  %v215 = vunpack.c.h.b16 %v65
  %v216 = vunpack.c.l.b16 %v66
  %v217 = vunpack.c.l.b16 %v67
  %v218 = vunpack.c.h.b16 %v67
  %v219 = vunpack.c.l.b16 %v68
  %v220 = vunpack.c.h.b16 %v68
  %v221 = vunpack.c.l.b16 %v69
  %v222 = vunpack.c.l.b16 %v70
  %v223 = vunpack.c.h.b16 %v70
  %v224 = vunpack.c.l.b16 %v71
  %v225 = vunpack.c.h.b16 %v71
  %v226 = vunpack.c.l.b16 %v72
  %v227 = vunpack.c.l.b16 %v73
  %v228 = vunpack.c.h.b16 %v73
  %v229 = vunpack.c.l.b16 %v74
  %v230 = vunpack.c.h.b16 %v74
  %v231 = vunpack.c.l.b16 %v75
  %v232 = vunpack.c.l.b16 %v76
  %v233 = vunpack.c.h.b16 %v76
  %v234 = vunpack.c.l.b16 %v77
  %v235 = vunpack.c.h.b16 %v77
  %v236 = vunpack.c.l.b16 %v78
  %v237 = vunpack.c.l.b16 %v79
  %v238 = vunpack.c.h.b16 %v79
  %v239 = vunpack.c.l.b16 %v80
  %v240 = vunpack.c.h.b16 %v80
  %v241 = vunpack.c.l.b16 %v81
  %v242 = vpack.c.b16 %v167, %v162
  %v243 = vpack.c.b16 %v168, %v163
  %v244 = vpack.c.b16 %v169, %v164
  %v245 = vpack.c.b16 %v170, %v165
  %v246 = vpack.c.b16 %v171, %v166
  %v247 = vpack.c.b16 %v177, %v172
  %v248 = vpack.c.b16 %v178, %v173
  %v249 = vpack.c.b16 %v179, %v174
  %v250 = vpack.c.b16 %v180, %v175
  %v251 = vpack.c.b16 %v181, %v176
  %v252 = vpack.c.b16 %v187, %v182
  %v253 = vpack.c.b16 %v188, %v183
  %v254 = vpack.c.b16 %v189, %v184
  %v255 = vpack.c.b16 %v190, %v185
  %v256 = vpack.c.b16 %v191, %v186
  %v257 = vpack.c.b16 %v197, %v192
  %v258 = vpack.c.b16 %v198, %v193
  %v259 = vpack.c.b16 %v199, %v194
  %v260 = vpack.c.b16 %v200, %v195
  %v261 = vpack.c.b16 %v201, %v196
  %v262 = vpack.c.b16 %v207, %v202
  %v263 = vpack.c.b16 %v208, %v203
  %v264 = vpack.c.b16 %v209, %v204
  %v265 = vpack.c.b16 %v210, %v205
  %v266 = vpack.c.b16 %v211, %v206
  %v267 = vpack.c.b16 %v217, %v212
  %v268 = vpack.c.b16 %v218, %v213
  %v269 = vpack.c.b16 %v219, %v214
  %v270 = vpack.c.b16 %v220, %v215
  %v271 = vpack.c.b16 %v221, %v216
  %v272 = vpack.c.b16 %v227, %v222
  %v273 = vpack.c.b16 %v228, %v223
  %v274 = vpack.c.b16 %v229, %v224
  %v275 = vpack.c.b16 %v230, %v225
  %v276 = vpack.c.b16 %v231, %v226
  %v277 = vpack.c.b16 %v237, %v232
  %v278 = vpack.c.b16 %v238, %v233
  %v279 = vpack.c.b16 %v239, %v234
  %v280 = vpack.c.b16 %v240, %v235
  %v281 = vpack.c.b16 %v241, %v236
  %322 = vmatpush.bf16.msra.mxu0 %v277
  %323 = vmatpush.bf16.msra.mxu0 %v272
  %324 = vmatpush.bf16.msra.mxu0 %v267
  %325 = vmatpush.bf16.msra.mxu0 %v262
  %326 = vmatpush.bf16.msra.mxu0 %v257
  %327 = vmatpush.bf16.msra.mxu0 %v252
  %328 = vmatpush.bf16.msra.mxu0 %v247
  %329 = vmatpush.bf16.msra.mxu0 %v242
  %330 = vmatmul.bf16.gmra.mxu0 %v110
  %v331 = vpop.f32.mrf.mxu0
  %v332 = vadd.f32 %v82, %v331
  %v333 = vpop.f32.mrf.mxu0
  %v334 = vadd.f32 %v87, %v333
  %335 = vmatmul.bf16.gmra.mxu0 %v111
  %v336 = vpop.f32.mrf.mxu0
  %v337 = vadd.f32 %v92, %v336
  %v338 = vpop.f32.mrf.mxu0
  %v339 = vadd.f32 %v97, %v338
  %340 = vdwg.mxu0
  %341 = vmatpush.bf16.msra.mxu0 %v278
  %342 = vmatpush.bf16.msra.mxu0 %v273
  %343 = vmatpush.bf16.msra.mxu0 %v268
  %344 = vmatpush.bf16.msra.mxu0 %v263
  %345 = vmatpush.bf16.msra.mxu0 %v258
  %346 = vmatpush.bf16.msra.mxu0 %v253
  %347 = vmatpush.bf16.msra.mxu0 %v248
  %348 = vmatpush.bf16.msra.mxu0 %v243
  %349 = vmatmul.bf16.gmra.mxu0 %v110
  %v350 = vpop.f32.mrf.mxu0
  %v351 = vadd.f32 %v83, %v350
  %v352 = vpop.f32.mrf.mxu0
  %v353 = vadd.f32 %v88, %v352
  %354 = vmatmul.bf16.gmra.mxu0 %v111
  %v355 = vpop.f32.mrf.mxu0
  %v356 = vadd.f32 %v93, %v355
  %v357 = vpop.f32.mrf.mxu0
  %v358 = vadd.f32 %v98, %v357
  %359 = vdwg.mxu0
  %360 = vmatpush.bf16.msra.mxu0 %v279
  %361 = vmatpush.bf16.msra.mxu0 %v274
  %362 = vmatpush.bf16.msra.mxu0 %v269
  %363 = vmatpush.bf16.msra.mxu0 %v264
  %364 = vmatpush.bf16.msra.mxu0 %v259
  %365 = vmatpush.bf16.msra.mxu0 %v254
  %366 = vmatpush.bf16.msra.mxu0 %v249
  %367 = vmatpush.bf16.msra.mxu0 %v244
  %368 = vmatmul.bf16.gmra.mxu0 %v110
  %v369 = vpop.f32.mrf.mxu0
  %v370 = vadd.f32 %v84, %v369
  %v371 = vpop.f32.mrf.mxu0
  %v372 = vadd.f32 %v89, %v371
  %373 = vmatmul.bf16.gmra.mxu0 %v111
  %v374 = vpop.f32.mrf.mxu0
  %v375 = vadd.f32 %v94, %v374
  %v376 = vpop.f32.mrf.mxu0
  %v377 = vadd.f32 %v99, %v376
  %378 = vdwg.mxu0
  %379 = vmatpush.bf16.msra.mxu0 %v280
  %380 = vmatpush.bf16.msra.mxu0 %v275
  %381 = vmatpush.bf16.msra.mxu0 %v270
  %382 = vmatpush.bf16.msra.mxu0 %v265
  %383 = vmatpush.bf16.msra.mxu0 %v260
  %384 = vmatpush.bf16.msra.mxu0 %v255
  %385 = vmatpush.bf16.msra.mxu0 %v250
  %386 = vmatpush.bf16.msra.mxu0 %v245
  %387 = vmatmul.bf16.gmra.mxu0 %v110
  %v388 = vpop.f32.mrf.mxu0
  %v389 = vadd.f32 %v85, %v388
  %v390 = vpop.f32.mrf.mxu0
  %v391 = vadd.f32 %v90, %v390
  %392 = vmatmul.bf16.gmra.mxu0 %v111
  %v393 = vpop.f32.mrf.mxu0
  %v394 = vadd.f32 %v95, %v393
  %v395 = vpop.f32.mrf.mxu0
  %v396 = vadd.f32 %v100, %v395
  %397 = vdwg.mxu0
  %398 = vmatpush.bf16.msra.mxu0 %v281
  %399 = vmatpush.bf16.msra.mxu0 %v276
  %400 = vmatpush.bf16.msra.mxu0 %v271
  %401 = vmatpush.bf16.msra.mxu0 %v266
  %402 = vmatpush.bf16.msra.mxu0 %v261
  %403 = vmatpush.bf16.msra.mxu0 %v256
  %404 = vmatpush.bf16.msra.mxu0 %v251
  %405 = vmatpush.bf16.msra.mxu0 %v246
  %406 = vmatmul.bf16.gmra.mxu0 %v110
  %v407 = vpop.f32.mrf.mxu0
  %v408 = vadd.f32 %v86, %v407
  %v409 = vpop.f32.mrf.mxu0
  %v410 = vadd.f32 %v91, %v409
  %411 = vmatmul.bf16.gmra.mxu0 %v111
  %v412 = vpop.f32.mrf.mxu0
  %v413 = vadd.f32 %v96, %v412
  %v414 = vpop.f32.mrf.mxu0
  %v415 = vadd.f32 %v101, %v414
  %416 = vdwg.mxu0
  %v417 = vlaneseq
  %vm418 = vcmp.ge.s32.totalorder %v417, 0
  %vm419 = vcmp.lt.s32.totalorder %v417, 576
  %vm420 = vmand %vm418, %vm419
  %421 = vst.msk [vmem:[#allocation2] ss:$8 sm:$0xf] %vm420, 0.0
  %422 = vst.msk [vmem:[#allocation2] ss:$8 sm:$0x10] %vm420, 0.0
  %s423 = scalar_lea.vmem [#allocation2], 81
  %424 = vst.msk [vmem:[%s423] ss:$8 sm:$0xf] %vm420, 0.0
  %425 = vst.msk [vmem:[%s423] ss:$8 sm:$0x10] %vm420, 0.0
  %vm436 = vcmask 1040384
  %v437 = vrot.slane %v332, 7
  %v438 = vrot.slane %v351, 7
  %v439 = vrot.slane %v370, 7
  %v440 = vrot.slane %v389, 7
  %v441 = vrot.slane %v408, 7
  %v442 = vrot.slane %v334, 7
  %v443 = vsel %vm436, %v437, %v442
  %v444 = vrot.slane %v353, 7
  %v445 = vsel %vm436, %v438, %v444
  %v446 = vrot.slane %v372, 7
  %v447 = vsel %vm436, %v439, %v446
  %v448 = vrot.slane %v391, 7
  %v449 = vsel %vm436, %v440, %v448
  %v450 = vrot.slane %v410, 7
  %v451 = vsel %vm436, %v441, %v450
  %467 = vst [vmem:[#allocation2] sm:$0xfe] %v437
  %468 = vst [vmem:[#allocation2 + $0x8] sm:$0xfe] %v438
  %469 = vst [vmem:[#allocation2 + $0x10] sm:$0xfe] %v439
  %470 = vst [vmem:[#allocation2 + $0x18] sm:$0xfe] %v440
  %vm471 = vcmask 523265
  %472 = vst.msk [vmem:[#allocation2 + $0x20] sm:$0xfe] %vm471, %v441
  %473 = vst [vmem:[#allocation2 + $0x28] sm:$0xff] %v443
  %474 = vst [vmem:[#allocation2 + $0x30] sm:$0xff] %v445
  %475 = vst [vmem:[#allocation2 + $0x38] sm:$0xff] %v447
  %476 = vst [vmem:[#allocation2 + $0x40] sm:$0xff] %v449
  %vm477 = vcmask 523264
  %478 = vst.msk [vmem:[#allocation2 + $0x48] sm:$0xff] %vm477, %v451
  %479 = vst [vmem:[#allocation2 + $0x50] sm:$0x1] %v442
  %480 = vst [vmem:[#allocation2 + $0x58] sm:$0x1] %v444
  %481 = vst [vmem:[#allocation2 + $0x60] sm:$0x1] %v446
  %482 = vst [vmem:[#allocation2 + $0x68] sm:$0x1] %v448
  %vm483 = vcmask 516096
  %484 = vst.msk [vmem:[#allocation2 + $0x70] sm:$0x1] %vm483, %v450
  %s485 = scalar_lea.vmem [#allocation2], 82
  %486 = vst.msk [vmem:[%s485] ss:$8 sm:$0xf] %vm420, 0.0
  %487 = vst.msk [vmem:[%s485] ss:$8 sm:$0x10] %vm420, 0.0
  %s488 = scalar_lea.vmem [#allocation2], 163
  %489 = vst.msk [vmem:[%s488] ss:$8 sm:$0xf] %vm420, 0.0
  %490 = vst.msk [vmem:[%s488] ss:$8 sm:$0x10] %vm420, 0.0
  %vm501 = vcmask 1042432
  %v502 = vrot.slane %v337, 5
  %v503 = vrot.slane %v356, 5
  %v504 = vrot.slane %v375, 5
  %v505 = vrot.slane %v394, 5
  %v506 = vrot.slane %v413, 5
  %v507 = vrot.slane %v339, 5
  %v508 = vsel %vm501, %v502, %v507
  %v509 = vrot.slane %v358, 5
  %v510 = vsel %vm501, %v503, %v509
  %v511 = vrot.slane %v377, 5
  %v512 = vsel %vm501, %v504, %v511
  %v513 = vrot.slane %v396, 5
  %v514 = vsel %vm501, %v505, %v513
  %v515 = vrot.slane %v415, 5
  %v516 = vsel %vm501, %v506, %v515
  %532 = vst [vmem:[#allocation2 + $0x50] sm:$0xf8] %v502
  %533 = vst [vmem:[#allocation2 + $0x58] sm:$0xf8] %v503
  %534 = vst [vmem:[#allocation2 + $0x60] sm:$0xf8] %v504
  %535 = vst [vmem:[#allocation2 + $0x68] sm:$0xf8] %v505
  %vm536 = vcmask 523267
  %537 = vst.msk [vmem:[#allocation2 + $0x70] sm:$0xf8] %vm536, %v506
  %538 = vst [vmem:[#allocation2 + $0x78] sm:$0xff] %v508
  %539 = vst [vmem:[#allocation2 + $0x80] sm:$0xff] %v510
  %540 = vst [vmem:[#allocation2 + $0x88] sm:$0xff] %v512
  %541 = vst [vmem:[#allocation2 + $0x90] sm:$0xff] %v514
  %542 = vst.msk [vmem:[#allocation2 + $0x98] sm:$0xff] %vm477, %v516
  %543 = vst [vmem:[#allocation2 + $0xa0] sm:$0x7] %v507
  %544 = vst [vmem:[#allocation2 + $0xa8] sm:$0x7] %v509
  %545 = vst [vmem:[#allocation2 + $0xb0] sm:$0x7] %v511
  %546 = vst [vmem:[#allocation2 + $0xb8] sm:$0x7] %v513
  %vm547 = vcmask 518144
  %548 = vst.msk [vmem:[#allocation2 + $0xc0] sm:$0x7] %vm547, %v515
  %v549 = vld [vmem:[%s7] ss:$8 sm:$0x7]
  %s550 = scalar_lea.vmem %s7, 1
  %v551 = vld [vmem:[%s550] ss:$8 sm:$0x7]
  %s552 = scalar_lea.vmem %s7, 2
  %v553 = vld [vmem:[%s552] ss:$8 sm:$0x7]
  %s554 = scalar_lea.vmem %s7, 3
  %v555 = vld [vmem:[%s554] ss:$8 sm:$0x3]
  %s556 = scalar_lea.vmem %s7, 4
  %v557 = vld [vmem:[%s556] ss:$8 sm:$0x3]
  %s558 = scalar_lea.vmem %s7, 5
  %v559 = vld [vmem:[%s558] ss:$8 sm:$0x3]
  %v560 = vld [vmem:[#allocation2] sm:$0xff]
  %v561 = vld [vmem:[#allocation2 + $0x8] sm:$0xff]
  %v562 = vld [vmem:[#allocation2 + $0x10] sm:$0xff]
  %v563 = vld [vmem:[#allocation2 + $0x18] sm:$0xff]
  %v564 = vld [vmem:[#allocation2 + $0x20] sm:$0xff]
  %v565 = vld [vmem:[#allocation2 + $0x28] sm:$0xff]
  %v566 = vld [vmem:[#allocation2 + $0x30] sm:$0xff]
  %v567 = vld [vmem:[#allocation2 + $0x38] sm:$0xff]
  %v568 = vld [vmem:[#allocation2 + $0x40] sm:$0xff]
  %v569 = vld [vmem:[#allocation2 + $0x48] sm:$0xff]
  %v570 = vpack.c.bf16 %v565, %v560
  %v571 = vpack.c.bf16 %v566, %v561
  %v572 = vpack.c.bf16 %v567, %v562
  %v573 = vpack.c.bf16 %v568, %v563
  %v574 = vpack.c.bf16 %v569, %v564
  %v575 = vld [vmem:[%s3] sm:$0xff]
  %v576 = vld [vmem:[%s3 + $0x8] sm:$0xf]
  %v577 = vld [vmem:[%s3 + $0xc] sm:$0xff]
  %v578 = vld [vmem:[%s3 + $0x14] sm:$0xf]
  %v579 = vld [vmem:[%s3 + $0x18] sm:$0xff]
  %v580 = vld [vmem:[%s3 + $0x20] sm:$0xf]
  %v581 = vld [vmem:[%s3 + $0x24] sm:$0xff]
  %v582 = vld [vmem:[%s3 + $0x2c] sm:$0xf]
  %v583 = vld [vmem:[%s3 + $0x30] sm:$0xff]
  %v584 = vld [vmem:[%s3 + $0x38] sm:$0xf]
  %v585 = vld [vmem:[%s3 + $0x3c] sm:$0xff]
  %v586 = vld [vmem:[%s3 + $0x44] sm:$0xf]
  %v587 = vld [vmem:[%s3 + $0x48] sm:$0xff]
  %v588 = vld [vmem:[%s3 + $0x50] sm:$0xf]
  %v589 = vld [vmem:[%s3 + $0x54] sm:$0xff]
  %v590 = vld [vmem:[%s3 + $0x5c] sm:$0xf]
  %v591 = vld [vmem:[%s3 + $0x60] sm:$0xff]
  %v592 = vld [vmem:[%s3 + $0x68] sm:$0xf]
  %v593 = vld [vmem:[%s3 + $0x6c] sm:$0xff]
  %v594 = vld [vmem:[%s3 + $0x74] sm:$0xf]
  %v595 = vld [vmem:[%s3 + $0x78] sm:$0xff]
  %v596 = vld [vmem:[%s3 + $0x80] sm:$0xf]
  %v597 = vld [vmem:[%s3 + $0x84] sm:$0xff]
  %v598 = vld [vmem:[%s3 + $0x8c] sm:$0xf]
  %v599 = vld [vmem:[%s3 + $0x90] sm:$0xff]
  %v600 = vld [vmem:[%s3 + $0x98] sm:$0xf]
  %v601 = vld [vmem:[%s3 + $0x9c] sm:$0xff]
  %v602 = vld [vmem:[%s3 + $0xa4] sm:$0xf]
  %v603 = vld [vmem:[%s3 + $0xa8] sm:$0xff]
  %v604 = vld [vmem:[%s3 + $0xb0] sm:$0xf]
  %v605 = vld [vmem:[%s3 + $0xb4] sm:$0xff]
  %v606 = vld [vmem:[%s3 + $0xbc] sm:$0xf]
  %v607 = vld [vmem:[%s3 + $0xc0] sm:$0xff]
  %v608 = vld [vmem:[%s3 + $0xc8] sm:$0xf]
  %v609 = vld [vmem:[%s3 + $0xcc] sm:$0xff]
  %v610 = vld [vmem:[%s3 + $0xd4] sm:$0xf]
  %v611 = vld [vmem:[%s3 + $0xd8] sm:$0xff]
  %v612 = vld [vmem:[%s3 + $0xe0] sm:$0xf]
  %v613 = vld [vmem:[%s3 + $0xe4] sm:$0xff]
  %v614 = vld [vmem:[%s3 + $0xec] sm:$0xf]
  %v615 = vld [vmem:[%s3 + $0xf0] sm:$0xff]
  %v616 = vld [vmem:[%s3 + $0xf8] sm:$0xf]
  %v617 = vld [vmem:[%s3 + $0xfc] sm:$0xff]
  %v618 = vld [vmem:[%s3 + $0x104] sm:$0xf]
  %v619 = vld [vmem:[%s3 + $0x108] sm:$0xff]
  %v620 = vld [vmem:[%s3 + $0x110] sm:$0xf]
  %v621 = vld [vmem:[%s3 + $0x114] sm:$0xff]
  %v622 = vld [vmem:[%s3 + $0x11c] sm:$0xf]
  %v623 = vld [vmem:[%s3 + $0x120] sm:$0xff]
  %v624 = vld [vmem:[%s3 + $0x128] sm:$0xf]
  %v625 = vld [vmem:[%s3 + $0x12c] sm:$0xff]
  %v626 = vld [vmem:[%s3 + $0x134] sm:$0xf]
  %v627 = vld [vmem:[%s3 + $0x138] sm:$0xff]
  %v628 = vld [vmem:[%s3 + $0x140] sm:$0xf]
  %v629 = vld [vmem:[%s3 + $0x144] sm:$0xff]
  %v630 = vld [vmem:[%s3 + $0x14c] sm:$0xf]
  %v631 = vld [vmem:[%s3 + $0x150] sm:$0xff]
  %v632 = vld [vmem:[%s3 + $0x158] sm:$0xf]
  %v633 = vld [vmem:[%s3 + $0x15c] sm:$0xff]
  %v634 = vld [vmem:[%s3 + $0x164] sm:$0xf]
  %v635 = vld [vmem:[%s3 + $0x168] sm:$0xff]
  %v636 = vld [vmem:[%s3 + $0x170] sm:$0xf]
  %v637 = vld [vmem:[%s3 + $0x174] sm:$0xff]
  %v638 = vld [vmem:[%s3 + $0x17c] sm:$0xf]
  %v639 = vld [vmem:[%s3 + $0x180] sm:$0xff]
  %v640 = vld [vmem:[%s3 + $0x188] sm:$0xf]
  %v641 = vld [vmem:[%s3 + $0x18c] sm:$0xff]
  %v642 = vld [vmem:[%s3 + $0x194] sm:$0xf]
  %v643 = vld [vmem:[%s3 + $0x198] sm:$0xff]
  %v644 = vld [vmem:[%s3 + $0x1a0] sm:$0xf]
  %v645 = vld [vmem:[%s3 + $0x1a4] sm:$0xff]
  %v646 = vld [vmem:[%s3 + $0x1ac] sm:$0xf]
  %v647 = vld [vmem:[%s3 + $0x1b0] sm:$0xff]
  %v648 = vld [vmem:[%s3 + $0x1b8] sm:$0xf]
  %v649 = vld [vmem:[%s3 + $0x1bc] sm:$0xff]
  %v650 = vld [vmem:[%s3 + $0x1c4] sm:$0xf]
  %v651 = vld [vmem:[%s3 + $0x1c8] sm:$0xff]
  %v652 = vld [vmem:[%s3 + $0x1d0] sm:$0xf]
  %v653 = vld [vmem:[%s3 + $0x1d4] sm:$0xff]
  %v654 = vld [vmem:[%s3 + $0x1dc] sm:$0xf]
  %v655 = vld [vmem:[%s3 + $0x1e0] sm:$0xff]
  %v656 = vld [vmem:[%s3 + $0x1e8] sm:$0xf]
  %v657 = vld [vmem:[%s3 + $0x1ec] sm:$0xff]
  %v658 = vld [vmem:[%s3 + $0x1f4] sm:$0xf]
  %v659 = vld [vmem:[%s3 + $0x1f8] sm:$0xff]
  %v660 = vld [vmem:[%s3 + $0x200] sm:$0xf]
  %v661 = vld [vmem:[%s3 + $0x204] sm:$0xff]
  %v662 = vld [vmem:[%s3 + $0x20c] sm:$0xf]
  %v663 = vld [vmem:[%s3 + $0x210] sm:$0xff]
  %v664 = vld [vmem:[%s3 + $0x218] sm:$0xf]
  %v665 = vld [vmem:[%s3 + $0x21c] sm:$0xff]
  %v666 = vld [vmem:[%s3 + $0x224] sm:$0xf]
  %v667 = vld [vmem:[%s3 + $0x228] sm:$0xff]
  %v668 = vld [vmem:[%s3 + $0x230] sm:$0xf]
  %v669 = vld [vmem:[%s3 + $0x234] sm:$0xff]
  %v670 = vld [vmem:[%s3 + $0x23c] sm:$0xf]
  %v671 = vld [vmem:[%s3 + $0x240] sm:$0xff]
  %v672 = vld [vmem:[%s3 + $0x248] sm:$0xf]
  %v673 = vld [vmem:[%s3 + $0x24c] sm:$0xff]
  %v674 = vld [vmem:[%s3 + $0x254] sm:$0xf]
  %v675 = vld [vmem:[%s3 + $0x258] sm:$0xff]
  %v676 = vld [vmem:[%s3 + $0x260] sm:$0xf]
  %v677 = vld [vmem:[%s3 + $0x264] sm:$0xff]
  %v678 = vld [vmem:[%s3 + $0x26c] sm:$0xf]
  %v679 = vld [vmem:[%s3 + $0x270] sm:$0xff]
  %v680 = vld [vmem:[%s3 + $0x278] sm:$0xf]
  %v681 = vld [vmem:[%s3 + $0x27c] sm:$0xff]
  %v682 = vld [vmem:[%s3 + $0x284] sm:$0xf]
  %v683 = vld [vmem:[%s3 + $0x288] sm:$0xff]
  %v684 = vld [vmem:[%s3 + $0x290] sm:$0xf]
  %v685 = vld [vmem:[%s3 + $0x294] sm:$0xff]
  %v686 = vld [vmem:[%s3 + $0x29c] sm:$0xf]
  %v687 = vld [vmem:[%s3 + $0x2a0] sm:$0xff]
  %v688 = vld [vmem:[%s3 + $0x2a8] sm:$0xf]
  %v689 = vld [vmem:[%s3 + $0x2ac] sm:$0xff]
  %v690 = vld [vmem:[%s3 + $0x2b4] sm:$0xf]
  %v691 = vld [vmem:[%s3 + $0x2b8] sm:$0xff]
  %v692 = vld [vmem:[%s3 + $0x2c0] sm:$0xf]
  %v693 = vld [vmem:[%s3 + $0x2c4] sm:$0xff]
  %v694 = vld [vmem:[%s3 + $0x2cc] sm:$0xf]
  %v695 = vld [vmem:[%s3 + $0x2d0] sm:$0xff]
  %v696 = vld [vmem:[%s3 + $0x2d8] sm:$0xf]
  %v697 = vld [vmem:[%s3 + $0x2dc] sm:$0xff]
  %v698 = vld [vmem:[%s3 + $0x2e4] sm:$0xf]
  %v699 = vld [vmem:[%s3 + $0x2e8] sm:$0xff]
  %v700 = vld [vmem:[%s3 + $0x2f0] sm:$0xf]
  %v701 = vld [vmem:[%s3 + $0x2f4] sm:$0xff]
  %v702 = vld [vmem:[%s3 + $0x2fc] sm:$0xf]
  %v703 = vld [vmem:[%s3 + $0x300] sm:$0xff]
  %v704 = vld [vmem:[%s3 + $0x308] sm:$0xf]
  %v705 = vld [vmem:[%s3 + $0x30c] sm:$0xff]
  %v706 = vld [vmem:[%s3 + $0x314] sm:$0xf]
  %v707 = vld [vmem:[%s3 + $0x318] sm:$0xff]
  %v708 = vld [vmem:[%s3 + $0x320] sm:$0xf]
  %v709 = vld [vmem:[%s3 + $0x324] sm:$0xff]
  %v710 = vld [vmem:[%s3 + $0x32c] sm:$0xf]
  %v711 = vld [vmem:[%s3 + $0x330] sm:$0xff]
  %v712 = vld [vmem:[%s3 + $0x338] sm:$0xf]
  %v713 = vld [vmem:[%s3 + $0x33c] sm:$0xff]
  %v714 = vld [vmem:[%s3 + $0x344] sm:$0xf]
  %v715 = vld [vmem:[%s3 + $0x348] sm:$0xff]
  %v716 = vld [vmem:[%s3 + $0x350] sm:$0xf]
  %v717 = vld [vmem:[%s3 + $0x354] sm:$0xff]
  %v718 = vld [vmem:[%s3 + $0x35c] sm:$0xf]
  %v719 = vld [vmem:[#allocation2] sm:$0xfe]
  %v720 = vld [vmem:[#allocation2 + $0x8] sm:$0xfe]
  %v721 = vld [vmem:[#allocation2 + $0x10] sm:$0xfe]
  %v722 = vld [vmem:[#allocation2 + $0x18] sm:$0xfe]
  %v723 = vld [vmem:[#allocation2 + $0x20] sm:$0xfe]
  %v724 = vld [vmem:[#allocation2 + $0x50] sm:$0x1]
  %v725 = vld [vmem:[#allocation2 + $0x58] sm:$0x1]
  %v726 = vld [vmem:[#allocation2 + $0x60] sm:$0x1]
  %v727 = vld [vmem:[#allocation2 + $0x68] sm:$0x1]
  %v728 = vld [vmem:[#allocation2 + $0x70] sm:$0x1]
  %v729 = vpack.c.bf16 %v565, %v719
  %v730 = vpack.c.bf16 %v566, %v720
  %v731 = vpack.c.bf16 %v567, %v721
  %v732 = vpack.c.bf16 %v568, %v722
  %v733 = vpack.c.bf16 %v569, %v723
  %v734 = vpack.c.bf16 %v724, %v724
  %v735 = vpack.c.bf16 %v725, %v725
  %v736 = vpack.c.bf16 %v726, %v726
  %v737 = vpack.c.bf16 %v727, %v727
  %v738 = vpack.c.bf16 %v728, %v728
  %s739 = scalar_lea.vmem %s3, 864
  %v740 = vld [vmem:[%s739] sm:$0xff]
  %v741 = vld [vmem:[%s739 + $0x8] sm:$0xf]
  %v742 = vld [vmem:[%s739 + $0xc] sm:$0xff]
  %v743 = vld [vmem:[%s739 + $0x14] sm:$0xf]
  %v744 = vld [vmem:[%s739 + $0x18] sm:$0xff]
  %v745 = vld [vmem:[%s739 + $0x20] sm:$0xf]
  %v746 = vld [vmem:[%s739 + $0x24] sm:$0xff]
  %v747 = vld [vmem:[%s739 + $0x2c] sm:$0xf]
  %v748 = vld [vmem:[%s739 + $0x30] sm:$0xff]
  %v749 = vld [vmem:[%s739 + $0x38] sm:$0xf]
  %v750 = vld [vmem:[%s739 + $0x3c] sm:$0xff]
  %v751 = vld [vmem:[%s739 + $0x44] sm:$0xf]
  %v752 = vld [vmem:[%s739 + $0x48] sm:$0xff]
  %v753 = vld [vmem:[%s739 + $0x50] sm:$0xf]
  %v754 = vld [vmem:[%s739 + $0x54] sm:$0xff]
  %v755 = vld [vmem:[%s739 + $0x5c] sm:$0xf]
  %v756 = vld [vmem:[%s739 + $0x60] sm:$0xff]
  %v757 = vld [vmem:[%s739 + $0x68] sm:$0xf]
  %v758 = vld [vmem:[%s739 + $0x6c] sm:$0xff]
  %v759 = vld [vmem:[%s739 + $0x74] sm:$0xf]
  %v760 = vld [vmem:[%s739 + $0x78] sm:$0xff]
  %v761 = vld [vmem:[%s739 + $0x80] sm:$0xf]
  %v762 = vld [vmem:[%s739 + $0x84] sm:$0xff]
  %v763 = vld [vmem:[%s739 + $0x8c] sm:$0xf]
  %v764 = vld [vmem:[%s739 + $0x90] sm:$0xff]
  %v765 = vld [vmem:[%s739 + $0x98] sm:$0xf]
  %v766 = vld [vmem:[%s739 + $0x9c] sm:$0xff]
  %v767 = vld [vmem:[%s739 + $0xa4] sm:$0xf]
  %v768 = vld [vmem:[%s739 + $0xa8] sm:$0xff]
  %v769 = vld [vmem:[%s739 + $0xb0] sm:$0xf]
  %v770 = vld [vmem:[%s739 + $0xb4] sm:$0xff]
  %v771 = vld [vmem:[%s739 + $0xbc] sm:$0xf]
  %v772 = vld [vmem:[%s739 + $0xc0] sm:$0xff]
  %v773 = vld [vmem:[%s739 + $0xc8] sm:$0xf]
  %v774 = vld [vmem:[%s739 + $0xcc] sm:$0xff]
  %v775 = vld [vmem:[%s739 + $0xd4] sm:$0xf]
  %v776 = vld [vmem:[%s739 + $0xd8] sm:$0xff]
  %v777 = vld [vmem:[%s739 + $0xe0] sm:$0xf]
  %v778 = vld [vmem:[%s739 + $0xe4] sm:$0xff]
  %v779 = vld [vmem:[%s739 + $0xec] sm:$0xf]
  %v780 = vld [vmem:[%s739 + $0xf0] sm:$0xff]
  %v781 = vld [vmem:[%s739 + $0xf8] sm:$0xf]
  %v782 = vld [vmem:[%s739 + $0xfc] sm:$0xff]
  %v783 = vld [vmem:[%s739 + $0x104] sm:$0xf]
  %v784 = vld [vmem:[%s739 + $0x108] sm:$0xff]
  %v785 = vld [vmem:[%s739 + $0x110] sm:$0xf]
  %v786 = vld [vmem:[%s739 + $0x114] sm:$0xff]
  %v787 = vld [vmem:[%s739 + $0x11c] sm:$0xf]
  %v788 = vld [vmem:[%s739 + $0x120] sm:$0xff]
  %v789 = vld [vmem:[%s739 + $0x128] sm:$0xf]
  %v790 = vld [vmem:[%s739 + $0x12c] sm:$0xff]
  %v791 = vld [vmem:[%s739 + $0x134] sm:$0xf]
  %v792 = vld [vmem:[%s739 + $0x138] sm:$0xff]
  %v793 = vld [vmem:[%s739 + $0x140] sm:$0xf]
  %v794 = vld [vmem:[%s739 + $0x144] sm:$0xff]
  %v795 = vld [vmem:[%s739 + $0x14c] sm:$0xf]
  %v796 = vld [vmem:[%s739 + $0x150] sm:$0xff]
  %v797 = vld [vmem:[%s739 + $0x158] sm:$0xf]
  %v798 = vld [vmem:[%s739 + $0x15c] sm:$0xff]
  %v799 = vld [vmem:[%s739 + $0x164] sm:$0xf]
  %v800 = vld [vmem:[%s739 + $0x168] sm:$0xff]
  %v801 = vld [vmem:[%s739 + $0x170] sm:$0xf]
  %v802 = vld [vmem:[%s739 + $0x174] sm:$0xff]
  %v803 = vld [vmem:[%s739 + $0x17c] sm:$0xf]
  %v804 = vld [vmem:[%s739 + $0x180] sm:$0xff]
  %v805 = vld [vmem:[%s739 + $0x188] sm:$0xf]
  %v806 = vld [vmem:[%s739 + $0x18c] sm:$0xff]
  %v807 = vld [vmem:[%s739 + $0x194] sm:$0xf]
  %v808 = vld [vmem:[%s739 + $0x198] sm:$0xff]
  %v809 = vld [vmem:[%s739 + $0x1a0] sm:$0xf]
  %v810 = vld [vmem:[%s739 + $0x1a4] sm:$0xff]
  %v811 = vld [vmem:[%s739 + $0x1ac] sm:$0xf]
  %v812 = vld [vmem:[%s739 + $0x1b0] sm:$0xff]
  %v813 = vld [vmem:[%s739 + $0x1b8] sm:$0xf]
  %v814 = vld [vmem:[%s739 + $0x1bc] sm:$0xff]
  %v815 = vld [vmem:[%s739 + $0x1c4] sm:$0xf]
  %v816 = vld [vmem:[%s739 + $0x1c8] sm:$0xff]
  %v817 = vld [vmem:[%s739 + $0x1d0] sm:$0xf]
  %v818 = vld [vmem:[%s739 + $0x1d4] sm:$0xff]
  %v819 = vld [vmem:[%s739 + $0x1dc] sm:$0xf]
  %v820 = vld [vmem:[%s739 + $0x1e0] sm:$0xff]
  %v821 = vld [vmem:[%s739 + $0x1e8] sm:$0xf]
  %v822 = vld [vmem:[%s739 + $0x1ec] sm:$0xff]
  %v823 = vld [vmem:[%s739 + $0x1f4] sm:$0xf]
  %v824 = vld [vmem:[%s739 + $0x1f8] sm:$0xff]
  %v825 = vld [vmem:[%s739 + $0x200] sm:$0xf]
  %v826 = vld [vmem:[%s739 + $0x204] sm:$0xff]
  %v827 = vld [vmem:[%s739 + $0x20c] sm:$0xf]
  %v828 = vld [vmem:[%s739 + $0x210] sm:$0xff]
  %v829 = vld [vmem:[%s739 + $0x218] sm:$0xf]
  %v830 = vld [vmem:[%s739 + $0x21c] sm:$0xff]
  %v831 = vld [vmem:[%s739 + $0x224] sm:$0xf]
  %v832 = vld [vmem:[%s739 + $0x228] sm:$0xff]
  %v833 = vld [vmem:[%s739 + $0x230] sm:$0xf]
  %v834 = vld [vmem:[%s739 + $0x234] sm:$0xff]
  %v835 = vld [vmem:[%s739 + $0x23c] sm:$0xf]
  %v836 = vld [vmem:[%s739 + $0x240] sm:$0xff]
  %v837 = vld [vmem:[%s739 + $0x248] sm:$0xf]
  %v838 = vld [vmem:[%s739 + $0x24c] sm:$0xff]
  %v839 = vld [vmem:[%s739 + $0x254] sm:$0xf]
  %v840 = vld [vmem:[%s739 + $0x258] sm:$0xff]
  %v841 = vld [vmem:[%s739 + $0x260] sm:$0xf]
  %v842 = vld [vmem:[%s739 + $0x264] sm:$0xff]
  %v843 = vld [vmem:[%s739 + $0x26c] sm:$0xf]
  %v844 = vld [vmem:[%s739 + $0x270] sm:$0xff]
  %v845 = vld [vmem:[%s739 + $0x278] sm:$0xf]
  %v846 = vld [vmem:[%s739 + $0x27c] sm:$0xff]
  %v847 = vld [vmem:[%s739 + $0x284] sm:$0xf]
  %v848 = vld [vmem:[%s739 + $0x288] sm:$0xff]
  %v849 = vld [vmem:[%s739 + $0x290] sm:$0xf]
  %v850 = vld [vmem:[%s739 + $0x294] sm:$0xff]
  %v851 = vld [vmem:[%s739 + $0x29c] sm:$0xf]
  %v852 = vld [vmem:[%s739 + $0x2a0] sm:$0xff]
  %v853 = vld [vmem:[%s739 + $0x2a8] sm:$0xf]
  %v854 = vld [vmem:[%s739 + $0x2ac] sm:$0xff]
  %v855 = vld [vmem:[%s739 + $0x2b4] sm:$0xf]
  %v856 = vld [vmem:[%s739 + $0x2b8] sm:$0xff]
  %v857 = vld [vmem:[%s739 + $0x2c0] sm:$0xf]
  %v858 = vld [vmem:[%s739 + $0x2c4] sm:$0xff]
  %v859 = vld [vmem:[%s739 + $0x2cc] sm:$0xf]
  %v860 = vld [vmem:[%s739 + $0x2d0] sm:$0xff]
  %v861 = vld [vmem:[%s739 + $0x2d8] sm:$0xf]
  %v862 = vld [vmem:[%s739 + $0x2dc] sm:$0xff]
  %v863 = vld [vmem:[%s739 + $0x2e4] sm:$0xf]
  %v864 = vld [vmem:[%s739 + $0x2e8] sm:$0xff]
  %v865 = vld [vmem:[%s739 + $0x2f0] sm:$0xf]
  %v866 = vld [vmem:[%s739 + $0x2f4] sm:$0xff]
  %v867 = vld [vmem:[%s739 + $0x2fc] sm:$0xf]
  %v868 = vld [vmem:[%s739 + $0x300] sm:$0xff]
  %v869 = vld [vmem:[%s739 + $0x308] sm:$0xf]
  %v870 = vld [vmem:[%s739 + $0x30c] sm:$0xff]
  %v871 = vld [vmem:[%s739 + $0x314] sm:$0xf]
  %v872 = vld [vmem:[%s739 + $0x318] sm:$0xff]
  %v873 = vld [vmem:[%s739 + $0x320] sm:$0xf]
  %v874 = vld [vmem:[%s739 + $0x324] sm:$0xff]
  %v875 = vld [vmem:[%s739 + $0x32c] sm:$0xf]
  %v876 = vld [vmem:[%s739 + $0x330] sm:$0xff]
  %v877 = vld [vmem:[%s739 + $0x338] sm:$0xf]
  %v878 = vld [vmem:[%s739 + $0x33c] sm:$0xff]
  %v879 = vld [vmem:[%s739 + $0x344] sm:$0xf]
  %v880 = vld [vmem:[%s739 + $0x348] sm:$0xff]
  %v881 = vld [vmem:[%s739 + $0x350] sm:$0xf]
  %v882 = vld [vmem:[%s739 + $0x354] sm:$0xff]
  %v883 = vld [vmem:[%s739 + $0x35c] sm:$0xf]
  %vm884 = vsmask.f32 7424
  %v886 = vshrl.u32 %v729, 16
  %v888 = vshll.u32 %v729, 16
  %v890 = vrot.slane %v888, 1
  %v891 = vor.u32 %v886, %v890
  %v893 = vshll.u32 %v734, 16
  %v895 = vrot.slane %v893, 1
  %v896 = vsel %vm884, %v891, %v895
  %v898 = vshrl.u32 %v730, 16
  %v900 = vshll.u32 %v730, 16
  %v902 = vrot.slane %v900, 1
  %v903 = vor.u32 %v898, %v902
  %v905 = vshll.u32 %v735, 16
  %v907 = vrot.slane %v905, 1
  %v908 = vsel %vm884, %v903, %v907
  %v910 = vshrl.u32 %v731, 16
  %v912 = vshll.u32 %v731, 16
  %v914 = vrot.slane %v912, 1
  %v915 = vor.u32 %v910, %v914
  %v917 = vshll.u32 %v736, 16
  %v919 = vrot.slane %v917, 1
  %v920 = vsel %vm884, %v915, %v919
  %v922 = vshrl.u32 %v732, 16
  %v924 = vshll.u32 %v732, 16
  %v926 = vrot.slane %v924, 1
  %v927 = vor.u32 %v922, %v926
  %v929 = vshll.u32 %v737, 16
  %v931 = vrot.slane %v929, 1
  %v932 = vsel %vm884, %v927, %v931
  %v934 = vshrl.u32 %v733, 16
  %v936 = vshll.u32 %v733, 16
  %v938 = vrot.slane %v936, 1
  %v939 = vor.u32 %v934, %v938
  %v941 = vshll.u32 %v738, 16
  %v943 = vrot.slane %v941, 1
  %v944 = vsel %vm884, %v939, %v943
  %v1093 = vunpack.c.l.b16 %v740
  %v1094 = vunpack.c.h.b16 %v740
  %v1095 = vunpack.c.l.b16 %v741
  %v1096 = vunpack.c.l.b16 %v742
  %v1097 = vunpack.c.h.b16 %v742
  %v1098 = vunpack.c.l.b16 %v743
  %v1099 = vunpack.c.l.b16 %v744
  %v1100 = vunpack.c.h.b16 %v744
  %v1101 = vunpack.c.l.b16 %v745
  %v1102 = vunpack.c.l.b16 %v746
  %v1103 = vunpack.c.h.b16 %v746
  %v1104 = vunpack.c.l.b16 %v747
  %v1105 = vunpack.c.l.b16 %v748
  %v1106 = vunpack.c.h.b16 %v748
  %v1107 = vunpack.c.l.b16 %v749
  %v1108 = vunpack.c.l.b16 %v750
  %v1109 = vunpack.c.h.b16 %v750
  %v1110 = vunpack.c.l.b16 %v751
  %v1111 = vunpack.c.l.b16 %v752
  %v1112 = vunpack.c.h.b16 %v752
  %v1113 = vunpack.c.l.b16 %v753
  %v1114 = vunpack.c.l.b16 %v754
  %v1115 = vunpack.c.h.b16 %v754
  %v1116 = vunpack.c.l.b16 %v755
  %v1117 = vunpack.c.l.b16 %v756
  %v1118 = vunpack.c.h.b16 %v756
  %v1119 = vunpack.c.l.b16 %v757
  %v1120 = vunpack.c.l.b16 %v758
  %v1121 = vunpack.c.h.b16 %v758
  %v1122 = vunpack.c.l.b16 %v759
  %v1123 = vunpack.c.l.b16 %v760
  %v1124 = vunpack.c.h.b16 %v760
  %v1125 = vunpack.c.l.b16 %v761
  %v1126 = vunpack.c.l.b16 %v762
  %v1127 = vunpack.c.h.b16 %v762
  %v1128 = vunpack.c.l.b16 %v763
  %v1129 = vunpack.c.l.b16 %v764
  %v1130 = vunpack.c.h.b16 %v764
  %v1131 = vunpack.c.l.b16 %v765
  %v1132 = vunpack.c.l.b16 %v766
  %v1133 = vunpack.c.h.b16 %v766
  %v1134 = vunpack.c.l.b16 %v767
  %v1135 = vunpack.c.l.b16 %v768
  %v1136 = vunpack.c.h.b16 %v768
  %v1137 = vunpack.c.l.b16 %v769
  %v1138 = vunpack.c.l.b16 %v770
  %v1139 = vunpack.c.h.b16 %v770
  %v1140 = vunpack.c.l.b16 %v771
  %v1141 = vunpack.c.l.b16 %v772
  %v1142 = vunpack.c.h.b16 %v772
  %v1143 = vunpack.c.l.b16 %v773
  %v1144 = vunpack.c.l.b16 %v774
  %v1145 = vunpack.c.h.b16 %v774
  %v1146 = vunpack.c.l.b16 %v775
  %v1147 = vunpack.c.l.b16 %v776
  %v1148 = vunpack.c.h.b16 %v776
  %v1149 = vunpack.c.l.b16 %v777
  %v1150 = vunpack.c.l.b16 %v778
  %v1151 = vunpack.c.h.b16 %v778
  %v1152 = vunpack.c.l.b16 %v779
  %v1153 = vunpack.c.l.b16 %v780
  %v1154 = vunpack.c.h.b16 %v780
  %v1155 = vunpack.c.l.b16 %v781
  %v1156 = vunpack.c.l.b16 %v782
  %v1157 = vunpack.c.h.b16 %v782
  %v1158 = vunpack.c.l.b16 %v783
  %v1159 = vunpack.c.l.b16 %v784
  %v1160 = vunpack.c.h.b16 %v784
  %v1161 = vunpack.c.l.b16 %v785
  %v1162 = vunpack.c.l.b16 %v786
  %v1163 = vunpack.c.h.b16 %v786
  %v1164 = vunpack.c.l.b16 %v787
  %v1165 = vunpack.c.l.b16 %v788
  %v1166 = vunpack.c.h.b16 %v788
  %v1167 = vunpack.c.l.b16 %v789
  %v1168 = vunpack.c.l.b16 %v790
  %v1169 = vunpack.c.h.b16 %v790
  %v1170 = vunpack.c.l.b16 %v791
  %v1171 = vunpack.c.l.b16 %v792
  %v1172 = vunpack.c.h.b16 %v792
  %v1173 = vunpack.c.l.b16 %v793
  %v1174 = vunpack.c.l.b16 %v794
  %v1175 = vunpack.c.h.b16 %v794
  %v1176 = vunpack.c.l.b16 %v795
  %v1177 = vunpack.c.l.b16 %v796
  %v1178 = vunpack.c.h.b16 %v796
  %v1179 = vunpack.c.l.b16 %v797
  %v1180 = vunpack.c.l.b16 %v798
  %v1181 = vunpack.c.h.b16 %v798
  %v1182 = vunpack.c.l.b16 %v799
  %v1183 = vunpack.c.l.b16 %v800
  %v1184 = vunpack.c.h.b16 %v800
  %v1185 = vunpack.c.l.b16 %v801
  %v1186 = vunpack.c.l.b16 %v802
  %v1187 = vunpack.c.h.b16 %v802
  %v1188 = vunpack.c.l.b16 %v803
  %v1189 = vunpack.c.l.b16 %v804
  %v1190 = vunpack.c.h.b16 %v804
  %v1191 = vunpack.c.l.b16 %v805
  %v1192 = vunpack.c.l.b16 %v806
  %v1193 = vunpack.c.h.b16 %v806
  %v1194 = vunpack.c.l.b16 %v807
  %v1195 = vunpack.c.l.b16 %v808
  %v1196 = vunpack.c.h.b16 %v808
  %v1197 = vunpack.c.l.b16 %v809
  %v1198 = vunpack.c.l.b16 %v810
  %v1199 = vunpack.c.h.b16 %v810
  %v1200 = vunpack.c.l.b16 %v811
  %v1201 = vunpack.c.l.b16 %v812
  %v1202 = vunpack.c.h.b16 %v812
  %v1203 = vunpack.c.l.b16 %v813
  %v1204 = vunpack.c.l.b16 %v814
  %v1205 = vunpack.c.h.b16 %v814
  %v1206 = vunpack.c.l.b16 %v815
  %v1207 = vunpack.c.l.b16 %v816
  %v1208 = vunpack.c.h.b16 %v816
  %v1209 = vunpack.c.l.b16 %v817
  %v1210 = vunpack.c.l.b16 %v818
  %v1211 = vunpack.c.h.b16 %v818
  %v1212 = vunpack.c.l.b16 %v819
  %v1213 = vunpack.c.l.b16 %v820
  %v1214 = vunpack.c.h.b16 %v820
  %v1215 = vunpack.c.l.b16 %v821
  %v1216 = vunpack.c.l.b16 %v822
  %v1217 = vunpack.c.h.b16 %v822
  %v1218 = vunpack.c.l.b16 %v823
  %v1219 = vunpack.c.l.b16 %v824
  %v1220 = vunpack.c.h.b16 %v824
  %v1221 = vunpack.c.l.b16 %v825
  %v1222 = vunpack.c.l.b16 %v826
  %v1223 = vunpack.c.h.b16 %v826
  %v1224 = vunpack.c.l.b16 %v827
  %v1225 = vunpack.c.l.b16 %v828
  %v1226 = vunpack.c.h.b16 %v828
  %v1227 = vunpack.c.l.b16 %v829
  %v1228 = vunpack.c.l.b16 %v830
  %v1229 = vunpack.c.h.b16 %v830
  %v1230 = vunpack.c.l.b16 %v831
  %v1231 = vunpack.c.l.b16 %v832
  %v1232 = vunpack.c.h.b16 %v832
  %v1233 = vunpack.c.l.b16 %v833
  %v1234 = vunpack.c.l.b16 %v834
  %v1235 = vunpack.c.h.b16 %v834
  %v1236 = vunpack.c.l.b16 %v835
  %v1237 = vunpack.c.l.b16 %v836
  %v1238 = vunpack.c.h.b16 %v836
  %v1239 = vunpack.c.l.b16 %v837
  %v1240 = vunpack.c.l.b16 %v838
  %v1241 = vunpack.c.h.b16 %v838
  %v1242 = vunpack.c.l.b16 %v839
  %v1243 = vunpack.c.l.b16 %v840
  %v1244 = vunpack.c.h.b16 %v840
  %v1245 = vunpack.c.l.b16 %v841
  %v1246 = vunpack.c.l.b16 %v842
  %v1247 = vunpack.c.h.b16 %v842
  %v1248 = vunpack.c.l.b16 %v843
  %v1249 = vunpack.c.l.b16 %v844
  %v1250 = vunpack.c.h.b16 %v844
  %v1251 = vunpack.c.l.b16 %v845
  %v1252 = vunpack.c.l.b16 %v846
  %v1253 = vunpack.c.h.b16 %v846
  %v1254 = vunpack.c.l.b16 %v847
  %v1255 = vunpack.c.l.b16 %v848
  %v1256 = vunpack.c.h.b16 %v848
  %v1257 = vunpack.c.l.b16 %v849
  %v1258 = vunpack.c.l.b16 %v850
  %v1259 = vunpack.c.h.b16 %v850
  %v1260 = vunpack.c.l.b16 %v851
  %v1261 = vunpack.c.l.b16 %v852
  %v1262 = vunpack.c.h.b16 %v852
  %v1263 = vunpack.c.l.b16 %v853
  %v1264 = vunpack.c.l.b16 %v854
  %v1265 = vunpack.c.h.b16 %v854
  %v1266 = vunpack.c.l.b16 %v855
  %v1267 = vunpack.c.l.b16 %v856
  %v1268 = vunpack.c.h.b16 %v856
  %v1269 = vunpack.c.l.b16 %v857
  %v1270 = vunpack.c.l.b16 %v858
  %v1271 = vunpack.c.h.b16 %v858
  %v1272 = vunpack.c.l.b16 %v859
  %v1273 = vunpack.c.l.b16 %v860
  %v1274 = vunpack.c.h.b16 %v860
  %v1275 = vunpack.c.l.b16 %v861
  %v1276 = vunpack.c.l.b16 %v862
  %v1277 = vunpack.c.h.b16 %v862
  %v1278 = vunpack.c.l.b16 %v863
  %v1279 = vunpack.c.l.b16 %v864
  %v1280 = vunpack.c.h.b16 %v864
  %v1281 = vunpack.c.l.b16 %v865
  %v1282 = vunpack.c.l.b16 %v866
  %v1283 = vunpack.c.h.b16 %v866
  %v1284 = vunpack.c.l.b16 %v867
  %v1285 = vunpack.c.l.b16 %v868
  %v1286 = vunpack.c.h.b16 %v868
  %v1287 = vunpack.c.l.b16 %v869
  %v1288 = vunpack.c.l.b16 %v870
  %v1289 = vunpack.c.h.b16 %v870
  %v1290 = vunpack.c.l.b16 %v871
  %v1291 = vunpack.c.l.b16 %v872
  %v1292 = vunpack.c.h.b16 %v872
  %v1293 = vunpack.c.l.b16 %v873
  %v1294 = vunpack.c.l.b16 %v874
  %v1295 = vunpack.c.h.b16 %v874
  %v1296 = vunpack.c.l.b16 %v875
  %v1297 = vunpack.c.l.b16 %v876
  %v1298 = vunpack.c.h.b16 %v876
  %v1299 = vunpack.c.l.b16 %v877
  %v1300 = vunpack.c.l.b16 %v878
  %v1301 = vunpack.c.h.b16 %v878
  %v1302 = vunpack.c.l.b16 %v879
  %v1303 = vunpack.c.l.b16 %v880
  %v1304 = vunpack.c.h.b16 %v880
  %v1305 = vunpack.c.l.b16 %v881
  %v1306 = vunpack.c.l.b16 %v882
  %v1307 = vunpack.c.h.b16 %v882
  %v1308 = vunpack.c.l.b16 %v883
  %v1309 = vpack.c.b16 %v1096, %v1093
  %v1310 = vpack.c.b16 %v1097, %v1094
  %v1311 = vpack.c.b16 %v1098, %v1095
  %v1312 = vpack.c.b16 %v1102, %v1099
  %v1313 = vpack.c.b16 %v1103, %v1100
  %v1314 = vpack.c.b16 %v1104, %v1101
  %v1315 = vpack.c.b16 %v1108, %v1105
  %v1316 = vpack.c.b16 %v1109, %v1106
  %v1317 = vpack.c.b16 %v1110, %v1107
  %v1318 = vpack.c.b16 %v1114, %v1111
  %v1319 = vpack.c.b16 %v1115, %v1112
  %v1320 = vpack.c.b16 %v1116, %v1113
  %v1321 = vpack.c.b16 %v1120, %v1117
  %v1322 = vpack.c.b16 %v1121, %v1118
  %v1323 = vpack.c.b16 %v1122, %v1119
  %v1324 = vpack.c.b16 %v1126, %v1123
  %v1325 = vpack.c.b16 %v1127, %v1124
  %v1326 = vpack.c.b16 %v1128, %v1125
  %v1327 = vpack.c.b16 %v1132, %v1129
  %v1328 = vpack.c.b16 %v1133, %v1130
  %v1329 = vpack.c.b16 %v1134, %v1131
  %v1330 = vpack.c.b16 %v1138, %v1135
  %v1331 = vpack.c.b16 %v1139, %v1136
  %v1332 = vpack.c.b16 %v1140, %v1137
  %v1333 = vpack.c.b16 %v1144, %v1141
  %v1334 = vpack.c.b16 %v1145, %v1142
  %v1335 = vpack.c.b16 %v1146, %v1143
  %v1336 = vpack.c.b16 %v1150, %v1147
  %v1337 = vpack.c.b16 %v1151, %v1148
  %v1338 = vpack.c.b16 %v1152, %v1149
  %v1339 = vpack.c.b16 %v1156, %v1153
  %v1340 = vpack.c.b16 %v1157, %v1154
  %v1341 = vpack.c.b16 %v1158, %v1155
  %v1342 = vpack.c.b16 %v1162, %v1159
  %v1343 = vpack.c.b16 %v1163, %v1160
  %v1344 = vpack.c.b16 %v1164, %v1161
  %v1345 = vpack.c.b16 %v1168, %v1165
  %v1346 = vpack.c.b16 %v1169, %v1166
  %v1347 = vpack.c.b16 %v1170, %v1167
  %v1348 = vpack.c.b16 %v1174, %v1171
  %v1349 = vpack.c.b16 %v1175, %v1172
  %v1350 = vpack.c.b16 %v1176, %v1173
  %v1351 = vpack.c.b16 %v1180, %v1177
  %v1352 = vpack.c.b16 %v1181, %v1178
  %v1353 = vpack.c.b16 %v1182, %v1179
  %v1354 = vpack.c.b16 %v1186, %v1183
  %v1355 = vpack.c.b16 %v1187, %v1184
  %v1356 = vpack.c.b16 %v1188, %v1185
  %v1357 = vpack.c.b16 %v1192, %v1189
  %v1358 = vpack.c.b16 %v1193, %v1190
  %v1359 = vpack.c.b16 %v1194, %v1191
  %v1360 = vpack.c.b16 %v1198, %v1195
  %v1361 = vpack.c.b16 %v1199, %v1196
  %v1362 = vpack.c.b16 %v1200, %v1197
  %v1363 = vpack.c.b16 %v1204, %v1201
  %v1364 = vpack.c.b16 %v1205, %v1202
  %v1365 = vpack.c.b16 %v1206, %v1203
  %v1366 = vpack.c.b16 %v1210, %v1207
  %v1367 = vpack.c.b16 %v1211, %v1208
  %v1368 = vpack.c.b16 %v1212, %v1209
  %v1369 = vpack.c.b16 %v1216, %v1213
  %v1370 = vpack.c.b16 %v1217, %v1214
  %v1371 = vpack.c.b16 %v1218, %v1215
  %v1372 = vpack.c.b16 %v1222, %v1219
  %v1373 = vpack.c.b16 %v1223, %v1220
  %v1374 = vpack.c.b16 %v1224, %v1221
  %v1375 = vpack.c.b16 %v1228, %v1225
  %v1376 = vpack.c.b16 %v1229, %v1226
  %v1377 = vpack.c.b16 %v1230, %v1227
  %v1378 = vpack.c.b16 %v1234, %v1231
  %v1379 = vpack.c.b16 %v1235, %v1232
  %v1380 = vpack.c.b16 %v1236, %v1233
  %v1381 = vpack.c.b16 %v1240, %v1237
  %v1382 = vpack.c.b16 %v1241, %v1238
  %v1383 = vpack.c.b16 %v1242, %v1239
  %v1384 = vpack.c.b16 %v1246, %v1243
  %v1385 = vpack.c.b16 %v1247, %v1244
  %v1386 = vpack.c.b16 %v1248, %v1245
  %v1387 = vpack.c.b16 %v1252, %v1249
  %v1388 = vpack.c.b16 %v1253, %v1250
  %v1389 = vpack.c.b16 %v1254, %v1251
  %v1390 = vpack.c.b16 %v1258, %v1255
  %v1391 = vpack.c.b16 %v1259, %v1256
  %v1392 = vpack.c.b16 %v1260, %v1257
  %v1393 = vpack.c.b16 %v1264, %v1261
  %v1394 = vpack.c.b16 %v1265, %v1262
  %v1395 = vpack.c.b16 %v1266, %v1263
  %v1396 = vpack.c.b16 %v1270, %v1267
  %v1397 = vpack.c.b16 %v1271, %v1268
  %v1398 = vpack.c.b16 %v1272, %v1269
  %v1399 = vpack.c.b16 %v1276, %v1273
  %v1400 = vpack.c.b16 %v1277, %v1274
  %v1401 = vpack.c.b16 %v1278, %v1275
  %v1402 = vpack.c.b16 %v1282, %v1279
  %v1403 = vpack.c.b16 %v1283, %v1280
  %v1404 = vpack.c.b16 %v1284, %v1281
  %v1405 = vpack.c.b16 %v1288, %v1285
  %v1406 = vpack.c.b16 %v1289, %v1286
  %v1407 = vpack.c.b16 %v1290, %v1287
  %v1408 = vpack.c.b16 %v1294, %v1291
  %v1409 = vpack.c.b16 %v1295, %v1292
  %v1410 = vpack.c.b16 %v1296, %v1293
  %v1411 = vpack.c.b16 %v1300, %v1297
  %v1412 = vpack.c.b16 %v1301, %v1298
  %v1413 = vpack.c.b16 %v1302, %v1299
  %v1414 = vpack.c.b16 %v1306, %v1303
  %v1415 = vpack.c.b16 %v1307, %v1304
  %v1416 = vpack.c.b16 %v1308, %v1305
  %v1526 = vsel %vm477, %v944, 0
  %1528 = vmatpush.bf16.msra.mxu0 %v1330
  %1529 = vmatpush.bf16.msra.mxu0 %v1327
  %1530 = vmatpush.bf16.msra.mxu0 %v1324
  %1531 = vmatpush.bf16.msra.mxu0 %v1321
  %1532 = vmatpush.bf16.msra.mxu0 %v1318
  %1533 = vmatpush.bf16.msra.mxu0 %v1315
  %1534 = vmatpush.bf16.msra.mxu0 %v1312
  %1535 = vmatpush.bf16.msra.mxu0 %v1309
  %1536 = vmatmul.bf16.gmra.mxu0 %v896
  %v1537 = vpop.f32.mrf.mxu0
  %v1538 = vadd.f32 0.0, %v1537
  %v1539 = vpop.f32.mrf.mxu0
  %v1540 = vadd.f32 0.0, %v1539
  %1541 = vdwg.mxu0
  %1542 = vmatpush.bf16.msra.mxu0 %v1354
  %1543 = vmatpush.bf16.msra.mxu0 %v1351
  %1544 = vmatpush.bf16.msra.mxu0 %v1348
  %1545 = vmatpush.bf16.msra.mxu0 %v1345
  %1546 = vmatpush.bf16.msra.mxu0 %v1342
  %1547 = vmatpush.bf16.msra.mxu0 %v1339
  %1548 = vmatpush.bf16.msra.mxu0 %v1336
  %1549 = vmatpush.bf16.msra.mxu0 %v1333
  %1550 = vmatmul.bf16.gmra.mxu0 %v908
  %v1551 = vpop.f32.mrf.mxu0
  %v1552 = vadd.f32 %v1538, %v1551
  %v1553 = vpop.f32.mrf.mxu0
  %v1554 = vadd.f32 %v1540, %v1553
  %1555 = vdwg.mxu0
  %1556 = vmatpush.bf16.msra.mxu0 %v1378
  %1557 = vmatpush.bf16.msra.mxu0 %v1375
  %1558 = vmatpush.bf16.msra.mxu0 %v1372
  %1559 = vmatpush.bf16.msra.mxu0 %v1369
  %1560 = vmatpush.bf16.msra.mxu0 %v1366
  %1561 = vmatpush.bf16.msra.mxu0 %v1363
  %1562 = vmatpush.bf16.msra.mxu0 %v1360
  %1563 = vmatpush.bf16.msra.mxu0 %v1357
  %1564 = vmatmul.bf16.gmra.mxu0 %v920
  %v1565 = vpop.f32.mrf.mxu0
  %v1566 = vadd.f32 %v1552, %v1565
  %v1567 = vpop.f32.mrf.mxu0
  %v1568 = vadd.f32 %v1554, %v1567
  %1569 = vdwg.mxu0
  %1570 = vmatpush.bf16.msra.mxu0 %v1402
  %1571 = vmatpush.bf16.msra.mxu0 %v1399
  %1572 = vmatpush.bf16.msra.mxu0 %v1396
  %1573 = vmatpush.bf16.msra.mxu0 %v1393
  %1574 = vmatpush.bf16.msra.mxu0 %v1390
  %1575 = vmatpush.bf16.msra.mxu0 %v1387
  %1576 = vmatpush.bf16.msra.mxu0 %v1384
  %1577 = vmatpush.bf16.msra.mxu0 %v1381
  %1578 = vmatmul.bf16.gmra.mxu0 %v932
  %v1579 = vpop.f32.mrf.mxu0
  %v1580 = vadd.f32 %v1566, %v1579
  %v1581 = vpop.f32.mrf.mxu0
  %v1582 = vadd.f32 %v1568, %v1581
  %1583 = vdwg.mxu0
  %1584 = vmatpush.bf16.msra.mxu0 0
  %1585 = vmatpush.bf16.msra.mxu0 0
  %1586 = vmatpush.bf16.msra.mxu0 0
  %1587 = vmatpush.bf16.msra.mxu0 0
  %1588 = vmatpush.bf16.msra.mxu0 %v1414
  %1589 = vmatpush.bf16.msra.mxu0 %v1411
  %1590 = vmatpush.bf16.msra.mxu0 %v1408
  %1591 = vmatpush.bf16.msra.mxu0 %v1405
  %1592 = vmatmul.bf16.gmra.mxu0 %v1526
  %v1593 = vpop.f32.mrf.mxu0
  %v1594 = vadd.f32 %v1580, %v1593
  %v1595 = vpop.f32.mrf.mxu0
  %v1596 = vadd.f32 %v1582, %v1595
  %1597 = vdwg.mxu0
  %1598 = vmatpush.bf16.msra.mxu0 %v1331
  %1599 = vmatpush.bf16.msra.mxu0 %v1328
  %1600 = vmatpush.bf16.msra.mxu0 %v1325
  %1601 = vmatpush.bf16.msra.mxu0 %v1322
  %1602 = vmatpush.bf16.msra.mxu0 %v1319
  %1603 = vmatpush.bf16.msra.mxu0 %v1316
  %1604 = vmatpush.bf16.msra.mxu0 %v1313
  %1605 = vmatpush.bf16.msra.mxu0 %v1310
  %1606 = vmatmul.bf16.gmra.mxu0 %v896
  %v1607 = vpop.f32.mrf.mxu0
  %v1608 = vadd.f32 0.0, %v1607
  %v1609 = vpop.f32.mrf.mxu0
  %v1610 = vadd.f32 0.0, %v1609
  %1611 = vdwg.mxu0
  %1612 = vmatpush.bf16.msra.mxu0 %v1355
  %1613 = vmatpush.bf16.msra.mxu0 %v1352
  %1614 = vmatpush.bf16.msra.mxu0 %v1349
  %1615 = vmatpush.bf16.msra.mxu0 %v1346
  %1616 = vmatpush.bf16.msra.mxu0 %v1343
  %1617 = vmatpush.bf16.msra.mxu0 %v1340
  %1618 = vmatpush.bf16.msra.mxu0 %v1337
  %1619 = vmatpush.bf16.msra.mxu0 %v1334
  %1620 = vmatmul.bf16.gmra.mxu0 %v908
  %v1621 = vpop.f32.mrf.mxu0
  %v1622 = vadd.f32 %v1608, %v1621
  %v1623 = vpop.f32.mrf.mxu0
  %v1624 = vadd.f32 %v1610, %v1623
  %1625 = vdwg.mxu0
  %1626 = vmatpush.bf16.msra.mxu0 %v1379
  %1627 = vmatpush.bf16.msra.mxu0 %v1376
  %1628 = vmatpush.bf16.msra.mxu0 %v1373
  %1629 = vmatpush.bf16.msra.mxu0 %v1370
  %1630 = vmatpush.bf16.msra.mxu0 %v1367
  %1631 = vmatpush.bf16.msra.mxu0 %v1364
  %1632 = vmatpush.bf16.msra.mxu0 %v1361
  %1633 = vmatpush.bf16.msra.mxu0 %v1358
  %1634 = vmatmul.bf16.gmra.mxu0 %v920
  %v1635 = vpop.f32.mrf.mxu0
  %v1636 = vadd.f32 %v1622, %v1635
  %v1637 = vpop.f32.mrf.mxu0
  %v1638 = vadd.f32 %v1624, %v1637
  %1639 = vdwg.mxu0
  %1640 = vmatpush.bf16.msra.mxu0 %v1403
  %1641 = vmatpush.bf16.msra.mxu0 %v1400
  %1642 = vmatpush.bf16.msra.mxu0 %v1397
  %1643 = vmatpush.bf16.msra.mxu0 %v1394
  %1644 = vmatpush.bf16.msra.mxu0 %v1391
  %1645 = vmatpush.bf16.msra.mxu0 %v1388
  %1646 = vmatpush.bf16.msra.mxu0 %v1385
  %1647 = vmatpush.bf16.msra.mxu0 %v1382
  %1648 = vmatmul.bf16.gmra.mxu0 %v932
  %v1649 = vpop.f32.mrf.mxu0
  %v1650 = vadd.f32 %v1636, %v1649
  %v1651 = vpop.f32.mrf.mxu0
  %v1652 = vadd.f32 %v1638, %v1651
  %1653 = vdwg.mxu0
  %1654 = vmatpush.bf16.msra.mxu0 0
  %1655 = vmatpush.bf16.msra.mxu0 0
  %1656 = vmatpush.bf16.msra.mxu0 0
  %1657 = vmatpush.bf16.msra.mxu0 0
  %1658 = vmatpush.bf16.msra.mxu0 %v1415
  %1659 = vmatpush.bf16.msra.mxu0 %v1412
  %1660 = vmatpush.bf16.msra.mxu0 %v1409
  %1661 = vmatpush.bf16.msra.mxu0 %v1406
  %1662 = vmatmul.bf16.gmra.mxu0 %v1526
  %v1663 = vpop.f32.mrf.mxu0
  %v1664 = vadd.f32 %v1650, %v1663
  %v1665 = vpop.f32.mrf.mxu0
  %v1666 = vadd.f32 %v1652, %v1665
  %1667 = vdwg.mxu0
  %1668 = vmatpush.bf16.msra.mxu0 %v1332
  %1669 = vmatpush.bf16.msra.mxu0 %v1329
  %1670 = vmatpush.bf16.msra.mxu0 %v1326
  %1671 = vmatpush.bf16.msra.mxu0 %v1323
  %1672 = vmatpush.bf16.msra.mxu0 %v1320
  %1673 = vmatpush.bf16.msra.mxu0 %v1317
  %1674 = vmatpush.bf16.msra.mxu0 %v1314
  %1675 = vmatpush.bf16.msra.mxu0 %v1311
  %1676 = vmatmul.bf16.gmra.mxu0 %v896
  %v1677 = vpop.f32.mrf.mxu0
  %v1678 = vadd.f32 0.0, %v1677
  %v1679 = vpop.f32.mrf.mxu0
  %v1680 = vadd.f32 0.0, %v1679
  %1681 = vdwg.mxu0
  %1682 = vmatpush.bf16.msra.mxu0 %v1356
  %1683 = vmatpush.bf16.msra.mxu0 %v1353
  %1684 = vmatpush.bf16.msra.mxu0 %v1350
  %1685 = vmatpush.bf16.msra.mxu0 %v1347
  %1686 = vmatpush.bf16.msra.mxu0 %v1344
  %1687 = vmatpush.bf16.msra.mxu0 %v1341
  %1688 = vmatpush.bf16.msra.mxu0 %v1338
  %1689 = vmatpush.bf16.msra.mxu0 %v1335
  %1690 = vmatmul.bf16.gmra.mxu0 %v908
  %v1691 = vpop.f32.mrf.mxu0
  %v1692 = vadd.f32 %v1678, %v1691
  %v1693 = vpop.f32.mrf.mxu0
  %v1694 = vadd.f32 %v1680, %v1693
  %1695 = vdwg.mxu0
  %1696 = vmatpush.bf16.msra.mxu0 %v1380
  %1697 = vmatpush.bf16.msra.mxu0 %v1377
  %1698 = vmatpush.bf16.msra.mxu0 %v1374
  %1699 = vmatpush.bf16.msra.mxu0 %v1371
  %1700 = vmatpush.bf16.msra.mxu0 %v1368
  %1701 = vmatpush.bf16.msra.mxu0 %v1365
  %1702 = vmatpush.bf16.msra.mxu0 %v1362
  %1703 = vmatpush.bf16.msra.mxu0 %v1359
  %1704 = vmatmul.bf16.gmra.mxu0 %v920
  %v1705 = vpop.f32.mrf.mxu0
  %v1706 = vadd.f32 %v1692, %v1705
  %v1707 = vpop.f32.mrf.mxu0
  %v1708 = vadd.f32 %v1694, %v1707
  %1709 = vdwg.mxu0
  %1710 = vmatpush.bf16.msra.mxu0 %v1404
  %1711 = vmatpush.bf16.msra.mxu0 %v1401
  %1712 = vmatpush.bf16.msra.mxu0 %v1398
  %1713 = vmatpush.bf16.msra.mxu0 %v1395
  %1714 = vmatpush.bf16.msra.mxu0 %v1392
  %1715 = vmatpush.bf16.msra.mxu0 %v1389
  %1716 = vmatpush.bf16.msra.mxu0 %v1386
  %1717 = vmatpush.bf16.msra.mxu0 %v1383
  %1718 = vmatmul.bf16.gmra.mxu0 %v932
  %v1719 = vpop.f32.mrf.mxu0
  %v1720 = vadd.f32 %v1706, %v1719
  %v1721 = vpop.f32.mrf.mxu0
  %v1722 = vadd.f32 %v1708, %v1721
  %1723 = vdwg.mxu0
  %1724 = vmatpush.bf16.msra.mxu0 0
  %1725 = vmatpush.bf16.msra.mxu0 0
  %1726 = vmatpush.bf16.msra.mxu0 0
  %1727 = vmatpush.bf16.msra.mxu0 0
  %1728 = vmatpush.bf16.msra.mxu0 %v1416
  %1729 = vmatpush.bf16.msra.mxu0 %v1413
  %1730 = vmatpush.bf16.msra.mxu0 %v1410
  %1731 = vmatpush.bf16.msra.mxu0 %v1407
  %1732 = vmatmul.bf16.gmra.mxu0 %v1526
  %v1733 = vpop.f32.mrf.mxu0
  %v1734 = vadd.f32 %v1720, %v1733
  %v1735 = vpop.f32.mrf.mxu0
  %v1736 = vadd.f32 %v1722, %v1735
  %1737 = vdwg.mxu0
  %v1882 = vunpack.c.l.b16 %v575
  %v1883 = vunpack.c.h.b16 %v575
  %v1884 = vunpack.c.l.b16 %v576
  %v1885 = vunpack.c.l.b16 %v577
  %v1886 = vunpack.c.h.b16 %v577
  %v1887 = vunpack.c.l.b16 %v578
  %v1888 = vunpack.c.l.b16 %v579
  %v1889 = vunpack.c.h.b16 %v579
  %v1890 = vunpack.c.l.b16 %v580
  %v1891 = vunpack.c.l.b16 %v581
  %v1892 = vunpack.c.h.b16 %v581
  %v1893 = vunpack.c.l.b16 %v582
  %v1894 = vunpack.c.l.b16 %v583
  %v1895 = vunpack.c.h.b16 %v583
  %v1896 = vunpack.c.l.b16 %v584
  %v1897 = vunpack.c.l.b16 %v585
  %v1898 = vunpack.c.h.b16 %v585
  %v1899 = vunpack.c.l.b16 %v586
  %v1900 = vunpack.c.l.b16 %v587
  %v1901 = vunpack.c.h.b16 %v587
  %v1902 = vunpack.c.l.b16 %v588
  %v1903 = vunpack.c.l.b16 %v589
  %v1904 = vunpack.c.h.b16 %v589
  %v1905 = vunpack.c.l.b16 %v590
  %v1906 = vunpack.c.l.b16 %v591
  %v1907 = vunpack.c.h.b16 %v591
  %v1908 = vunpack.c.l.b16 %v592
  %v1909 = vunpack.c.l.b16 %v593
  %v1910 = vunpack.c.h.b16 %v593
  %v1911 = vunpack.c.l.b16 %v594
  %v1912 = vunpack.c.l.b16 %v595
  %v1913 = vunpack.c.h.b16 %v595
  %v1914 = vunpack.c.l.b16 %v596
  %v1915 = vunpack.c.l.b16 %v597
  %v1916 = vunpack.c.h.b16 %v597
  %v1917 = vunpack.c.l.b16 %v598
  %v1918 = vunpack.c.l.b16 %v599
  %v1919 = vunpack.c.h.b16 %v599
  %v1920 = vunpack.c.l.b16 %v600
  %v1921 = vunpack.c.l.b16 %v601
  %v1922 = vunpack.c.h.b16 %v601
  %v1923 = vunpack.c.l.b16 %v602
  %v1924 = vunpack.c.l.b16 %v603
  %v1925 = vunpack.c.h.b16 %v603
  %v1926 = vunpack.c.l.b16 %v604
  %v1927 = vunpack.c.l.b16 %v605
  %v1928 = vunpack.c.h.b16 %v605
  %v1929 = vunpack.c.l.b16 %v606
  %v1930 = vunpack.c.l.b16 %v607
  %v1931 = vunpack.c.h.b16 %v607
  %v1932 = vunpack.c.l.b16 %v608
  %v1933 = vunpack.c.l.b16 %v609
  %v1934 = vunpack.c.h.b16 %v609
  %v1935 = vunpack.c.l.b16 %v610
  %v1936 = vunpack.c.l.b16 %v611
  %v1937 = vunpack.c.h.b16 %v611
  %v1938 = vunpack.c.l.b16 %v612
  %v1939 = vunpack.c.l.b16 %v613
  %v1940 = vunpack.c.h.b16 %v613
  %v1941 = vunpack.c.l.b16 %v614
  %v1942 = vunpack.c.l.b16 %v615
  %v1943 = vunpack.c.h.b16 %v615
  %v1944 = vunpack.c.l.b16 %v616
  %v1945 = vunpack.c.l.b16 %v617
  %v1946 = vunpack.c.h.b16 %v617
  %v1947 = vunpack.c.l.b16 %v618
  %v1948 = vunpack.c.l.b16 %v619
  %v1949 = vunpack.c.h.b16 %v619
  %v1950 = vunpack.c.l.b16 %v620
  %v1951 = vunpack.c.l.b16 %v621
  %v1952 = vunpack.c.h.b16 %v621
  %v1953 = vunpack.c.l.b16 %v622
  %v1954 = vunpack.c.l.b16 %v623
  %v1955 = vunpack.c.h.b16 %v623
  %v1956 = vunpack.c.l.b16 %v624
  %v1957 = vunpack.c.l.b16 %v625
  %v1958 = vunpack.c.h.b16 %v625
  %v1959 = vunpack.c.l.b16 %v626
  %v1960 = vunpack.c.l.b16 %v627
  %v1961 = vunpack.c.h.b16 %v627
  %v1962 = vunpack.c.l.b16 %v628
  %v1963 = vunpack.c.l.b16 %v629
  %v1964 = vunpack.c.h.b16 %v629
  %v1965 = vunpack.c.l.b16 %v630
  %v1966 = vunpack.c.l.b16 %v631
  %v1967 = vunpack.c.h.b16 %v631
  %v1968 = vunpack.c.l.b16 %v632
  %v1969 = vunpack.c.l.b16 %v633
  %v1970 = vunpack.c.h.b16 %v633
  %v1971 = vunpack.c.l.b16 %v634
  %v1972 = vunpack.c.l.b16 %v635
  %v1973 = vunpack.c.h.b16 %v635
  %v1974 = vunpack.c.l.b16 %v636
  %v1975 = vunpack.c.l.b16 %v637
  %v1976 = vunpack.c.h.b16 %v637
  %v1977 = vunpack.c.l.b16 %v638
  %v1978 = vunpack.c.l.b16 %v639
  %v1979 = vunpack.c.h.b16 %v639
  %v1980 = vunpack.c.l.b16 %v640
  %v1981 = vunpack.c.l.b16 %v641
  %v1982 = vunpack.c.h.b16 %v641
  %v1983 = vunpack.c.l.b16 %v642
  %v1984 = vunpack.c.l.b16 %v643
  %v1985 = vunpack.c.h.b16 %v643
  %v1986 = vunpack.c.l.b16 %v644
  %v1987 = vunpack.c.l.b16 %v645
  %v1988 = vunpack.c.h.b16 %v645
  %v1989 = vunpack.c.l.b16 %v646
  %v1990 = vunpack.c.l.b16 %v647
  %v1991 = vunpack.c.h.b16 %v647
  %v1992 = vunpack.c.l.b16 %v648
  %v1993 = vunpack.c.l.b16 %v649
  %v1994 = vunpack.c.h.b16 %v649
  %v1995 = vunpack.c.l.b16 %v650
  %v1996 = vunpack.c.l.b16 %v651
  %v1997 = vunpack.c.h.b16 %v651
  %v1998 = vunpack.c.l.b16 %v652
  %v1999 = vunpack.c.l.b16 %v653
  %v2000 = vunpack.c.h.b16 %v653
  %v2001 = vunpack.c.l.b16 %v654
  %v2002 = vunpack.c.l.b16 %v655
  %v2003 = vunpack.c.h.b16 %v655
  %v2004 = vunpack.c.l.b16 %v656
  %v2005 = vunpack.c.l.b16 %v657
  %v2006 = vunpack.c.h.b16 %v657
  %v2007 = vunpack.c.l.b16 %v658
  %v2008 = vunpack.c.l.b16 %v659
  %v2009 = vunpack.c.h.b16 %v659
  %v2010 = vunpack.c.l.b16 %v660
  %v2011 = vunpack.c.l.b16 %v661
  %v2012 = vunpack.c.h.b16 %v661
  %v2013 = vunpack.c.l.b16 %v662
  %v2014 = vunpack.c.l.b16 %v663
  %v2015 = vunpack.c.h.b16 %v663
  %v2016 = vunpack.c.l.b16 %v664
  %v2017 = vunpack.c.l.b16 %v665
  %v2018 = vunpack.c.h.b16 %v665
  %v2019 = vunpack.c.l.b16 %v666
  %v2020 = vunpack.c.l.b16 %v667
  %v2021 = vunpack.c.h.b16 %v667
  %v2022 = vunpack.c.l.b16 %v668
  %v2023 = vunpack.c.l.b16 %v669
  %v2024 = vunpack.c.h.b16 %v669
  %v2025 = vunpack.c.l.b16 %v670
  %v2026 = vunpack.c.l.b16 %v671
  %v2027 = vunpack.c.h.b16 %v671
  %v2028 = vunpack.c.l.b16 %v672
  %v2029 = vunpack.c.l.b16 %v673
  %v2030 = vunpack.c.h.b16 %v673
  %v2031 = vunpack.c.l.b16 %v674
  %v2032 = vunpack.c.l.b16 %v675
  %v2033 = vunpack.c.h.b16 %v675
  %v2034 = vunpack.c.l.b16 %v676
  %v2035 = vunpack.c.l.b16 %v677
  %v2036 = vunpack.c.h.b16 %v677
  %v2037 = vunpack.c.l.b16 %v678
  %v2038 = vunpack.c.l.b16 %v679
  %v2039 = vunpack.c.h.b16 %v679
  %v2040 = vunpack.c.l.b16 %v680
  %v2041 = vunpack.c.l.b16 %v681
  %v2042 = vunpack.c.h.b16 %v681
  %v2043 = vunpack.c.l.b16 %v682
  %v2044 = vunpack.c.l.b16 %v683
  %v2045 = vunpack.c.h.b16 %v683
  %v2046 = vunpack.c.l.b16 %v684
  %v2047 = vunpack.c.l.b16 %v685
  %v2048 = vunpack.c.h.b16 %v685
  %v2049 = vunpack.c.l.b16 %v686
  %v2050 = vunpack.c.l.b16 %v687
  %v2051 = vunpack.c.h.b16 %v687
  %v2052 = vunpack.c.l.b16 %v688
  %v2053 = vunpack.c.l.b16 %v689
  %v2054 = vunpack.c.h.b16 %v689
  %v2055 = vunpack.c.l.b16 %v690
  %v2056 = vunpack.c.l.b16 %v691
  %v2057 = vunpack.c.h.b16 %v691
  %v2058 = vunpack.c.l.b16 %v692
  %v2059 = vunpack.c.l.b16 %v693
  %v2060 = vunpack.c.h.b16 %v693
  %v2061 = vunpack.c.l.b16 %v694
  %v2062 = vunpack.c.l.b16 %v695
  %v2063 = vunpack.c.h.b16 %v695
  %v2064 = vunpack.c.l.b16 %v696
  %v2065 = vunpack.c.l.b16 %v697
  %v2066 = vunpack.c.h.b16 %v697
  %v2067 = vunpack.c.l.b16 %v698
  %v2068 = vunpack.c.l.b16 %v699
  %v2069 = vunpack.c.h.b16 %v699
  %v2070 = vunpack.c.l.b16 %v700
  %v2071 = vunpack.c.l.b16 %v701
  %v2072 = vunpack.c.h.b16 %v701
  %v2073 = vunpack.c.l.b16 %v702
  %v2074 = vunpack.c.l.b16 %v703
  %v2075 = vunpack.c.h.b16 %v703
  %v2076 = vunpack.c.l.b16 %v704
  %v2077 = vunpack.c.l.b16 %v705
  %v2078 = vunpack.c.h.b16 %v705
  %v2079 = vunpack.c.l.b16 %v706
  %v2080 = vunpack.c.l.b16 %v707
  %v2081 = vunpack.c.h.b16 %v707
  %v2082 = vunpack.c.l.b16 %v708
  %v2083 = vunpack.c.l.b16 %v709
  %v2084 = vunpack.c.h.b16 %v709
  %v2085 = vunpack.c.l.b16 %v710
  %v2086 = vunpack.c.l.b16 %v711
  %v2087 = vunpack.c.h.b16 %v711
  %v2088 = vunpack.c.l.b16 %v712
  %v2089 = vunpack.c.l.b16 %v713
  %v2090 = vunpack.c.h.b16 %v713
  %v2091 = vunpack.c.l.b16 %v714
  %v2092 = vunpack.c.l.b16 %v715
  %v2093 = vunpack.c.h.b16 %v715
  %v2094 = vunpack.c.l.b16 %v716
  %v2095 = vunpack.c.l.b16 %v717
  %v2096 = vunpack.c.h.b16 %v717
  %v2097 = vunpack.c.l.b16 %v718
  %v2098 = vpack.c.b16 %v1885, %v1882
  %v2099 = vpack.c.b16 %v1886, %v1883
  %v2100 = vpack.c.b16 %v1887, %v1884
  %v2101 = vpack.c.b16 %v1891, %v1888
  %v2102 = vpack.c.b16 %v1892, %v1889
  %v2103 = vpack.c.b16 %v1893, %v1890
  %v2104 = vpack.c.b16 %v1897, %v1894
  %v2105 = vpack.c.b16 %v1898, %v1895
  %v2106 = vpack.c.b16 %v1899, %v1896
  %v2107 = vpack.c.b16 %v1903, %v1900
  %v2108 = vpack.c.b16 %v1904, %v1901
  %v2109 = vpack.c.b16 %v1905, %v1902
  %v2110 = vpack.c.b16 %v1909, %v1906
  %v2111 = vpack.c.b16 %v1910, %v1907
  %v2112 = vpack.c.b16 %v1911, %v1908
  %v2113 = vpack.c.b16 %v1915, %v1912
  %v2114 = vpack.c.b16 %v1916, %v1913
  %v2115 = vpack.c.b16 %v1917, %v1914
  %v2116 = vpack.c.b16 %v1921, %v1918
  %v2117 = vpack.c.b16 %v1922, %v1919
  %v2118 = vpack.c.b16 %v1923, %v1920
  %v2119 = vpack.c.b16 %v1927, %v1924
  %v2120 = vpack.c.b16 %v1928, %v1925
  %v2121 = vpack.c.b16 %v1929, %v1926
  %v2122 = vpack.c.b16 %v1933, %v1930
  %v2123 = vpack.c.b16 %v1934, %v1931
  %v2124 = vpack.c.b16 %v1935, %v1932
  %v2125 = vpack.c.b16 %v1939, %v1936
  %v2126 = vpack.c.b16 %v1940, %v1937
  %v2127 = vpack.c.b16 %v1941, %v1938
  %v2128 = vpack.c.b16 %v1945, %v1942
  %v2129 = vpack.c.b16 %v1946, %v1943
  %v2130 = vpack.c.b16 %v1947, %v1944
  %v2131 = vpack.c.b16 %v1951, %v1948
  %v2132 = vpack.c.b16 %v1952, %v1949
  %v2133 = vpack.c.b16 %v1953, %v1950
  %v2134 = vpack.c.b16 %v1957, %v1954
  %v2135 = vpack.c.b16 %v1958, %v1955
  %v2136 = vpack.c.b16 %v1959, %v1956
  %v2137 = vpack.c.b16 %v1963, %v1960
  %v2138 = vpack.c.b16 %v1964, %v1961
  %v2139 = vpack.c.b16 %v1965, %v1962
  %v2140 = vpack.c.b16 %v1969, %v1966
  %v2141 = vpack.c.b16 %v1970, %v1967
  %v2142 = vpack.c.b16 %v1971, %v1968
  %v2143 = vpack.c.b16 %v1975, %v1972
  %v2144 = vpack.c.b16 %v1976, %v1973
  %v2145 = vpack.c.b16 %v1977, %v1974
  %v2146 = vpack.c.b16 %v1981, %v1978
  %v2147 = vpack.c.b16 %v1982, %v1979
  %v2148 = vpack.c.b16 %v1983, %v1980
  %v2149 = vpack.c.b16 %v1987, %v1984
  %v2150 = vpack.c.b16 %v1988, %v1985
  %v2151 = vpack.c.b16 %v1989, %v1986
  %v2152 = vpack.c.b16 %v1993, %v1990
  %v2153 = vpack.c.b16 %v1994, %v1991
  %v2154 = vpack.c.b16 %v1995, %v1992
  %v2155 = vpack.c.b16 %v1999, %v1996
  %v2156 = vpack.c.b16 %v2000, %v1997
  %v2157 = vpack.c.b16 %v2001, %v1998
  %v2158 = vpack.c.b16 %v2005, %v2002
  %v2159 = vpack.c.b16 %v2006, %v2003
  %v2160 = vpack.c.b16 %v2007, %v2004
  %v2161 = vpack.c.b16 %v2011, %v2008
  %v2162 = vpack.c.b16 %v2012, %v2009
  %v2163 = vpack.c.b16 %v2013, %v2010
  %v2164 = vpack.c.b16 %v2017, %v2014
  %v2165 = vpack.c.b16 %v2018, %v2015
  %v2166 = vpack.c.b16 %v2019, %v2016
  %v2167 = vpack.c.b16 %v2023, %v2020
  %v2168 = vpack.c.b16 %v2024, %v2021
  %v2169 = vpack.c.b16 %v2025, %v2022
  %v2170 = vpack.c.b16 %v2029, %v2026
  %v2171 = vpack.c.b16 %v2030, %v2027
  %v2172 = vpack.c.b16 %v2031, %v2028
  %v2173 = vpack.c.b16 %v2035, %v2032
  %v2174 = vpack.c.b16 %v2036, %v2033
  %v2175 = vpack.c.b16 %v2037, %v2034
  %v2176 = vpack.c.b16 %v2041, %v2038
  %v2177 = vpack.c.b16 %v2042, %v2039
  %v2178 = vpack.c.b16 %v2043, %v2040
  %v2179 = vpack.c.b16 %v2047, %v2044
  %v2180 = vpack.c.b16 %v2048, %v2045
  %v2181 = vpack.c.b16 %v2049, %v2046
  %v2182 = vpack.c.b16 %v2053, %v2050
  %v2183 = vpack.c.b16 %v2054, %v2051
  %v2184 = vpack.c.b16 %v2055, %v2052
  %v2185 = vpack.c.b16 %v2059, %v2056
  %v2186 = vpack.c.b16 %v2060, %v2057
  %v2187 = vpack.c.b16 %v2061, %v2058
  %v2188 = vpack.c.b16 %v2065, %v2062
  %v2189 = vpack.c.b16 %v2066, %v2063
  %v2190 = vpack.c.b16 %v2067, %v2064
  %v2191 = vpack.c.b16 %v2071, %v2068
  %v2192 = vpack.c.b16 %v2072, %v2069
  %v2193 = vpack.c.b16 %v2073, %v2070
  %v2194 = vpack.c.b16 %v2077, %v2074
  %v2195 = vpack.c.b16 %v2078, %v2075
  %v2196 = vpack.c.b16 %v2079, %v2076
  %v2197 = vpack.c.b16 %v2083, %v2080
  %v2198 = vpack.c.b16 %v2084, %v2081
  %v2199 = vpack.c.b16 %v2085, %v2082
  %v2200 = vpack.c.b16 %v2089, %v2086
  %v2201 = vpack.c.b16 %v2090, %v2087
  %v2202 = vpack.c.b16 %v2091, %v2088
  %v2203 = vpack.c.b16 %v2095, %v2092
  %v2204 = vpack.c.b16 %v2096, %v2093
  %v2205 = vpack.c.b16 %v2097, %v2094
  %v2315 = vsel %vm477, %v574, 0
  %2317 = vmatpush.bf16.msra.mxu0 %v2119
  %2318 = vmatpush.bf16.msra.mxu0 %v2116
  %2319 = vmatpush.bf16.msra.mxu0 %v2113
  %2320 = vmatpush.bf16.msra.mxu0 %v2110
  %2321 = vmatpush.bf16.msra.mxu0 %v2107
  %2322 = vmatpush.bf16.msra.mxu0 %v2104
  %2323 = vmatpush.bf16.msra.mxu0 %v2101
  %2324 = vmatpush.bf16.msra.mxu0 %v2098
  %2325 = vmatmul.bf16.gmra.mxu0 %v570
  %v2326 = vpop.f32.mrf.mxu0
  %v2327 = vadd.f32 %v1594, %v2326
  %v2328 = vpop.f32.mrf.mxu0
  %v2329 = vadd.f32 %v1596, %v2328
  %2330 = vdwg.mxu0
  %2331 = vmatpush.bf16.msra.mxu0 %v2143
  %2332 = vmatpush.bf16.msra.mxu0 %v2140
  %2333 = vmatpush.bf16.msra.mxu0 %v2137
  %2334 = vmatpush.bf16.msra.mxu0 %v2134
  %2335 = vmatpush.bf16.msra.mxu0 %v2131
  %2336 = vmatpush.bf16.msra.mxu0 %v2128
  %2337 = vmatpush.bf16.msra.mxu0 %v2125
  %2338 = vmatpush.bf16.msra.mxu0 %v2122
  %2339 = vmatmul.bf16.gmra.mxu0 %v571
  %v2340 = vpop.f32.mrf.mxu0
  %v2341 = vadd.f32 %v2327, %v2340
  %v2342 = vpop.f32.mrf.mxu0
  %v2343 = vadd.f32 %v2329, %v2342
  %2344 = vdwg.mxu0
  %2345 = vmatpush.bf16.msra.mxu0 %v2167
  %2346 = vmatpush.bf16.msra.mxu0 %v2164
  %2347 = vmatpush.bf16.msra.mxu0 %v2161
  %2348 = vmatpush.bf16.msra.mxu0 %v2158
  %2349 = vmatpush.bf16.msra.mxu0 %v2155
  %2350 = vmatpush.bf16.msra.mxu0 %v2152
  %2351 = vmatpush.bf16.msra.mxu0 %v2149
  %2352 = vmatpush.bf16.msra.mxu0 %v2146
  %2353 = vmatmul.bf16.gmra.mxu0 %v572
  %v2354 = vpop.f32.mrf.mxu0
  %v2355 = vadd.f32 %v2341, %v2354
  %v2356 = vpop.f32.mrf.mxu0
  %v2357 = vadd.f32 %v2343, %v2356
  %2358 = vdwg.mxu0
  %2359 = vmatpush.bf16.msra.mxu0 %v2191
  %2360 = vmatpush.bf16.msra.mxu0 %v2188
  %2361 = vmatpush.bf16.msra.mxu0 %v2185
  %2362 = vmatpush.bf16.msra.mxu0 %v2182
  %2363 = vmatpush.bf16.msra.mxu0 %v2179
  %2364 = vmatpush.bf16.msra.mxu0 %v2176
  %2365 = vmatpush.bf16.msra.mxu0 %v2173
  %2366 = vmatpush.bf16.msra.mxu0 %v2170
  %2367 = vmatmul.bf16.gmra.mxu0 %v573
  %v2368 = vpop.f32.mrf.mxu0
  %v2369 = vadd.f32 %v2355, %v2368
  %v2370 = vpop.f32.mrf.mxu0
  %v2371 = vadd.f32 %v2357, %v2370
  %2372 = vdwg.mxu0
  %2373 = vmatpush.bf16.msra.mxu0 0
  %2374 = vmatpush.bf16.msra.mxu0 0
  %2375 = vmatpush.bf16.msra.mxu0 0
  %2376 = vmatpush.bf16.msra.mxu0 0
  %2377 = vmatpush.bf16.msra.mxu0 %v2203
  %2378 = vmatpush.bf16.msra.mxu0 %v2200
  %2379 = vmatpush.bf16.msra.mxu0 %v2197
  %2380 = vmatpush.bf16.msra.mxu0 %v2194
  %2381 = vmatmul.bf16.gmra.mxu0 %v2315
  %v2382 = vpop.f32.mrf.mxu0
  %v2383 = vadd.f32 %v2369, %v2382
  %v2384 = vpop.f32.mrf.mxu0
  %v2385 = vadd.f32 %v2371, %v2384
  %2386 = vdwg.mxu0
  %2387 = vmatpush.bf16.msra.mxu0 %v2120
  %2388 = vmatpush.bf16.msra.mxu0 %v2117
  %2389 = vmatpush.bf16.msra.mxu0 %v2114
  %2390 = vmatpush.bf16.msra.mxu0 %v2111
  %2391 = vmatpush.bf16.msra.mxu0 %v2108
  %2392 = vmatpush.bf16.msra.mxu0 %v2105
  %2393 = vmatpush.bf16.msra.mxu0 %v2102
  %2394 = vmatpush.bf16.msra.mxu0 %v2099
  %2395 = vmatmul.bf16.gmra.mxu0 %v570
  %v2396 = vpop.f32.mrf.mxu0
  %v2397 = vadd.f32 %v1664, %v2396
  %v2398 = vpop.f32.mrf.mxu0
  %v2399 = vadd.f32 %v1666, %v2398
  %2400 = vdwg.mxu0
  %2401 = vmatpush.bf16.msra.mxu0 %v2144
  %2402 = vmatpush.bf16.msra.mxu0 %v2141
  %2403 = vmatpush.bf16.msra.mxu0 %v2138
  %2404 = vmatpush.bf16.msra.mxu0 %v2135
  %2405 = vmatpush.bf16.msra.mxu0 %v2132
  %2406 = vmatpush.bf16.msra.mxu0 %v2129
  %2407 = vmatpush.bf16.msra.mxu0 %v2126
  %2408 = vmatpush.bf16.msra.mxu0 %v2123
  %2409 = vmatmul.bf16.gmra.mxu0 %v571
  %v2410 = vpop.f32.mrf.mxu0
  %v2411 = vadd.f32 %v2397, %v2410
  %v2412 = vpop.f32.mrf.mxu0
  %v2413 = vadd.f32 %v2399, %v2412
  %2414 = vdwg.mxu0
  %2415 = vmatpush.bf16.msra.mxu0 %v2168
  %2416 = vmatpush.bf16.msra.mxu0 %v2165
  %2417 = vmatpush.bf16.msra.mxu0 %v2162
  %2418 = vmatpush.bf16.msra.mxu0 %v2159
  %2419 = vmatpush.bf16.msra.mxu0 %v2156
  %2420 = vmatpush.bf16.msra.mxu0 %v2153
  %2421 = vmatpush.bf16.msra.mxu0 %v2150
  %2422 = vmatpush.bf16.msra.mxu0 %v2147
  %2423 = vmatmul.bf16.gmra.mxu0 %v572
  %v2424 = vpop.f32.mrf.mxu0
  %v2425 = vadd.f32 %v2411, %v2424
  %v2426 = vpop.f32.mrf.mxu0
  %v2427 = vadd.f32 %v2413, %v2426
  %2428 = vdwg.mxu0
  %2429 = vmatpush.bf16.msra.mxu0 %v2192
  %2430 = vmatpush.bf16.msra.mxu0 %v2189
  %2431 = vmatpush.bf16.msra.mxu0 %v2186
  %2432 = vmatpush.bf16.msra.mxu0 %v2183
  %2433 = vmatpush.bf16.msra.mxu0 %v2180
  %2434 = vmatpush.bf16.msra.mxu0 %v2177
  %2435 = vmatpush.bf16.msra.mxu0 %v2174
  %2436 = vmatpush.bf16.msra.mxu0 %v2171
  %2437 = vmatmul.bf16.gmra.mxu0 %v573
  %v2438 = vpop.f32.mrf.mxu0
  %v2439 = vadd.f32 %v2425, %v2438
  %v2440 = vpop.f32.mrf.mxu0
  %v2441 = vadd.f32 %v2427, %v2440
  %2442 = vdwg.mxu0
  %2443 = vmatpush.bf16.msra.mxu0 0
  %2444 = vmatpush.bf16.msra.mxu0 0
  %2445 = vmatpush.bf16.msra.mxu0 0
  %2446 = vmatpush.bf16.msra.mxu0 0
  %2447 = vmatpush.bf16.msra.mxu0 %v2204
  %2448 = vmatpush.bf16.msra.mxu0 %v2201
  %2449 = vmatpush.bf16.msra.mxu0 %v2198
  %2450 = vmatpush.bf16.msra.mxu0 %v2195
  %2451 = vmatmul.bf16.gmra.mxu0 %v2315
  %v2452 = vpop.f32.mrf.mxu0
  %v2453 = vadd.f32 %v2439, %v2452
  %v2454 = vpop.f32.mrf.mxu0
  %v2455 = vadd.f32 %v2441, %v2454
  %2456 = vdwg.mxu0
  %2457 = vmatpush.bf16.msra.mxu0 %v2121
  %2458 = vmatpush.bf16.msra.mxu0 %v2118
  %2459 = vmatpush.bf16.msra.mxu0 %v2115
  %2460 = vmatpush.bf16.msra.mxu0 %v2112
  %2461 = vmatpush.bf16.msra.mxu0 %v2109
  %2462 = vmatpush.bf16.msra.mxu0 %v2106
  %2463 = vmatpush.bf16.msra.mxu0 %v2103
  %2464 = vmatpush.bf16.msra.mxu0 %v2100
  %2465 = vmatmul.bf16.gmra.mxu0 %v570
  %v2466 = vpop.f32.mrf.mxu0
  %v2467 = vadd.f32 %v1734, %v2466
  %v2468 = vpop.f32.mrf.mxu0
  %v2469 = vadd.f32 %v1736, %v2468
  %2470 = vdwg.mxu0
  %2471 = vmatpush.bf16.msra.mxu0 %v2145
  %2472 = vmatpush.bf16.msra.mxu0 %v2142
  %2473 = vmatpush.bf16.msra.mxu0 %v2139
  %2474 = vmatpush.bf16.msra.mxu0 %v2136
  %2475 = vmatpush.bf16.msra.mxu0 %v2133
  %2476 = vmatpush.bf16.msra.mxu0 %v2130
  %2477 = vmatpush.bf16.msra.mxu0 %v2127
  %2478 = vmatpush.bf16.msra.mxu0 %v2124
  %2479 = vmatmul.bf16.gmra.mxu0 %v571
  %v2480 = vpop.f32.mrf.mxu0
  %v2481 = vadd.f32 %v2467, %v2480
  %v2482 = vpop.f32.mrf.mxu0
  %v2483 = vadd.f32 %v2469, %v2482
  %2484 = vdwg.mxu0
  %2485 = vmatpush.bf16.msra.mxu0 %v2169
  %2486 = vmatpush.bf16.msra.mxu0 %v2166
  %2487 = vmatpush.bf16.msra.mxu0 %v2163
  %2488 = vmatpush.bf16.msra.mxu0 %v2160
  %2489 = vmatpush.bf16.msra.mxu0 %v2157
  %2490 = vmatpush.bf16.msra.mxu0 %v2154
  %2491 = vmatpush.bf16.msra.mxu0 %v2151
  %2492 = vmatpush.bf16.msra.mxu0 %v2148
  %2493 = vmatmul.bf16.gmra.mxu0 %v572
  %v2494 = vpop.f32.mrf.mxu0
  %v2495 = vadd.f32 %v2481, %v2494
  %v2496 = vpop.f32.mrf.mxu0
  %v2497 = vadd.f32 %v2483, %v2496
  %2498 = vdwg.mxu0
  %2499 = vmatpush.bf16.msra.mxu0 %v2193
  %2500 = vmatpush.bf16.msra.mxu0 %v2190
  %2501 = vmatpush.bf16.msra.mxu0 %v2187
  %2502 = vmatpush.bf16.msra.mxu0 %v2184
  %2503 = vmatpush.bf16.msra.mxu0 %v2181
  %2504 = vmatpush.bf16.msra.mxu0 %v2178
  %2505 = vmatpush.bf16.msra.mxu0 %v2175
  %2506 = vmatpush.bf16.msra.mxu0 %v2172
  %2507 = vmatmul.bf16.gmra.mxu0 %v573
  %v2508 = vpop.f32.mrf.mxu0
  %v2509 = vadd.f32 %v2495, %v2508
  %v2510 = vpop.f32.mrf.mxu0
  %v2511 = vadd.f32 %v2497, %v2510
  %2512 = vdwg.mxu0
  %2513 = vmatpush.bf16.msra.mxu0 0
  %2514 = vmatpush.bf16.msra.mxu0 0
  %2515 = vmatpush.bf16.msra.mxu0 0
  %2516 = vmatpush.bf16.msra.mxu0 0
  %2517 = vmatpush.bf16.msra.mxu0 %v2205
  %2518 = vmatpush.bf16.msra.mxu0 %v2202
  %2519 = vmatpush.bf16.msra.mxu0 %v2199
  %2520 = vmatpush.bf16.msra.mxu0 %v2196
  %2521 = vmatmul.bf16.gmra.mxu0 %v2315
  %v2522 = vpop.f32.mrf.mxu0
  %v2523 = vadd.f32 %v2509, %v2522
  %v2524 = vpop.f32.mrf.mxu0
  %v2525 = vadd.f32 %v2511, %v2524
  %2526 = vdwg.mxu0
  %v2527 = vld [vmem:[#allocation2] sm:$0xfc]
  %v2528 = vld [vmem:[#allocation2 + $0x8] sm:$0xfc]
  %v2529 = vld [vmem:[#allocation2 + $0x10] sm:$0xfc]
  %v2530 = vld [vmem:[#allocation2 + $0x18] sm:$0xfc]
  %v2531 = vld [vmem:[#allocation2 + $0x20] sm:$0xfc]
  %v2532 = vld [vmem:[#allocation2 + $0x50] sm:$0x3]
  %v2533 = vld [vmem:[#allocation2 + $0x58] sm:$0x3]
  %v2534 = vld [vmem:[#allocation2 + $0x60] sm:$0x3]
  %v2535 = vld [vmem:[#allocation2 + $0x68] sm:$0x3]
  %v2536 = vld [vmem:[#allocation2 + $0x70] sm:$0x3]
  %v2537 = vpack.c.bf16 %v565, %v2527
  %v2538 = vpack.c.bf16 %v566, %v2528
  %v2539 = vpack.c.bf16 %v567, %v2529
  %v2540 = vpack.c.bf16 %v568, %v2530
  %v2541 = vpack.c.bf16 %v569, %v2531
  %v2542 = vpack.c.bf16 %v2532, %v2532
  %v2543 = vpack.c.bf16 %v2533, %v2533
  %v2544 = vpack.c.bf16 %v2534, %v2534
  %v2545 = vpack.c.bf16 %v2535, %v2535
  %v2546 = vpack.c.bf16 %v2536, %v2536
  %s2547 = scalar_lea.vmem %s3, 1728
  %v2548 = vld [vmem:[%s2547] sm:$0xff]
  %v2549 = vld [vmem:[%s2547 + $0x8] sm:$0xf]
  %v2550 = vld [vmem:[%s2547 + $0xc] sm:$0xff]
  %v2551 = vld [vmem:[%s2547 + $0x14] sm:$0xf]
  %v2552 = vld [vmem:[%s2547 + $0x18] sm:$0xff]
  %v2553 = vld [vmem:[%s2547 + $0x20] sm:$0xf]
  %v2554 = vld [vmem:[%s2547 + $0x24] sm:$0xff]
  %v2555 = vld [vmem:[%s2547 + $0x2c] sm:$0xf]
  %v2556 = vld [vmem:[%s2547 + $0x30] sm:$0xff]
  %v2557 = vld [vmem:[%s2547 + $0x38] sm:$0xf]
  %v2558 = vld [vmem:[%s2547 + $0x3c] sm:$0xff]
  %v2559 = vld [vmem:[%s2547 + $0x44] sm:$0xf]
  %v2560 = vld [vmem:[%s2547 + $0x48] sm:$0xff]
  %v2561 = vld [vmem:[%s2547 + $0x50] sm:$0xf]
  %v2562 = vld [vmem:[%s2547 + $0x54] sm:$0xff]
  %v2563 = vld [vmem:[%s2547 + $0x5c] sm:$0xf]
  %v2564 = vld [vmem:[%s2547 + $0x60] sm:$0xff]
  %v2565 = vld [vmem:[%s2547 + $0x68] sm:$0xf]
  %v2566 = vld [vmem:[%s2547 + $0x6c] sm:$0xff]
  %v2567 = vld [vmem:[%s2547 + $0x74] sm:$0xf]
  %v2568 = vld [vmem:[%s2547 + $0x78] sm:$0xff]
  %v2569 = vld [vmem:[%s2547 + $0x80] sm:$0xf]
  %v2570 = vld [vmem:[%s2547 + $0x84] sm:$0xff]
  %v2571 = vld [vmem:[%s2547 + $0x8c] sm:$0xf]
  %v2572 = vld [vmem:[%s2547 + $0x90] sm:$0xff]
  %v2573 = vld [vmem:[%s2547 + $0x98] sm:$0xf]
  %v2574 = vld [vmem:[%s2547 + $0x9c] sm:$0xff]
  %v2575 = vld [vmem:[%s2547 + $0xa4] sm:$0xf]
  %v2576 = vld [vmem:[%s2547 + $0xa8] sm:$0xff]
  %v2577 = vld [vmem:[%s2547 + $0xb0] sm:$0xf]
  %v2578 = vld [vmem:[%s2547 + $0xb4] sm:$0xff]
  %v2579 = vld [vmem:[%s2547 + $0xbc] sm:$0xf]
  %v2580 = vld [vmem:[%s2547 + $0xc0] sm:$0xff]
  %v2581 = vld [vmem:[%s2547 + $0xc8] sm:$0xf]
  %v2582 = vld [vmem:[%s2547 + $0xcc] sm:$0xff]
  %v2583 = vld [vmem:[%s2547 + $0xd4] sm:$0xf]
  %v2584 = vld [vmem:[%s2547 + $0xd8] sm:$0xff]
  %v2585 = vld [vmem:[%s2547 + $0xe0] sm:$0xf]
  %v2586 = vld [vmem:[%s2547 + $0xe4] sm:$0xff]
  %v2587 = vld [vmem:[%s2547 + $0xec] sm:$0xf]
  %v2588 = vld [vmem:[%s2547 + $0xf0] sm:$0xff]
  %v2589 = vld [vmem:[%s2547 + $0xf8] sm:$0xf]
  %v2590 = vld [vmem:[%s2547 + $0xfc] sm:$0xff]
  %v2591 = vld [vmem:[%s2547 + $0x104] sm:$0xf]
  %v2592 = vld [vmem:[%s2547 + $0x108] sm:$0xff]
  %v2593 = vld [vmem:[%s2547 + $0x110] sm:$0xf]
  %v2594 = vld [vmem:[%s2547 + $0x114] sm:$0xff]
  %v2595 = vld [vmem:[%s2547 + $0x11c] sm:$0xf]
  %v2596 = vld [vmem:[%s2547 + $0x120] sm:$0xff]
  %v2597 = vld [vmem:[%s2547 + $0x128] sm:$0xf]
  %v2598 = vld [vmem:[%s2547 + $0x12c] sm:$0xff]
  %v2599 = vld [vmem:[%s2547 + $0x134] sm:$0xf]
  %v2600 = vld [vmem:[%s2547 + $0x138] sm:$0xff]
  %v2601 = vld [vmem:[%s2547 + $0x140] sm:$0xf]
  %v2602 = vld [vmem:[%s2547 + $0x144] sm:$0xff]
  %v2603 = vld [vmem:[%s2547 + $0x14c] sm:$0xf]
  %v2604 = vld [vmem:[%s2547 + $0x150] sm:$0xff]
  %v2605 = vld [vmem:[%s2547 + $0x158] sm:$0xf]
  %v2606 = vld [vmem:[%s2547 + $0x15c] sm:$0xff]
  %v2607 = vld [vmem:[%s2547 + $0x164] sm:$0xf]
  %v2608 = vld [vmem:[%s2547 + $0x168] sm:$0xff]
  %v2609 = vld [vmem:[%s2547 + $0x170] sm:$0xf]
  %v2610 = vld [vmem:[%s2547 + $0x174] sm:$0xff]
  %v2611 = vld [vmem:[%s2547 + $0x17c] sm:$0xf]
  %v2612 = vld [vmem:[%s2547 + $0x180] sm:$0xff]
  %v2613 = vld [vmem:[%s2547 + $0x188] sm:$0xf]
  %v2614 = vld [vmem:[%s2547 + $0x18c] sm:$0xff]
  %v2615 = vld [vmem:[%s2547 + $0x194] sm:$0xf]
  %v2616 = vld [vmem:[%s2547 + $0x198] sm:$0xff]
  %v2617 = vld [vmem:[%s2547 + $0x1a0] sm:$0xf]
  %v2618 = vld [vmem:[%s2547 + $0x1a4] sm:$0xff]
  %v2619 = vld [vmem:[%s2547 + $0x1ac] sm:$0xf]
  %v2620 = vld [vmem:[%s2547 + $0x1b0] sm:$0xff]
  %v2621 = vld [vmem:[%s2547 + $0x1b8] sm:$0xf]
  %v2622 = vld [vmem:[%s2547 + $0x1bc] sm:$0xff]
  %v2623 = vld [vmem:[%s2547 + $0x1c4] sm:$0xf]
  %v2624 = vld [vmem:[%s2547 + $0x1c8] sm:$0xff]
  %v2625 = vld [vmem:[%s2547 + $0x1d0] sm:$0xf]
  %v2626 = vld [vmem:[%s2547 + $0x1d4] sm:$0xff]
  %v2627 = vld [vmem:[%s2547 + $0x1dc] sm:$0xf]
  %v2628 = vld [vmem:[%s2547 + $0x1e0] sm:$0xff]
  %v2629 = vld [vmem:[%s2547 + $0x1e8] sm:$0xf]
  %v2630 = vld [vmem:[%s2547 + $0x1ec] sm:$0xff]
  %v2631 = vld [vmem:[%s2547 + $0x1f4] sm:$0xf]
  %v2632 = vld [vmem:[%s2547 + $0x1f8] sm:$0xff]
  %v2633 = vld [vmem:[%s2547 + $0x200] sm:$0xf]
  %v2634 = vld [vmem:[%s2547 + $0x204] sm:$0xff]
  %v2635 = vld [vmem:[%s2547 + $0x20c] sm:$0xf]
  %v2636 = vld [vmem:[%s2547 + $0x210] sm:$0xff]
  %v2637 = vld [vmem:[%s2547 + $0x218] sm:$0xf]
  %v2638 = vld [vmem:[%s2547 + $0x21c] sm:$0xff]
  %v2639 = vld [vmem:[%s2547 + $0x224] sm:$0xf]
  %v2640 = vld [vmem:[%s2547 + $0x228] sm:$0xff]
  %v2641 = vld [vmem:[%s2547 + $0x230] sm:$0xf]
  %v2642 = vld [vmem:[%s2547 + $0x234] sm:$0xff]
  %v2643 = vld [vmem:[%s2547 + $0x23c] sm:$0xf]
  %v2644 = vld [vmem:[%s2547 + $0x240] sm:$0xff]
  %v2645 = vld [vmem:[%s2547 + $0x248] sm:$0xf]
  %v2646 = vld [vmem:[%s2547 + $0x24c] sm:$0xff]
  %v2647 = vld [vmem:[%s2547 + $0x254] sm:$0xf]
  %v2648 = vld [vmem:[%s2547 + $0x258] sm:$0xff]
  %v2649 = vld [vmem:[%s2547 + $0x260] sm:$0xf]
  %v2650 = vld [vmem:[%s2547 + $0x264] sm:$0xff]
  %v2651 = vld [vmem:[%s2547 + $0x26c] sm:$0xf]
  %v2652 = vld [vmem:[%s2547 + $0x270] sm:$0xff]
  %v2653 = vld [vmem:[%s2547 + $0x278] sm:$0xf]
  %v2654 = vld [vmem:[%s2547 + $0x27c] sm:$0xff]
  %v2655 = vld [vmem:[%s2547 + $0x284] sm:$0xf]
  %v2656 = vld [vmem:[%s2547 + $0x288] sm:$0xff]
  %v2657 = vld [vmem:[%s2547 + $0x290] sm:$0xf]
  %v2658 = vld [vmem:[%s2547 + $0x294] sm:$0xff]
  %v2659 = vld [vmem:[%s2547 + $0x29c] sm:$0xf]
  %v2660 = vld [vmem:[%s2547 + $0x2a0] sm:$0xff]
  %v2661 = vld [vmem:[%s2547 + $0x2a8] sm:$0xf]
  %v2662 = vld [vmem:[%s2547 + $0x2ac] sm:$0xff]
  %v2663 = vld [vmem:[%s2547 + $0x2b4] sm:$0xf]
  %v2664 = vld [vmem:[%s2547 + $0x2b8] sm:$0xff]
  %v2665 = vld [vmem:[%s2547 + $0x2c0] sm:$0xf]
  %v2666 = vld [vmem:[%s2547 + $0x2c4] sm:$0xff]
  %v2667 = vld [vmem:[%s2547 + $0x2cc] sm:$0xf]
  %v2668 = vld [vmem:[%s2547 + $0x2d0] sm:$0xff]
  %v2669 = vld [vmem:[%s2547 + $0x2d8] sm:$0xf]
  %v2670 = vld [vmem:[%s2547 + $0x2dc] sm:$0xff]
  %v2671 = vld [vmem:[%s2547 + $0x2e4] sm:$0xf]
  %v2672 = vld [vmem:[%s2547 + $0x2e8] sm:$0xff]
  %v2673 = vld [vmem:[%s2547 + $0x2f0] sm:$0xf]
  %v2674 = vld [vmem:[%s2547 + $0x2f4] sm:$0xff]
  %v2675 = vld [vmem:[%s2547 + $0x2fc] sm:$0xf]
  %v2676 = vld [vmem:[%s2547 + $0x300] sm:$0xff]
  %v2677 = vld [vmem:[%s2547 + $0x308] sm:$0xf]
  %v2678 = vld [vmem:[%s2547 + $0x30c] sm:$0xff]
  %v2679 = vld [vmem:[%s2547 + $0x314] sm:$0xf]
  %v2680 = vld [vmem:[%s2547 + $0x318] sm:$0xff]
  %v2681 = vld [vmem:[%s2547 + $0x320] sm:$0xf]
  %v2682 = vld [vmem:[%s2547 + $0x324] sm:$0xff]
  %v2683 = vld [vmem:[%s2547 + $0x32c] sm:$0xf]
  %v2684 = vld [vmem:[%s2547 + $0x330] sm:$0xff]
  %v2685 = vld [vmem:[%s2547 + $0x338] sm:$0xf]
  %v2686 = vld [vmem:[%s2547 + $0x33c] sm:$0xff]
  %v2687 = vld [vmem:[%s2547 + $0x344] sm:$0xf]
  %v2688 = vld [vmem:[%s2547 + $0x348] sm:$0xff]
  %v2689 = vld [vmem:[%s2547 + $0x350] sm:$0xf]
  %v2690 = vld [vmem:[%s2547 + $0x354] sm:$0xff]
  %v2691 = vld [vmem:[%s2547 + $0x35c] sm:$0xf]
  %vm2702 = vcmask 1046528
  %v2703 = vrot.slane %v2537, 1
  %v2704 = vrot.slane %v2542, 1
  %v2705 = vsel %vm2702, %v2703, %v2704
  %v2706 = vrot.slane %v2538, 1
  %v2707 = vrot.slane %v2543, 1
  %v2708 = vsel %vm2702, %v2706, %v2707
  %v2709 = vrot.slane %v2539, 1
  %v2710 = vrot.slane %v2544, 1
  %v2711 = vsel %vm2702, %v2709, %v2710
  %v2712 = vrot.slane %v2540, 1
  %v2713 = vrot.slane %v2545, 1
  %v2714 = vsel %vm2702, %v2712, %v2713
  %v2715 = vrot.slane %v2541, 1
  %v2716 = vrot.slane %v2546, 1
  %v2717 = vsel %vm2702, %v2715, %v2716
  %v2866 = vunpack.c.l.b16 %v2548
  %v2867 = vunpack.c.h.b16 %v2548
  %v2868 = vunpack.c.l.b16 %v2549
  %v2869 = vunpack.c.l.b16 %v2550
  %v2870 = vunpack.c.h.b16 %v2550
  %v2871 = vunpack.c.l.b16 %v2551
  %v2872 = vunpack.c.l.b16 %v2552
  %v2873 = vunpack.c.h.b16 %v2552
  %v2874 = vunpack.c.l.b16 %v2553
  %v2875 = vunpack.c.l.b16 %v2554
  %v2876 = vunpack.c.h.b16 %v2554
  %v2877 = vunpack.c.l.b16 %v2555
  %v2878 = vunpack.c.l.b16 %v2556
  %v2879 = vunpack.c.h.b16 %v2556
  %v2880 = vunpack.c.l.b16 %v2557
  %v2881 = vunpack.c.l.b16 %v2558
  %v2882 = vunpack.c.h.b16 %v2558
  %v2883 = vunpack.c.l.b16 %v2559
  %v2884 = vunpack.c.l.b16 %v2560
  %v2885 = vunpack.c.h.b16 %v2560
  %v2886 = vunpack.c.l.b16 %v2561
  %v2887 = vunpack.c.l.b16 %v2562
  %v2888 = vunpack.c.h.b16 %v2562
  %v2889 = vunpack.c.l.b16 %v2563
  %v2890 = vunpack.c.l.b16 %v2564
  %v2891 = vunpack.c.h.b16 %v2564
  %v2892 = vunpack.c.l.b16 %v2565
  %v2893 = vunpack.c.l.b16 %v2566
  %v2894 = vunpack.c.h.b16 %v2566
  %v2895 = vunpack.c.l.b16 %v2567
  %v2896 = vunpack.c.l.b16 %v2568
  %v2897 = vunpack.c.h.b16 %v2568
  %v2898 = vunpack.c.l.b16 %v2569
  %v2899 = vunpack.c.l.b16 %v2570
  %v2900 = vunpack.c.h.b16 %v2570
  %v2901 = vunpack.c.l.b16 %v2571
  %v2902 = vunpack.c.l.b16 %v2572
  %v2903 = vunpack.c.h.b16 %v2572
  %v2904 = vunpack.c.l.b16 %v2573
  %v2905 = vunpack.c.l.b16 %v2574
  %v2906 = vunpack.c.h.b16 %v2574
  %v2907 = vunpack.c.l.b16 %v2575
  %v2908 = vunpack.c.l.b16 %v2576
  %v2909 = vunpack.c.h.b16 %v2576
  %v2910 = vunpack.c.l.b16 %v2577
  %v2911 = vunpack.c.l.b16 %v2578
  %v2912 = vunpack.c.h.b16 %v2578
  %v2913 = vunpack.c.l.b16 %v2579
  %v2914 = vunpack.c.l.b16 %v2580
  %v2915 = vunpack.c.h.b16 %v2580
  %v2916 = vunpack.c.l.b16 %v2581
  %v2917 = vunpack.c.l.b16 %v2582
  %v2918 = vunpack.c.h.b16 %v2582
  %v2919 = vunpack.c.l.b16 %v2583
  %v2920 = vunpack.c.l.b16 %v2584
  %v2921 = vunpack.c.h.b16 %v2584
  %v2922 = vunpack.c.l.b16 %v2585
  %v2923 = vunpack.c.l.b16 %v2586
  %v2924 = vunpack.c.h.b16 %v2586
  %v2925 = vunpack.c.l.b16 %v2587
  %v2926 = vunpack.c.l.b16 %v2588
  %v2927 = vunpack.c.h.b16 %v2588
  %v2928 = vunpack.c.l.b16 %v2589
  %v2929 = vunpack.c.l.b16 %v2590
  %v2930 = vunpack.c.h.b16 %v2590
  %v2931 = vunpack.c.l.b16 %v2591
  %v2932 = vunpack.c.l.b16 %v2592
  %v2933 = vunpack.c.h.b16 %v2592
  %v2934 = vunpack.c.l.b16 %v2593
  %v2935 = vunpack.c.l.b16 %v2594
  %v2936 = vunpack.c.h.b16 %v2594
  %v2937 = vunpack.c.l.b16 %v2595
  %v2938 = vunpack.c.l.b16 %v2596
  %v2939 = vunpack.c.h.b16 %v2596
  %v2940 = vunpack.c.l.b16 %v2597
  %v2941 = vunpack.c.l.b16 %v2598
  %v2942 = vunpack.c.h.b16 %v2598
  %v2943 = vunpack.c.l.b16 %v2599
  %v2944 = vunpack.c.l.b16 %v2600
  %v2945 = vunpack.c.h.b16 %v2600
  %v2946 = vunpack.c.l.b16 %v2601
  %v2947 = vunpack.c.l.b16 %v2602
  %v2948 = vunpack.c.h.b16 %v2602
  %v2949 = vunpack.c.l.b16 %v2603
  %v2950 = vunpack.c.l.b16 %v2604
  %v2951 = vunpack.c.h.b16 %v2604
  %v2952 = vunpack.c.l.b16 %v2605
  %v2953 = vunpack.c.l.b16 %v2606
  %v2954 = vunpack.c.h.b16 %v2606
  %v2955 = vunpack.c.l.b16 %v2607
  %v2956 = vunpack.c.l.b16 %v2608
  %v2957 = vunpack.c.h.b16 %v2608
  %v2958 = vunpack.c.l.b16 %v2609
  %v2959 = vunpack.c.l.b16 %v2610
  %v2960 = vunpack.c.h.b16 %v2610
  %v2961 = vunpack.c.l.b16 %v2611
  %v2962 = vunpack.c.l.b16 %v2612
  %v2963 = vunpack.c.h.b16 %v2612
  %v2964 = vunpack.c.l.b16 %v2613
  %v2965 = vunpack.c.l.b16 %v2614
  %v2966 = vunpack.c.h.b16 %v2614
  %v2967 = vunpack.c.l.b16 %v2615
  %v2968 = vunpack.c.l.b16 %v2616
  %v2969 = vunpack.c.h.b16 %v2616
  %v2970 = vunpack.c.l.b16 %v2617
  %v2971 = vunpack.c.l.b16 %v2618
  %v2972 = vunpack.c.h.b16 %v2618
  %v2973 = vunpack.c.l.b16 %v2619
  %v2974 = vunpack.c.l.b16 %v2620
  %v2975 = vunpack.c.h.b16 %v2620
  %v2976 = vunpack.c.l.b16 %v2621
  %v2977 = vunpack.c.l.b16 %v2622
  %v2978 = vunpack.c.h.b16 %v2622
  %v2979 = vunpack.c.l.b16 %v2623
  %v2980 = vunpack.c.l.b16 %v2624
  %v2981 = vunpack.c.h.b16 %v2624
  %v2982 = vunpack.c.l.b16 %v2625
  %v2983 = vunpack.c.l.b16 %v2626
  %v2984 = vunpack.c.h.b16 %v2626
  %v2985 = vunpack.c.l.b16 %v2627
  %v2986 = vunpack.c.l.b16 %v2628
  %v2987 = vunpack.c.h.b16 %v2628
  %v2988 = vunpack.c.l.b16 %v2629
  %v2989 = vunpack.c.l.b16 %v2630
  %v2990 = vunpack.c.h.b16 %v2630
  %v2991 = vunpack.c.l.b16 %v2631
  %v2992 = vunpack.c.l.b16 %v2632
  %v2993 = vunpack.c.h.b16 %v2632
  %v2994 = vunpack.c.l.b16 %v2633
  %v2995 = vunpack.c.l.b16 %v2634
  %v2996 = vunpack.c.h.b16 %v2634
  %v2997 = vunpack.c.l.b16 %v2635
  %v2998 = vunpack.c.l.b16 %v2636
  %v2999 = vunpack.c.h.b16 %v2636
  %v3000 = vunpack.c.l.b16 %v2637
  %v3001 = vunpack.c.l.b16 %v2638
  %v3002 = vunpack.c.h.b16 %v2638
  %v3003 = vunpack.c.l.b16 %v2639
  %v3004 = vunpack.c.l.b16 %v2640
  %v3005 = vunpack.c.h.b16 %v2640
  %v3006 = vunpack.c.l.b16 %v2641
  %v3007 = vunpack.c.l.b16 %v2642
  %v3008 = vunpack.c.h.b16 %v2642
  %v3009 = vunpack.c.l.b16 %v2643
  %v3010 = vunpack.c.l.b16 %v2644
  %v3011 = vunpack.c.h.b16 %v2644
  %v3012 = vunpack.c.l.b16 %v2645
  %v3013 = vunpack.c.l.b16 %v2646
  %v3014 = vunpack.c.h.b16 %v2646
  %v3015 = vunpack.c.l.b16 %v2647
  %v3016 = vunpack.c.l.b16 %v2648
  %v3017 = vunpack.c.h.b16 %v2648
  %v3018 = vunpack.c.l.b16 %v2649
  %v3019 = vunpack.c.l.b16 %v2650
  %v3020 = vunpack.c.h.b16 %v2650
  %v3021 = vunpack.c.l.b16 %v2651
  %v3022 = vunpack.c.l.b16 %v2652
  %v3023 = vunpack.c.h.b16 %v2652
  %v3024 = vunpack.c.l.b16 %v2653
  %v3025 = vunpack.c.l.b16 %v2654
  %v3026 = vunpack.c.h.b16 %v2654
  %v3027 = vunpack.c.l.b16 %v2655
  %v3028 = vunpack.c.l.b16 %v2656
  %v3029 = vunpack.c.h.b16 %v2656
  %v3030 = vunpack.c.l.b16 %v2657
  %v3031 = vunpack.c.l.b16 %v2658
  %v3032 = vunpack.c.h.b16 %v2658
  %v3033 = vunpack.c.l.b16 %v2659
  %v3034 = vunpack.c.l.b16 %v2660
  %v3035 = vunpack.c.h.b16 %v2660
  %v3036 = vunpack.c.l.b16 %v2661
  %v3037 = vunpack.c.l.b16 %v2662
  %v3038 = vunpack.c.h.b16 %v2662
  %v3039 = vunpack.c.l.b16 %v2663
  %v3040 = vunpack.c.l.b16 %v2664
  %v3041 = vunpack.c.h.b16 %v2664
  %v3042 = vunpack.c.l.b16 %v2665
  %v3043 = vunpack.c.l.b16 %v2666
  %v3044 = vunpack.c.h.b16 %v2666
  %v3045 = vunpack.c.l.b16 %v2667
  %v3046 = vunpack.c.l.b16 %v2668
  %v3047 = vunpack.c.h.b16 %v2668
  %v3048 = vunpack.c.l.b16 %v2669
  %v3049 = vunpack.c.l.b16 %v2670
  %v3050 = vunpack.c.h.b16 %v2670
  %v3051 = vunpack.c.l.b16 %v2671
  %v3052 = vunpack.c.l.b16 %v2672
  %v3053 = vunpack.c.h.b16 %v2672
  %v3054 = vunpack.c.l.b16 %v2673
  %v3055 = vunpack.c.l.b16 %v2674
  %v3056 = vunpack.c.h.b16 %v2674
  %v3057 = vunpack.c.l.b16 %v2675
  %v3058 = vunpack.c.l.b16 %v2676
  %v3059 = vunpack.c.h.b16 %v2676
  %v3060 = vunpack.c.l.b16 %v2677
  %v3061 = vunpack.c.l.b16 %v2678
  %v3062 = vunpack.c.h.b16 %v2678
  %v3063 = vunpack.c.l.b16 %v2679
  %v3064 = vunpack.c.l.b16 %v2680
  %v3065 = vunpack.c.h.b16 %v2680
  %v3066 = vunpack.c.l.b16 %v2681
  %v3067 = vunpack.c.l.b16 %v2682
  %v3068 = vunpack.c.h.b16 %v2682
  %v3069 = vunpack.c.l.b16 %v2683
  %v3070 = vunpack.c.l.b16 %v2684
  %v3071 = vunpack.c.h.b16 %v2684
  %v3072 = vunpack.c.l.b16 %v2685
  %v3073 = vunpack.c.l.b16 %v2686
  %v3074 = vunpack.c.h.b16 %v2686
  %v3075 = vunpack.c.l.b16 %v2687
  %v3076 = vunpack.c.l.b16 %v2688
  %v3077 = vunpack.c.h.b16 %v2688
  %v3078 = vunpack.c.l.b16 %v2689
  %v3079 = vunpack.c.l.b16 %v2690
  %v3080 = vunpack.c.h.b16 %v2690
  %v3081 = vunpack.c.l.b16 %v2691
  %v3082 = vpack.c.b16 %v2869, %v2866
  %v3083 = vpack.c.b16 %v2870, %v2867
  %v3084 = vpack.c.b16 %v2871, %v2868
  %v3085 = vpack.c.b16 %v2875, %v2872
  %v3086 = vpack.c.b16 %v2876, %v2873
  %v3087 = vpack.c.b16 %v2877, %v2874
  %v3088 = vpack.c.b16 %v2881, %v2878
  %v3089 = vpack.c.b16 %v2882, %v2879
  %v3090 = vpack.c.b16 %v2883, %v2880
  %v3091 = vpack.c.b16 %v2887, %v2884
  %v3092 = vpack.c.b16 %v2888, %v2885
  %v3093 = vpack.c.b16 %v2889, %v2886
  %v3094 = vpack.c.b16 %v2893, %v2890
  %v3095 = vpack.c.b16 %v2894, %v2891
  %v3096 = vpack.c.b16 %v2895, %v2892
  %v3097 = vpack.c.b16 %v2899, %v2896
  %v3098 = vpack.c.b16 %v2900, %v2897
  %v3099 = vpack.c.b16 %v2901, %v2898
  %v3100 = vpack.c.b16 %v2905, %v2902
  %v3101 = vpack.c.b16 %v2906, %v2903
  %v3102 = vpack.c.b16 %v2907, %v2904
  %v3103 = vpack.c.b16 %v2911, %v2908
  %v3104 = vpack.c.b16 %v2912, %v2909
  %v3105 = vpack.c.b16 %v2913, %v2910
  %v3106 = vpack.c.b16 %v2917, %v2914
  %v3107 = vpack.c.b16 %v2918, %v2915
  %v3108 = vpack.c.b16 %v2919, %v2916
  %v3109 = vpack.c.b16 %v2923, %v2920
  %v3110 = vpack.c.b16 %v2924, %v2921
  %v3111 = vpack.c.b16 %v2925, %v2922
  %v3112 = vpack.c.b16 %v2929, %v2926
  %v3113 = vpack.c.b16 %v2930, %v2927
  %v3114 = vpack.c.b16 %v2931, %v2928
  %v3115 = vpack.c.b16 %v2935, %v2932
  %v3116 = vpack.c.b16 %v2936, %v2933
  %v3117 = vpack.c.b16 %v2937, %v2934
  %v3118 = vpack.c.b16 %v2941, %v2938
  %v3119 = vpack.c.b16 %v2942, %v2939
  %v3120 = vpack.c.b16 %v2943, %v2940
  %v3121 = vpack.c.b16 %v2947, %v2944
  %v3122 = vpack.c.b16 %v2948, %v2945
  %v3123 = vpack.c.b16 %v2949, %v2946
  %v3124 = vpack.c.b16 %v2953, %v2950
  %v3125 = vpack.c.b16 %v2954, %v2951
  %v3126 = vpack.c.b16 %v2955, %v2952
  %v3127 = vpack.c.b16 %v2959, %v2956
  %v3128 = vpack.c.b16 %v2960, %v2957
  %v3129 = vpack.c.b16 %v2961, %v2958
  %v3130 = vpack.c.b16 %v2965, %v2962
  %v3131 = vpack.c.b16 %v2966, %v2963
  %v3132 = vpack.c.b16 %v2967, %v2964
  %v3133 = vpack.c.b16 %v2971, %v2968
  %v3134 = vpack.c.b16 %v2972, %v2969
  %v3135 = vpack.c.b16 %v2973, %v2970
  %v3136 = vpack.c.b16 %v2977, %v2974
  %v3137 = vpack.c.b16 %v2978, %v2975
  %v3138 = vpack.c.b16 %v2979, %v2976
  %v3139 = vpack.c.b16 %v2983, %v2980
  %v3140 = vpack.c.b16 %v2984, %v2981
  %v3141 = vpack.c.b16 %v2985, %v2982
  %v3142 = vpack.c.b16 %v2989, %v2986
  %v3143 = vpack.c.b16 %v2990, %v2987
  %v3144 = vpack.c.b16 %v2991, %v2988
  %v3145 = vpack.c.b16 %v2995, %v2992
  %v3146 = vpack.c.b16 %v2996, %v2993
  %v3147 = vpack.c.b16 %v2997, %v2994
  %v3148 = vpack.c.b16 %v3001, %v2998
  %v3149 = vpack.c.b16 %v3002, %v2999
  %v3150 = vpack.c.b16 %v3003, %v3000
  %v3151 = vpack.c.b16 %v3007, %v3004
  %v3152 = vpack.c.b16 %v3008, %v3005
  %v3153 = vpack.c.b16 %v3009, %v3006
  %v3154 = vpack.c.b16 %v3013, %v3010
  %v3155 = vpack.c.b16 %v3014, %v3011
  %v3156 = vpack.c.b16 %v3015, %v3012
  %v3157 = vpack.c.b16 %v3019, %v3016
  %v3158 = vpack.c.b16 %v3020, %v3017
  %v3159 = vpack.c.b16 %v3021, %v3018
  %v3160 = vpack.c.b16 %v3025, %v3022
  %v3161 = vpack.c.b16 %v3026, %v3023
  %v3162 = vpack.c.b16 %v3027, %v3024
  %v3163 = vpack.c.b16 %v3031, %v3028
  %v3164 = vpack.c.b16 %v3032, %v3029
  %v3165 = vpack.c.b16 %v3033, %v3030
  %v3166 = vpack.c.b16 %v3037, %v3034
  %v3167 = vpack.c.b16 %v3038, %v3035
  %v3168 = vpack.c.b16 %v3039, %v3036
  %v3169 = vpack.c.b16 %v3043, %v3040
  %v3170 = vpack.c.b16 %v3044, %v3041
  %v3171 = vpack.c.b16 %v3045, %v3042
  %v3172 = vpack.c.b16 %v3049, %v3046
  %v3173 = vpack.c.b16 %v3050, %v3047
  %v3174 = vpack.c.b16 %v3051, %v3048
  %v3175 = vpack.c.b16 %v3055, %v3052
  %v3176 = vpack.c.b16 %v3056, %v3053
  %v3177 = vpack.c.b16 %v3057, %v3054
  %v3178 = vpack.c.b16 %v3061, %v3058
  %v3179 = vpack.c.b16 %v3062, %v3059
  %v3180 = vpack.c.b16 %v3063, %v3060
  %v3181 = vpack.c.b16 %v3067, %v3064
  %v3182 = vpack.c.b16 %v3068, %v3065
  %v3183 = vpack.c.b16 %v3069, %v3066
  %v3184 = vpack.c.b16 %v3073, %v3070
  %v3185 = vpack.c.b16 %v3074, %v3071
  %v3186 = vpack.c.b16 %v3075, %v3072
  %v3187 = vpack.c.b16 %v3079, %v3076
  %v3188 = vpack.c.b16 %v3080, %v3077
  %v3189 = vpack.c.b16 %v3081, %v3078
  %v3299 = vsel %vm477, %v2717, 0
  %3301 = vmatpush.bf16.msra.mxu0 %v3103
  %3302 = vmatpush.bf16.msra.mxu0 %v3100
  %3303 = vmatpush.bf16.msra.mxu0 %v3097
  %3304 = vmatpush.bf16.msra.mxu0 %v3094
  %3305 = vmatpush.bf16.msra.mxu0 %v3091
  %3306 = vmatpush.bf16.msra.mxu0 %v3088
  %3307 = vmatpush.bf16.msra.mxu0 %v3085
  %3308 = vmatpush.bf16.msra.mxu0 %v3082
  %3309 = vmatmul.bf16.gmra.mxu0 %v2705
  %v3310 = vpop.f32.mrf.mxu0
  %v3311 = vadd.f32 0.0, %v3310
  %v3312 = vpop.f32.mrf.mxu0
  %v3313 = vadd.f32 0.0, %v3312
  %3314 = vdwg.mxu0
  %3315 = vmatpush.bf16.msra.mxu0 %v3127
  %3316 = vmatpush.bf16.msra.mxu0 %v3124
  %3317 = vmatpush.bf16.msra.mxu0 %v3121
  %3318 = vmatpush.bf16.msra.mxu0 %v3118
  %3319 = vmatpush.bf16.msra.mxu0 %v3115
  %3320 = vmatpush.bf16.msra.mxu0 %v3112
  %3321 = vmatpush.bf16.msra.mxu0 %v3109
  %3322 = vmatpush.bf16.msra.mxu0 %v3106
  %3323 = vmatmul.bf16.gmra.mxu0 %v2708
  %v3324 = vpop.f32.mrf.mxu0
  %v3325 = vadd.f32 %v3311, %v3324
  %v3326 = vpop.f32.mrf.mxu0
  %v3327 = vadd.f32 %v3313, %v3326
  %3328 = vdwg.mxu0
  %3329 = vmatpush.bf16.msra.mxu0 %v3151
  %3330 = vmatpush.bf16.msra.mxu0 %v3148
  %3331 = vmatpush.bf16.msra.mxu0 %v3145
  %3332 = vmatpush.bf16.msra.mxu0 %v3142
  %3333 = vmatpush.bf16.msra.mxu0 %v3139
  %3334 = vmatpush.bf16.msra.mxu0 %v3136
  %3335 = vmatpush.bf16.msra.mxu0 %v3133
  %3336 = vmatpush.bf16.msra.mxu0 %v3130
  %3337 = vmatmul.bf16.gmra.mxu0 %v2711
  %v3338 = vpop.f32.mrf.mxu0
  %v3339 = vadd.f32 %v3325, %v3338
  %v3340 = vpop.f32.mrf.mxu0
  %v3341 = vadd.f32 %v3327, %v3340
  %3342 = vdwg.mxu0
  %3343 = vmatpush.bf16.msra.mxu0 %v3175
  %3344 = vmatpush.bf16.msra.mxu0 %v3172
  %3345 = vmatpush.bf16.msra.mxu0 %v3169
  %3346 = vmatpush.bf16.msra.mxu0 %v3166
  %3347 = vmatpush.bf16.msra.mxu0 %v3163
  %3348 = vmatpush.bf16.msra.mxu0 %v3160
  %3349 = vmatpush.bf16.msra.mxu0 %v3157
  %3350 = vmatpush.bf16.msra.mxu0 %v3154
  %3351 = vmatmul.bf16.gmra.mxu0 %v2714
  %v3352 = vpop.f32.mrf.mxu0
  %v3353 = vadd.f32 %v3339, %v3352
  %v3354 = vpop.f32.mrf.mxu0
  %v3355 = vadd.f32 %v3341, %v3354
  %3356 = vdwg.mxu0
  %3357 = vmatpush.bf16.msra.mxu0 0
  %3358 = vmatpush.bf16.msra.mxu0 0
  %3359 = vmatpush.bf16.msra.mxu0 0
  %3360 = vmatpush.bf16.msra.mxu0 0
  %3361 = vmatpush.bf16.msra.mxu0 %v3187
  %3362 = vmatpush.bf16.msra.mxu0 %v3184
  %3363 = vmatpush.bf16.msra.mxu0 %v3181
  %3364 = vmatpush.bf16.msra.mxu0 %v3178
  %3365 = vmatmul.bf16.gmra.mxu0 %v3299
  %v3366 = vpop.f32.mrf.mxu0
  %v3367 = vadd.f32 %v3353, %v3366
  %v3368 = vpop.f32.mrf.mxu0
  %v3369 = vadd.f32 %v3355, %v3368
  %3370 = vdwg.mxu0
  %3371 = vmatpush.bf16.msra.mxu0 %v3104
  %3372 = vmatpush.bf16.msra.mxu0 %v3101
  %3373 = vmatpush.bf16.msra.mxu0 %v3098
  %3374 = vmatpush.bf16.msra.mxu0 %v3095
  %3375 = vmatpush.bf16.msra.mxu0 %v3092
  %3376 = vmatpush.bf16.msra.mxu0 %v3089
  %3377 = vmatpush.bf16.msra.mxu0 %v3086
  %3378 = vmatpush.bf16.msra.mxu0 %v3083
  %3379 = vmatmul.bf16.gmra.mxu0 %v2705
  %v3380 = vpop.f32.mrf.mxu0
  %v3381 = vadd.f32 0.0, %v3380
  %v3382 = vpop.f32.mrf.mxu0
  %v3383 = vadd.f32 0.0, %v3382
  %3384 = vdwg.mxu0
  %3385 = vmatpush.bf16.msra.mxu0 %v3128
  %3386 = vmatpush.bf16.msra.mxu0 %v3125
  %3387 = vmatpush.bf16.msra.mxu0 %v3122
  %3388 = vmatpush.bf16.msra.mxu0 %v3119
  %3389 = vmatpush.bf16.msra.mxu0 %v3116
  %3390 = vmatpush.bf16.msra.mxu0 %v3113
  %3391 = vmatpush.bf16.msra.mxu0 %v3110
  %3392 = vmatpush.bf16.msra.mxu0 %v3107
  %3393 = vmatmul.bf16.gmra.mxu0 %v2708
  %v3394 = vpop.f32.mrf.mxu0
  %v3395 = vadd.f32 %v3381, %v3394
  %v3396 = vpop.f32.mrf.mxu0
  %v3397 = vadd.f32 %v3383, %v3396
  %3398 = vdwg.mxu0
  %3399 = vmatpush.bf16.msra.mxu0 %v3152
  %3400 = vmatpush.bf16.msra.mxu0 %v3149
  %3401 = vmatpush.bf16.msra.mxu0 %v3146
  %3402 = vmatpush.bf16.msra.mxu0 %v3143
  %3403 = vmatpush.bf16.msra.mxu0 %v3140
  %3404 = vmatpush.bf16.msra.mxu0 %v3137
  %3405 = vmatpush.bf16.msra.mxu0 %v3134
  %3406 = vmatpush.bf16.msra.mxu0 %v3131
  %3407 = vmatmul.bf16.gmra.mxu0 %v2711
  %v3408 = vpop.f32.mrf.mxu0
  %v3409 = vadd.f32 %v3395, %v3408
  %v3410 = vpop.f32.mrf.mxu0
  %v3411 = vadd.f32 %v3397, %v3410
  %3412 = vdwg.mxu0
  %3413 = vmatpush.bf16.msra.mxu0 %v3176
  %3414 = vmatpush.bf16.msra.mxu0 %v3173
  %3415 = vmatpush.bf16.msra.mxu0 %v3170
  %3416 = vmatpush.bf16.msra.mxu0 %v3167
  %3417 = vmatpush.bf16.msra.mxu0 %v3164
  %3418 = vmatpush.bf16.msra.mxu0 %v3161
  %3419 = vmatpush.bf16.msra.mxu0 %v3158
  %3420 = vmatpush.bf16.msra.mxu0 %v3155
  %3421 = vmatmul.bf16.gmra.mxu0 %v2714
  %v3422 = vpop.f32.mrf.mxu0
  %v3423 = vadd.f32 %v3409, %v3422
  %v3424 = vpop.f32.mrf.mxu0
  %v3425 = vadd.f32 %v3411, %v3424
  %3426 = vdwg.mxu0
  %3427 = vmatpush.bf16.msra.mxu0 0
  %3428 = vmatpush.bf16.msra.mxu0 0
  %3429 = vmatpush.bf16.msra.mxu0 0
  %3430 = vmatpush.bf16.msra.mxu0 0
  %3431 = vmatpush.bf16.msra.mxu0 %v3188
  %3432 = vmatpush.bf16.msra.mxu0 %v3185
  %3433 = vmatpush.bf16.msra.mxu0 %v3182
  %3434 = vmatpush.bf16.msra.mxu0 %v3179
  %3435 = vmatmul.bf16.gmra.mxu0 %v3299
  %v3436 = vpop.f32.mrf.mxu0
  %v3437 = vadd.f32 %v3423, %v3436
  %v3438 = vpop.f32.mrf.mxu0
  %v3439 = vadd.f32 %v3425, %v3438
  %3440 = vdwg.mxu0
  %3441 = vmatpush.bf16.msra.mxu0 %v3105
  %3442 = vmatpush.bf16.msra.mxu0 %v3102
  %3443 = vmatpush.bf16.msra.mxu0 %v3099
  %3444 = vmatpush.bf16.msra.mxu0 %v3096
  %3445 = vmatpush.bf16.msra.mxu0 %v3093
  %3446 = vmatpush.bf16.msra.mxu0 %v3090
  %3447 = vmatpush.bf16.msra.mxu0 %v3087
  %3448 = vmatpush.bf16.msra.mxu0 %v3084
  %3449 = vmatmul.bf16.gmra.mxu0 %v2705
  %v3450 = vpop.f32.mrf.mxu0
  %v3451 = vadd.f32 0.0, %v3450
  %v3452 = vpop.f32.mrf.mxu0
  %v3453 = vadd.f32 0.0, %v3452
  %3454 = vdwg.mxu0
  %3455 = vmatpush.bf16.msra.mxu0 %v3129
  %3456 = vmatpush.bf16.msra.mxu0 %v3126
  %3457 = vmatpush.bf16.msra.mxu0 %v3123
  %3458 = vmatpush.bf16.msra.mxu0 %v3120
  %3459 = vmatpush.bf16.msra.mxu0 %v3117
  %3460 = vmatpush.bf16.msra.mxu0 %v3114
  %3461 = vmatpush.bf16.msra.mxu0 %v3111
  %3462 = vmatpush.bf16.msra.mxu0 %v3108
  %3463 = vmatmul.bf16.gmra.mxu0 %v2708
  %v3464 = vpop.f32.mrf.mxu0
  %v3465 = vadd.f32 %v3451, %v3464
  %v3466 = vpop.f32.mrf.mxu0
  %v3467 = vadd.f32 %v3453, %v3466
  %3468 = vdwg.mxu0
  %3469 = vmatpush.bf16.msra.mxu0 %v3153
  %3470 = vmatpush.bf16.msra.mxu0 %v3150
  %3471 = vmatpush.bf16.msra.mxu0 %v3147
  %3472 = vmatpush.bf16.msra.mxu0 %v3144
  %3473 = vmatpush.bf16.msra.mxu0 %v3141
  %3474 = vmatpush.bf16.msra.mxu0 %v3138
  %3475 = vmatpush.bf16.msra.mxu0 %v3135
  %3476 = vmatpush.bf16.msra.mxu0 %v3132
  %3477 = vmatmul.bf16.gmra.mxu0 %v2711
  %v3478 = vpop.f32.mrf.mxu0
  %v3479 = vadd.f32 %v3465, %v3478
  %v3480 = vpop.f32.mrf.mxu0
  %v3481 = vadd.f32 %v3467, %v3480
  %3482 = vdwg.mxu0
  %3483 = vmatpush.bf16.msra.mxu0 %v3177
  %3484 = vmatpush.bf16.msra.mxu0 %v3174
  %3485 = vmatpush.bf16.msra.mxu0 %v3171
  %3486 = vmatpush.bf16.msra.mxu0 %v3168
  %3487 = vmatpush.bf16.msra.mxu0 %v3165
  %3488 = vmatpush.bf16.msra.mxu0 %v3162
  %3489 = vmatpush.bf16.msra.mxu0 %v3159
  %3490 = vmatpush.bf16.msra.mxu0 %v3156
  %3491 = vmatmul.bf16.gmra.mxu0 %v2714
  %v3492 = vpop.f32.mrf.mxu0
  %v3493 = vadd.f32 %v3479, %v3492
  %v3494 = vpop.f32.mrf.mxu0
  %v3495 = vadd.f32 %v3481, %v3494
  %3496 = vdwg.mxu0
  %3497 = vmatpush.bf16.msra.mxu0 0
  %3498 = vmatpush.bf16.msra.mxu0 0
  %3499 = vmatpush.bf16.msra.mxu0 0
  %3500 = vmatpush.bf16.msra.mxu0 0
  %3501 = vmatpush.bf16.msra.mxu0 %v3189
  %3502 = vmatpush.bf16.msra.mxu0 %v3186
  %3503 = vmatpush.bf16.msra.mxu0 %v3183
  %3504 = vmatpush.bf16.msra.mxu0 %v3180
  %3505 = vmatmul.bf16.gmra.mxu0 %v3299
  %v3506 = vpop.f32.mrf.mxu0
  %v3507 = vadd.f32 %v3493, %v3506
  %v3508 = vpop.f32.mrf.mxu0
  %v3509 = vadd.f32 %v3495, %v3508
  %3510 = vdwg.mxu0
  %v3511 = vadd.f32 %v2383, %v3367
  %v3512 = vadd.f32 %v2453, %v3437
  %v3513 = vadd.f32 %v2523, %v3507
  %v3514 = vadd.f32 %v2385, %v3369
  %v3515 = vadd.f32 %v2455, %v3439
  %v3516 = vadd.f32 %v2525, %v3509
  %v3518 = vperm.slane %v549, 0
  %v3519 = vperm.slane %v549, 1
  %v3520 = vperm.slane %v549, 2
  %v3524 = vadd.f32 %v3511, %v3518
  %v3525 = vadd.f32 %v3512, %v3519
  %v3526 = vadd.f32 %v3513, %v3520
  %v3527 = vadd.f32 %v3514, %v3518
  %v3528 = vadd.f32 %v3515, %v3519
  %v3529 = vadd.f32 %v3516, %v3520
  %v3530 = vmax.f32 %v3524, 0.0
  %v3531 = vmax.f32 %v3525, 0.0
  %v3532 = vmax.f32 %v3526, 0.0
  %v3533 = vmax.f32 %v3527, 0.0
  %v3534 = vmax.f32 %v3528, 0.0
  %v3535 = vmax.f32 %v3529, 0.0
  %v3536 = vld [vmem:[#allocation2 + $0x50] sm:$0xfc]
  %v3537 = vld [vmem:[#allocation2 + $0x58] sm:$0xfc]
  %v3538 = vld [vmem:[#allocation2 + $0x60] sm:$0xfc]
  %v3539 = vld [vmem:[#allocation2 + $0x68] sm:$0xfc]
  %v3540 = vld [vmem:[#allocation2 + $0x70] sm:$0xfc]
  %v3541 = vld [vmem:[#allocation2 + $0x78] sm:$0xff]
  %v3542 = vld [vmem:[#allocation2 + $0x80] sm:$0xff]
  %v3543 = vld [vmem:[#allocation2 + $0x88] sm:$0xff]
  %v3544 = vld [vmem:[#allocation2 + $0x90] sm:$0xff]
  %v3545 = vld [vmem:[#allocation2 + $0x98] sm:$0xff]
  %v3546 = vld [vmem:[#allocation2 + $0xa0] sm:$0x3]
  %v3547 = vld [vmem:[#allocation2 + $0xa8] sm:$0x3]
  %v3548 = vld [vmem:[#allocation2 + $0xb0] sm:$0x3]
  %v3549 = vld [vmem:[#allocation2 + $0xb8] sm:$0x3]
  %v3550 = vld [vmem:[#allocation2 + $0xc0] sm:$0x3]
  %v3551 = vpack.c.bf16 %v3541, %v3536
  %v3552 = vpack.c.bf16 %v3542, %v3537
  %v3553 = vpack.c.bf16 %v3543, %v3538
  %v3554 = vpack.c.bf16 %v3544, %v3539
  %v3555 = vpack.c.bf16 %v3545, %v3540
  %v3556 = vpack.c.bf16 %v3546, %v3546
  %v3557 = vpack.c.bf16 %v3547, %v3547
  %v3558 = vpack.c.bf16 %v3548, %v3548
  %v3559 = vpack.c.bf16 %v3549, %v3549
  %v3560 = vpack.c.bf16 %v3550, %v3550
  %v3561 = vld [vmem:[#allocation2 + $0x50] sm:$0xf8]
  %v3562 = vld [vmem:[#allocation2 + $0x58] sm:$0xf8]
  %v3563 = vld [vmem:[#allocation2 + $0x60] sm:$0xf8]
  %v3564 = vld [vmem:[#allocation2 + $0x68] sm:$0xf8]
  %v3565 = vld [vmem:[#allocation2 + $0x70] sm:$0xf8]
  %v3566 = vld [vmem:[#allocation2 + $0xa0] sm:$0x7]
  %v3567 = vld [vmem:[#allocation2 + $0xa8] sm:$0x7]
  %v3568 = vld [vmem:[#allocation2 + $0xb0] sm:$0x7]
  %v3569 = vld [vmem:[#allocation2 + $0xb8] sm:$0x7]
  %v3570 = vld [vmem:[#allocation2 + $0xc0] sm:$0x7]
  %v3571 = vpack.c.bf16 %v3541, %v3561
  %v3572 = vpack.c.bf16 %v3542, %v3562
  %v3573 = vpack.c.bf16 %v3543, %v3563
  %v3574 = vpack.c.bf16 %v3544, %v3564
  %v3575 = vpack.c.bf16 %v3545, %v3565
  %v3576 = vpack.c.bf16 %v3566, %v3566
  %v3577 = vpack.c.bf16 %v3567, %v3567
  %v3578 = vpack.c.bf16 %v3568, %v3568
  %v3579 = vpack.c.bf16 %v3569, %v3569
  %v3580 = vpack.c.bf16 %v3570, %v3570
  %vm3581 = vsmask.f32 6400
  %v3583 = vshrl.u32 %v3571, 16
  %v3585 = vrot.slane %v3583, 1
  %v3586 = vshll.u32 %v3571, 16
  %v3588 = vrot.slane %v3586, 2
  %v3589 = vor.u32 %v3585, %v3588
  %v3591 = vshrl.u32 %v3576, 16
  %v3593 = vrot.slane %v3591, 1
  %v3594 = vshll.u32 %v3576, 16
  %v3596 = vrot.slane %v3594, 2
  %v3597 = vor.u32 %v3593, %v3596
  %v3598 = vsel %vm3581, %v3589, %v3597
  %v3600 = vshrl.u32 %v3572, 16
  %v3602 = vrot.slane %v3600, 1
  %v3603 = vshll.u32 %v3572, 16
  %v3605 = vrot.slane %v3603, 2
  %v3606 = vor.u32 %v3602, %v3605
  %v3608 = vshrl.u32 %v3577, 16
  %v3610 = vrot.slane %v3608, 1
  %v3611 = vshll.u32 %v3577, 16
  %v3613 = vrot.slane %v3611, 2
  %v3614 = vor.u32 %v3610, %v3613
  %v3615 = vsel %vm3581, %v3606, %v3614
  %v3617 = vshrl.u32 %v3573, 16
  %v3619 = vrot.slane %v3617, 1
  %v3620 = vshll.u32 %v3573, 16
  %v3622 = vrot.slane %v3620, 2
  %v3623 = vor.u32 %v3619, %v3622
  %v3625 = vshrl.u32 %v3578, 16
  %v3627 = vrot.slane %v3625, 1
  %v3628 = vshll.u32 %v3578, 16
  %v3630 = vrot.slane %v3628, 2
  %v3631 = vor.u32 %v3627, %v3630
  %v3632 = vsel %vm3581, %v3623, %v3631
  %v3634 = vshrl.u32 %v3574, 16
  %v3636 = vrot.slane %v3634, 1
  %v3637 = vshll.u32 %v3574, 16
  %v3639 = vrot.slane %v3637, 2
  %v3640 = vor.u32 %v3636, %v3639
  %v3642 = vshrl.u32 %v3579, 16
  %v3644 = vrot.slane %v3642, 1
  %v3645 = vshll.u32 %v3579, 16
  %v3647 = vrot.slane %v3645, 2
  %v3648 = vor.u32 %v3644, %v3647
  %v3649 = vsel %vm3581, %v3640, %v3648
  %v3651 = vshrl.u32 %v3575, 16
  %v3653 = vrot.slane %v3651, 1
  %v3654 = vshll.u32 %v3575, 16
  %v3656 = vrot.slane %v3654, 2
  %v3657 = vor.u32 %v3653, %v3656
  %v3659 = vshrl.u32 %v3580, 16
  %v3661 = vrot.slane %v3659, 1
  %v3662 = vshll.u32 %v3580, 16
  %v3664 = vrot.slane %v3662, 2
  %v3665 = vor.u32 %v3661, %v3664
  %v3666 = vsel %vm3581, %v3657, %v3665
  %v3672 = vsel %vm477, %v3666, 0
  %3674 = vmatpush.bf16.msra.mxu0 %v1330
  %3675 = vmatpush.bf16.msra.mxu0 %v1327
  %3676 = vmatpush.bf16.msra.mxu0 %v1324
  %3677 = vmatpush.bf16.msra.mxu0 %v1321
  %3678 = vmatpush.bf16.msra.mxu0 %v1318
  %3679 = vmatpush.bf16.msra.mxu0 %v1315
  %3680 = vmatpush.bf16.msra.mxu0 %v1312
  %3681 = vmatpush.bf16.msra.mxu0 %v1309
  %3682 = vmatmul.bf16.gmra.mxu0 %v3598
  %v3683 = vpop.f32.mrf.mxu0
  %v3684 = vadd.f32 0.0, %v3683
  %v3685 = vpop.f32.mrf.mxu0
  %v3686 = vadd.f32 0.0, %v3685
  %3687 = vdwg.mxu0
  %3688 = vmatpush.bf16.msra.mxu0 %v1354
  %3689 = vmatpush.bf16.msra.mxu0 %v1351
  %3690 = vmatpush.bf16.msra.mxu0 %v1348
  %3691 = vmatpush.bf16.msra.mxu0 %v1345
  %3692 = vmatpush.bf16.msra.mxu0 %v1342
  %3693 = vmatpush.bf16.msra.mxu0 %v1339
  %3694 = vmatpush.bf16.msra.mxu0 %v1336
  %3695 = vmatpush.bf16.msra.mxu0 %v1333
  %3696 = vmatmul.bf16.gmra.mxu0 %v3615
  %v3697 = vpop.f32.mrf.mxu0
  %v3698 = vadd.f32 %v3684, %v3697
  %v3699 = vpop.f32.mrf.mxu0
  %v3700 = vadd.f32 %v3686, %v3699
  %3701 = vdwg.mxu0
  %3702 = vmatpush.bf16.msra.mxu0 %v1378
  %3703 = vmatpush.bf16.msra.mxu0 %v1375
  %3704 = vmatpush.bf16.msra.mxu0 %v1372
  %3705 = vmatpush.bf16.msra.mxu0 %v1369
  %3706 = vmatpush.bf16.msra.mxu0 %v1366
  %3707 = vmatpush.bf16.msra.mxu0 %v1363
  %3708 = vmatpush.bf16.msra.mxu0 %v1360
  %3709 = vmatpush.bf16.msra.mxu0 %v1357
  %3710 = vmatmul.bf16.gmra.mxu0 %v3632
  %v3711 = vpop.f32.mrf.mxu0
  %v3712 = vadd.f32 %v3698, %v3711
  %v3713 = vpop.f32.mrf.mxu0
  %v3714 = vadd.f32 %v3700, %v3713
  %3715 = vdwg.mxu0
  %3716 = vmatpush.bf16.msra.mxu0 %v1402
  %3717 = vmatpush.bf16.msra.mxu0 %v1399
  %3718 = vmatpush.bf16.msra.mxu0 %v1396
  %3719 = vmatpush.bf16.msra.mxu0 %v1393
  %3720 = vmatpush.bf16.msra.mxu0 %v1390
  %3721 = vmatpush.bf16.msra.mxu0 %v1387
  %3722 = vmatpush.bf16.msra.mxu0 %v1384
  %3723 = vmatpush.bf16.msra.mxu0 %v1381
  %3724 = vmatmul.bf16.gmra.mxu0 %v3649
  %v3725 = vpop.f32.mrf.mxu0
  %v3726 = vadd.f32 %v3712, %v3725
  %v3727 = vpop.f32.mrf.mxu0
  %v3728 = vadd.f32 %v3714, %v3727
  %3729 = vdwg.mxu0
  %3730 = vmatpush.bf16.msra.mxu0 0
  %3731 = vmatpush.bf16.msra.mxu0 0
  %3732 = vmatpush.bf16.msra.mxu0 0
  %3733 = vmatpush.bf16.msra.mxu0 0
  %3734 = vmatpush.bf16.msra.mxu0 %v1414
  %3735 = vmatpush.bf16.msra.mxu0 %v1411
  %3736 = vmatpush.bf16.msra.mxu0 %v1408
  %3737 = vmatpush.bf16.msra.mxu0 %v1405
  %3738 = vmatmul.bf16.gmra.mxu0 %v3672
  %v3739 = vpop.f32.mrf.mxu0
  %v3740 = vadd.f32 %v3726, %v3739
  %v3741 = vpop.f32.mrf.mxu0
  %v3742 = vadd.f32 %v3728, %v3741
  %3743 = vdwg.mxu0
  %3744 = vmatpush.bf16.msra.mxu0 %v1331
  %3745 = vmatpush.bf16.msra.mxu0 %v1328
  %3746 = vmatpush.bf16.msra.mxu0 %v1325
  %3747 = vmatpush.bf16.msra.mxu0 %v1322
  %3748 = vmatpush.bf16.msra.mxu0 %v1319
  %3749 = vmatpush.bf16.msra.mxu0 %v1316
  %3750 = vmatpush.bf16.msra.mxu0 %v1313
  %3751 = vmatpush.bf16.msra.mxu0 %v1310
  %3752 = vmatmul.bf16.gmra.mxu0 %v3598
  %v3753 = vpop.f32.mrf.mxu0
  %v3754 = vadd.f32 0.0, %v3753
  %v3755 = vpop.f32.mrf.mxu0
  %v3756 = vadd.f32 0.0, %v3755
  %3757 = vdwg.mxu0
  %3758 = vmatpush.bf16.msra.mxu0 %v1355
  %3759 = vmatpush.bf16.msra.mxu0 %v1352
  %3760 = vmatpush.bf16.msra.mxu0 %v1349
  %3761 = vmatpush.bf16.msra.mxu0 %v1346
  %3762 = vmatpush.bf16.msra.mxu0 %v1343
  %3763 = vmatpush.bf16.msra.mxu0 %v1340
  %3764 = vmatpush.bf16.msra.mxu0 %v1337
  %3765 = vmatpush.bf16.msra.mxu0 %v1334
  %3766 = vmatmul.bf16.gmra.mxu0 %v3615
  %v3767 = vpop.f32.mrf.mxu0
  %v3768 = vadd.f32 %v3754, %v3767
  %v3769 = vpop.f32.mrf.mxu0
  %v3770 = vadd.f32 %v3756, %v3769
  %3771 = vdwg.mxu0
  %3772 = vmatpush.bf16.msra.mxu0 %v1379
  %3773 = vmatpush.bf16.msra.mxu0 %v1376
  %3774 = vmatpush.bf16.msra.mxu0 %v1373
  %3775 = vmatpush.bf16.msra.mxu0 %v1370
  %3776 = vmatpush.bf16.msra.mxu0 %v1367
  %3777 = vmatpush.bf16.msra.mxu0 %v1364
  %3778 = vmatpush.bf16.msra.mxu0 %v1361
  %3779 = vmatpush.bf16.msra.mxu0 %v1358
  %3780 = vmatmul.bf16.gmra.mxu0 %v3632
  %v3781 = vpop.f32.mrf.mxu0
  %v3782 = vadd.f32 %v3768, %v3781
  %v3783 = vpop.f32.mrf.mxu0
  %v3784 = vadd.f32 %v3770, %v3783
  %3785 = vdwg.mxu0
  %3786 = vmatpush.bf16.msra.mxu0 %v1403
  %3787 = vmatpush.bf16.msra.mxu0 %v1400
  %3788 = vmatpush.bf16.msra.mxu0 %v1397
  %3789 = vmatpush.bf16.msra.mxu0 %v1394
  %3790 = vmatpush.bf16.msra.mxu0 %v1391
  %3791 = vmatpush.bf16.msra.mxu0 %v1388
  %3792 = vmatpush.bf16.msra.mxu0 %v1385
  %3793 = vmatpush.bf16.msra.mxu0 %v1382
  %3794 = vmatmul.bf16.gmra.mxu0 %v3649
  %v3795 = vpop.f32.mrf.mxu0
  %v3796 = vadd.f32 %v3782, %v3795
  %v3797 = vpop.f32.mrf.mxu0
  %v3798 = vadd.f32 %v3784, %v3797
  %3799 = vdwg.mxu0
  %3800 = vmatpush.bf16.msra.mxu0 0
  %3801 = vmatpush.bf16.msra.mxu0 0
  %3802 = vmatpush.bf16.msra.mxu0 0
  %3803 = vmatpush.bf16.msra.mxu0 0
  %3804 = vmatpush.bf16.msra.mxu0 %v1415
  %3805 = vmatpush.bf16.msra.mxu0 %v1412
  %3806 = vmatpush.bf16.msra.mxu0 %v1409
  %3807 = vmatpush.bf16.msra.mxu0 %v1406
  %3808 = vmatmul.bf16.gmra.mxu0 %v3672
  %v3809 = vpop.f32.mrf.mxu0
  %v3810 = vadd.f32 %v3796, %v3809
  %v3811 = vpop.f32.mrf.mxu0
  %v3812 = vadd.f32 %v3798, %v3811
  %3813 = vdwg.mxu0
  %3814 = vmatpush.bf16.msra.mxu0 %v1332
  %3815 = vmatpush.bf16.msra.mxu0 %v1329
  %3816 = vmatpush.bf16.msra.mxu0 %v1326
  %3817 = vmatpush.bf16.msra.mxu0 %v1323
  %3818 = vmatpush.bf16.msra.mxu0 %v1320
  %3819 = vmatpush.bf16.msra.mxu0 %v1317
  %3820 = vmatpush.bf16.msra.mxu0 %v1314
  %3821 = vmatpush.bf16.msra.mxu0 %v1311
  %3822 = vmatmul.bf16.gmra.mxu0 %v3598
  %v3823 = vpop.f32.mrf.mxu0
  %v3824 = vadd.f32 0.0, %v3823
  %v3825 = vpop.f32.mrf.mxu0
  %v3826 = vadd.f32 0.0, %v3825
  %3827 = vdwg.mxu0
  %3828 = vmatpush.bf16.msra.mxu0 %v1356
  %3829 = vmatpush.bf16.msra.mxu0 %v1353
  %3830 = vmatpush.bf16.msra.mxu0 %v1350
  %3831 = vmatpush.bf16.msra.mxu0 %v1347
  %3832 = vmatpush.bf16.msra.mxu0 %v1344
  %3833 = vmatpush.bf16.msra.mxu0 %v1341
  %3834 = vmatpush.bf16.msra.mxu0 %v1338
  %3835 = vmatpush.bf16.msra.mxu0 %v1335
  %3836 = vmatmul.bf16.gmra.mxu0 %v3615
  %v3837 = vpop.f32.mrf.mxu0
  %v3838 = vadd.f32 %v3824, %v3837
  %v3839 = vpop.f32.mrf.mxu0
  %v3840 = vadd.f32 %v3826, %v3839
  %3841 = vdwg.mxu0
  %3842 = vmatpush.bf16.msra.mxu0 %v1380
  %3843 = vmatpush.bf16.msra.mxu0 %v1377
  %3844 = vmatpush.bf16.msra.mxu0 %v1374
  %3845 = vmatpush.bf16.msra.mxu0 %v1371
  %3846 = vmatpush.bf16.msra.mxu0 %v1368
  %3847 = vmatpush.bf16.msra.mxu0 %v1365
  %3848 = vmatpush.bf16.msra.mxu0 %v1362
  %3849 = vmatpush.bf16.msra.mxu0 %v1359
  %3850 = vmatmul.bf16.gmra.mxu0 %v3632
  %v3851 = vpop.f32.mrf.mxu0
  %v3852 = vadd.f32 %v3838, %v3851
  %v3853 = vpop.f32.mrf.mxu0
  %v3854 = vadd.f32 %v3840, %v3853
  %3855 = vdwg.mxu0
  %3856 = vmatpush.bf16.msra.mxu0 %v1404
  %3857 = vmatpush.bf16.msra.mxu0 %v1401
  %3858 = vmatpush.bf16.msra.mxu0 %v1398
  %3859 = vmatpush.bf16.msra.mxu0 %v1395
  %3860 = vmatpush.bf16.msra.mxu0 %v1392
  %3861 = vmatpush.bf16.msra.mxu0 %v1389
  %3862 = vmatpush.bf16.msra.mxu0 %v1386
  %3863 = vmatpush.bf16.msra.mxu0 %v1383
  %3864 = vmatmul.bf16.gmra.mxu0 %v3649
  %v3865 = vpop.f32.mrf.mxu0
  %v3866 = vadd.f32 %v3852, %v3865
  %v3867 = vpop.f32.mrf.mxu0
  %v3868 = vadd.f32 %v3854, %v3867
  %3869 = vdwg.mxu0
  %3870 = vmatpush.bf16.msra.mxu0 0
  %3871 = vmatpush.bf16.msra.mxu0 0
  %3872 = vmatpush.bf16.msra.mxu0 0
  %3873 = vmatpush.bf16.msra.mxu0 0
  %3874 = vmatpush.bf16.msra.mxu0 %v1416
  %3875 = vmatpush.bf16.msra.mxu0 %v1413
  %3876 = vmatpush.bf16.msra.mxu0 %v1410
  %3877 = vmatpush.bf16.msra.mxu0 %v1407
  %3878 = vmatmul.bf16.gmra.mxu0 %v3672
  %v3879 = vpop.f32.mrf.mxu0
  %v3880 = vadd.f32 %v3866, %v3879
  %v3881 = vpop.f32.mrf.mxu0
  %v3882 = vadd.f32 %v3868, %v3881
  %3883 = vdwg.mxu0
  %v3894 = vrot.slane %v3551, 1
  %v3895 = vrot.slane %v3556, 1
  %v3896 = vsel %vm2702, %v3894, %v3895
  %v3897 = vrot.slane %v3552, 1
  %v3898 = vrot.slane %v3557, 1
  %v3899 = vsel %vm2702, %v3897, %v3898
  %v3900 = vrot.slane %v3553, 1
  %v3901 = vrot.slane %v3558, 1
  %v3902 = vsel %vm2702, %v3900, %v3901
  %v3903 = vrot.slane %v3554, 1
  %v3904 = vrot.slane %v3559, 1
  %v3905 = vsel %vm2702, %v3903, %v3904
  %v3906 = vrot.slane %v3555, 1
  %v3907 = vrot.slane %v3560, 1
  %v3908 = vsel %vm2702, %v3906, %v3907
  %v3914 = vsel %vm477, %v3908, 0
  %3916 = vmatpush.bf16.msra.mxu0 %v2119
  %3917 = vmatpush.bf16.msra.mxu0 %v2116
  %3918 = vmatpush.bf16.msra.mxu0 %v2113
  %3919 = vmatpush.bf16.msra.mxu0 %v2110
  %3920 = vmatpush.bf16.msra.mxu0 %v2107
  %3921 = vmatpush.bf16.msra.mxu0 %v2104
  %3922 = vmatpush.bf16.msra.mxu0 %v2101
  %3923 = vmatpush.bf16.msra.mxu0 %v2098
  %3924 = vmatmul.bf16.gmra.mxu0 %v3896
  %v3925 = vpop.f32.mrf.mxu0
  %v3926 = vadd.f32 %v3740, %v3925
  %v3927 = vpop.f32.mrf.mxu0
  %v3928 = vadd.f32 %v3742, %v3927
  %3929 = vdwg.mxu0
  %3930 = vmatpush.bf16.msra.mxu0 %v2143
  %3931 = vmatpush.bf16.msra.mxu0 %v2140
  %3932 = vmatpush.bf16.msra.mxu0 %v2137
  %3933 = vmatpush.bf16.msra.mxu0 %v2134
  %3934 = vmatpush.bf16.msra.mxu0 %v2131
  %3935 = vmatpush.bf16.msra.mxu0 %v2128
  %3936 = vmatpush.bf16.msra.mxu0 %v2125
  %3937 = vmatpush.bf16.msra.mxu0 %v2122
  %3938 = vmatmul.bf16.gmra.mxu0 %v3899
  %v3939 = vpop.f32.mrf.mxu0
  %v3940 = vadd.f32 %v3926, %v3939
  %v3941 = vpop.f32.mrf.mxu0
  %v3942 = vadd.f32 %v3928, %v3941
  %3943 = vdwg.mxu0
  %3944 = vmatpush.bf16.msra.mxu0 %v2167
  %3945 = vmatpush.bf16.msra.mxu0 %v2164
  %3946 = vmatpush.bf16.msra.mxu0 %v2161
  %3947 = vmatpush.bf16.msra.mxu0 %v2158
  %3948 = vmatpush.bf16.msra.mxu0 %v2155
  %3949 = vmatpush.bf16.msra.mxu0 %v2152
  %3950 = vmatpush.bf16.msra.mxu0 %v2149
  %3951 = vmatpush.bf16.msra.mxu0 %v2146
  %3952 = vmatmul.bf16.gmra.mxu0 %v3902
  %v3953 = vpop.f32.mrf.mxu0
  %v3954 = vadd.f32 %v3940, %v3953
  %v3955 = vpop.f32.mrf.mxu0
  %v3956 = vadd.f32 %v3942, %v3955
  %3957 = vdwg.mxu0
  %3958 = vmatpush.bf16.msra.mxu0 %v2191
  %3959 = vmatpush.bf16.msra.mxu0 %v2188
  %3960 = vmatpush.bf16.msra.mxu0 %v2185
  %3961 = vmatpush.bf16.msra.mxu0 %v2182
  %3962 = vmatpush.bf16.msra.mxu0 %v2179
  %3963 = vmatpush.bf16.msra.mxu0 %v2176
  %3964 = vmatpush.bf16.msra.mxu0 %v2173
  %3965 = vmatpush.bf16.msra.mxu0 %v2170
  %3966 = vmatmul.bf16.gmra.mxu0 %v3905
  %v3967 = vpop.f32.mrf.mxu0
  %v3968 = vadd.f32 %v3954, %v3967
  %v3969 = vpop.f32.mrf.mxu0
  %v3970 = vadd.f32 %v3956, %v3969
  %3971 = vdwg.mxu0
  %3972 = vmatpush.bf16.msra.mxu0 0
  %3973 = vmatpush.bf16.msra.mxu0 0
  %3974 = vmatpush.bf16.msra.mxu0 0
  %3975 = vmatpush.bf16.msra.mxu0 0
  %3976 = vmatpush.bf16.msra.mxu0 %v2203
  %3977 = vmatpush.bf16.msra.mxu0 %v2200
  %3978 = vmatpush.bf16.msra.mxu0 %v2197
  %3979 = vmatpush.bf16.msra.mxu0 %v2194
  %3980 = vmatmul.bf16.gmra.mxu0 %v3914
  %v3981 = vpop.f32.mrf.mxu0
  %v3982 = vadd.f32 %v3968, %v3981
  %v3983 = vpop.f32.mrf.mxu0
  %v3984 = vadd.f32 %v3970, %v3983
  %3985 = vdwg.mxu0
  %3986 = vmatpush.bf16.msra.mxu0 %v2120
  %3987 = vmatpush.bf16.msra.mxu0 %v2117
  %3988 = vmatpush.bf16.msra.mxu0 %v2114
  %3989 = vmatpush.bf16.msra.mxu0 %v2111
  %3990 = vmatpush.bf16.msra.mxu0 %v2108
  %3991 = vmatpush.bf16.msra.mxu0 %v2105
  %3992 = vmatpush.bf16.msra.mxu0 %v2102
  %3993 = vmatpush.bf16.msra.mxu0 %v2099
  %3994 = vmatmul.bf16.gmra.mxu0 %v3896
  %v3995 = vpop.f32.mrf.mxu0
  %v3996 = vadd.f32 %v3810, %v3995
  %v3997 = vpop.f32.mrf.mxu0
  %v3998 = vadd.f32 %v3812, %v3997
  %3999 = vdwg.mxu0
  %4000 = vmatpush.bf16.msra.mxu0 %v2144
  %4001 = vmatpush.bf16.msra.mxu0 %v2141
  %4002 = vmatpush.bf16.msra.mxu0 %v2138
  %4003 = vmatpush.bf16.msra.mxu0 %v2135
  %4004 = vmatpush.bf16.msra.mxu0 %v2132
  %4005 = vmatpush.bf16.msra.mxu0 %v2129
  %4006 = vmatpush.bf16.msra.mxu0 %v2126
  %4007 = vmatpush.bf16.msra.mxu0 %v2123
  %4008 = vmatmul.bf16.gmra.mxu0 %v3899
  %v4009 = vpop.f32.mrf.mxu0
  %v4010 = vadd.f32 %v3996, %v4009
  %v4011 = vpop.f32.mrf.mxu0
  %v4012 = vadd.f32 %v3998, %v4011
  %4013 = vdwg.mxu0
  %4014 = vmatpush.bf16.msra.mxu0 %v2168
  %4015 = vmatpush.bf16.msra.mxu0 %v2165
  %4016 = vmatpush.bf16.msra.mxu0 %v2162
  %4017 = vmatpush.bf16.msra.mxu0 %v2159
  %4018 = vmatpush.bf16.msra.mxu0 %v2156
  %4019 = vmatpush.bf16.msra.mxu0 %v2153
  %4020 = vmatpush.bf16.msra.mxu0 %v2150
  %4021 = vmatpush.bf16.msra.mxu0 %v2147
  %4022 = vmatmul.bf16.gmra.mxu0 %v3902
  %v4023 = vpop.f32.mrf.mxu0
  %v4024 = vadd.f32 %v4010, %v4023
  %v4025 = vpop.f32.mrf.mxu0
  %v4026 = vadd.f32 %v4012, %v4025
  %4027 = vdwg.mxu0
  %4028 = vmatpush.bf16.msra.mxu0 %v2192
  %4029 = vmatpush.bf16.msra.mxu0 %v2189
  %4030 = vmatpush.bf16.msra.mxu0 %v2186
  %4031 = vmatpush.bf16.msra.mxu0 %v2183
  %4032 = vmatpush.bf16.msra.mxu0 %v2180
  %4033 = vmatpush.bf16.msra.mxu0 %v2177
  %4034 = vmatpush.bf16.msra.mxu0 %v2174
  %4035 = vmatpush.bf16.msra.mxu0 %v2171
  %4036 = vmatmul.bf16.gmra.mxu0 %v3905
  %v4037 = vpop.f32.mrf.mxu0
  %v4038 = vadd.f32 %v4024, %v4037
  %v4039 = vpop.f32.mrf.mxu0
  %v4040 = vadd.f32 %v4026, %v4039
  %4041 = vdwg.mxu0
  %4042 = vmatpush.bf16.msra.mxu0 0
  %4043 = vmatpush.bf16.msra.mxu0 0
  %4044 = vmatpush.bf16.msra.mxu0 0
  %4045 = vmatpush.bf16.msra.mxu0 0
  %4046 = vmatpush.bf16.msra.mxu0 %v2204
  %4047 = vmatpush.bf16.msra.mxu0 %v2201
  %4048 = vmatpush.bf16.msra.mxu0 %v2198
  %4049 = vmatpush.bf16.msra.mxu0 %v2195
  %4050 = vmatmul.bf16.gmra.mxu0 %v3914
  %v4051 = vpop.f32.mrf.mxu0
  %v4052 = vadd.f32 %v4038, %v4051
  %v4053 = vpop.f32.mrf.mxu0
  %v4054 = vadd.f32 %v4040, %v4053
  %4055 = vdwg.mxu0
  %4056 = vmatpush.bf16.msra.mxu0 %v2121
  %4057 = vmatpush.bf16.msra.mxu0 %v2118
  %4058 = vmatpush.bf16.msra.mxu0 %v2115
  %4059 = vmatpush.bf16.msra.mxu0 %v2112
  %4060 = vmatpush.bf16.msra.mxu0 %v2109
  %4061 = vmatpush.bf16.msra.mxu0 %v2106
  %4062 = vmatpush.bf16.msra.mxu0 %v2103
  %4063 = vmatpush.bf16.msra.mxu0 %v2100
  %4064 = vmatmul.bf16.gmra.mxu0 %v3896
  %v4065 = vpop.f32.mrf.mxu0
  %v4066 = vadd.f32 %v3880, %v4065
  %v4067 = vpop.f32.mrf.mxu0
  %v4068 = vadd.f32 %v3882, %v4067
  %4069 = vdwg.mxu0
  %4070 = vmatpush.bf16.msra.mxu0 %v2145
  %4071 = vmatpush.bf16.msra.mxu0 %v2142
  %4072 = vmatpush.bf16.msra.mxu0 %v2139
  %4073 = vmatpush.bf16.msra.mxu0 %v2136
  %4074 = vmatpush.bf16.msra.mxu0 %v2133
  %4075 = vmatpush.bf16.msra.mxu0 %v2130
  %4076 = vmatpush.bf16.msra.mxu0 %v2127
  %4077 = vmatpush.bf16.msra.mxu0 %v2124
  %4078 = vmatmul.bf16.gmra.mxu0 %v3899
  %v4079 = vpop.f32.mrf.mxu0
  %v4080 = vadd.f32 %v4066, %v4079
  %v4081 = vpop.f32.mrf.mxu0
  %v4082 = vadd.f32 %v4068, %v4081
  %4083 = vdwg.mxu0
  %4084 = vmatpush.bf16.msra.mxu0 %v2169
  %4085 = vmatpush.bf16.msra.mxu0 %v2166
  %4086 = vmatpush.bf16.msra.mxu0 %v2163
  %4087 = vmatpush.bf16.msra.mxu0 %v2160
  %4088 = vmatpush.bf16.msra.mxu0 %v2157
  %4089 = vmatpush.bf16.msra.mxu0 %v2154
  %4090 = vmatpush.bf16.msra.mxu0 %v2151
  %4091 = vmatpush.bf16.msra.mxu0 %v2148
  %4092 = vmatmul.bf16.gmra.mxu0 %v3902
  %v4093 = vpop.f32.mrf.mxu0
  %v4094 = vadd.f32 %v4080, %v4093
  %v4095 = vpop.f32.mrf.mxu0
  %v4096 = vadd.f32 %v4082, %v4095
  %4097 = vdwg.mxu0
  %4098 = vmatpush.bf16.msra.mxu0 %v2193
  %4099 = vmatpush.bf16.msra.mxu0 %v2190
  %4100 = vmatpush.bf16.msra.mxu0 %v2187
  %4101 = vmatpush.bf16.msra.mxu0 %v2184
  %4102 = vmatpush.bf16.msra.mxu0 %v2181
  %4103 = vmatpush.bf16.msra.mxu0 %v2178
  %4104 = vmatpush.bf16.msra.mxu0 %v2175
  %4105 = vmatpush.bf16.msra.mxu0 %v2172
  %4106 = vmatmul.bf16.gmra.mxu0 %v3905
  %v4107 = vpop.f32.mrf.mxu0
  %v4108 = vadd.f32 %v4094, %v4107
  %v4109 = vpop.f32.mrf.mxu0
  %v4110 = vadd.f32 %v4096, %v4109
  %4111 = vdwg.mxu0
  %4112 = vmatpush.bf16.msra.mxu0 0
  %4113 = vmatpush.bf16.msra.mxu0 0
  %4114 = vmatpush.bf16.msra.mxu0 0
  %4115 = vmatpush.bf16.msra.mxu0 0
  %4116 = vmatpush.bf16.msra.mxu0 %v2205
  %4117 = vmatpush.bf16.msra.mxu0 %v2202
  %4118 = vmatpush.bf16.msra.mxu0 %v2199
  %4119 = vmatpush.bf16.msra.mxu0 %v2196
  %4120 = vmatmul.bf16.gmra.mxu0 %v3914
  %v4121 = vpop.f32.mrf.mxu0
  %v4122 = vadd.f32 %v4108, %v4121
  %v4123 = vpop.f32.mrf.mxu0
  %v4124 = vadd.f32 %v4110, %v4123
  %4125 = vdwg.mxu0
  %v4126 = vld [vmem:[#allocation2 + $0x50] sm:$0xf0]
  %v4127 = vld [vmem:[#allocation2 + $0x58] sm:$0xf0]
  %v4128 = vld [vmem:[#allocation2 + $0x60] sm:$0xf0]
  %v4129 = vld [vmem:[#allocation2 + $0x68] sm:$0xf0]
  %v4130 = vld [vmem:[#allocation2 + $0x70] sm:$0xf0]
  %v4131 = vld [vmem:[#allocation2 + $0xa0] sm:$0xf]
  %v4132 = vld [vmem:[#allocation2 + $0xa8] sm:$0xf]
  %v4133 = vld [vmem:[#allocation2 + $0xb0] sm:$0xf]
  %v4134 = vld [vmem:[#allocation2 + $0xb8] sm:$0xf]
  %v4135 = vld [vmem:[#allocation2 + $0xc0] sm:$0xf]
  %v4136 = vpack.c.bf16 %v3541, %v4126
  %v4137 = vpack.c.bf16 %v3542, %v4127
  %v4138 = vpack.c.bf16 %v3543, %v4128
  %v4139 = vpack.c.bf16 %v3544, %v4129
  %v4140 = vpack.c.bf16 %v3545, %v4130
  %v4141 = vpack.c.bf16 %v4131, %v4131
  %v4142 = vpack.c.bf16 %v4132, %v4132
  %v4143 = vpack.c.bf16 %v4133, %v4133
  %v4144 = vpack.c.bf16 %v4134, %v4134
  %v4145 = vpack.c.bf16 %v4135, %v4135
  %vm4156 = vcmask 1045504
  %v4157 = vrot.slane %v4136, 2
  %v4158 = vrot.slane %v4141, 2
  %v4159 = vsel %vm4156, %v4157, %v4158
  %v4160 = vrot.slane %v4137, 2
  %v4161 = vrot.slane %v4142, 2
  %v4162 = vsel %vm4156, %v4160, %v4161
  %v4163 = vrot.slane %v4138, 2
  %v4164 = vrot.slane %v4143, 2
  %v4165 = vsel %vm4156, %v4163, %v4164
  %v4166 = vrot.slane %v4139, 2
  %v4167 = vrot.slane %v4144, 2
  %v4168 = vsel %vm4156, %v4166, %v4167
  %v4169 = vrot.slane %v4140, 2
  %v4170 = vrot.slane %v4145, 2
  %v4171 = vsel %vm4156, %v4169, %v4170
  %v4177 = vsel %vm477, %v4171, 0
  %4179 = vmatpush.bf16.msra.mxu0 %v3103
  %4180 = vmatpush.bf16.msra.mxu0 %v3100
  %4181 = vmatpush.bf16.msra.mxu0 %v3097
  %4182 = vmatpush.bf16.msra.mxu0 %v3094
  %4183 = vmatpush.bf16.msra.mxu0 %v3091
  %4184 = vmatpush.bf16.msra.mxu0 %v3088
  %4185 = vmatpush.bf16.msra.mxu0 %v3085
  %4186 = vmatpush.bf16.msra.mxu0 %v3082
  %4187 = vmatmul.bf16.gmra.mxu0 %v4159
  %v4188 = vpop.f32.mrf.mxu0
  %v4189 = vadd.f32 0.0, %v4188
  %v4190 = vpop.f32.mrf.mxu0
  %v4191 = vadd.f32 0.0, %v4190
  %4192 = vdwg.mxu0
  %4193 = vmatpush.bf16.msra.mxu0 %v3127
  %4194 = vmatpush.bf16.msra.mxu0 %v3124
  %4195 = vmatpush.bf16.msra.mxu0 %v3121
  %4196 = vmatpush.bf16.msra.mxu0 %v3118
  %4197 = vmatpush.bf16.msra.mxu0 %v3115
  %4198 = vmatpush.bf16.msra.mxu0 %v3112
  %4199 = vmatpush.bf16.msra.mxu0 %v3109
  %4200 = vmatpush.bf16.msra.mxu0 %v3106
  %4201 = vmatmul.bf16.gmra.mxu0 %v4162
  %v4202 = vpop.f32.mrf.mxu0
  %v4203 = vadd.f32 %v4189, %v4202
  %v4204 = vpop.f32.mrf.mxu0
  %v4205 = vadd.f32 %v4191, %v4204
  %4206 = vdwg.mxu0
  %4207 = vmatpush.bf16.msra.mxu0 %v3151
  %4208 = vmatpush.bf16.msra.mxu0 %v3148
  %4209 = vmatpush.bf16.msra.mxu0 %v3145
  %4210 = vmatpush.bf16.msra.mxu0 %v3142
  %4211 = vmatpush.bf16.msra.mxu0 %v3139
  %4212 = vmatpush.bf16.msra.mxu0 %v3136
  %4213 = vmatpush.bf16.msra.mxu0 %v3133
  %4214 = vmatpush.bf16.msra.mxu0 %v3130
  %4215 = vmatmul.bf16.gmra.mxu0 %v4165
  %v4216 = vpop.f32.mrf.mxu0
  %v4217 = vadd.f32 %v4203, %v4216
  %v4218 = vpop.f32.mrf.mxu0
  %v4219 = vadd.f32 %v4205, %v4218
  %4220 = vdwg.mxu0
  %4221 = vmatpush.bf16.msra.mxu0 %v3175
  %4222 = vmatpush.bf16.msra.mxu0 %v3172
  %4223 = vmatpush.bf16.msra.mxu0 %v3169
  %4224 = vmatpush.bf16.msra.mxu0 %v3166
  %4225 = vmatpush.bf16.msra.mxu0 %v3163
  %4226 = vmatpush.bf16.msra.mxu0 %v3160
  %4227 = vmatpush.bf16.msra.mxu0 %v3157
  %4228 = vmatpush.bf16.msra.mxu0 %v3154
  %4229 = vmatmul.bf16.gmra.mxu0 %v4168
  %v4230 = vpop.f32.mrf.mxu0
  %v4231 = vadd.f32 %v4217, %v4230
  %v4232 = vpop.f32.mrf.mxu0
  %v4233 = vadd.f32 %v4219, %v4232
  %4234 = vdwg.mxu0
  %4235 = vmatpush.bf16.msra.mxu0 0
  %4236 = vmatpush.bf16.msra.mxu0 0
  %4237 = vmatpush.bf16.msra.mxu0 0
  %4238 = vmatpush.bf16.msra.mxu0 0
  %4239 = vmatpush.bf16.msra.mxu0 %v3187
  %4240 = vmatpush.bf16.msra.mxu0 %v3184
  %4241 = vmatpush.bf16.msra.mxu0 %v3181
  %4242 = vmatpush.bf16.msra.mxu0 %v3178
  %4243 = vmatmul.bf16.gmra.mxu0 %v4177
  %v4244 = vpop.f32.mrf.mxu0
  %v4245 = vadd.f32 %v4231, %v4244
  %v4246 = vpop.f32.mrf.mxu0
  %v4247 = vadd.f32 %v4233, %v4246
  %4248 = vdwg.mxu0
  %4249 = vmatpush.bf16.msra.mxu0 %v3104
  %4250 = vmatpush.bf16.msra.mxu0 %v3101
  %4251 = vmatpush.bf16.msra.mxu0 %v3098
  %4252 = vmatpush.bf16.msra.mxu0 %v3095
  %4253 = vmatpush.bf16.msra.mxu0 %v3092
  %4254 = vmatpush.bf16.msra.mxu0 %v3089
  %4255 = vmatpush.bf16.msra.mxu0 %v3086
  %4256 = vmatpush.bf16.msra.mxu0 %v3083
  %4257 = vmatmul.bf16.gmra.mxu0 %v4159
  %v4258 = vpop.f32.mrf.mxu0
  %v4259 = vadd.f32 0.0, %v4258
  %v4260 = vpop.f32.mrf.mxu0
  %v4261 = vadd.f32 0.0, %v4260
  %4262 = vdwg.mxu0
  %4263 = vmatpush.bf16.msra.mxu0 %v3128
  %4264 = vmatpush.bf16.msra.mxu0 %v3125
  %4265 = vmatpush.bf16.msra.mxu0 %v3122
  %4266 = vmatpush.bf16.msra.mxu0 %v3119
  %4267 = vmatpush.bf16.msra.mxu0 %v3116
  %4268 = vmatpush.bf16.msra.mxu0 %v3113
  %4269 = vmatpush.bf16.msra.mxu0 %v3110
  %4270 = vmatpush.bf16.msra.mxu0 %v3107
  %4271 = vmatmul.bf16.gmra.mxu0 %v4162
  %v4272 = vpop.f32.mrf.mxu0
  %v4273 = vadd.f32 %v4259, %v4272
  %v4274 = vpop.f32.mrf.mxu0
  %v4275 = vadd.f32 %v4261, %v4274
  %4276 = vdwg.mxu0
  %4277 = vmatpush.bf16.msra.mxu0 %v3152
  %4278 = vmatpush.bf16.msra.mxu0 %v3149
  %4279 = vmatpush.bf16.msra.mxu0 %v3146
  %4280 = vmatpush.bf16.msra.mxu0 %v3143
  %4281 = vmatpush.bf16.msra.mxu0 %v3140
  %4282 = vmatpush.bf16.msra.mxu0 %v3137
  %4283 = vmatpush.bf16.msra.mxu0 %v3134
  %4284 = vmatpush.bf16.msra.mxu0 %v3131
  %4285 = vmatmul.bf16.gmra.mxu0 %v4165
  %v4286 = vpop.f32.mrf.mxu0
  %v4287 = vadd.f32 %v4273, %v4286
  %v4288 = vpop.f32.mrf.mxu0
  %v4289 = vadd.f32 %v4275, %v4288
  %4290 = vdwg.mxu0
  %4291 = vmatpush.bf16.msra.mxu0 %v3176
  %4292 = vmatpush.bf16.msra.mxu0 %v3173
  %4293 = vmatpush.bf16.msra.mxu0 %v3170
  %4294 = vmatpush.bf16.msra.mxu0 %v3167
  %4295 = vmatpush.bf16.msra.mxu0 %v3164
  %4296 = vmatpush.bf16.msra.mxu0 %v3161
  %4297 = vmatpush.bf16.msra.mxu0 %v3158
  %4298 = vmatpush.bf16.msra.mxu0 %v3155
  %4299 = vmatmul.bf16.gmra.mxu0 %v4168
  %v4300 = vpop.f32.mrf.mxu0
  %v4301 = vadd.f32 %v4287, %v4300
  %v4302 = vpop.f32.mrf.mxu0
  %v4303 = vadd.f32 %v4289, %v4302
  %4304 = vdwg.mxu0
  %4305 = vmatpush.bf16.msra.mxu0 0
  %4306 = vmatpush.bf16.msra.mxu0 0
  %4307 = vmatpush.bf16.msra.mxu0 0
  %4308 = vmatpush.bf16.msra.mxu0 0
  %4309 = vmatpush.bf16.msra.mxu0 %v3188
  %4310 = vmatpush.bf16.msra.mxu0 %v3185
  %4311 = vmatpush.bf16.msra.mxu0 %v3182
  %4312 = vmatpush.bf16.msra.mxu0 %v3179
  %4313 = vmatmul.bf16.gmra.mxu0 %v4177
  %v4314 = vpop.f32.mrf.mxu0
  %v4315 = vadd.f32 %v4301, %v4314
  %v4316 = vpop.f32.mrf.mxu0
  %v4317 = vadd.f32 %v4303, %v4316
  %4318 = vdwg.mxu0
  %4319 = vmatpush.bf16.msra.mxu0 %v3105
  %4320 = vmatpush.bf16.msra.mxu0 %v3102
  %4321 = vmatpush.bf16.msra.mxu0 %v3099
  %4322 = vmatpush.bf16.msra.mxu0 %v3096
  %4323 = vmatpush.bf16.msra.mxu0 %v3093
  %4324 = vmatpush.bf16.msra.mxu0 %v3090
  %4325 = vmatpush.bf16.msra.mxu0 %v3087
  %4326 = vmatpush.bf16.msra.mxu0 %v3084
  %4327 = vmatmul.bf16.gmra.mxu0 %v4159
  %v4328 = vpop.f32.mrf.mxu0
  %v4329 = vadd.f32 0.0, %v4328
  %v4330 = vpop.f32.mrf.mxu0
  %v4331 = vadd.f32 0.0, %v4330
  %4332 = vdwg.mxu0
  %4333 = vmatpush.bf16.msra.mxu0 %v3129
  %4334 = vmatpush.bf16.msra.mxu0 %v3126
  %4335 = vmatpush.bf16.msra.mxu0 %v3123
  %4336 = vmatpush.bf16.msra.mxu0 %v3120
  %4337 = vmatpush.bf16.msra.mxu0 %v3117
  %4338 = vmatpush.bf16.msra.mxu0 %v3114
  %4339 = vmatpush.bf16.msra.mxu0 %v3111
  %4340 = vmatpush.bf16.msra.mxu0 %v3108
  %4341 = vmatmul.bf16.gmra.mxu0 %v4162
  %v4342 = vpop.f32.mrf.mxu0
  %v4343 = vadd.f32 %v4329, %v4342
  %v4344 = vpop.f32.mrf.mxu0
  %v4345 = vadd.f32 %v4331, %v4344
  %4346 = vdwg.mxu0
  %4347 = vmatpush.bf16.msra.mxu0 %v3153
  %4348 = vmatpush.bf16.msra.mxu0 %v3150
  %4349 = vmatpush.bf16.msra.mxu0 %v3147
  %4350 = vmatpush.bf16.msra.mxu0 %v3144
  %4351 = vmatpush.bf16.msra.mxu0 %v3141
  %4352 = vmatpush.bf16.msra.mxu0 %v3138
  %4353 = vmatpush.bf16.msra.mxu0 %v3135
  %4354 = vmatpush.bf16.msra.mxu0 %v3132
  %4355 = vmatmul.bf16.gmra.mxu0 %v4165
  %v4356 = vpop.f32.mrf.mxu0
  %v4357 = vadd.f32 %v4343, %v4356
  %v4358 = vpop.f32.mrf.mxu0
  %v4359 = vadd.f32 %v4345, %v4358
  %4360 = vdwg.mxu0
  %4361 = vmatpush.bf16.msra.mxu0 %v3177
  %4362 = vmatpush.bf16.msra.mxu0 %v3174
  %4363 = vmatpush.bf16.msra.mxu0 %v3171
  %4364 = vmatpush.bf16.msra.mxu0 %v3168
  %4365 = vmatpush.bf16.msra.mxu0 %v3165
  %4366 = vmatpush.bf16.msra.mxu0 %v3162
  %4367 = vmatpush.bf16.msra.mxu0 %v3159
  %4368 = vmatpush.bf16.msra.mxu0 %v3156
  %4369 = vmatmul.bf16.gmra.mxu0 %v4168
  %v4370 = vpop.f32.mrf.mxu0
  %v4371 = vadd.f32 %v4357, %v4370
  %v4372 = vpop.f32.mrf.mxu0
  %v4373 = vadd.f32 %v4359, %v4372
  %4374 = vdwg.mxu0
  %4375 = vmatpush.bf16.msra.mxu0 0
  %4376 = vmatpush.bf16.msra.mxu0 0
  %4377 = vmatpush.bf16.msra.mxu0 0
  %4378 = vmatpush.bf16.msra.mxu0 0
  %4379 = vmatpush.bf16.msra.mxu0 %v3189
  %4380 = vmatpush.bf16.msra.mxu0 %v3186
  %4381 = vmatpush.bf16.msra.mxu0 %v3183
  %4382 = vmatpush.bf16.msra.mxu0 %v3180
  %4383 = vmatmul.bf16.gmra.mxu0 %v4177
  %v4384 = vpop.f32.mrf.mxu0
  %v4385 = vadd.f32 %v4371, %v4384
  %v4386 = vpop.f32.mrf.mxu0
  %v4387 = vadd.f32 %v4373, %v4386
  %4388 = vdwg.mxu0
  %v4389 = vadd.f32 %v3982, %v4245
  %v4390 = vadd.f32 %v4052, %v4315
  %v4391 = vadd.f32 %v4122, %v4385
  %v4392 = vadd.f32 %v3984, %v4247
  %v4393 = vadd.f32 %v4054, %v4317
  %v4394 = vadd.f32 %v4124, %v4387
  %v4395 = vadd.f32 %v4389, %v3518
  %v4396 = vadd.f32 %v4390, %v3519
  %v4397 = vadd.f32 %v4391, %v3520
  %v4398 = vadd.f32 %v4392, %v3518
  %v4399 = vadd.f32 %v4393, %v3519
  %v4400 = vadd.f32 %v4394, %v3520
  %v4401 = vmax.f32 %v4395, 0.0
  %v4402 = vmax.f32 %v4396, 0.0
  %v4403 = vmax.f32 %v4397, 0.0
  %v4404 = vmax.f32 %v4398, 0.0
  %v4405 = vmax.f32 %v4399, 0.0
  %v4406 = vmax.f32 %v4400, 0.0
  %v4407 = vadd.f32 %v3530, %v3533
  %v4408 = vrot.slane %v4407, 4
  %v4409 = vadd.f32 %v4407, %v4408
  %v4410 = vrot.slane %v4409, 2
  %v4411 = vadd.f32 %v4409, %v4410
  %v4412 = vrot.slane %v4411, 1
  %v4413 = vadd.f32 %v4411, %v4412
  %v4414 = vadd.f32 %v3531, %v3534
  %v4415 = vrot.slane %v4414, 4
  %v4416 = vadd.f32 %v4414, %v4415
  %v4417 = vrot.slane %v4416, 2
  %v4418 = vadd.f32 %v4416, %v4417
  %v4419 = vrot.slane %v4418, 1
  %v4420 = vadd.f32 %v4418, %v4419
  %vm4421 = vcmask 261120
  %v4422 = vsel %vm4421, %v3532, 0.0
  %v4423 = vsel %vm4421, %v3535, 0.0
  %v4424 = vadd.f32 %v4422, %v4423
  %v4425 = vrot.slane %v4424, 4
  %v4426 = vadd.f32 %v4424, %v4425
  %v4427 = vrot.slane %v4426, 2
  %v4428 = vadd.f32 %v4426, %v4427
  %v4429 = vrot.slane %v4428, 1
  %v4430 = vadd.f32 %v4428, %v4429
  %v4431 = vadd.f32 %v4401, %v4404
  %v4432 = vrot.slane %v4431, 4
  %v4433 = vadd.f32 %v4431, %v4432
  %v4434 = vrot.slane %v4433, 2
  %v4435 = vadd.f32 %v4433, %v4434
  %v4436 = vrot.slane %v4435, 1
  %v4437 = vadd.f32 %v4435, %v4436
  %v4438 = vadd.f32 %v4402, %v4405
  %v4439 = vrot.slane %v4438, 4
  %v4440 = vadd.f32 %v4438, %v4439
  %v4441 = vrot.slane %v4440, 2
  %v4442 = vadd.f32 %v4440, %v4441
  %v4443 = vrot.slane %v4442, 1
  %v4444 = vadd.f32 %v4442, %v4443
  %v4445 = vsel %vm4421, %v4403, 0.0
  %v4446 = vsel %vm4421, %v4406, 0.0
  %v4447 = vadd.f32 %v4445, %v4446
  %v4448 = vrot.slane %v4447, 4
  %v4449 = vadd.f32 %v4447, %v4448
  %v4450 = vrot.slane %v4449, 2
  %v4451 = vadd.f32 %v4449, %v4450
  %v4452 = vrot.slane %v4451, 1
  %v4453 = vadd.f32 %v4451, %v4452
  %v4454 = vadd.f32 %v4413, %v4437
  %v4455 = vadd.f32 %v4420, %v4444
  %v4456 = vadd.f32 %v4430, %v4453
  %v4457 = vld [vmem:[%s5] sm:$0xff]
  %v4458 = vld [vmem:[%s5 + $0x8] sm:$0xff]
  %v4459 = vld [vmem:[%s5 + $0x10] sm:$0xff]
  %v4460 = vld [vmem:[%s5 + $0x18] sm:$0xff]
  %v4461 = vld [vmem:[%s5 + $0x20] sm:$0xff]
  %v4462 = vld [vmem:[%s5 + $0x28] sm:$0xff]
  %v4463 = vld [vmem:[%s5 + $0x30] sm:$0xff]
  %v4464 = vld [vmem:[%s5 + $0x38] sm:$0xff]
  %v4465 = vld [vmem:[%s5 + $0x40] sm:$0xff]
  %v4466 = vld [vmem:[%s5 + $0x48] sm:$0xff]
  %v4467 = vld [vmem:[%s5 + $0x50] sm:$0xff]
  %v4468 = vld [vmem:[%s5 + $0x58] sm:$0xff]
  %v4469 = vld [vmem:[%s5 + $0x60] sm:$0xff]
  %v4470 = vld [vmem:[%s5 + $0x68] sm:$0xff]
  %v4471 = vld [vmem:[%s5 + $0x70] sm:$0xff]
  %v4472 = vld [vmem:[%s5 + $0x78] sm:$0xff]
  %v4473 = vld [vmem:[%s5 + $0x80] sm:$0xff]
  %v4474 = vld [vmem:[%s5 + $0x88] sm:$0xff]
  %v4475 = vld [vmem:[%s5 + $0x90] sm:$0xff]
  %v4476 = vld [vmem:[%s5 + $0x98] sm:$0xff]
  %v4477 = vld [vmem:[%s5 + $0xa0] sm:$0xff]
  %v4478 = vld [vmem:[%s5 + $0xa8] sm:$0xff]
  %v4479 = vld [vmem:[%s5 + $0xb0] sm:$0xff]
  %v4480 = vld [vmem:[%s5 + $0xb8] sm:$0xff]
  %v4481 = vld [vmem:[%s5 + $0xc0] sm:$0xff]
  %v4482 = vld [vmem:[%s5 + $0xc8] sm:$0xff]
  %v4483 = vld [vmem:[%s5 + $0xd0] sm:$0xff]
  %v4484 = vld [vmem:[%s5 + $0xd8] sm:$0xff]
  %v4485 = vld [vmem:[%s5 + $0xe0] sm:$0xff]
  %v4486 = vld [vmem:[%s5 + $0xe8] sm:$0xff]
  %v4487 = vld [vmem:[%s5 + $0xf0] sm:$0xff]
  %v4488 = vld [vmem:[%s5 + $0xf8] sm:$0xff]
  %v4489 = vld [vmem:[%s5 + $0x100] sm:$0xff]
  %v4490 = vld [vmem:[%s5 + $0x108] sm:$0xff]
  %v4491 = vld [vmem:[%s5 + $0x110] sm:$0xff]
  %v4492 = vld [vmem:[%s5 + $0x118] sm:$0xff]
  %v4493 = vld [vmem:[%s5 + $0x120] sm:$0xff]
  %v4494 = vld [vmem:[%s5 + $0x128] sm:$0xff]
  %v4495 = vld [vmem:[%s5 + $0x130] sm:$0xff]
  %v4496 = vld [vmem:[%s5 + $0x138] sm:$0xff]
  %v4497 = vld [vmem:[%s5 + $0x140] sm:$0xff]
  %v4498 = vld [vmem:[%s5 + $0x148] sm:$0xff]
  %v4499 = vld [vmem:[%s5 + $0x150] sm:$0xff]
  %v4500 = vld [vmem:[%s5 + $0x158] sm:$0xff]
  %v4501 = vld [vmem:[%s5 + $0x160] sm:$0xff]
  %v4502 = vld [vmem:[%s5 + $0x168] sm:$0xff]
  %v4503 = vld [vmem:[%s5 + $0x170] sm:$0xff]
  %v4504 = vld [vmem:[%s5 + $0x178] sm:$0xff]
  %v4505 = vld [vmem:[%s5 + $0x180] sm:$0xff]
  %v4506 = vld [vmem:[%s5 + $0x188] sm:$0xff]
  %v4507 = vld [vmem:[%s5 + $0x190] sm:$0xff]
  %v4508 = vld [vmem:[%s5 + $0x198] sm:$0xff]
  %v4509 = vld [vmem:[%s5 + $0x1a0] sm:$0xff]
  %v4510 = vld [vmem:[%s5 + $0x1a8] sm:$0xff]
  %v4511 = vld [vmem:[%s5 + $0x1b0] sm:$0xff]
  %v4512 = vld [vmem:[%s5 + $0x1b8] sm:$0xff]
  %v4513 = vld [vmem:[%s5 + $0x1c0] sm:$0xff]
  %v4514 = vld [vmem:[%s5 + $0x1c8] sm:$0xff]
  %v4515 = vld [vmem:[%s5 + $0x1d0] sm:$0xff]
  %v4516 = vld [vmem:[%s5 + $0x1d8] sm:$0xff]
  %v4517 = vld [vmem:[%s5 + $0x1e0] sm:$0xff]
  %v4518 = vld [vmem:[%s5 + $0x1e8] sm:$0xff]
  %v4519 = vld [vmem:[%s5 + $0x1f0] sm:$0xff]
  %v4520 = vld [vmem:[%s5 + $0x1f8] sm:$0xff]
  %v4521 = vld [vmem:[%s5 + $0x200] sm:$0xff]
  %v4522 = vld [vmem:[%s5 + $0x208] sm:$0xff]
  %v4523 = vld [vmem:[%s5 + $0x210] sm:$0xff]
  %v4524 = vld [vmem:[%s5 + $0x218] sm:$0xff]
  %v4525 = vld [vmem:[%s5 + $0x220] sm:$0xff]
  %v4526 = vld [vmem:[%s5 + $0x228] sm:$0xff]
  %v4527 = vld [vmem:[%s5 + $0x230] sm:$0xff]
  %v4528 = vld [vmem:[%s5 + $0x238] sm:$0xff]
  %v4529 = vld [vmem:[%s5 + $0x240] sm:$0xff]
  %v4530 = vld [vmem:[%s5 + $0x248] sm:$0xff]
  %v4531 = vld [vmem:[%s5 + $0x250] sm:$0xff]
  %v4532 = vld [vmem:[%s5 + $0x258] sm:$0xff]
  %v4533 = vld [vmem:[%s5 + $0x260] sm:$0xff]
  %v4534 = vld [vmem:[%s5 + $0x268] sm:$0xff]
  %v4535 = vld [vmem:[%s5 + $0x270] sm:$0xff]
  %v4536 = vld [vmem:[%s5 + $0x278] sm:$0xff]
  %v4537 = vld [vmem:[%s5 + $0x280] sm:$0xff]
  %v4538 = vld [vmem:[%s5 + $0x288] sm:$0xff]
  %v4539 = vld [vmem:[%s5 + $0x290] sm:$0xff]
  %v4540 = vld [vmem:[%s5 + $0x298] sm:$0xff]
  %v4541 = vld [vmem:[%s5 + $0x2a0] sm:$0xff]
  %v4542 = vld [vmem:[%s5 + $0x2a8] sm:$0xff]
  %v4543 = vld [vmem:[%s5 + $0x2b0] sm:$0xff]
  %v4544 = vld [vmem:[%s5 + $0x2b8] sm:$0xff]
  %v4545 = vld [vmem:[%s5 + $0x2c0] sm:$0xff]
  %v4546 = vld [vmem:[%s5 + $0x2c8] sm:$0xff]
  %v4547 = vld [vmem:[%s5 + $0x2d0] sm:$0xff]
  %v4548 = vld [vmem:[%s5 + $0x2d8] sm:$0xff]
  %v4549 = vld [vmem:[%s5 + $0x2e0] sm:$0xff]
  %v4550 = vld [vmem:[%s5 + $0x2e8] sm:$0xff]
  %v4551 = vld [vmem:[%s5 + $0x2f0] sm:$0xff]
  %v4552 = vld [vmem:[%s5 + $0x2f8] sm:$0xff]
  %v4553 = vld [vmem:[%s5 + $0x300] sm:$0xff]
  %v4554 = vld [vmem:[%s5 + $0x308] sm:$0xff]
  %v4555 = vld [vmem:[%s5 + $0x310] sm:$0xff]
  %v4556 = vld [vmem:[%s5 + $0x318] sm:$0xff]
  %v4557 = vld [vmem:[%s5 + $0x320] sm:$0xff]
  %v4558 = vld [vmem:[%s5 + $0x328] sm:$0xff]
  %v4559 = vld [vmem:[%s5 + $0x330] sm:$0xff]
  %v4560 = vld [vmem:[%s5 + $0x338] sm:$0xff]
  %v4561 = vld [vmem:[%s5 + $0x340] sm:$0xff]
  %v4562 = vld [vmem:[%s5 + $0x348] sm:$0xff]
  %v4563 = vld [vmem:[%s5 + $0x350] sm:$0xff]
  %v4564 = vld [vmem:[%s5 + $0x358] sm:$0xff]
  %v4566 = vsel %vm4421, %v4456, 0
  %4568 = vmatpush.msra.mxu0 %v4502
  %4569 = vmatpush.msra.mxu0 %v4499
  %4570 = vmatpush.msra.mxu0 %v4496
  %4571 = vmatpush.msra.mxu0 %v4493
  %4572 = vmatpush.msra.mxu0 %v4490
  %4573 = vmatpush.msra.mxu0 %v4487
  %4574 = vmatpush.msra.mxu0 %v4484
  %4575 = vmatpush.msra.mxu0 %v4481
  %4576 = vmatpush.msra.mxu0 %v4478
  %4577 = vmatpush.msra.mxu0 %v4475
  %4578 = vmatpush.msra.mxu0 %v4472
  %4579 = vmatpush.msra.mxu0 %v4469
  %4580 = vmatpush.msra.mxu0 %v4466
  %4581 = vmatpush.msra.mxu0 %v4463
  %4582 = vmatpush.msra.mxu0 %v4460
  %4583 = vmatpush.msra.mxu0 %v4457
  %4584 = vmatmul.f32.gmra.mxu0 %v4454
  %v4585 = vpop.f32.mrf.mxu0
  %v4586 = vadd.f32 0.0, %v4585
  %4587 = vdwg.mxu0
  %4588 = vmatpush.msra.mxu0 %v4550
  %4589 = vmatpush.msra.mxu0 %v4547
  %4590 = vmatpush.msra.mxu0 %v4544
  %4591 = vmatpush.msra.mxu0 %v4541
  %4592 = vmatpush.msra.mxu0 %v4538
  %4593 = vmatpush.msra.mxu0 %v4535
  %4594 = vmatpush.msra.mxu0 %v4532
  %4595 = vmatpush.msra.mxu0 %v4529
  %4596 = vmatpush.msra.mxu0 %v4526
  %4597 = vmatpush.msra.mxu0 %v4523
  %4598 = vmatpush.msra.mxu0 %v4520
  %4599 = vmatpush.msra.mxu0 %v4517
  %4600 = vmatpush.msra.mxu0 %v4514
  %4601 = vmatpush.msra.mxu0 %v4511
  %4602 = vmatpush.msra.mxu0 %v4508
  %4603 = vmatpush.msra.mxu0 %v4505
  %4604 = vmatmul.f32.gmra.mxu0 %v4455
  %v4605 = vpop.f32.mrf.mxu0
  %v4606 = vadd.f32 %v4586, %v4605
  %4607 = vdwg.mxu0
  %4608 = vmatpush.msra.mxu0 0.0
  %4609 = vmatpush.msra.mxu0 0.0
  %4610 = vmatpush.msra.mxu0 0.0
  %4611 = vmatpush.msra.mxu0 0.0
  %4612 = vmatpush.msra.mxu0 0.0
  %4613 = vmatpush.msra.mxu0 0.0
  %4614 = vmatpush.msra.mxu0 0.0
  %4615 = vmatpush.msra.mxu0 0.0
  %4616 = vmatpush.msra.mxu0 0.0
  %4617 = vmatpush.msra.mxu0 0.0
  %4618 = vmatpush.msra.mxu0 0.0
  %4619 = vmatpush.msra.mxu0 0.0
  %4620 = vmatpush.msra.mxu0 %v4562
  %4621 = vmatpush.msra.mxu0 %v4559
  %4622 = vmatpush.msra.mxu0 %v4556
  %4623 = vmatpush.msra.mxu0 %v4553
  %4624 = vmatmul.f32.gmra.mxu0 %v4566
  %v4625 = vpop.f32.mrf.mxu0
  %v4626 = vadd.f32 %v4606, %v4625
  %4627 = vdwg.mxu0
  %4628 = vmatpush.msra.mxu0 %v4503
  %4629 = vmatpush.msra.mxu0 %v4500
  %4630 = vmatpush.msra.mxu0 %v4497
  %4631 = vmatpush.msra.mxu0 %v4494
  %4632 = vmatpush.msra.mxu0 %v4491
  %4633 = vmatpush.msra.mxu0 %v4488
  %4634 = vmatpush.msra.mxu0 %v4485
  %4635 = vmatpush.msra.mxu0 %v4482
  %4636 = vmatpush.msra.mxu0 %v4479
  %4637 = vmatpush.msra.mxu0 %v4476
  %4638 = vmatpush.msra.mxu0 %v4473
  %4639 = vmatpush.msra.mxu0 %v4470
  %4640 = vmatpush.msra.mxu0 %v4467
  %4641 = vmatpush.msra.mxu0 %v4464
  %4642 = vmatpush.msra.mxu0 %v4461
  %4643 = vmatpush.msra.mxu0 %v4458
  %4644 = vmatmul.f32.gmra.mxu0 %v4454
  %v4645 = vpop.f32.mrf.mxu0
  %v4646 = vadd.f32 0.0, %v4645
  %4647 = vdwg.mxu0
  %4648 = vmatpush.msra.mxu0 %v4551
  %4649 = vmatpush.msra.mxu0 %v4548
  %4650 = vmatpush.msra.mxu0 %v4545
  %4651 = vmatpush.msra.mxu0 %v4542
  %4652 = vmatpush.msra.mxu0 %v4539
  %4653 = vmatpush.msra.mxu0 %v4536
  %4654 = vmatpush.msra.mxu0 %v4533
  %4655 = vmatpush.msra.mxu0 %v4530
  %4656 = vmatpush.msra.mxu0 %v4527
  %4657 = vmatpush.msra.mxu0 %v4524
  %4658 = vmatpush.msra.mxu0 %v4521
  %4659 = vmatpush.msra.mxu0 %v4518
  %4660 = vmatpush.msra.mxu0 %v4515
  %4661 = vmatpush.msra.mxu0 %v4512
  %4662 = vmatpush.msra.mxu0 %v4509
  %4663 = vmatpush.msra.mxu0 %v4506
  %4664 = vmatmul.f32.gmra.mxu0 %v4455
  %v4665 = vpop.f32.mrf.mxu0
  %v4666 = vadd.f32 %v4646, %v4665
  %4667 = vdwg.mxu0
  %4668 = vmatpush.msra.mxu0 0.0
  %4669 = vmatpush.msra.mxu0 0.0
  %4670 = vmatpush.msra.mxu0 0.0
  %4671 = vmatpush.msra.mxu0 0.0
  %4672 = vmatpush.msra.mxu0 0.0
  %4673 = vmatpush.msra.mxu0 0.0
  %4674 = vmatpush.msra.mxu0 0.0
  %4675 = vmatpush.msra.mxu0 0.0
  %4676 = vmatpush.msra.mxu0 0.0
  %4677 = vmatpush.msra.mxu0 0.0
  %4678 = vmatpush.msra.mxu0 0.0
  %4679 = vmatpush.msra.mxu0 0.0
  %4680 = vmatpush.msra.mxu0 %v4563
  %4681 = vmatpush.msra.mxu0 %v4560
  %4682 = vmatpush.msra.mxu0 %v4557
  %4683 = vmatpush.msra.mxu0 %v4554
  %4684 = vmatmul.f32.gmra.mxu0 %v4566
  %v4685 = vpop.f32.mrf.mxu0
  %v4686 = vadd.f32 %v4666, %v4685
  %4687 = vdwg.mxu0
  %4688 = vmatpush.msra.mxu0 %v4504
  %4689 = vmatpush.msra.mxu0 %v4501
  %4690 = vmatpush.msra.mxu0 %v4498
  %4691 = vmatpush.msra.mxu0 %v4495
  %4692 = vmatpush.msra.mxu0 %v4492
  %4693 = vmatpush.msra.mxu0 %v4489
  %4694 = vmatpush.msra.mxu0 %v4486
  %4695 = vmatpush.msra.mxu0 %v4483
  %4696 = vmatpush.msra.mxu0 %v4480
  %4697 = vmatpush.msra.mxu0 %v4477
  %4698 = vmatpush.msra.mxu0 %v4474
  %4699 = vmatpush.msra.mxu0 %v4471
  %4700 = vmatpush.msra.mxu0 %v4468
  %4701 = vmatpush.msra.mxu0 %v4465
  %4702 = vmatpush.msra.mxu0 %v4462
  %4703 = vmatpush.msra.mxu0 %v4459
  %4704 = vmatmul.f32.gmra.mxu0 %v4454
  %v4705 = vpop.f32.mrf.mxu0
  %v4706 = vadd.f32 0.0, %v4705
  %4707 = vdwg.mxu0
  %4708 = vmatpush.msra.mxu0 %v4552
  %4709 = vmatpush.msra.mxu0 %v4549
  %4710 = vmatpush.msra.mxu0 %v4546
  %4711 = vmatpush.msra.mxu0 %v4543
  %4712 = vmatpush.msra.mxu0 %v4540
  %4713 = vmatpush.msra.mxu0 %v4537
  %4714 = vmatpush.msra.mxu0 %v4534
  %4715 = vmatpush.msra.mxu0 %v4531
  %4716 = vmatpush.msra.mxu0 %v4528
  %4717 = vmatpush.msra.mxu0 %v4525
  %4718 = vmatpush.msra.mxu0 %v4522
  %4719 = vmatpush.msra.mxu0 %v4519
  %4720 = vmatpush.msra.mxu0 %v4516
  %4721 = vmatpush.msra.mxu0 %v4513
  %4722 = vmatpush.msra.mxu0 %v4510
  %4723 = vmatpush.msra.mxu0 %v4507
  %4724 = vmatmul.f32.gmra.mxu0 %v4455
  %v4725 = vpop.f32.mrf.mxu0
  %v4726 = vadd.f32 %v4706, %v4725
  %4727 = vdwg.mxu0
  %4728 = vmatpush.msra.mxu0 0.0
  %4729 = vmatpush.msra.mxu0 0.0
  %4730 = vmatpush.msra.mxu0 0.0
  %4731 = vmatpush.msra.mxu0 0.0
  %4732 = vmatpush.msra.mxu0 0.0
  %4733 = vmatpush.msra.mxu0 0.0
  %4734 = vmatpush.msra.mxu0 0.0
  %4735 = vmatpush.msra.mxu0 0.0
  %4736 = vmatpush.msra.mxu0 0.0
  %4737 = vmatpush.msra.mxu0 0.0
  %4738 = vmatpush.msra.mxu0 0.0
  %4739 = vmatpush.msra.mxu0 0.0
  %4740 = vmatpush.msra.mxu0 %v4564
  %4741 = vmatpush.msra.mxu0 %v4561
  %4742 = vmatpush.msra.mxu0 %v4558
  %4743 = vmatpush.msra.mxu0 %v4555
  %4744 = vmatmul.f32.gmra.mxu0 %v4566
  %v4745 = vpop.f32.mrf.mxu0
  %v4746 = vadd.f32 %v4726, %v4745
  %4747 = vdwg.mxu0
  %v4748 = vmul.f32 %v4626, 0.00048828125
  %v4749 = vmul.f32 %v4686, 0.00048828125
  %v4750 = vmul.f32 %v4746, 0.00048828125
  %v4751 = vperm.slane %v4748, 0
  %v4752 = vperm.slane %v4749, 0
  %v4753 = vperm.slane %v4750, 0
  %v4754 = vsub.f32 %v3530, %v4751
  %v4755 = vsub.f32 %v3531, %v4752
  %v4756 = vsub.f32 %v3532, %v4753
  %v4757 = vsub.f32 %v3533, %v4751
  %v4758 = vsub.f32 %v3534, %v4752
  %v4759 = vsub.f32 %v3535, %v4753
  %v4760 = vmul.f32 %v4754, %v4754
  %v4761 = vmul.f32 %v4755, %v4755
  %v4762 = vmul.f32 %v4756, %v4756
  %v4763 = vmul.f32 %v4757, %v4757
  %v4764 = vmul.f32 %v4758, %v4758
  %v4765 = vmul.f32 %v4759, %v4759
  %v4766 = vadd.f32 %v4760, %v4763
  %v4767 = vrot.slane %v4766, 4
  %v4768 = vadd.f32 %v4766, %v4767
  %v4769 = vrot.slane %v4768, 2
  %v4770 = vadd.f32 %v4768, %v4769
  %v4771 = vrot.slane %v4770, 1
  %v4772 = vadd.f32 %v4770, %v4771
  %v4773 = vadd.f32 %v4761, %v4764
  %v4774 = vrot.slane %v4773, 4
  %v4775 = vadd.f32 %v4773, %v4774
  %v4776 = vrot.slane %v4775, 2
  %v4777 = vadd.f32 %v4775, %v4776
  %v4778 = vrot.slane %v4777, 1
  %v4779 = vadd.f32 %v4777, %v4778
  %v4780 = vsel %vm4421, %v4762, 0.0
  %v4781 = vsel %vm4421, %v4765, 0.0
  %v4782 = vadd.f32 %v4780, %v4781
  %v4783 = vrot.slane %v4782, 4
  %v4784 = vadd.f32 %v4782, %v4783
  %v4785 = vrot.slane %v4784, 2
  %v4786 = vadd.f32 %v4784, %v4785
  %v4787 = vrot.slane %v4786, 1
  %v4788 = vadd.f32 %v4786, %v4787
  %v4789 = vsub.f32 %v4401, %v4751
  %v4790 = vsub.f32 %v4402, %v4752
  %v4791 = vsub.f32 %v4403, %v4753
  %v4792 = vsub.f32 %v4404, %v4751
  %v4793 = vsub.f32 %v4405, %v4752
  %v4794 = vsub.f32 %v4406, %v4753
  %v4795 = vmul.f32 %v4789, %v4789
  %v4796 = vmul.f32 %v4790, %v4790
  %v4797 = vmul.f32 %v4791, %v4791
  %v4798 = vmul.f32 %v4792, %v4792
  %v4799 = vmul.f32 %v4793, %v4793
  %v4800 = vmul.f32 %v4794, %v4794
  %v4801 = vadd.f32 %v4795, %v4798
  %v4802 = vrot.slane %v4801, 4
  %v4803 = vadd.f32 %v4801, %v4802
  %v4804 = vrot.slane %v4803, 2
  %v4805 = vadd.f32 %v4803, %v4804
  %v4806 = vrot.slane %v4805, 1
  %v4807 = vadd.f32 %v4805, %v4806
  %v4808 = vadd.f32 %v4796, %v4799
  %v4809 = vrot.slane %v4808, 4
  %v4810 = vadd.f32 %v4808, %v4809
  %v4811 = vrot.slane %v4810, 2
  %v4812 = vadd.f32 %v4810, %v4811
  %v4813 = vrot.slane %v4812, 1
  %v4814 = vadd.f32 %v4812, %v4813
  %v4815 = vsel %vm4421, %v4797, 0.0
  %v4816 = vsel %vm4421, %v4800, 0.0
  %v4817 = vadd.f32 %v4815, %v4816
  %v4818 = vrot.slane %v4817, 4
  %v4819 = vadd.f32 %v4817, %v4818
  %v4820 = vrot.slane %v4819, 2
  %v4821 = vadd.f32 %v4819, %v4820
  %v4822 = vrot.slane %v4821, 1
  %v4823 = vadd.f32 %v4821, %v4822
  %v4824 = vadd.f32 %v4772, %v4807
  %v4825 = vadd.f32 %v4779, %v4814
  %v4826 = vadd.f32 %v4788, %v4823
  %v4828 = vsel %vm4421, %v4826, 0
  %4830 = vmatpush.msra.mxu0 %v4502
  %4831 = vmatpush.msra.mxu0 %v4499
  %4832 = vmatpush.msra.mxu0 %v4496
  %4833 = vmatpush.msra.mxu0 %v4493
  %4834 = vmatpush.msra.mxu0 %v4490
  %4835 = vmatpush.msra.mxu0 %v4487
  %4836 = vmatpush.msra.mxu0 %v4484
  %4837 = vmatpush.msra.mxu0 %v4481
  %4838 = vmatpush.msra.mxu0 %v4478
  %4839 = vmatpush.msra.mxu0 %v4475
  %4840 = vmatpush.msra.mxu0 %v4472
  %4841 = vmatpush.msra.mxu0 %v4469
  %4842 = vmatpush.msra.mxu0 %v4466
  %4843 = vmatpush.msra.mxu0 %v4463
  %4844 = vmatpush.msra.mxu0 %v4460
  %4845 = vmatpush.msra.mxu0 %v4457
  %4846 = vmatmul.f32.gmra.mxu0 %v4824
  %v4847 = vpop.f32.mrf.mxu0
  %v4848 = vadd.f32 0.0, %v4847
  %4849 = vdwg.mxu0
  %4850 = vmatpush.msra.mxu0 %v4550
  %4851 = vmatpush.msra.mxu0 %v4547
  %4852 = vmatpush.msra.mxu0 %v4544
  %4853 = vmatpush.msra.mxu0 %v4541
  %4854 = vmatpush.msra.mxu0 %v4538
  %4855 = vmatpush.msra.mxu0 %v4535
  %4856 = vmatpush.msra.mxu0 %v4532
  %4857 = vmatpush.msra.mxu0 %v4529
  %4858 = vmatpush.msra.mxu0 %v4526
  %4859 = vmatpush.msra.mxu0 %v4523
  %4860 = vmatpush.msra.mxu0 %v4520
  %4861 = vmatpush.msra.mxu0 %v4517
  %4862 = vmatpush.msra.mxu0 %v4514
  %4863 = vmatpush.msra.mxu0 %v4511
  %4864 = vmatpush.msra.mxu0 %v4508
  %4865 = vmatpush.msra.mxu0 %v4505
  %4866 = vmatmul.f32.gmra.mxu0 %v4825
  %v4867 = vpop.f32.mrf.mxu0
  %v4868 = vadd.f32 %v4848, %v4867
  %4869 = vdwg.mxu0
  %4870 = vmatpush.msra.mxu0 0.0
  %4871 = vmatpush.msra.mxu0 0.0
  %4872 = vmatpush.msra.mxu0 0.0
  %4873 = vmatpush.msra.mxu0 0.0
  %4874 = vmatpush.msra.mxu0 0.0
  %4875 = vmatpush.msra.mxu0 0.0
  %4876 = vmatpush.msra.mxu0 0.0
  %4877 = vmatpush.msra.mxu0 0.0
  %4878 = vmatpush.msra.mxu0 0.0
  %4879 = vmatpush.msra.mxu0 0.0
  %4880 = vmatpush.msra.mxu0 0.0
  %4881 = vmatpush.msra.mxu0 0.0
  %4882 = vmatpush.msra.mxu0 %v4562
  %4883 = vmatpush.msra.mxu0 %v4559
  %4884 = vmatpush.msra.mxu0 %v4556
  %4885 = vmatpush.msra.mxu0 %v4553
  %4886 = vmatmul.f32.gmra.mxu0 %v4828
  %v4887 = vpop.f32.mrf.mxu0
  %v4888 = vadd.f32 %v4868, %v4887
  %4889 = vdwg.mxu0
  %4890 = vmatpush.msra.mxu0 %v4503
  %4891 = vmatpush.msra.mxu0 %v4500
  %4892 = vmatpush.msra.mxu0 %v4497
  %4893 = vmatpush.msra.mxu0 %v4494
  %4894 = vmatpush.msra.mxu0 %v4491
  %4895 = vmatpush.msra.mxu0 %v4488
  %4896 = vmatpush.msra.mxu0 %v4485
  %4897 = vmatpush.msra.mxu0 %v4482
  %4898 = vmatpush.msra.mxu0 %v4479
  %4899 = vmatpush.msra.mxu0 %v4476
  %4900 = vmatpush.msra.mxu0 %v4473
  %4901 = vmatpush.msra.mxu0 %v4470
  %4902 = vmatpush.msra.mxu0 %v4467
  %4903 = vmatpush.msra.mxu0 %v4464
  %4904 = vmatpush.msra.mxu0 %v4461
  %4905 = vmatpush.msra.mxu0 %v4458
  %4906 = vmatmul.f32.gmra.mxu0 %v4824
  %v4907 = vpop.f32.mrf.mxu0
  %v4908 = vadd.f32 0.0, %v4907
  %4909 = vdwg.mxu0
  %4910 = vmatpush.msra.mxu0 %v4551
  %4911 = vmatpush.msra.mxu0 %v4548
  %4912 = vmatpush.msra.mxu0 %v4545
  %4913 = vmatpush.msra.mxu0 %v4542
  %4914 = vmatpush.msra.mxu0 %v4539
  %4915 = vmatpush.msra.mxu0 %v4536
  %4916 = vmatpush.msra.mxu0 %v4533
  %4917 = vmatpush.msra.mxu0 %v4530
  %4918 = vmatpush.msra.mxu0 %v4527
  %4919 = vmatpush.msra.mxu0 %v4524
  %4920 = vmatpush.msra.mxu0 %v4521
  %4921 = vmatpush.msra.mxu0 %v4518
  %4922 = vmatpush.msra.mxu0 %v4515
  %4923 = vmatpush.msra.mxu0 %v4512
  %4924 = vmatpush.msra.mxu0 %v4509
  %4925 = vmatpush.msra.mxu0 %v4506
  %4926 = vmatmul.f32.gmra.mxu0 %v4825
  %v4927 = vpop.f32.mrf.mxu0
  %v4928 = vadd.f32 %v4908, %v4927
  %4929 = vdwg.mxu0
  %4930 = vmatpush.msra.mxu0 0.0
  %4931 = vmatpush.msra.mxu0 0.0
  %4932 = vmatpush.msra.mxu0 0.0
  %4933 = vmatpush.msra.mxu0 0.0
  %4934 = vmatpush.msra.mxu0 0.0
  %4935 = vmatpush.msra.mxu0 0.0
  %4936 = vmatpush.msra.mxu0 0.0
  %4937 = vmatpush.msra.mxu0 0.0
  %4938 = vmatpush.msra.mxu0 0.0
  %4939 = vmatpush.msra.mxu0 0.0
  %4940 = vmatpush.msra.mxu0 0.0
  %4941 = vmatpush.msra.mxu0 0.0
  %4942 = vmatpush.msra.mxu0 %v4563
  %4943 = vmatpush.msra.mxu0 %v4560
  %4944 = vmatpush.msra.mxu0 %v4557
  %4945 = vmatpush.msra.mxu0 %v4554
  %4946 = vmatmul.f32.gmra.mxu0 %v4828
  %v4947 = vpop.f32.mrf.mxu0
  %v4948 = vadd.f32 %v4928, %v4947
  %4949 = vdwg.mxu0
  %4950 = vmatpush.msra.mxu0 %v4504
  %4951 = vmatpush.msra.mxu0 %v4501
  %4952 = vmatpush.msra.mxu0 %v4498
  %4953 = vmatpush.msra.mxu0 %v4495
  %4954 = vmatpush.msra.mxu0 %v4492
  %4955 = vmatpush.msra.mxu0 %v4489
  %4956 = vmatpush.msra.mxu0 %v4486
  %4957 = vmatpush.msra.mxu0 %v4483
  %4958 = vmatpush.msra.mxu0 %v4480
  %4959 = vmatpush.msra.mxu0 %v4477
  %4960 = vmatpush.msra.mxu0 %v4474
  %4961 = vmatpush.msra.mxu0 %v4471
  %4962 = vmatpush.msra.mxu0 %v4468
  %4963 = vmatpush.msra.mxu0 %v4465
  %4964 = vmatpush.msra.mxu0 %v4462
  %4965 = vmatpush.msra.mxu0 %v4459
  %4966 = vmatmul.f32.gmra.mxu0 %v4824
  %v4967 = vpop.f32.mrf.mxu0
  %v4968 = vadd.f32 0.0, %v4967
  %4969 = vdwg.mxu0
  %4970 = vmatpush.msra.mxu0 %v4552
  %4971 = vmatpush.msra.mxu0 %v4549
  %4972 = vmatpush.msra.mxu0 %v4546
  %4973 = vmatpush.msra.mxu0 %v4543
  %4974 = vmatpush.msra.mxu0 %v4540
  %4975 = vmatpush.msra.mxu0 %v4537
  %4976 = vmatpush.msra.mxu0 %v4534
  %4977 = vmatpush.msra.mxu0 %v4531
  %4978 = vmatpush.msra.mxu0 %v4528
  %4979 = vmatpush.msra.mxu0 %v4525
  %4980 = vmatpush.msra.mxu0 %v4522
  %4981 = vmatpush.msra.mxu0 %v4519
  %4982 = vmatpush.msra.mxu0 %v4516
  %4983 = vmatpush.msra.mxu0 %v4513
  %4984 = vmatpush.msra.mxu0 %v4510
  %4985 = vmatpush.msra.mxu0 %v4507
  %4986 = vmatmul.f32.gmra.mxu0 %v4825
  %v4987 = vpop.f32.mrf.mxu0
  %v4988 = vadd.f32 %v4968, %v4987
  %4989 = vdwg.mxu0
  %4990 = vmatpush.msra.mxu0 0.0
  %4991 = vmatpush.msra.mxu0 0.0
  %4992 = vmatpush.msra.mxu0 0.0
  %4993 = vmatpush.msra.mxu0 0.0
  %4994 = vmatpush.msra.mxu0 0.0
  %4995 = vmatpush.msra.mxu0 0.0
  %4996 = vmatpush.msra.mxu0 0.0
  %4997 = vmatpush.msra.mxu0 0.0
  %4998 = vmatpush.msra.mxu0 0.0
  %4999 = vmatpush.msra.mxu0 0.0
  %5000 = vmatpush.msra.mxu0 0.0
  %5001 = vmatpush.msra.mxu0 0.0
  %5002 = vmatpush.msra.mxu0 %v4564
  %5003 = vmatpush.msra.mxu0 %v4561
  %5004 = vmatpush.msra.mxu0 %v4558
  %5005 = vmatpush.msra.mxu0 %v4555
  %5006 = vmatmul.f32.gmra.mxu0 %v4828
  %v5007 = vpop.f32.mrf.mxu0
  %v5008 = vadd.f32 %v4988, %v5007
  %5009 = vdwg.mxu0
  %v5010 = vmul.f32 %v4888, 0.00048828125
  %v5011 = vmul.f32 %v4948, 0.00048828125
  %v5012 = vmul.f32 %v5008, 0.00048828125
  %v5013 = vadd.f32 %v5010, 1e-05
  %v5014 = vadd.f32 %v5011, 1e-05
  %v5015 = vadd.f32 %v5012, 1e-05
  %v5016 = vrsqrt.pop %v5013
  %v5017 = vmul.f32 %v5016, %v5013
  %v5018 = vmul.f32 %v5017, %v5016
  %v5019 = vmul.f32 0.5, %v5018
  %v5020 = vsub.f32 1.5, %v5019
  %v5021 = vmul.f32 %v5016, %v5020
  %vm5022 = vweird.f32 %v5013
  %vm5023 = vweird.f32 %v5016
  %vm5024 = vmor %vm5022, %vm5023
  %v5025 = vsel %vm5024, %v5016, %v5021
  %v5026 = vrsqrt.pop %v5014
  %v5027 = vmul.f32 %v5026, %v5014
  %v5028 = vmul.f32 %v5027, %v5026
  %v5029 = vmul.f32 0.5, %v5028
  %v5030 = vsub.f32 1.5, %v5029
  %v5031 = vmul.f32 %v5026, %v5030
  %vm5032 = vweird.f32 %v5014
  %vm5033 = vweird.f32 %v5026
  %vm5034 = vmor %vm5032, %vm5033
  %v5035 = vsel %vm5034, %v5026, %v5031
  %v5036 = vrsqrt.pop %v5015
  %v5037 = vmul.f32 %v5036, %v5015
  %v5038 = vmul.f32 %v5037, %v5036
  %v5039 = vmul.f32 0.5, %v5038
  %v5040 = vsub.f32 1.5, %v5039
  %v5041 = vmul.f32 %v5036, %v5040
  %vm5042 = vweird.f32 %v5015
  %vm5043 = vweird.f32 %v5036
  %vm5044 = vmor %vm5042, %vm5043
  %v5045 = vsel %vm5044, %v5036, %v5041
  %v5049 = vrot.slane %v5035, 7
  %v5050 = vrot.slane %v5045, 6
  %v5051 = vsel %vm436, %v5025, %v5049
  %vm5052 = vcmask 1041408
  %v5053 = vsel %vm5052, %v5051, %v5050
  %v5055 = vmul.f32 %v551, %v5053
  %v5057 = vperm.slane %v5055, 0
  %v5058 = vperm.slane %v5055, 1
  %v5059 = vperm.slane %v5055, 2
  %v5063 = vmul.f32 %v4754, %v5057
  %v5064 = vmul.f32 %v4755, %v5058
  %v5065 = vmul.f32 %v4756, %v5059
  %v5066 = vmul.f32 %v4757, %v5057
  %v5067 = vmul.f32 %v4758, %v5058
  %v5068 = vmul.f32 %v4759, %v5059
  %v5070 = vperm.slane %v553, 0
  %v5071 = vperm.slane %v553, 1
  %v5072 = vperm.slane %v553, 2
  %v5076 = vadd.f32 %v5063, %v5070
  %v5077 = vadd.f32 %v5064, %v5071
  %v5078 = vadd.f32 %v5065, %v5072
  %v5079 = vadd.f32 %v5066, %v5070
  %v5080 = vadd.f32 %v5067, %v5071
  %v5081 = vadd.f32 %v5068, %v5072
  %v5082 = vmul.f32 %v4789, %v5057
  %v5083 = vmul.f32 %v4790, %v5058
  %v5084 = vmul.f32 %v4791, %v5059
  %v5085 = vmul.f32 %v4792, %v5057
  %v5086 = vmul.f32 %v4793, %v5058
  %v5087 = vmul.f32 %v4794, %v5059
  %v5088 = vadd.f32 %v5082, %v5070
  %v5089 = vadd.f32 %v5083, %v5071
  %v5090 = vadd.f32 %v5084, %v5072
  %v5091 = vadd.f32 %v5085, %v5070
  %v5092 = vadd.f32 %v5086, %v5071
  %v5093 = vadd.f32 %v5087, %v5072
  %vm5094 = vcmp.lt.s32.totalorder %v417, 288
  %vm5095 = vmand %vm418, %vm5094
  %5096 = vst.msk [vmem:[#allocation3] ss:$8 sm:$0x7] %vm5095, 0.0
  %5097 = vst.msk [vmem:[#allocation3] ss:$8 sm:$0x0] %vm5095, 0.0
  %s5098 = scalar_lea.vmem [#allocation3], 49
  %5099 = vst.msk [vmem:[%s5098] ss:$8 sm:$0x7] %vm5095, 0.0
  %5100 = vst.msk [vmem:[%s5098] ss:$8 sm:$0x0] %vm5095, 0.0
  %v5107 = vrot.slane %v5076, 7
  %v5108 = vrot.slane %v5077, 7
  %v5109 = vrot.slane %v5078, 7
  %v5110 = vrot.slane %v5079, 7
  %v5111 = vsel %vm436, %v5107, %v5110
  %v5112 = vrot.slane %v5080, 7
  %v5113 = vsel %vm436, %v5108, %v5112
  %v5114 = vrot.slane %v5081, 7
  %v5115 = vsel %vm436, %v5109, %v5114
  %5125 = vst [vmem:[#allocation3] sm:$0xfe] %v5107
  %5126 = vst [vmem:[#allocation3 + $0x8] sm:$0xfe] %v5108
  %vm5127 = vcmask 261121
  %5128 = vst.msk [vmem:[#allocation3 + $0x10] sm:$0xfe] %vm5127, %v5109
  %5129 = vst [vmem:[#allocation3 + $0x18] sm:$0xff] %v5111
  %5130 = vst [vmem:[#allocation3 + $0x20] sm:$0xff] %v5113
  %5131 = vst.msk [vmem:[#allocation3 + $0x28] sm:$0xff] %vm4421, %v5115
  %5132 = vst [vmem:[#allocation3 + $0x30] sm:$0x1] %v5110
  %5133 = vst [vmem:[#allocation3 + $0x38] sm:$0x1] %v5112
  %vm5134 = vcmask 253952
  %5135 = vst.msk [vmem:[#allocation3 + $0x40] sm:$0x1] %vm5134, %v5114
  %s5136 = scalar_lea.vmem [#allocation3], 50
  %5137 = vst.msk [vmem:[%s5136] ss:$8 sm:$0x7] %vm5095, 0.0
  %5138 = vst.msk [vmem:[%s5136] ss:$8 sm:$0x0] %vm5095, 0.0
  %s5139 = scalar_lea.vmem [#allocation3], 99
  %5140 = vst.msk [vmem:[%s5139] ss:$8 sm:$0x7] %vm5095, 0.0
  %5141 = vst.msk [vmem:[%s5139] ss:$8 sm:$0x0] %vm5095, 0.0
  %v5148 = vrot.slane %v5088, 5
  %v5149 = vrot.slane %v5089, 5
  %v5150 = vrot.slane %v5090, 5
  %v5151 = vrot.slane %v5091, 5
  %v5152 = vsel %vm501, %v5148, %v5151
  %v5153 = vrot.slane %v5092, 5
  %v5154 = vsel %vm501, %v5149, %v5153
  %v5155 = vrot.slane %v5093, 5
  %v5156 = vsel %vm501, %v5150, %v5155
  %5166 = vst [vmem:[#allocation3 + $0x30] sm:$0xf8] %v5148
  %5167 = vst [vmem:[#allocation3 + $0x38] sm:$0xf8] %v5149
  %vm5168 = vcmask 261123
  %5169 = vst.msk [vmem:[#allocation3 + $0x40] sm:$0xf8] %vm5168, %v5150
  %5170 = vst [vmem:[#allocation3 + $0x48] sm:$0xff] %v5152
  %5171 = vst [vmem:[#allocation3 + $0x50] sm:$0xff] %v5154
  %5172 = vst.msk [vmem:[#allocation3 + $0x58] sm:$0xff] %vm4421, %v5156
  %5173 = vst [vmem:[#allocation3 + $0x60] sm:$0x7] %v5151
  %5174 = vst [vmem:[#allocation3 + $0x68] sm:$0x7] %v5153
  %vm5175 = vcmask 256000
  %5176 = vst.msk [vmem:[#allocation3 + $0x70] sm:$0x7] %vm5175, %v5155
  %v5177 = vld [vmem:[#allocation3] sm:$0xff]
  %v5178 = vld [vmem:[#allocation3 + $0x8] sm:$0xff]
  %v5179 = vld [vmem:[#allocation3 + $0x10] sm:$0xff]
  %v5180 = vld [vmem:[#allocation3 + $0x18] sm:$0xff]
  %v5181 = vld [vmem:[#allocation3 + $0x20] sm:$0xff]
  %v5182 = vld [vmem:[#allocation3 + $0x28] sm:$0xff]
  %v5183 = vpack.c.bf16 %v5180, %v5177
  %v5184 = vpack.c.bf16 %v5181, %v5178
  %v5185 = vpack.c.bf16 %v5182, %v5179
  %v5186 = vld [vmem:[%s4] sm:$0xff]
  %v5187 = vld [vmem:[%s4 + $0x8] sm:$0xff]
  %v5188 = vld [vmem:[%s4 + $0x10] sm:$0xff]
  %v5189 = vld [vmem:[%s4 + $0x18] sm:$0xff]
  %v5190 = vld [vmem:[%s4 + $0x20] sm:$0xff]
  %v5191 = vld [vmem:[%s4 + $0x28] sm:$0xff]
  %v5192 = vld [vmem:[%s4 + $0x30] sm:$0xff]
  %v5193 = vld [vmem:[%s4 + $0x38] sm:$0xff]
  %v5194 = vld [vmem:[%s4 + $0x40] sm:$0xff]
  %v5195 = vld [vmem:[%s4 + $0x48] sm:$0xff]
  %v5196 = vld [vmem:[%s4 + $0x50] sm:$0xff]
  %v5197 = vld [vmem:[%s4 + $0x58] sm:$0xff]
  %v5198 = vld [vmem:[%s4 + $0x60] sm:$0xff]
  %v5199 = vld [vmem:[%s4 + $0x68] sm:$0xff]
  %v5200 = vld [vmem:[%s4 + $0x70] sm:$0xff]
  %v5201 = vld [vmem:[%s4 + $0x78] sm:$0xff]
  %v5202 = vld [vmem:[%s4 + $0x80] sm:$0xff]
  %v5203 = vld [vmem:[%s4 + $0x88] sm:$0xff]
  %v5204 = vld [vmem:[%s4 + $0x90] sm:$0xff]
  %v5205 = vld [vmem:[%s4 + $0x98] sm:$0xff]
  %v5206 = vld [vmem:[%s4 + $0xa0] sm:$0xff]
  %v5207 = vld [vmem:[%s4 + $0xa8] sm:$0xff]
  %v5208 = vld [vmem:[%s4 + $0xb0] sm:$0xff]
  %v5209 = vld [vmem:[%s4 + $0xb8] sm:$0xff]
  %v5210 = vld [vmem:[%s4 + $0xc0] sm:$0xff]
  %v5211 = vld [vmem:[%s4 + $0xc8] sm:$0xff]
  %v5212 = vld [vmem:[%s4 + $0xd0] sm:$0xff]
  %v5213 = vld [vmem:[%s4 + $0xd8] sm:$0xff]
  %v5214 = vld [vmem:[%s4 + $0xe0] sm:$0xff]
  %v5215 = vld [vmem:[%s4 + $0xe8] sm:$0xff]
  %v5216 = vld [vmem:[%s4 + $0xf0] sm:$0xff]
  %v5217 = vld [vmem:[%s4 + $0xf8] sm:$0xff]
  %v5218 = vld [vmem:[%s4 + $0x100] sm:$0xff]
  %v5219 = vld [vmem:[%s4 + $0x108] sm:$0xff]
  %v5220 = vld [vmem:[%s4 + $0x110] sm:$0xff]
  %v5221 = vld [vmem:[%s4 + $0x118] sm:$0xff]
  %v5222 = vld [vmem:[#allocation3] sm:$0xfe]
  %v5223 = vld [vmem:[#allocation3 + $0x8] sm:$0xfe]
  %v5224 = vld [vmem:[#allocation3 + $0x10] sm:$0xfe]
  %v5225 = vld [vmem:[#allocation3 + $0x30] sm:$0x1]
  %v5226 = vld [vmem:[#allocation3 + $0x38] sm:$0x1]
  %v5227 = vld [vmem:[#allocation3 + $0x40] sm:$0x1]
  %v5228 = vpack.c.bf16 %v5180, %v5222
  %v5229 = vpack.c.bf16 %v5181, %v5223
  %v5230 = vpack.c.bf16 %v5182, %v5224
  %v5231 = vpack.c.bf16 %v5225, %v5225
  %v5232 = vpack.c.bf16 %v5226, %v5226
  %v5233 = vpack.c.bf16 %v5227, %v5227
  %s5234 = scalar_lea.vmem %s4, 288
  %v5235 = vld [vmem:[%s5234] sm:$0xff]
  %v5236 = vld [vmem:[%s5234 + $0x8] sm:$0xff]
  %v5237 = vld [vmem:[%s5234 + $0x10] sm:$0xff]
  %v5238 = vld [vmem:[%s5234 + $0x18] sm:$0xff]
  %v5239 = vld [vmem:[%s5234 + $0x20] sm:$0xff]
  %v5240 = vld [vmem:[%s5234 + $0x28] sm:$0xff]
  %v5241 = vld [vmem:[%s5234 + $0x30] sm:$0xff]
  %v5242 = vld [vmem:[%s5234 + $0x38] sm:$0xff]
  %v5243 = vld [vmem:[%s5234 + $0x40] sm:$0xff]
  %v5244 = vld [vmem:[%s5234 + $0x48] sm:$0xff]
  %v5245 = vld [vmem:[%s5234 + $0x50] sm:$0xff]
  %v5246 = vld [vmem:[%s5234 + $0x58] sm:$0xff]
  %v5247 = vld [vmem:[%s5234 + $0x60] sm:$0xff]
  %v5248 = vld [vmem:[%s5234 + $0x68] sm:$0xff]
  %v5249 = vld [vmem:[%s5234 + $0x70] sm:$0xff]
  %v5250 = vld [vmem:[%s5234 + $0x78] sm:$0xff]
  %v5251 = vld [vmem:[%s5234 + $0x80] sm:$0xff]
  %v5252 = vld [vmem:[%s5234 + $0x88] sm:$0xff]
  %v5253 = vld [vmem:[%s5234 + $0x90] sm:$0xff]
  %v5254 = vld [vmem:[%s5234 + $0x98] sm:$0xff]
  %v5255 = vld [vmem:[%s5234 + $0xa0] sm:$0xff]
  %v5256 = vld [vmem:[%s5234 + $0xa8] sm:$0xff]
  %v5257 = vld [vmem:[%s5234 + $0xb0] sm:$0xff]
  %v5258 = vld [vmem:[%s5234 + $0xb8] sm:$0xff]
  %v5259 = vld [vmem:[%s5234 + $0xc0] sm:$0xff]
  %v5260 = vld [vmem:[%s5234 + $0xc8] sm:$0xff]
  %v5261 = vld [vmem:[%s5234 + $0xd0] sm:$0xff]
  %v5262 = vld [vmem:[%s5234 + $0xd8] sm:$0xff]
  %v5263 = vld [vmem:[%s5234 + $0xe0] sm:$0xff]
  %v5264 = vld [vmem:[%s5234 + $0xe8] sm:$0xff]
  %v5265 = vld [vmem:[%s5234 + $0xf0] sm:$0xff]
  %v5266 = vld [vmem:[%s5234 + $0xf8] sm:$0xff]
  %v5267 = vld [vmem:[%s5234 + $0x100] sm:$0xff]
  %v5268 = vld [vmem:[%s5234 + $0x108] sm:$0xff]
  %v5269 = vld [vmem:[%s5234 + $0x110] sm:$0xff]
  %v5270 = vld [vmem:[%s5234 + $0x118] sm:$0xff]
  %v5272 = vshrl.u32 %v5228, 16
  %v5274 = vshll.u32 %v5228, 16
  %v5276 = vrot.slane %v5274, 1
  %v5277 = vor.u32 %v5272, %v5276
  %v5279 = vshll.u32 %v5231, 16
  %v5281 = vrot.slane %v5279, 1
  %v5282 = vsel %vm884, %v5277, %v5281
  %v5284 = vshrl.u32 %v5229, 16
  %v5286 = vshll.u32 %v5229, 16
  %v5288 = vrot.slane %v5286, 1
  %v5289 = vor.u32 %v5284, %v5288
  %v5291 = vshll.u32 %v5232, 16
  %v5293 = vrot.slane %v5291, 1
  %v5294 = vsel %vm884, %v5289, %v5293
  %v5296 = vshrl.u32 %v5230, 16
  %v5298 = vshll.u32 %v5230, 16
  %v5300 = vrot.slane %v5298, 1
  %v5301 = vor.u32 %v5296, %v5300
  %v5303 = vshll.u32 %v5233, 16
  %v5305 = vrot.slane %v5303, 1
  %v5306 = vsel %vm884, %v5301, %v5305
  %v5345 = vunpack.c.l.b16 %v5235
  %v5346 = vunpack.c.h.b16 %v5235
  %v5347 = vunpack.c.l.b16 %v5236
  %v5348 = vunpack.c.h.b16 %v5236
  %v5349 = vunpack.c.l.b16 %v5237
  %v5350 = vunpack.c.h.b16 %v5237
  %v5351 = vunpack.c.l.b16 %v5238
  %v5352 = vunpack.c.h.b16 %v5238
  %v5353 = vunpack.c.l.b16 %v5239
  %v5354 = vunpack.c.h.b16 %v5239
  %v5355 = vunpack.c.l.b16 %v5240
  %v5356 = vunpack.c.h.b16 %v5240
  %v5357 = vunpack.c.l.b16 %v5241
  %v5358 = vunpack.c.h.b16 %v5241
  %v5359 = vunpack.c.l.b16 %v5242
  %v5360 = vunpack.c.h.b16 %v5242
  %v5361 = vunpack.c.l.b16 %v5243
  %v5362 = vunpack.c.h.b16 %v5243
  %v5363 = vunpack.c.l.b16 %v5244
  %v5364 = vunpack.c.h.b16 %v5244
  %v5365 = vunpack.c.l.b16 %v5245
  %v5366 = vunpack.c.h.b16 %v5245
  %v5367 = vunpack.c.l.b16 %v5246
  %v5368 = vunpack.c.h.b16 %v5246
  %v5369 = vunpack.c.l.b16 %v5247
  %v5370 = vunpack.c.h.b16 %v5247
  %v5371 = vunpack.c.l.b16 %v5248
  %v5372 = vunpack.c.h.b16 %v5248
  %v5373 = vunpack.c.l.b16 %v5249
  %v5374 = vunpack.c.h.b16 %v5249
  %v5375 = vunpack.c.l.b16 %v5250
  %v5376 = vunpack.c.h.b16 %v5250
  %v5377 = vunpack.c.l.b16 %v5251
  %v5378 = vunpack.c.h.b16 %v5251
  %v5379 = vunpack.c.l.b16 %v5252
  %v5380 = vunpack.c.h.b16 %v5252
  %v5381 = vunpack.c.l.b16 %v5253
  %v5382 = vunpack.c.h.b16 %v5253
  %v5383 = vunpack.c.l.b16 %v5254
  %v5384 = vunpack.c.h.b16 %v5254
  %v5385 = vunpack.c.l.b16 %v5255
  %v5386 = vunpack.c.h.b16 %v5255
  %v5387 = vunpack.c.l.b16 %v5256
  %v5388 = vunpack.c.h.b16 %v5256
  %v5389 = vunpack.c.l.b16 %v5257
  %v5390 = vunpack.c.h.b16 %v5257
  %v5391 = vunpack.c.l.b16 %v5258
  %v5392 = vunpack.c.h.b16 %v5258
  %v5393 = vunpack.c.l.b16 %v5259
  %v5394 = vunpack.c.h.b16 %v5259
  %v5395 = vunpack.c.l.b16 %v5260
  %v5396 = vunpack.c.h.b16 %v5260
  %v5397 = vunpack.c.l.b16 %v5261
  %v5398 = vunpack.c.h.b16 %v5261
  %v5399 = vunpack.c.l.b16 %v5262
  %v5400 = vunpack.c.h.b16 %v5262
  %v5401 = vunpack.c.l.b16 %v5263
  %v5402 = vunpack.c.h.b16 %v5263
  %v5403 = vunpack.c.l.b16 %v5264
  %v5404 = vunpack.c.h.b16 %v5264
  %v5405 = vunpack.c.l.b16 %v5265
  %v5406 = vunpack.c.h.b16 %v5265
  %v5407 = vunpack.c.l.b16 %v5266
  %v5408 = vunpack.c.h.b16 %v5266
  %v5409 = vunpack.c.l.b16 %v5267
  %v5410 = vunpack.c.h.b16 %v5267
  %v5411 = vunpack.c.l.b16 %v5268
  %v5412 = vunpack.c.h.b16 %v5268
  %v5413 = vunpack.c.l.b16 %v5269
  %v5414 = vunpack.c.h.b16 %v5269
  %v5415 = vunpack.c.l.b16 %v5270
  %v5416 = vunpack.c.h.b16 %v5270
  %v5417 = vpack.c.b16 %v5347, %v5345
  %v5418 = vpack.c.b16 %v5348, %v5346
  %v5419 = vpack.c.b16 %v5351, %v5349
  %v5420 = vpack.c.b16 %v5352, %v5350
  %v5421 = vpack.c.b16 %v5355, %v5353
  %v5422 = vpack.c.b16 %v5356, %v5354
  %v5423 = vpack.c.b16 %v5359, %v5357
  %v5424 = vpack.c.b16 %v5360, %v5358
  %v5425 = vpack.c.b16 %v5363, %v5361
  %v5426 = vpack.c.b16 %v5364, %v5362
  %v5427 = vpack.c.b16 %v5367, %v5365
  %v5428 = vpack.c.b16 %v5368, %v5366
  %v5429 = vpack.c.b16 %v5371, %v5369
  %v5430 = vpack.c.b16 %v5372, %v5370
  %v5431 = vpack.c.b16 %v5375, %v5373
  %v5432 = vpack.c.b16 %v5376, %v5374
  %v5433 = vpack.c.b16 %v5379, %v5377
  %v5434 = vpack.c.b16 %v5380, %v5378
  %v5435 = vpack.c.b16 %v5383, %v5381
  %v5436 = vpack.c.b16 %v5384, %v5382
  %v5437 = vpack.c.b16 %v5387, %v5385
  %v5438 = vpack.c.b16 %v5388, %v5386
  %v5439 = vpack.c.b16 %v5391, %v5389
  %v5440 = vpack.c.b16 %v5392, %v5390
  %v5441 = vpack.c.b16 %v5395, %v5393
  %v5442 = vpack.c.b16 %v5396, %v5394
  %v5443 = vpack.c.b16 %v5399, %v5397
  %v5444 = vpack.c.b16 %v5400, %v5398
  %v5445 = vpack.c.b16 %v5403, %v5401
  %v5446 = vpack.c.b16 %v5404, %v5402
  %v5447 = vpack.c.b16 %v5407, %v5405
  %v5448 = vpack.c.b16 %v5408, %v5406
  %v5449 = vpack.c.b16 %v5411, %v5409
  %v5450 = vpack.c.b16 %v5412, %v5410
  %v5451 = vpack.c.b16 %v5415, %v5413
  %v5452 = vpack.c.b16 %v5416, %v5414
  %v5490 = vsel %vm4421, %v5306, 0
  %5492 = vmatpush.bf16.msra.mxu0 %v5431
  %5493 = vmatpush.bf16.msra.mxu0 %v5429
  %5494 = vmatpush.bf16.msra.mxu0 %v5427
  %5495 = vmatpush.bf16.msra.mxu0 %v5425
  %5496 = vmatpush.bf16.msra.mxu0 %v5423
  %5497 = vmatpush.bf16.msra.mxu0 %v5421
  %5498 = vmatpush.bf16.msra.mxu0 %v5419
  %5499 = vmatpush.bf16.msra.mxu0 %v5417
  %5500 = vmatmul.bf16.gmra.mxu0 %v5282
  %v5501 = vpop.f32.mrf.mxu0
  %v5502 = vadd.f32 0.0, %v5501
  %v5503 = vpop.f32.mrf.mxu0
  %v5504 = vadd.f32 0.0, %v5503
  %5505 = vdwg.mxu0
  %5506 = vmatpush.bf16.msra.mxu0 %v5447
  %5507 = vmatpush.bf16.msra.mxu0 %v5445
  %5508 = vmatpush.bf16.msra.mxu0 %v5443
  %5509 = vmatpush.bf16.msra.mxu0 %v5441
  %5510 = vmatpush.bf16.msra.mxu0 %v5439
  %5511 = vmatpush.bf16.msra.mxu0 %v5437
  %5512 = vmatpush.bf16.msra.mxu0 %v5435
  %5513 = vmatpush.bf16.msra.mxu0 %v5433
  %5514 = vmatmul.bf16.gmra.mxu0 %v5294
  %v5515 = vpop.f32.mrf.mxu0
  %v5516 = vadd.f32 %v5502, %v5515
  %v5517 = vpop.f32.mrf.mxu0
  %v5518 = vadd.f32 %v5504, %v5517
  %5519 = vdwg.mxu0
  %5520 = vmatpush.bf16.msra.mxu0 0
  %5521 = vmatpush.bf16.msra.mxu0 0
  %5522 = vmatpush.bf16.msra.mxu0 0
  %5523 = vmatpush.bf16.msra.mxu0 0
  %5524 = vmatpush.bf16.msra.mxu0 0
  %5525 = vmatpush.bf16.msra.mxu0 0
  %5526 = vmatpush.bf16.msra.mxu0 %v5451
  %5527 = vmatpush.bf16.msra.mxu0 %v5449
  %5528 = vmatmul.bf16.gmra.mxu0 %v5490
  %v5529 = vpop.f32.mrf.mxu0
  %v5530 = vadd.f32 %v5516, %v5529
  %v5531 = vpop.f32.mrf.mxu0
  %v5532 = vadd.f32 %v5518, %v5531
  %5533 = vdwg.mxu0
  %5534 = vmatpush.bf16.msra.mxu0 %v5432
  %5535 = vmatpush.bf16.msra.mxu0 %v5430
  %5536 = vmatpush.bf16.msra.mxu0 %v5428
  %5537 = vmatpush.bf16.msra.mxu0 %v5426
  %5538 = vmatpush.bf16.msra.mxu0 %v5424
  %5539 = vmatpush.bf16.msra.mxu0 %v5422
  %5540 = vmatpush.bf16.msra.mxu0 %v5420
  %5541 = vmatpush.bf16.msra.mxu0 %v5418
  %5542 = vmatmul.bf16.gmra.mxu0 %v5282
  %v5543 = vpop.f32.mrf.mxu0
  %v5544 = vadd.f32 0.0, %v5543
  %v5545 = vpop.f32.mrf.mxu0
  %v5546 = vadd.f32 0.0, %v5545
  %5547 = vdwg.mxu0
  %5548 = vmatpush.bf16.msra.mxu0 %v5448
  %5549 = vmatpush.bf16.msra.mxu0 %v5446
  %5550 = vmatpush.bf16.msra.mxu0 %v5444
  %5551 = vmatpush.bf16.msra.mxu0 %v5442
  %5552 = vmatpush.bf16.msra.mxu0 %v5440
  %5553 = vmatpush.bf16.msra.mxu0 %v5438
  %5554 = vmatpush.bf16.msra.mxu0 %v5436
  %5555 = vmatpush.bf16.msra.mxu0 %v5434
  %5556 = vmatmul.bf16.gmra.mxu0 %v5294
  %v5557 = vpop.f32.mrf.mxu0
  %v5558 = vadd.f32 %v5544, %v5557
  %v5559 = vpop.f32.mrf.mxu0
  %v5560 = vadd.f32 %v5546, %v5559
  %5561 = vdwg.mxu0
  %5562 = vmatpush.bf16.msra.mxu0 0
  %5563 = vmatpush.bf16.msra.mxu0 0
  %5564 = vmatpush.bf16.msra.mxu0 0
  %5565 = vmatpush.bf16.msra.mxu0 0
  %5566 = vmatpush.bf16.msra.mxu0 0
  %5567 = vmatpush.bf16.msra.mxu0 0
  %5568 = vmatpush.bf16.msra.mxu0 %v5452
  %5569 = vmatpush.bf16.msra.mxu0 %v5450
  %5570 = vmatmul.bf16.gmra.mxu0 %v5490
  %v5571 = vpop.f32.mrf.mxu0
  %v5572 = vadd.f32 %v5558, %v5571
  %v5573 = vpop.f32.mrf.mxu0
  %v5574 = vadd.f32 %v5560, %v5573
  %5575 = vdwg.mxu0
  %v5612 = vunpack.c.l.b16 %v5186
  %v5613 = vunpack.c.h.b16 %v5186
  %v5614 = vunpack.c.l.b16 %v5187
  %v5615 = vunpack.c.h.b16 %v5187
  %v5616 = vunpack.c.l.b16 %v5188
  %v5617 = vunpack.c.h.b16 %v5188
  %v5618 = vunpack.c.l.b16 %v5189
  %v5619 = vunpack.c.h.b16 %v5189
  %v5620 = vunpack.c.l.b16 %v5190
  %v5621 = vunpack.c.h.b16 %v5190
  %v5622 = vunpack.c.l.b16 %v5191
  %v5623 = vunpack.c.h.b16 %v5191
  %v5624 = vunpack.c.l.b16 %v5192
  %v5625 = vunpack.c.h.b16 %v5192
  %v5626 = vunpack.c.l.b16 %v5193
  %v5627 = vunpack.c.h.b16 %v5193
  %v5628 = vunpack.c.l.b16 %v5194
  %v5629 = vunpack.c.h.b16 %v5194
  %v5630 = vunpack.c.l.b16 %v5195
  %v5631 = vunpack.c.h.b16 %v5195
  %v5632 = vunpack.c.l.b16 %v5196
  %v5633 = vunpack.c.h.b16 %v5196
  %v5634 = vunpack.c.l.b16 %v5197
  %v5635 = vunpack.c.h.b16 %v5197
  %v5636 = vunpack.c.l.b16 %v5198
  %v5637 = vunpack.c.h.b16 %v5198
  %v5638 = vunpack.c.l.b16 %v5199
  %v5639 = vunpack.c.h.b16 %v5199
  %v5640 = vunpack.c.l.b16 %v5200
  %v5641 = vunpack.c.h.b16 %v5200
  %v5642 = vunpack.c.l.b16 %v5201
  %v5643 = vunpack.c.h.b16 %v5201
  %v5644 = vunpack.c.l.b16 %v5202
  %v5645 = vunpack.c.h.b16 %v5202
  %v5646 = vunpack.c.l.b16 %v5203
  %v5647 = vunpack.c.h.b16 %v5203
  %v5648 = vunpack.c.l.b16 %v5204
  %v5649 = vunpack.c.h.b16 %v5204
  %v5650 = vunpack.c.l.b16 %v5205
  %v5651 = vunpack.c.h.b16 %v5205
  %v5652 = vunpack.c.l.b16 %v5206
  %v5653 = vunpack.c.h.b16 %v5206
  %v5654 = vunpack.c.l.b16 %v5207
  %v5655 = vunpack.c.h.b16 %v5207
  %v5656 = vunpack.c.l.b16 %v5208
  %v5657 = vunpack.c.h.b16 %v5208
  %v5658 = vunpack.c.l.b16 %v5209
  %v5659 = vunpack.c.h.b16 %v5209
  %v5660 = vunpack.c.l.b16 %v5210
  %v5661 = vunpack.c.h.b16 %v5210
  %v5662 = vunpack.c.l.b16 %v5211
  %v5663 = vunpack.c.h.b16 %v5211
  %v5664 = vunpack.c.l.b16 %v5212
  %v5665 = vunpack.c.h.b16 %v5212
  %v5666 = vunpack.c.l.b16 %v5213
  %v5667 = vunpack.c.h.b16 %v5213
  %v5668 = vunpack.c.l.b16 %v5214
  %v5669 = vunpack.c.h.b16 %v5214
  %v5670 = vunpack.c.l.b16 %v5215
  %v5671 = vunpack.c.h.b16 %v5215
  %v5672 = vunpack.c.l.b16 %v5216
  %v5673 = vunpack.c.h.b16 %v5216
  %v5674 = vunpack.c.l.b16 %v5217
  %v5675 = vunpack.c.h.b16 %v5217
  %v5676 = vunpack.c.l.b16 %v5218
  %v5677 = vunpack.c.h.b16 %v5218
  %v5678 = vunpack.c.l.b16 %v5219
  %v5679 = vunpack.c.h.b16 %v5219
  %v5680 = vunpack.c.l.b16 %v5220
  %v5681 = vunpack.c.h.b16 %v5220
  %v5682 = vunpack.c.l.b16 %v5221
  %v5683 = vunpack.c.h.b16 %v5221
  %v5684 = vpack.c.b16 %v5614, %v5612
  %v5685 = vpack.c.b16 %v5615, %v5613
  %v5686 = vpack.c.b16 %v5618, %v5616
  %v5687 = vpack.c.b16 %v5619, %v5617
  %v5688 = vpack.c.b16 %v5622, %v5620
  %v5689 = vpack.c.b16 %v5623, %v5621
  %v5690 = vpack.c.b16 %v5626, %v5624
  %v5691 = vpack.c.b16 %v5627, %v5625
  %v5692 = vpack.c.b16 %v5630, %v5628
  %v5693 = vpack.c.b16 %v5631, %v5629
  %v5694 = vpack.c.b16 %v5634, %v5632
  %v5695 = vpack.c.b16 %v5635, %v5633
  %v5696 = vpack.c.b16 %v5638, %v5636
  %v5697 = vpack.c.b16 %v5639, %v5637
  %v5698 = vpack.c.b16 %v5642, %v5640
  %v5699 = vpack.c.b16 %v5643, %v5641
  %v5700 = vpack.c.b16 %v5646, %v5644
  %v5701 = vpack.c.b16 %v5647, %v5645
  %v5702 = vpack.c.b16 %v5650, %v5648
  %v5703 = vpack.c.b16 %v5651, %v5649
  %v5704 = vpack.c.b16 %v5654, %v5652
  %v5705 = vpack.c.b16 %v5655, %v5653
  %v5706 = vpack.c.b16 %v5658, %v5656
  %v5707 = vpack.c.b16 %v5659, %v5657
  %v5708 = vpack.c.b16 %v5662, %v5660
  %v5709 = vpack.c.b16 %v5663, %v5661
  %v5710 = vpack.c.b16 %v5666, %v5664
  %v5711 = vpack.c.b16 %v5667, %v5665
  %v5712 = vpack.c.b16 %v5670, %v5668
  %v5713 = vpack.c.b16 %v5671, %v5669
  %v5714 = vpack.c.b16 %v5674, %v5672
  %v5715 = vpack.c.b16 %v5675, %v5673
  %v5716 = vpack.c.b16 %v5678, %v5676
  %v5717 = vpack.c.b16 %v5679, %v5677
  %v5718 = vpack.c.b16 %v5682, %v5680
  %v5719 = vpack.c.b16 %v5683, %v5681
  %v5757 = vsel %vm4421, %v5185, 0
  %5759 = vmatpush.bf16.msra.mxu0 %v5698
  %5760 = vmatpush.bf16.msra.mxu0 %v5696
  %5761 = vmatpush.bf16.msra.mxu0 %v5694
  %5762 = vmatpush.bf16.msra.mxu0 %v5692
  %5763 = vmatpush.bf16.msra.mxu0 %v5690
  %5764 = vmatpush.bf16.msra.mxu0 %v5688
  %5765 = vmatpush.bf16.msra.mxu0 %v5686
  %5766 = vmatpush.bf16.msra.mxu0 %v5684
  %5767 = vmatmul.bf16.gmra.mxu0 %v5183
  %v5768 = vpop.f32.mrf.mxu0
  %v5769 = vadd.f32 %v5530, %v5768
  %v5770 = vpop.f32.mrf.mxu0
  %v5771 = vadd.f32 %v5532, %v5770
  %5772 = vdwg.mxu0
  %5773 = vmatpush.bf16.msra.mxu0 %v5714
  %5774 = vmatpush.bf16.msra.mxu0 %v5712
  %5775 = vmatpush.bf16.msra.mxu0 %v5710
  %5776 = vmatpush.bf16.msra.mxu0 %v5708
  %5777 = vmatpush.bf16.msra.mxu0 %v5706
  %5778 = vmatpush.bf16.msra.mxu0 %v5704
  %5779 = vmatpush.bf16.msra.mxu0 %v5702
  %5780 = vmatpush.bf16.msra.mxu0 %v5700
  %5781 = vmatmul.bf16.gmra.mxu0 %v5184
  %v5782 = vpop.f32.mrf.mxu0
  %v5783 = vadd.f32 %v5769, %v5782
  %v5784 = vpop.f32.mrf.mxu0
  %v5785 = vadd.f32 %v5771, %v5784
  %5786 = vdwg.mxu0
  %5787 = vmatpush.bf16.msra.mxu0 0
  %5788 = vmatpush.bf16.msra.mxu0 0
  %5789 = vmatpush.bf16.msra.mxu0 0
  %5790 = vmatpush.bf16.msra.mxu0 0
  %5791 = vmatpush.bf16.msra.mxu0 0
  %5792 = vmatpush.bf16.msra.mxu0 0
  %5793 = vmatpush.bf16.msra.mxu0 %v5718
  %5794 = vmatpush.bf16.msra.mxu0 %v5716
  %5795 = vmatmul.bf16.gmra.mxu0 %v5757
  %v5796 = vpop.f32.mrf.mxu0
  %v5797 = vadd.f32 %v5783, %v5796
  %v5798 = vpop.f32.mrf.mxu0
  %v5799 = vadd.f32 %v5785, %v5798
  %5800 = vdwg.mxu0
  %5801 = vmatpush.bf16.msra.mxu0 %v5699
  %5802 = vmatpush.bf16.msra.mxu0 %v5697
  %5803 = vmatpush.bf16.msra.mxu0 %v5695
  %5804 = vmatpush.bf16.msra.mxu0 %v5693
  %5805 = vmatpush.bf16.msra.mxu0 %v5691
  %5806 = vmatpush.bf16.msra.mxu0 %v5689
  %5807 = vmatpush.bf16.msra.mxu0 %v5687
  %5808 = vmatpush.bf16.msra.mxu0 %v5685
  %5809 = vmatmul.bf16.gmra.mxu0 %v5183
  %v5810 = vpop.f32.mrf.mxu0
  %v5811 = vadd.f32 %v5572, %v5810
  %v5812 = vpop.f32.mrf.mxu0
  %v5813 = vadd.f32 %v5574, %v5812
  %5814 = vdwg.mxu0
  %5815 = vmatpush.bf16.msra.mxu0 %v5715
  %5816 = vmatpush.bf16.msra.mxu0 %v5713
  %5817 = vmatpush.bf16.msra.mxu0 %v5711
  %5818 = vmatpush.bf16.msra.mxu0 %v5709
  %5819 = vmatpush.bf16.msra.mxu0 %v5707
  %5820 = vmatpush.bf16.msra.mxu0 %v5705
  %5821 = vmatpush.bf16.msra.mxu0 %v5703
  %5822 = vmatpush.bf16.msra.mxu0 %v5701
  %5823 = vmatmul.bf16.gmra.mxu0 %v5184
  %v5824 = vpop.f32.mrf.mxu0
  %v5825 = vadd.f32 %v5811, %v5824
  %v5826 = vpop.f32.mrf.mxu0
  %v5827 = vadd.f32 %v5813, %v5826
  %5828 = vdwg.mxu0
  %5829 = vmatpush.bf16.msra.mxu0 0
  %5830 = vmatpush.bf16.msra.mxu0 0
  %5831 = vmatpush.bf16.msra.mxu0 0
  %5832 = vmatpush.bf16.msra.mxu0 0
  %5833 = vmatpush.bf16.msra.mxu0 0
  %5834 = vmatpush.bf16.msra.mxu0 0
  %5835 = vmatpush.bf16.msra.mxu0 %v5719
  %5836 = vmatpush.bf16.msra.mxu0 %v5717
  %5837 = vmatmul.bf16.gmra.mxu0 %v5757
  %v5838 = vpop.f32.mrf.mxu0
  %v5839 = vadd.f32 %v5825, %v5838
  %v5840 = vpop.f32.mrf.mxu0
  %v5841 = vadd.f32 %v5827, %v5840
  %5842 = vdwg.mxu0
  %v5843 = vld [vmem:[#allocation3] sm:$0xfc]
  %v5844 = vld [vmem:[#allocation3 + $0x8] sm:$0xfc]
  %v5845 = vld [vmem:[#allocation3 + $0x10] sm:$0xfc]
  %v5846 = vld [vmem:[#allocation3 + $0x30] sm:$0x3]
  %v5847 = vld [vmem:[#allocation3 + $0x38] sm:$0x3]
  %v5848 = vld [vmem:[#allocation3 + $0x40] sm:$0x3]
  %v5849 = vpack.c.bf16 %v5180, %v5843
  %v5850 = vpack.c.bf16 %v5181, %v5844
  %v5851 = vpack.c.bf16 %v5182, %v5845
  %v5852 = vpack.c.bf16 %v5846, %v5846
  %v5853 = vpack.c.bf16 %v5847, %v5847
  %v5854 = vpack.c.bf16 %v5848, %v5848
  %s5855 = scalar_lea.vmem %s4, 576
  %v5856 = vld [vmem:[%s5855] sm:$0xff]
  %v5857 = vld [vmem:[%s5855 + $0x8] sm:$0xff]
  %v5858 = vld [vmem:[%s5855 + $0x10] sm:$0xff]
  %v5859 = vld [vmem:[%s5855 + $0x18] sm:$0xff]
  %v5860 = vld [vmem:[%s5855 + $0x20] sm:$0xff]
  %v5861 = vld [vmem:[%s5855 + $0x28] sm:$0xff]
  %v5862 = vld [vmem:[%s5855 + $0x30] sm:$0xff]
  %v5863 = vld [vmem:[%s5855 + $0x38] sm:$0xff]
  %v5864 = vld [vmem:[%s5855 + $0x40] sm:$0xff]
  %v5865 = vld [vmem:[%s5855 + $0x48] sm:$0xff]
  %v5866 = vld [vmem:[%s5855 + $0x50] sm:$0xff]
  %v5867 = vld [vmem:[%s5855 + $0x58] sm:$0xff]
  %v5868 = vld [vmem:[%s5855 + $0x60] sm:$0xff]
  %v5869 = vld [vmem:[%s5855 + $0x68] sm:$0xff]
  %v5870 = vld [vmem:[%s5855 + $0x70] sm:$0xff]
  %v5871 = vld [vmem:[%s5855 + $0x78] sm:$0xff]
  %v5872 = vld [vmem:[%s5855 + $0x80] sm:$0xff]
  %v5873 = vld [vmem:[%s5855 + $0x88] sm:$0xff]
  %v5874 = vld [vmem:[%s5855 + $0x90] sm:$0xff]
  %v5875 = vld [vmem:[%s5855 + $0x98] sm:$0xff]
  %v5876 = vld [vmem:[%s5855 + $0xa0] sm:$0xff]
  %v5877 = vld [vmem:[%s5855 + $0xa8] sm:$0xff]
  %v5878 = vld [vmem:[%s5855 + $0xb0] sm:$0xff]
  %v5879 = vld [vmem:[%s5855 + $0xb8] sm:$0xff]
  %v5880 = vld [vmem:[%s5855 + $0xc0] sm:$0xff]
  %v5881 = vld [vmem:[%s5855 + $0xc8] sm:$0xff]
  %v5882 = vld [vmem:[%s5855 + $0xd0] sm:$0xff]
  %v5883 = vld [vmem:[%s5855 + $0xd8] sm:$0xff]
  %v5884 = vld [vmem:[%s5855 + $0xe0] sm:$0xff]
  %v5885 = vld [vmem:[%s5855 + $0xe8] sm:$0xff]
  %v5886 = vld [vmem:[%s5855 + $0xf0] sm:$0xff]
  %v5887 = vld [vmem:[%s5855 + $0xf8] sm:$0xff]
  %v5888 = vld [vmem:[%s5855 + $0x100] sm:$0xff]
  %v5889 = vld [vmem:[%s5855 + $0x108] sm:$0xff]
  %v5890 = vld [vmem:[%s5855 + $0x110] sm:$0xff]
  %v5891 = vld [vmem:[%s5855 + $0x118] sm:$0xff]
  %v5898 = vrot.slane %v5849, 1
  %v5899 = vrot.slane %v5852, 1
  %v5900 = vsel %vm2702, %v5898, %v5899
  %v5901 = vrot.slane %v5850, 1
  %v5902 = vrot.slane %v5853, 1
  %v5903 = vsel %vm2702, %v5901, %v5902
  %v5904 = vrot.slane %v5851, 1
  %v5905 = vrot.slane %v5854, 1
  %v5906 = vsel %vm2702, %v5904, %v5905
  %v5945 = vunpack.c.l.b16 %v5856
  %v5946 = vunpack.c.h.b16 %v5856
  %v5947 = vunpack.c.l.b16 %v5857
  %v5948 = vunpack.c.h.b16 %v5857
  %v5949 = vunpack.c.l.b16 %v5858
  %v5950 = vunpack.c.h.b16 %v5858
  %v5951 = vunpack.c.l.b16 %v5859
  %v5952 = vunpack.c.h.b16 %v5859
  %v5953 = vunpack.c.l.b16 %v5860
  %v5954 = vunpack.c.h.b16 %v5860
  %v5955 = vunpack.c.l.b16 %v5861
  %v5956 = vunpack.c.h.b16 %v5861
  %v5957 = vunpack.c.l.b16 %v5862
  %v5958 = vunpack.c.h.b16 %v5862
  %v5959 = vunpack.c.l.b16 %v5863
  %v5960 = vunpack.c.h.b16 %v5863
  %v5961 = vunpack.c.l.b16 %v5864
  %v5962 = vunpack.c.h.b16 %v5864
  %v5963 = vunpack.c.l.b16 %v5865
  %v5964 = vunpack.c.h.b16 %v5865
  %v5965 = vunpack.c.l.b16 %v5866
  %v5966 = vunpack.c.h.b16 %v5866
  %v5967 = vunpack.c.l.b16 %v5867
  %v5968 = vunpack.c.h.b16 %v5867
  %v5969 = vunpack.c.l.b16 %v5868
  %v5970 = vunpack.c.h.b16 %v5868
  %v5971 = vunpack.c.l.b16 %v5869
  %v5972 = vunpack.c.h.b16 %v5869
  %v5973 = vunpack.c.l.b16 %v5870
  %v5974 = vunpack.c.h.b16 %v5870
  %v5975 = vunpack.c.l.b16 %v5871
  %v5976 = vunpack.c.h.b16 %v5871
  %v5977 = vunpack.c.l.b16 %v5872
  %v5978 = vunpack.c.h.b16 %v5872
  %v5979 = vunpack.c.l.b16 %v5873
  %v5980 = vunpack.c.h.b16 %v5873
  %v5981 = vunpack.c.l.b16 %v5874
  %v5982 = vunpack.c.h.b16 %v5874
  %v5983 = vunpack.c.l.b16 %v5875
  %v5984 = vunpack.c.h.b16 %v5875
  %v5985 = vunpack.c.l.b16 %v5876
  %v5986 = vunpack.c.h.b16 %v5876
  %v5987 = vunpack.c.l.b16 %v5877
  %v5988 = vunpack.c.h.b16 %v5877
  %v5989 = vunpack.c.l.b16 %v5878
  %v5990 = vunpack.c.h.b16 %v5878
  %v5991 = vunpack.c.l.b16 %v5879
  %v5992 = vunpack.c.h.b16 %v5879
  %v5993 = vunpack.c.l.b16 %v5880
  %v5994 = vunpack.c.h.b16 %v5880
  %v5995 = vunpack.c.l.b16 %v5881
  %v5996 = vunpack.c.h.b16 %v5881
  %v5997 = vunpack.c.l.b16 %v5882
  %v5998 = vunpack.c.h.b16 %v5882
  %v5999 = vunpack.c.l.b16 %v5883
  %v6000 = vunpack.c.h.b16 %v5883
  %v6001 = vunpack.c.l.b16 %v5884
  %v6002 = vunpack.c.h.b16 %v5884
  %v6003 = vunpack.c.l.b16 %v5885
  %v6004 = vunpack.c.h.b16 %v5885
  %v6005 = vunpack.c.l.b16 %v5886
  %v6006 = vunpack.c.h.b16 %v5886
  %v6007 = vunpack.c.l.b16 %v5887
  %v6008 = vunpack.c.h.b16 %v5887
  %v6009 = vunpack.c.l.b16 %v5888
  %v6010 = vunpack.c.h.b16 %v5888
  %v6011 = vunpack.c.l.b16 %v5889
  %v6012 = vunpack.c.h.b16 %v5889
  %v6013 = vunpack.c.l.b16 %v5890
  %v6014 = vunpack.c.h.b16 %v5890
  %v6015 = vunpack.c.l.b16 %v5891
  %v6016 = vunpack.c.h.b16 %v5891
  %v6017 = vpack.c.b16 %v5947, %v5945
  %v6018 = vpack.c.b16 %v5948, %v5946
  %v6019 = vpack.c.b16 %v5951, %v5949
  %v6020 = vpack.c.b16 %v5952, %v5950
  %v6021 = vpack.c.b16 %v5955, %v5953
  %v6022 = vpack.c.b16 %v5956, %v5954
  %v6023 = vpack.c.b16 %v5959, %v5957
  %v6024 = vpack.c.b16 %v5960, %v5958
  %v6025 = vpack.c.b16 %v5963, %v5961
  %v6026 = vpack.c.b16 %v5964, %v5962
  %v6027 = vpack.c.b16 %v5967, %v5965
  %v6028 = vpack.c.b16 %v5968, %v5966
  %v6029 = vpack.c.b16 %v5971, %v5969
  %v6030 = vpack.c.b16 %v5972, %v5970
  %v6031 = vpack.c.b16 %v5975, %v5973
  %v6032 = vpack.c.b16 %v5976, %v5974
  %v6033 = vpack.c.b16 %v5979, %v5977
  %v6034 = vpack.c.b16 %v5980, %v5978
  %v6035 = vpack.c.b16 %v5983, %v5981
  %v6036 = vpack.c.b16 %v5984, %v5982
  %v6037 = vpack.c.b16 %v5987, %v5985
  %v6038 = vpack.c.b16 %v5988, %v5986
  %v6039 = vpack.c.b16 %v5991, %v5989
  %v6040 = vpack.c.b16 %v5992, %v5990
  %v6041 = vpack.c.b16 %v5995, %v5993
  %v6042 = vpack.c.b16 %v5996, %v5994
  %v6043 = vpack.c.b16 %v5999, %v5997
  %v6044 = vpack.c.b16 %v6000, %v5998
  %v6045 = vpack.c.b16 %v6003, %v6001
  %v6046 = vpack.c.b16 %v6004, %v6002
  %v6047 = vpack.c.b16 %v6007, %v6005
  %v6048 = vpack.c.b16 %v6008, %v6006
  %v6049 = vpack.c.b16 %v6011, %v6009
  %v6050 = vpack.c.b16 %v6012, %v6010
  %v6051 = vpack.c.b16 %v6015, %v6013
  %v6052 = vpack.c.b16 %v6016, %v6014
  %v6090 = vsel %vm4421, %v5906, 0
  %6092 = vmatpush.bf16.msra.mxu0 %v6031
  %6093 = vmatpush.bf16.msra.mxu0 %v6029
  %6094 = vmatpush.bf16.msra.mxu0 %v6027
  %6095 = vmatpush.bf16.msra.mxu0 %v6025
  %6096 = vmatpush.bf16.msra.mxu0 %v6023
  %6097 = vmatpush.bf16.msra.mxu0 %v6021
  %6098 = vmatpush.bf16.msra.mxu0 %v6019
  %6099 = vmatpush.bf16.msra.mxu0 %v6017
  %6100 = vmatmul.bf16.gmra.mxu0 %v5900
  %v6101 = vpop.f32.mrf.mxu0
  %v6102 = vadd.f32 0.0, %v6101
  %v6103 = vpop.f32.mrf.mxu0
  %v6104 = vadd.f32 0.0, %v6103
  %6105 = vdwg.mxu0
  %6106 = vmatpush.bf16.msra.mxu0 %v6047
  %6107 = vmatpush.bf16.msra.mxu0 %v6045
  %6108 = vmatpush.bf16.msra.mxu0 %v6043
  %6109 = vmatpush.bf16.msra.mxu0 %v6041
  %6110 = vmatpush.bf16.msra.mxu0 %v6039
  %6111 = vmatpush.bf16.msra.mxu0 %v6037
  %6112 = vmatpush.bf16.msra.mxu0 %v6035
  %6113 = vmatpush.bf16.msra.mxu0 %v6033
  %6114 = vmatmul.bf16.gmra.mxu0 %v5903
  %v6115 = vpop.f32.mrf.mxu0
  %v6116 = vadd.f32 %v6102, %v6115
  %v6117 = vpop.f32.mrf.mxu0
  %v6118 = vadd.f32 %v6104, %v6117
  %6119 = vdwg.mxu0
  %6120 = vmatpush.bf16.msra.mxu0 0
  %6121 = vmatpush.bf16.msra.mxu0 0
  %6122 = vmatpush.bf16.msra.mxu0 0
  %6123 = vmatpush.bf16.msra.mxu0 0
  %6124 = vmatpush.bf16.msra.mxu0 0
  %6125 = vmatpush.bf16.msra.mxu0 0
  %6126 = vmatpush.bf16.msra.mxu0 %v6051
  %6127 = vmatpush.bf16.msra.mxu0 %v6049
  %6128 = vmatmul.bf16.gmra.mxu0 %v6090
  %v6129 = vpop.f32.mrf.mxu0
  %v6130 = vadd.f32 %v6116, %v6129
  %v6131 = vpop.f32.mrf.mxu0
  %v6132 = vadd.f32 %v6118, %v6131
  %6133 = vdwg.mxu0
  %6134 = vmatpush.bf16.msra.mxu0 %v6032
  %6135 = vmatpush.bf16.msra.mxu0 %v6030
  %6136 = vmatpush.bf16.msra.mxu0 %v6028
  %6137 = vmatpush.bf16.msra.mxu0 %v6026
  %6138 = vmatpush.bf16.msra.mxu0 %v6024
  %6139 = vmatpush.bf16.msra.mxu0 %v6022
  %6140 = vmatpush.bf16.msra.mxu0 %v6020
  %6141 = vmatpush.bf16.msra.mxu0 %v6018
  %6142 = vmatmul.bf16.gmra.mxu0 %v5900
  %v6143 = vpop.f32.mrf.mxu0
  %v6144 = vadd.f32 0.0, %v6143
  %v6145 = vpop.f32.mrf.mxu0
  %v6146 = vadd.f32 0.0, %v6145
  %6147 = vdwg.mxu0
  %6148 = vmatpush.bf16.msra.mxu0 %v6048
  %6149 = vmatpush.bf16.msra.mxu0 %v6046
  %6150 = vmatpush.bf16.msra.mxu0 %v6044
  %6151 = vmatpush.bf16.msra.mxu0 %v6042
  %6152 = vmatpush.bf16.msra.mxu0 %v6040
  %6153 = vmatpush.bf16.msra.mxu0 %v6038
  %6154 = vmatpush.bf16.msra.mxu0 %v6036
  %6155 = vmatpush.bf16.msra.mxu0 %v6034
  %6156 = vmatmul.bf16.gmra.mxu0 %v5903
  %v6157 = vpop.f32.mrf.mxu0
  %v6158 = vadd.f32 %v6144, %v6157
  %v6159 = vpop.f32.mrf.mxu0
  %v6160 = vadd.f32 %v6146, %v6159
  %6161 = vdwg.mxu0
  %6162 = vmatpush.bf16.msra.mxu0 0
  %6163 = vmatpush.bf16.msra.mxu0 0
  %6164 = vmatpush.bf16.msra.mxu0 0
  %6165 = vmatpush.bf16.msra.mxu0 0
  %6166 = vmatpush.bf16.msra.mxu0 0
  %6167 = vmatpush.bf16.msra.mxu0 0
  %6168 = vmatpush.bf16.msra.mxu0 %v6052
  %6169 = vmatpush.bf16.msra.mxu0 %v6050
  %6170 = vmatmul.bf16.gmra.mxu0 %v6090
  %v6171 = vpop.f32.mrf.mxu0
  %v6172 = vadd.f32 %v6158, %v6171
  %v6173 = vpop.f32.mrf.mxu0
  %v6174 = vadd.f32 %v6160, %v6173
  %6175 = vdwg.mxu0
  %v6176 = vadd.f32 %v5797, %v6130
  %v6177 = vadd.f32 %v5839, %v6172
  %v6178 = vadd.f32 %v5799, %v6132
  %v6179 = vadd.f32 %v5841, %v6174
  %v6181 = vperm.slane %v555, 0
  %v6182 = vperm.slane %v555, 1
  %v6185 = vadd.f32 %v6176, %v6181
  %v6186 = vadd.f32 %v6177, %v6182
  %v6187 = vadd.f32 %v6178, %v6181
  %v6188 = vadd.f32 %v6179, %v6182
  %v6189 = vmax.f32 %v6185, 0.0
  %v6190 = vmax.f32 %v6186, 0.0
  %v6191 = vmax.f32 %v6187, 0.0
  %v6192 = vmax.f32 %v6188, 0.0
  %v6193 = vld [vmem:[#allocation3 + $0x30] sm:$0xfc]
  %v6194 = vld [vmem:[#allocation3 + $0x38] sm:$0xfc]
  %v6195 = vld [vmem:[#allocation3 + $0x40] sm:$0xfc]
  %v6196 = vld [vmem:[#allocation3 + $0x48] sm:$0xff]
  %v6197 = vld [vmem:[#allocation3 + $0x50] sm:$0xff]
  %v6198 = vld [vmem:[#allocation3 + $0x58] sm:$0xff]
  %v6199 = vld [vmem:[#allocation3 + $0x60] sm:$0x3]
  %v6200 = vld [vmem:[#allocation3 + $0x68] sm:$0x3]
  %v6201 = vld [vmem:[#allocation3 + $0x70] sm:$0x3]
  %v6202 = vpack.c.bf16 %v6196, %v6193
  %v6203 = vpack.c.bf16 %v6197, %v6194
  %v6204 = vpack.c.bf16 %v6198, %v6195
  %v6205 = vpack.c.bf16 %v6199, %v6199
  %v6206 = vpack.c.bf16 %v6200, %v6200
  %v6207 = vpack.c.bf16 %v6201, %v6201
  %v6208 = vld [vmem:[#allocation3 + $0x30] sm:$0xf8]
  %v6209 = vld [vmem:[#allocation3 + $0x38] sm:$0xf8]
  %v6210 = vld [vmem:[#allocation3 + $0x40] sm:$0xf8]
  %v6211 = vld [vmem:[#allocation3 + $0x60] sm:$0x7]
  %v6212 = vld [vmem:[#allocation3 + $0x68] sm:$0x7]
  %v6213 = vld [vmem:[#allocation3 + $0x70] sm:$0x7]
  %v6214 = vpack.c.bf16 %v6196, %v6208
  %v6215 = vpack.c.bf16 %v6197, %v6209
  %v6216 = vpack.c.bf16 %v6198, %v6210
  %v6217 = vpack.c.bf16 %v6211, %v6211
  %v6218 = vpack.c.bf16 %v6212, %v6212
  %v6219 = vpack.c.bf16 %v6213, %v6213
  %v6221 = vshrl.u32 %v6214, 16
  %v6223 = vrot.slane %v6221, 1
  %v6224 = vshll.u32 %v6214, 16
  %v6226 = vrot.slane %v6224, 2
  %v6227 = vor.u32 %v6223, %v6226
  %v6229 = vshrl.u32 %v6217, 16
  %v6231 = vrot.slane %v6229, 1
  %v6232 = vshll.u32 %v6217, 16
  %v6234 = vrot.slane %v6232, 2
  %v6235 = vor.u32 %v6231, %v6234
  %v6236 = vsel %vm3581, %v6227, %v6235
  %v6238 = vshrl.u32 %v6215, 16
  %v6240 = vrot.slane %v6238, 1
  %v6241 = vshll.u32 %v6215, 16
  %v6243 = vrot.slane %v6241, 2
  %v6244 = vor.u32 %v6240, %v6243
  %v6246 = vshrl.u32 %v6218, 16
  %v6248 = vrot.slane %v6246, 1
  %v6249 = vshll.u32 %v6218, 16
  %v6251 = vrot.slane %v6249, 2
  %v6252 = vor.u32 %v6248, %v6251
  %v6253 = vsel %vm3581, %v6244, %v6252
  %v6255 = vshrl.u32 %v6216, 16
  %v6257 = vrot.slane %v6255, 1
  %v6258 = vshll.u32 %v6216, 16
  %v6260 = vrot.slane %v6258, 2
  %v6261 = vor.u32 %v6257, %v6260
  %v6263 = vshrl.u32 %v6219, 16
  %v6265 = vrot.slane %v6263, 1
  %v6266 = vshll.u32 %v6219, 16
  %v6268 = vrot.slane %v6266, 2
  %v6269 = vor.u32 %v6265, %v6268
  %v6270 = vsel %vm3581, %v6261, %v6269
  %v6274 = vsel %vm4421, %v6270, 0
  %6276 = vmatpush.bf16.msra.mxu0 %v5431
  %6277 = vmatpush.bf16.msra.mxu0 %v5429
  %6278 = vmatpush.bf16.msra.mxu0 %v5427
  %6279 = vmatpush.bf16.msra.mxu0 %v5425
  %6280 = vmatpush.bf16.msra.mxu0 %v5423
  %6281 = vmatpush.bf16.msra.mxu0 %v5421
  %6282 = vmatpush.bf16.msra.mxu0 %v5419
  %6283 = vmatpush.bf16.msra.mxu0 %v5417
  %6284 = vmatmul.bf16.gmra.mxu0 %v6236
  %v6285 = vpop.f32.mrf.mxu0
  %v6286 = vadd.f32 0.0, %v6285
  %v6287 = vpop.f32.mrf.mxu0
  %v6288 = vadd.f32 0.0, %v6287
  %6289 = vdwg.mxu0
  %6290 = vmatpush.bf16.msra.mxu0 %v5447
  %6291 = vmatpush.bf16.msra.mxu0 %v5445
  %6292 = vmatpush.bf16.msra.mxu0 %v5443
  %6293 = vmatpush.bf16.msra.mxu0 %v5441
  %6294 = vmatpush.bf16.msra.mxu0 %v5439
  %6295 = vmatpush.bf16.msra.mxu0 %v5437
  %6296 = vmatpush.bf16.msra.mxu0 %v5435
  %6297 = vmatpush.bf16.msra.mxu0 %v5433
  %6298 = vmatmul.bf16.gmra.mxu0 %v6253
  %v6299 = vpop.f32.mrf.mxu0
  %v6300 = vadd.f32 %v6286, %v6299
  %v6301 = vpop.f32.mrf.mxu0
  %v6302 = vadd.f32 %v6288, %v6301
  %6303 = vdwg.mxu0
  %6304 = vmatpush.bf16.msra.mxu0 0
  %6305 = vmatpush.bf16.msra.mxu0 0
  %6306 = vmatpush.bf16.msra.mxu0 0
  %6307 = vmatpush.bf16.msra.mxu0 0
  %6308 = vmatpush.bf16.msra.mxu0 0
  %6309 = vmatpush.bf16.msra.mxu0 0
  %6310 = vmatpush.bf16.msra.mxu0 %v5451
  %6311 = vmatpush.bf16.msra.mxu0 %v5449
  %6312 = vmatmul.bf16.gmra.mxu0 %v6274
  %v6313 = vpop.f32.mrf.mxu0
  %v6314 = vadd.f32 %v6300, %v6313
  %v6315 = vpop.f32.mrf.mxu0
  %v6316 = vadd.f32 %v6302, %v6315
  %6317 = vdwg.mxu0
  %6318 = vmatpush.bf16.msra.mxu0 %v5432
  %6319 = vmatpush.bf16.msra.mxu0 %v5430
  %6320 = vmatpush.bf16.msra.mxu0 %v5428
  %6321 = vmatpush.bf16.msra.mxu0 %v5426
  %6322 = vmatpush.bf16.msra.mxu0 %v5424
  %6323 = vmatpush.bf16.msra.mxu0 %v5422
  %6324 = vmatpush.bf16.msra.mxu0 %v5420
  %6325 = vmatpush.bf16.msra.mxu0 %v5418
  %6326 = vmatmul.bf16.gmra.mxu0 %v6236
  %v6327 = vpop.f32.mrf.mxu0
  %v6328 = vadd.f32 0.0, %v6327
  %v6329 = vpop.f32.mrf.mxu0
  %v6330 = vadd.f32 0.0, %v6329
  %6331 = vdwg.mxu0
  %6332 = vmatpush.bf16.msra.mxu0 %v5448
  %6333 = vmatpush.bf16.msra.mxu0 %v5446
  %6334 = vmatpush.bf16.msra.mxu0 %v5444
  %6335 = vmatpush.bf16.msra.mxu0 %v5442
  %6336 = vmatpush.bf16.msra.mxu0 %v5440
  %6337 = vmatpush.bf16.msra.mxu0 %v5438
  %6338 = vmatpush.bf16.msra.mxu0 %v5436
  %6339 = vmatpush.bf16.msra.mxu0 %v5434
  %6340 = vmatmul.bf16.gmra.mxu0 %v6253
  %v6341 = vpop.f32.mrf.mxu0
  %v6342 = vadd.f32 %v6328, %v6341
  %v6343 = vpop.f32.mrf.mxu0
  %v6344 = vadd.f32 %v6330, %v6343
  %6345 = vdwg.mxu0
  %6346 = vmatpush.bf16.msra.mxu0 0
  %6347 = vmatpush.bf16.msra.mxu0 0
  %6348 = vmatpush.bf16.msra.mxu0 0
  %6349 = vmatpush.bf16.msra.mxu0 0
  %6350 = vmatpush.bf16.msra.mxu0 0
  %6351 = vmatpush.bf16.msra.mxu0 0
  %6352 = vmatpush.bf16.msra.mxu0 %v5452
  %6353 = vmatpush.bf16.msra.mxu0 %v5450
  %6354 = vmatmul.bf16.gmra.mxu0 %v6274
  %v6355 = vpop.f32.mrf.mxu0
  %v6356 = vadd.f32 %v6342, %v6355
  %v6357 = vpop.f32.mrf.mxu0
  %v6358 = vadd.f32 %v6344, %v6357
  %6359 = vdwg.mxu0
  %v6366 = vrot.slane %v6202, 1
  %v6367 = vrot.slane %v6205, 1
  %v6368 = vsel %vm2702, %v6366, %v6367
  %v6369 = vrot.slane %v6203, 1
  %v6370 = vrot.slane %v6206, 1
  %v6371 = vsel %vm2702, %v6369, %v6370
  %v6372 = vrot.slane %v6204, 1
  %v6373 = vrot.slane %v6207, 1
  %v6374 = vsel %vm2702, %v6372, %v6373
  %v6378 = vsel %vm4421, %v6374, 0
  %6380 = vmatpush.bf16.msra.mxu0 %v5698
  %6381 = vmatpush.bf16.msra.mxu0 %v5696
  %6382 = vmatpush.bf16.msra.mxu0 %v5694
  %6383 = vmatpush.bf16.msra.mxu0 %v5692
  %6384 = vmatpush.bf16.msra.mxu0 %v5690
  %6385 = vmatpush.bf16.msra.mxu0 %v5688
  %6386 = vmatpush.bf16.msra.mxu0 %v5686
  %6387 = vmatpush.bf16.msra.mxu0 %v5684
  %6388 = vmatmul.bf16.gmra.mxu0 %v6368
  %v6389 = vpop.f32.mrf.mxu0
  %v6390 = vadd.f32 %v6314, %v6389
  %v6391 = vpop.f32.mrf.mxu0
  %v6392 = vadd.f32 %v6316, %v6391
  %6393 = vdwg.mxu0
  %6394 = vmatpush.bf16.msra.mxu0 %v5714
  %6395 = vmatpush.bf16.msra.mxu0 %v5712
  %6396 = vmatpush.bf16.msra.mxu0 %v5710
  %6397 = vmatpush.bf16.msra.mxu0 %v5708
  %6398 = vmatpush.bf16.msra.mxu0 %v5706
  %6399 = vmatpush.bf16.msra.mxu0 %v5704
  %6400 = vmatpush.bf16.msra.mxu0 %v5702
  %6401 = vmatpush.bf16.msra.mxu0 %v5700
  %6402 = vmatmul.bf16.gmra.mxu0 %v6371
  %v6403 = vpop.f32.mrf.mxu0
  %v6404 = vadd.f32 %v6390, %v6403
  %v6405 = vpop.f32.mrf.mxu0
  %v6406 = vadd.f32 %v6392, %v6405
  %6407 = vdwg.mxu0
  %6408 = vmatpush.bf16.msra.mxu0 0
  %6409 = vmatpush.bf16.msra.mxu0 0
  %6410 = vmatpush.bf16.msra.mxu0 0
  %6411 = vmatpush.bf16.msra.mxu0 0
  %6412 = vmatpush.bf16.msra.mxu0 0
  %6413 = vmatpush.bf16.msra.mxu0 0
  %6414 = vmatpush.bf16.msra.mxu0 %v5718
  %6415 = vmatpush.bf16.msra.mxu0 %v5716
  %6416 = vmatmul.bf16.gmra.mxu0 %v6378
  %v6417 = vpop.f32.mrf.mxu0
  %v6418 = vadd.f32 %v6404, %v6417
  %v6419 = vpop.f32.mrf.mxu0
  %v6420 = vadd.f32 %v6406, %v6419
  %6421 = vdwg.mxu0
  %6422 = vmatpush.bf16.msra.mxu0 %v5699
  %6423 = vmatpush.bf16.msra.mxu0 %v5697
  %6424 = vmatpush.bf16.msra.mxu0 %v5695
  %6425 = vmatpush.bf16.msra.mxu0 %v5693
  %6426 = vmatpush.bf16.msra.mxu0 %v5691
  %6427 = vmatpush.bf16.msra.mxu0 %v5689
  %6428 = vmatpush.bf16.msra.mxu0 %v5687
  %6429 = vmatpush.bf16.msra.mxu0 %v5685
  %6430 = vmatmul.bf16.gmra.mxu0 %v6368
  %v6431 = vpop.f32.mrf.mxu0
  %v6432 = vadd.f32 %v6356, %v6431
  %v6433 = vpop.f32.mrf.mxu0
  %v6434 = vadd.f32 %v6358, %v6433
  %6435 = vdwg.mxu0
  %6436 = vmatpush.bf16.msra.mxu0 %v5715
  %6437 = vmatpush.bf16.msra.mxu0 %v5713
  %6438 = vmatpush.bf16.msra.mxu0 %v5711
  %6439 = vmatpush.bf16.msra.mxu0 %v5709
  %6440 = vmatpush.bf16.msra.mxu0 %v5707
  %6441 = vmatpush.bf16.msra.mxu0 %v5705
  %6442 = vmatpush.bf16.msra.mxu0 %v5703
  %6443 = vmatpush.bf16.msra.mxu0 %v5701
  %6444 = vmatmul.bf16.gmra.mxu0 %v6371
  %v6445 = vpop.f32.mrf.mxu0
  %v6446 = vadd.f32 %v6432, %v6445
  %v6447 = vpop.f32.mrf.mxu0
  %v6448 = vadd.f32 %v6434, %v6447
  %6449 = vdwg.mxu0
  %6450 = vmatpush.bf16.msra.mxu0 0
  %6451 = vmatpush.bf16.msra.mxu0 0
  %6452 = vmatpush.bf16.msra.mxu0 0
  %6453 = vmatpush.bf16.msra.mxu0 0
  %6454 = vmatpush.bf16.msra.mxu0 0
  %6455 = vmatpush.bf16.msra.mxu0 0
  %6456 = vmatpush.bf16.msra.mxu0 %v5719
  %6457 = vmatpush.bf16.msra.mxu0 %v5717
  %6458 = vmatmul.bf16.gmra.mxu0 %v6378
  %v6459 = vpop.f32.mrf.mxu0
  %v6460 = vadd.f32 %v6446, %v6459
  %v6461 = vpop.f32.mrf.mxu0
  %v6462 = vadd.f32 %v6448, %v6461
  %6463 = vdwg.mxu0
  %v6464 = vld [vmem:[#allocation3 + $0x30] sm:$0xf0]
  %v6465 = vld [vmem:[#allocation3 + $0x38] sm:$0xf0]
  %v6466 = vld [vmem:[#allocation3 + $0x40] sm:$0xf0]
  %v6467 = vld [vmem:[#allocation3 + $0x60] sm:$0xf]
  %v6468 = vld [vmem:[#allocation3 + $0x68] sm:$0xf]
  %v6469 = vld [vmem:[#allocation3 + $0x70] sm:$0xf]
  %v6470 = vpack.c.bf16 %v6196, %v6464
  %v6471 = vpack.c.bf16 %v6197, %v6465
  %v6472 = vpack.c.bf16 %v6198, %v6466
  %v6473 = vpack.c.bf16 %v6467, %v6467
  %v6474 = vpack.c.bf16 %v6468, %v6468
  %v6475 = vpack.c.bf16 %v6469, %v6469
  %v6482 = vrot.slane %v6470, 2
  %v6483 = vrot.slane %v6473, 2
  %v6484 = vsel %vm4156, %v6482, %v6483
  %v6485 = vrot.slane %v6471, 2
  %v6486 = vrot.slane %v6474, 2
  %v6487 = vsel %vm4156, %v6485, %v6486
  %v6488 = vrot.slane %v6472, 2
  %v6489 = vrot.slane %v6475, 2
  %v6490 = vsel %vm4156, %v6488, %v6489
  %v6494 = vsel %vm4421, %v6490, 0
  %6496 = vmatpush.bf16.msra.mxu0 %v6031
  %6497 = vmatpush.bf16.msra.mxu0 %v6029
  %6498 = vmatpush.bf16.msra.mxu0 %v6027
  %6499 = vmatpush.bf16.msra.mxu0 %v6025
  %6500 = vmatpush.bf16.msra.mxu0 %v6023
  %6501 = vmatpush.bf16.msra.mxu0 %v6021
  %6502 = vmatpush.bf16.msra.mxu0 %v6019
  %6503 = vmatpush.bf16.msra.mxu0 %v6017
  %6504 = vmatmul.bf16.gmra.mxu0 %v6484
  %v6505 = vpop.f32.mrf.mxu0
  %v6506 = vadd.f32 0.0, %v6505
  %v6507 = vpop.f32.mrf.mxu0
  %v6508 = vadd.f32 0.0, %v6507
  %6509 = vdwg.mxu0
  %6510 = vmatpush.bf16.msra.mxu0 %v6047
  %6511 = vmatpush.bf16.msra.mxu0 %v6045
  %6512 = vmatpush.bf16.msra.mxu0 %v6043
  %6513 = vmatpush.bf16.msra.mxu0 %v6041
  %6514 = vmatpush.bf16.msra.mxu0 %v6039
  %6515 = vmatpush.bf16.msra.mxu0 %v6037
  %6516 = vmatpush.bf16.msra.mxu0 %v6035
  %6517 = vmatpush.bf16.msra.mxu0 %v6033
  %6518 = vmatmul.bf16.gmra.mxu0 %v6487
  %v6519 = vpop.f32.mrf.mxu0
  %v6520 = vadd.f32 %v6506, %v6519
  %v6521 = vpop.f32.mrf.mxu0
  %v6522 = vadd.f32 %v6508, %v6521
  %6523 = vdwg.mxu0
  %6524 = vmatpush.bf16.msra.mxu0 0
  %6525 = vmatpush.bf16.msra.mxu0 0
  %6526 = vmatpush.bf16.msra.mxu0 0
  %6527 = vmatpush.bf16.msra.mxu0 0
  %6528 = vmatpush.bf16.msra.mxu0 0
  %6529 = vmatpush.bf16.msra.mxu0 0
  %6530 = vmatpush.bf16.msra.mxu0 %v6051
  %6531 = vmatpush.bf16.msra.mxu0 %v6049
  %6532 = vmatmul.bf16.gmra.mxu0 %v6494
  %v6533 = vpop.f32.mrf.mxu0
  %v6534 = vadd.f32 %v6520, %v6533
  %v6535 = vpop.f32.mrf.mxu0
  %v6536 = vadd.f32 %v6522, %v6535
  %6537 = vdwg.mxu0
  %6538 = vmatpush.bf16.msra.mxu0 %v6032
  %6539 = vmatpush.bf16.msra.mxu0 %v6030
  %6540 = vmatpush.bf16.msra.mxu0 %v6028
  %6541 = vmatpush.bf16.msra.mxu0 %v6026
  %6542 = vmatpush.bf16.msra.mxu0 %v6024
  %6543 = vmatpush.bf16.msra.mxu0 %v6022
  %6544 = vmatpush.bf16.msra.mxu0 %v6020
  %6545 = vmatpush.bf16.msra.mxu0 %v6018
  %6546 = vmatmul.bf16.gmra.mxu0 %v6484
  %v6547 = vpop.f32.mrf.mxu0
  %v6548 = vadd.f32 0.0, %v6547
  %v6549 = vpop.f32.mrf.mxu0
  %v6550 = vadd.f32 0.0, %v6549
  %6551 = vdwg.mxu0
  %6552 = vmatpush.bf16.msra.mxu0 %v6048
  %6553 = vmatpush.bf16.msra.mxu0 %v6046
  %6554 = vmatpush.bf16.msra.mxu0 %v6044
  %6555 = vmatpush.bf16.msra.mxu0 %v6042
  %6556 = vmatpush.bf16.msra.mxu0 %v6040
  %6557 = vmatpush.bf16.msra.mxu0 %v6038
  %6558 = vmatpush.bf16.msra.mxu0 %v6036
  %6559 = vmatpush.bf16.msra.mxu0 %v6034
  %6560 = vmatmul.bf16.gmra.mxu0 %v6487
  %v6561 = vpop.f32.mrf.mxu0
  %v6562 = vadd.f32 %v6548, %v6561
  %v6563 = vpop.f32.mrf.mxu0
  %v6564 = vadd.f32 %v6550, %v6563
  %6565 = vdwg.mxu0
  %6566 = vmatpush.bf16.msra.mxu0 0
  %6567 = vmatpush.bf16.msra.mxu0 0
  %6568 = vmatpush.bf16.msra.mxu0 0
  %6569 = vmatpush.bf16.msra.mxu0 0
  %6570 = vmatpush.bf16.msra.mxu0 0
  %6571 = vmatpush.bf16.msra.mxu0 0
  %6572 = vmatpush.bf16.msra.mxu0 %v6052
  %6573 = vmatpush.bf16.msra.mxu0 %v6050
  %6574 = vmatmul.bf16.gmra.mxu0 %v6494
  %v6575 = vpop.f32.mrf.mxu0
  %v6576 = vadd.f32 %v6562, %v6575
  %v6577 = vpop.f32.mrf.mxu0
  %v6578 = vadd.f32 %v6564, %v6577
  %6579 = vdwg.mxu0
  %v6580 = vadd.f32 %v6418, %v6534
  %v6581 = vadd.f32 %v6460, %v6576
  %v6582 = vadd.f32 %v6420, %v6536
  %v6583 = vadd.f32 %v6462, %v6578
  %v6584 = vadd.f32 %v6580, %v6181
  %v6585 = vadd.f32 %v6581, %v6182
  %v6586 = vadd.f32 %v6582, %v6181
  %v6587 = vadd.f32 %v6583, %v6182
  %v6588 = vmax.f32 %v6584, 0.0
  %v6589 = vmax.f32 %v6585, 0.0
  %v6590 = vmax.f32 %v6586, 0.0
  %v6591 = vmax.f32 %v6587, 0.0
  %v6592 = vadd.f32 %v6189, %v6191
  %v6593 = vrot.slane %v6592, 4
  %v6594 = vadd.f32 %v6592, %v6593
  %v6595 = vrot.slane %v6594, 2
  %v6596 = vadd.f32 %v6594, %v6595
  %v6597 = vrot.slane %v6596, 1
  %v6598 = vadd.f32 %v6596, %v6597
  %v6599 = vadd.f32 %v6190, %v6192
  %v6600 = vrot.slane %v6599, 4
  %v6601 = vadd.f32 %v6599, %v6600
  %v6602 = vrot.slane %v6601, 2
  %v6603 = vadd.f32 %v6601, %v6602
  %v6604 = vrot.slane %v6603, 1
  %v6605 = vadd.f32 %v6603, %v6604
  %v6606 = vadd.f32 %v6588, %v6590
  %v6607 = vrot.slane %v6606, 4
  %v6608 = vadd.f32 %v6606, %v6607
  %v6609 = vrot.slane %v6608, 2
  %v6610 = vadd.f32 %v6608, %v6609
  %v6611 = vrot.slane %v6610, 1
  %v6612 = vadd.f32 %v6610, %v6611
  %v6613 = vadd.f32 %v6589, %v6591
  %v6614 = vrot.slane %v6613, 4
  %v6615 = vadd.f32 %v6613, %v6614
  %v6616 = vrot.slane %v6615, 2
  %v6617 = vadd.f32 %v6615, %v6616
  %v6618 = vrot.slane %v6617, 1
  %v6619 = vadd.f32 %v6617, %v6618
  %v6620 = vadd.f32 %v6598, %v6612
  %v6621 = vadd.f32 %v6605, %v6619
  %v6622 = vld [vmem:[%s6] sm:$0xff]
  %v6623 = vld [vmem:[%s6 + $0x8] sm:$0xff]
  %v6624 = vld [vmem:[%s6 + $0x10] sm:$0xff]
  %v6625 = vld [vmem:[%s6 + $0x18] sm:$0xff]
  %v6626 = vld [vmem:[%s6 + $0x20] sm:$0xff]
  %v6627 = vld [vmem:[%s6 + $0x28] sm:$0xff]
  %v6628 = vld [vmem:[%s6 + $0x30] sm:$0xff]
  %v6629 = vld [vmem:[%s6 + $0x38] sm:$0xff]
  %v6630 = vld [vmem:[%s6 + $0x40] sm:$0xff]
  %v6631 = vld [vmem:[%s6 + $0x48] sm:$0xff]
  %v6632 = vld [vmem:[%s6 + $0x50] sm:$0xff]
  %v6633 = vld [vmem:[%s6 + $0x58] sm:$0xff]
  %v6634 = vld [vmem:[%s6 + $0x60] sm:$0xff]
  %v6635 = vld [vmem:[%s6 + $0x68] sm:$0xff]
  %v6636 = vld [vmem:[%s6 + $0x70] sm:$0xff]
  %v6637 = vld [vmem:[%s6 + $0x78] sm:$0xff]
  %v6638 = vld [vmem:[%s6 + $0x80] sm:$0xff]
  %v6639 = vld [vmem:[%s6 + $0x88] sm:$0xff]
  %v6640 = vld [vmem:[%s6 + $0x90] sm:$0xff]
  %v6641 = vld [vmem:[%s6 + $0x98] sm:$0xff]
  %v6642 = vld [vmem:[%s6 + $0xa0] sm:$0xff]
  %v6643 = vld [vmem:[%s6 + $0xa8] sm:$0xff]
  %v6644 = vld [vmem:[%s6 + $0xb0] sm:$0xff]
  %v6645 = vld [vmem:[%s6 + $0xb8] sm:$0xff]
  %v6646 = vld [vmem:[%s6 + $0xc0] sm:$0xff]
  %v6647 = vld [vmem:[%s6 + $0xc8] sm:$0xff]
  %v6648 = vld [vmem:[%s6 + $0xd0] sm:$0xff]
  %v6649 = vld [vmem:[%s6 + $0xd8] sm:$0xff]
  %v6650 = vld [vmem:[%s6 + $0xe0] sm:$0xff]
  %v6651 = vld [vmem:[%s6 + $0xe8] sm:$0xff]
  %v6652 = vld [vmem:[%s6 + $0xf0] sm:$0xff]
  %v6653 = vld [vmem:[%s6 + $0xf8] sm:$0xff]
  %v6654 = vld [vmem:[%s6 + $0x100] sm:$0xff]
  %v6655 = vld [vmem:[%s6 + $0x108] sm:$0xff]
  %v6656 = vld [vmem:[%s6 + $0x110] sm:$0xff]
  %v6657 = vld [vmem:[%s6 + $0x118] sm:$0xff]
  %v6658 = vld [vmem:[%s6 + $0x120] sm:$0xff]
  %v6659 = vld [vmem:[%s6 + $0x128] sm:$0xff]
  %v6660 = vld [vmem:[%s6 + $0x130] sm:$0xff]
  %v6661 = vld [vmem:[%s6 + $0x138] sm:$0xff]
  %v6662 = vld [vmem:[%s6 + $0x140] sm:$0xff]
  %v6663 = vld [vmem:[%s6 + $0x148] sm:$0xff]
  %v6664 = vld [vmem:[%s6 + $0x150] sm:$0xff]
  %v6665 = vld [vmem:[%s6 + $0x158] sm:$0xff]
  %v6666 = vld [vmem:[%s6 + $0x160] sm:$0xff]
  %v6667 = vld [vmem:[%s6 + $0x168] sm:$0xff]
  %v6668 = vld [vmem:[%s6 + $0x170] sm:$0xff]
  %v6669 = vld [vmem:[%s6 + $0x178] sm:$0xff]
  %v6670 = vld [vmem:[%s6 + $0x180] sm:$0xff]
  %v6671 = vld [vmem:[%s6 + $0x188] sm:$0xff]
  %v6672 = vld [vmem:[%s6 + $0x190] sm:$0xff]
  %v6673 = vld [vmem:[%s6 + $0x198] sm:$0xff]
  %v6674 = vld [vmem:[%s6 + $0x1a0] sm:$0xff]
  %v6675 = vld [vmem:[%s6 + $0x1a8] sm:$0xff]
  %v6676 = vld [vmem:[%s6 + $0x1b0] sm:$0xff]
  %v6677 = vld [vmem:[%s6 + $0x1b8] sm:$0xff]
  %v6678 = vld [vmem:[%s6 + $0x1c0] sm:$0xff]
  %v6679 = vld [vmem:[%s6 + $0x1c8] sm:$0xff]
  %v6680 = vld [vmem:[%s6 + $0x1d0] sm:$0xff]
  %v6681 = vld [vmem:[%s6 + $0x1d8] sm:$0xff]
  %v6682 = vld [vmem:[%s6 + $0x1e0] sm:$0xff]
  %v6683 = vld [vmem:[%s6 + $0x1e8] sm:$0xff]
  %v6684 = vld [vmem:[%s6 + $0x1f0] sm:$0xff]
  %v6685 = vld [vmem:[%s6 + $0x1f8] sm:$0xff]
  %6686 = vmatpush.msra.mxu0 %v6652
  %6687 = vmatpush.msra.mxu0 %v6650
  %6688 = vmatpush.msra.mxu0 %v6648
  %6689 = vmatpush.msra.mxu0 %v6646
  %6690 = vmatpush.msra.mxu0 %v6644
  %6691 = vmatpush.msra.mxu0 %v6642
  %6692 = vmatpush.msra.mxu0 %v6640
  %6693 = vmatpush.msra.mxu0 %v6638
  %6694 = vmatpush.msra.mxu0 %v6636
  %6695 = vmatpush.msra.mxu0 %v6634
  %6696 = vmatpush.msra.mxu0 %v6632
  %6697 = vmatpush.msra.mxu0 %v6630
  %6698 = vmatpush.msra.mxu0 %v6628
  %6699 = vmatpush.msra.mxu0 %v6626
  %6700 = vmatpush.msra.mxu0 %v6624
  %6701 = vmatpush.msra.mxu0 %v6622
  %6702 = vmatmul.f32.gmra.mxu0 %v6620
  %v6703 = vpop.f32.mrf.mxu0
  %v6704 = vadd.f32 0.0, %v6703
  %6705 = vdwg.mxu0
  %6706 = vmatpush.msra.mxu0 %v6684
  %6707 = vmatpush.msra.mxu0 %v6682
  %6708 = vmatpush.msra.mxu0 %v6680
  %6709 = vmatpush.msra.mxu0 %v6678
  %6710 = vmatpush.msra.mxu0 %v6676
  %6711 = vmatpush.msra.mxu0 %v6674
  %6712 = vmatpush.msra.mxu0 %v6672
  %6713 = vmatpush.msra.mxu0 %v6670
  %6714 = vmatpush.msra.mxu0 %v6668
  %6715 = vmatpush.msra.mxu0 %v6666
  %6716 = vmatpush.msra.mxu0 %v6664
  %6717 = vmatpush.msra.mxu0 %v6662
  %6718 = vmatpush.msra.mxu0 %v6660
  %6719 = vmatpush.msra.mxu0 %v6658
  %6720 = vmatpush.msra.mxu0 %v6656
  %6721 = vmatpush.msra.mxu0 %v6654
  %6722 = vmatmul.f32.gmra.mxu0 %v6621
  %v6723 = vpop.f32.mrf.mxu0
  %v6724 = vadd.f32 %v6704, %v6723
  %6725 = vdwg.mxu0
  %6726 = vmatpush.msra.mxu0 %v6653
  %6727 = vmatpush.msra.mxu0 %v6651
  %6728 = vmatpush.msra.mxu0 %v6649
  %6729 = vmatpush.msra.mxu0 %v6647
  %6730 = vmatpush.msra.mxu0 %v6645
  %6731 = vmatpush.msra.mxu0 %v6643
  %6732 = vmatpush.msra.mxu0 %v6641
  %6733 = vmatpush.msra.mxu0 %v6639
  %6734 = vmatpush.msra.mxu0 %v6637
  %6735 = vmatpush.msra.mxu0 %v6635
  %6736 = vmatpush.msra.mxu0 %v6633
  %6737 = vmatpush.msra.mxu0 %v6631
  %6738 = vmatpush.msra.mxu0 %v6629
  %6739 = vmatpush.msra.mxu0 %v6627
  %6740 = vmatpush.msra.mxu0 %v6625
  %6741 = vmatpush.msra.mxu0 %v6623
  %6742 = vmatmul.f32.gmra.mxu0 %v6620
  %v6743 = vpop.f32.mrf.mxu0
  %v6744 = vadd.f32 0.0, %v6743
  %6745 = vdwg.mxu0
  %6746 = vmatpush.msra.mxu0 %v6685
  %6747 = vmatpush.msra.mxu0 %v6683
  %6748 = vmatpush.msra.mxu0 %v6681
  %6749 = vmatpush.msra.mxu0 %v6679
  %6750 = vmatpush.msra.mxu0 %v6677
  %6751 = vmatpush.msra.mxu0 %v6675
  %6752 = vmatpush.msra.mxu0 %v6673
  %6753 = vmatpush.msra.mxu0 %v6671
  %6754 = vmatpush.msra.mxu0 %v6669
  %6755 = vmatpush.msra.mxu0 %v6667
  %6756 = vmatpush.msra.mxu0 %v6665
  %6757 = vmatpush.msra.mxu0 %v6663
  %6758 = vmatpush.msra.mxu0 %v6661
  %6759 = vmatpush.msra.mxu0 %v6659
  %6760 = vmatpush.msra.mxu0 %v6657
  %6761 = vmatpush.msra.mxu0 %v6655
  %6762 = vmatmul.f32.gmra.mxu0 %v6621
  %v6763 = vpop.f32.mrf.mxu0
  %v6764 = vadd.f32 %v6744, %v6763
  %6765 = vdwg.mxu0
  %v6766 = vmul.f32 %v6724, 0.00048828125
  %v6767 = vmul.f32 %v6764, 0.00048828125
  %v6768 = vperm.slane %v6766, 0
  %v6769 = vperm.slane %v6767, 0
  %v6770 = vsub.f32 %v6189, %v6768
  %v6771 = vsub.f32 %v6190, %v6769
  %v6772 = vsub.f32 %v6191, %v6768
  %v6773 = vsub.f32 %v6192, %v6769
  %v6774 = vmul.f32 %v6770, %v6770
  %v6775 = vmul.f32 %v6771, %v6771
  %v6776 = vmul.f32 %v6772, %v6772
  %v6777 = vmul.f32 %v6773, %v6773
  %v6778 = vadd.f32 %v6774, %v6776
  %v6779 = vrot.slane %v6778, 4
  %v6780 = vadd.f32 %v6778, %v6779
  %v6781 = vrot.slane %v6780, 2
  %v6782 = vadd.f32 %v6780, %v6781
  %v6783 = vrot.slane %v6782, 1
  %v6784 = vadd.f32 %v6782, %v6783
  %v6785 = vadd.f32 %v6775, %v6777
  %v6786 = vrot.slane %v6785, 4
  %v6787 = vadd.f32 %v6785, %v6786
  %v6788 = vrot.slane %v6787, 2
  %v6789 = vadd.f32 %v6787, %v6788
  %v6790 = vrot.slane %v6789, 1
  %v6791 = vadd.f32 %v6789, %v6790
  %v6792 = vsub.f32 %v6588, %v6768
  %v6793 = vsub.f32 %v6589, %v6769
  %v6794 = vsub.f32 %v6590, %v6768
  %v6795 = vsub.f32 %v6591, %v6769
  %v6796 = vmul.f32 %v6792, %v6792
  %v6797 = vmul.f32 %v6793, %v6793
  %v6798 = vmul.f32 %v6794, %v6794
  %v6799 = vmul.f32 %v6795, %v6795
  %v6800 = vadd.f32 %v6796, %v6798
  %v6801 = vrot.slane %v6800, 4
  %v6802 = vadd.f32 %v6800, %v6801
  %v6803 = vrot.slane %v6802, 2
  %v6804 = vadd.f32 %v6802, %v6803
  %v6805 = vrot.slane %v6804, 1
  %v6806 = vadd.f32 %v6804, %v6805
  %v6807 = vadd.f32 %v6797, %v6799
  %v6808 = vrot.slane %v6807, 4
  %v6809 = vadd.f32 %v6807, %v6808
  %v6810 = vrot.slane %v6809, 2
  %v6811 = vadd.f32 %v6809, %v6810
  %v6812 = vrot.slane %v6811, 1
  %v6813 = vadd.f32 %v6811, %v6812
  %v6814 = vadd.f32 %v6784, %v6806
  %v6815 = vadd.f32 %v6791, %v6813
  %6816 = vmatpush.msra.mxu0 %v6652
  %6817 = vmatpush.msra.mxu0 %v6650
  %6818 = vmatpush.msra.mxu0 %v6648
  %6819 = vmatpush.msra.mxu0 %v6646
  %6820 = vmatpush.msra.mxu0 %v6644
  %6821 = vmatpush.msra.mxu0 %v6642
  %6822 = vmatpush.msra.mxu0 %v6640
  %6823 = vmatpush.msra.mxu0 %v6638
  %6824 = vmatpush.msra.mxu0 %v6636
  %6825 = vmatpush.msra.mxu0 %v6634
  %6826 = vmatpush.msra.mxu0 %v6632
  %6827 = vmatpush.msra.mxu0 %v6630
  %6828 = vmatpush.msra.mxu0 %v6628
  %6829 = vmatpush.msra.mxu0 %v6626
  %6830 = vmatpush.msra.mxu0 %v6624
  %6831 = vmatpush.msra.mxu0 %v6622
  %6832 = vmatmul.f32.gmra.mxu0 %v6814
  %v6833 = vpop.f32.mrf.mxu0
  %v6834 = vadd.f32 0.0, %v6833
  %6835 = vdwg.mxu0
  %6836 = vmatpush.msra.mxu0 %v6684
  %6837 = vmatpush.msra.mxu0 %v6682
  %6838 = vmatpush.msra.mxu0 %v6680
  %6839 = vmatpush.msra.mxu0 %v6678
  %6840 = vmatpush.msra.mxu0 %v6676
  %6841 = vmatpush.msra.mxu0 %v6674
  %6842 = vmatpush.msra.mxu0 %v6672
  %6843 = vmatpush.msra.mxu0 %v6670
  %6844 = vmatpush.msra.mxu0 %v6668
  %6845 = vmatpush.msra.mxu0 %v6666
  %6846 = vmatpush.msra.mxu0 %v6664
  %6847 = vmatpush.msra.mxu0 %v6662
  %6848 = vmatpush.msra.mxu0 %v6660
  %6849 = vmatpush.msra.mxu0 %v6658
  %6850 = vmatpush.msra.mxu0 %v6656
  %6851 = vmatpush.msra.mxu0 %v6654
  %6852 = vmatmul.f32.gmra.mxu0 %v6815
  %v6853 = vpop.f32.mrf.mxu0
  %v6854 = vadd.f32 %v6834, %v6853
  %6855 = vdwg.mxu0
  %6856 = vmatpush.msra.mxu0 %v6653
  %6857 = vmatpush.msra.mxu0 %v6651
  %6858 = vmatpush.msra.mxu0 %v6649
  %6859 = vmatpush.msra.mxu0 %v6647
  %6860 = vmatpush.msra.mxu0 %v6645
  %6861 = vmatpush.msra.mxu0 %v6643
  %6862 = vmatpush.msra.mxu0 %v6641
  %6863 = vmatpush.msra.mxu0 %v6639
  %6864 = vmatpush.msra.mxu0 %v6637
  %6865 = vmatpush.msra.mxu0 %v6635
  %6866 = vmatpush.msra.mxu0 %v6633
  %6867 = vmatpush.msra.mxu0 %v6631
  %6868 = vmatpush.msra.mxu0 %v6629
  %6869 = vmatpush.msra.mxu0 %v6627
  %6870 = vmatpush.msra.mxu0 %v6625
  %6871 = vmatpush.msra.mxu0 %v6623
  %6872 = vmatmul.f32.gmra.mxu0 %v6814
  %v6873 = vpop.f32.mrf.mxu0
  %v6874 = vadd.f32 0.0, %v6873
  %6875 = vdwg.mxu0
  %6876 = vmatpush.msra.mxu0 %v6685
  %6877 = vmatpush.msra.mxu0 %v6683
  %6878 = vmatpush.msra.mxu0 %v6681
  %6879 = vmatpush.msra.mxu0 %v6679
  %6880 = vmatpush.msra.mxu0 %v6677
  %6881 = vmatpush.msra.mxu0 %v6675
  %6882 = vmatpush.msra.mxu0 %v6673
  %6883 = vmatpush.msra.mxu0 %v6671
  %6884 = vmatpush.msra.mxu0 %v6669
  %6885 = vmatpush.msra.mxu0 %v6667
  %6886 = vmatpush.msra.mxu0 %v6665
  %6887 = vmatpush.msra.mxu0 %v6663
  %6888 = vmatpush.msra.mxu0 %v6661
  %6889 = vmatpush.msra.mxu0 %v6659
  %6890 = vmatpush.msra.mxu0 %v6657
  %6891 = vmatpush.msra.mxu0 %v6655
  %6892 = vmatmul.f32.gmra.mxu0 %v6815
  %v6893 = vpop.f32.mrf.mxu0
  %v6894 = vadd.f32 %v6874, %v6893
  %6895 = vdwg.mxu0
  %v6896 = vmul.f32 %v6854, 0.00048828125
  %v6897 = vmul.f32 %v6894, 0.00048828125
  %v6898 = vadd.f32 %v6896, 1e-05
  %v6899 = vadd.f32 %v6897, 1e-05
  %v6900 = vrsqrt.pop %v6898
  %v6901 = vmul.f32 %v6900, %v6898
  %v6902 = vmul.f32 %v6901, %v6900
  %v6903 = vmul.f32 0.5, %v6902
  %v6904 = vsub.f32 1.5, %v6903
  %v6905 = vmul.f32 %v6900, %v6904
  %vm6906 = vweird.f32 %v6898
  %vm6907 = vweird.f32 %v6900
  %vm6908 = vmor %vm6906, %vm6907
  %v6909 = vsel %vm6908, %v6900, %v6905
  %v6910 = vrsqrt.pop %v6899
  %v6911 = vmul.f32 %v6910, %v6899
  %v6912 = vmul.f32 %v6911, %v6910
  %v6913 = vmul.f32 0.5, %v6912
  %v6914 = vsub.f32 1.5, %v6913
  %v6915 = vmul.f32 %v6910, %v6914
  %vm6916 = vweird.f32 %v6899
  %vm6917 = vweird.f32 %v6910
  %vm6918 = vmor %vm6916, %vm6917
  %v6919 = vsel %vm6918, %v6910, %v6915
  %v6922 = vrot.slane %v6919, 7
  %v6923 = vsel %vm436, %v6909, %v6922
  %v6925 = vmul.f32 %v557, %v6923
  %v6927 = vperm.slane %v6925, 0
  %v6928 = vperm.slane %v6925, 1
  %v6931 = vmul.f32 %v6770, %v6927
  %v6932 = vmul.f32 %v6771, %v6928
  %v6933 = vmul.f32 %v6772, %v6927
  %v6934 = vmul.f32 %v6773, %v6928
  %v6936 = vperm.slane %v559, 0
  %v6937 = vperm.slane %v559, 1
  %v6940 = vadd.f32 %v6931, %v6936
  %v6941 = vadd.f32 %v6932, %v6937
  %v6942 = vadd.f32 %v6933, %v6936
  %v6943 = vadd.f32 %v6934, %v6937
  %v6944 = vmul.f32 %v6792, %v6927
  %v6945 = vmul.f32 %v6793, %v6928
  %v6946 = vmul.f32 %v6794, %v6927
  %v6947 = vmul.f32 %v6795, %v6928
  %v6948 = vadd.f32 %v6944, %v6936
  %v6949 = vadd.f32 %v6945, %v6937
  %v6950 = vadd.f32 %v6946, %v6936
  %v6951 = vadd.f32 %v6947, %v6937
  %6952 = vst [vmem:[%s8] sm:$0xff] %v6940
  %6953 = vst [vmem:[%s8 + $0x8] sm:$0xff] %v6941
  %6954 = vst [vmem:[%s8 + $0x10] sm:$0xff] %v6942
  %6955 = vst [vmem:[%s8 + $0x18] sm:$0xff] %v6943
  %6956 = vst [vmem:[%s8 + $0x20] sm:$0xff] %v6948
  %6957 = vst [vmem:[%s8 + $0x28] sm:$0xff] %v6949
  %6958 = vst [vmem:[%s8 + $0x30] sm:$0xff] %v6950
  %6959 = vst [vmem:[%s8 + $0x38] sm:$0xff] %v6951
  // Predicated region
  $region34: #{decoder_forward.1} parent=0 // pred_check
    _
  $region35: #{decoder_forward.1} parent=0 // pred_check_branch
    %6961 = sbr.rel (0) target = $region37
  $region36: #{decoder_forward.1} parent=0 // pred_region
    _
  $region37: #{decoder_forward.1} parent=0 // pred_fallthru
    _
  // Predicated region
  $region38: #{decoder_forward.1} parent=0 // pred_check
    _
  $region39: #{decoder_forward.1} parent=0 // pred_check_branch
    %6963 = sbr.rel (0) target = $region41
  $region40: #{decoder_forward.1} parent=0 // pred_region
    _
  $region41: #{decoder_forward.1} parent=0 // pred_fallthru
    _

</llo_original>
